<compile_context>
chip_gen: v6e
topology: v6e:2x2x1
jax: 0.10.0
libtpu: 0.0.40
codegen_flags: <defaults>
</compile_context>

<pallas_src>
import math
from functools import partial

import jax
import jax.numpy as jnp
from jax import lax
from jax.experimental import pallas as pl
from jax.experimental.pallas import tpu as pltpu

# Hyper-parameters hard-wired by the module.
N_STOCKS = 9
SEQ = 36
FEAT = 7
D = 128
HEADS = 2
DH = D // HEADS
FF = 2048
FF_CHUNK = 512
LN_EPS = 1e-5
BN_EPS = 1e-5
ATTN_SCALE = 1.0 / math.sqrt(DH)
NEG_INF = -1e30
PAD = 8  # aligned sublane padding used for the conv slabs


def _layer_norm(v, g, b):
    mu = jnp.mean(v, axis=-1, keepdims=True)
    var = jnp.mean((v - mu) ** 2, axis=-1, keepdims=True)
    return (v - mu) * lax.rsqrt(var + LN_EPS) * g + b


def _fused_kernel(
    # data
    xg_ref, xcp_ref,
    # structure masks / pooling matrices (built once in the wrapper, tiny)
    cm1_ref, cm2_ref, gmask_ref, amask_ref, msum_ref,
    # conv / gcn weights
    w1k_ref, b1_ref, w2k_ref, b2_ref,
    g1w_ref, g1b_ref, g2w_ref, g2b_ref,
    # transformer weights, stacked over layers
    win_ref, bin_ref, wout_ref, bout_ref, ln1g_ref, ln1b_ref,
    wff1_ref, bff1_ref, wff2_ref, bff2_ref, ln2g_ref, ln2b_ref,
    # head
    attnw_ref, attnb_ref, fcw_ref, fcb_ref,
    # output
    o_ref,
    # scratch
    y1pad_ref,
    *, num_layers, bs):
    f32 = jnp.float32
    bf16 = jnp.bfloat16

    # ---------------- GCN branch (structured propagation, no dense 72x72 op) --
    # Graph nodes are rows 0..8 of the (B*S, 9) node matrix; sym-normalized
    # all-ones graph + self loops => those rows become their mean, rest identity.
    gmask = gmask_ref[...]                                            # (bs,1)
    h1 = jnp.dot(xg_ref[...].astype(bf16), g1w_ref[...],
                 preferred_element_type=f32)                          # (bs,64)
    m1 = jnp.sum(h1 * gmask, axis=0, keepdims=True) * (1.0 / N_STOCKS)
    h1 = gmask * m1 + (1.0 - gmask) * h1
    h1 = jnp.maximum(h1 + g1b_ref[...], 0.0)
    h2 = jnp.dot(h1.astype(bf16), g2w_ref[...], preferred_element_type=f32)
    m2 = jnp.sum(h2 * gmask, axis=0, keepdims=True) * (1.0 / N_STOCKS)
    h2 = gmask * m2 + (1.0 - gmask) * h2
    x_gcn = jnp.maximum(h2 + g2b_ref[...], 0.0)                       # (bs,128)

    # ---------------- Conv branch (shifted matmuls; stock-mean pre-folded) ----
    acc1 = jnp.zeros((bs, 64), f32)
    for k in range(5):                    # conv1: k=5, pad=2
        win_k = xcp_ref[PAD - 2 + k:PAD - 2 + k + bs, :] * cm1_ref[k]
        acc1 = acc1 + jnp.dot(win_k.astype(bf16), w1k_ref[k],
                              preferred_element_type=f32)
    y1 = acc1 + b1_ref[...]                                           # (bs,64)

    y1pad_ref[...] = jnp.zeros_like(y1pad_ref)                        # zero pad rows
    y1pad_ref[PAD:PAD + bs, :] = y1
    acc2 = jnp.zeros((bs, D), f32)
    for k in range(3):                    # conv2: k=3, pad=1 (BN folded)
        win_k = y1pad_ref[PAD - 1 + k:PAD - 1 + k + bs, :] * cm2_ref[k]
        acc2 = acc2 + jnp.dot(win_k.astype(bf16), w2k_ref[k],
                              preferred_element_type=f32)
    h = acc2 + b2_ref[...]                                            # (bs,128)

    # ---------------- Transformer encoder (post-norm, eval mode) --------------
    amask = amask_ref[...]                                            # (bs,bs)
    for l in range(num_layers):
        hb = h.astype(bf16)
        qkv = jnp.dot(hb, win_ref[l], preferred_element_type=f32) + bin_ref[l]
        a_acc = jnp.zeros((bs, D), f32)
        for hd in range(HEADS):
            q = (qkv[:, hd * DH:(hd + 1) * DH] * ATTN_SCALE).astype(bf16)
            k_ = qkv[:, D + hd * DH:D + (hd + 1) * DH]
            v_ = qkv[:, 2 * D + hd * DH:2 * D + (hd + 1) * DH].astype(bf16)
            s = jnp.dot(q, k_.T.astype(bf16), preferred_element_type=f32) + amask
            m = jnp.max(s, axis=-1, keepdims=True)
            p = jnp.exp(s - m)
            p = p * pl.reciprocal(jnp.sum(p, axis=-1, keepdims=True), approx=True)
            oh = jnp.dot(p.astype(bf16), v_, preferred_element_type=f32)
            a_acc = a_acc + jnp.dot(oh.astype(bf16),
                                    wout_ref[l, hd * DH:(hd + 1) * DH, :],
                                    preferred_element_type=f32)
        h = _layer_norm(h + a_acc + bout_ref[l], ln1g_ref[l], ln1b_ref[l])

        hb = h.astype(bf16)
        f_acc = jnp.zeros((bs, D), f32)
        for c in range(FF // FF_CHUNK):   # chunked FFN hidden dim
            c0 = c * FF_CHUNK
            t = jnp.dot(hb, wff1_ref[l, :, c0:c0 + FF_CHUNK],
                        preferred_element_type=f32) + bff1_ref[l, :, c0:c0 + FF_CHUNK]
            t = jnp.maximum(t, 0.0).astype(bf16)
            f_acc = f_acc + jnp.dot(t, wff2_ref[l, c0:c0 + FF_CHUNK, :],
                                    preferred_element_type=f32)
        h = _layer_norm(h + f_acc + bff2_ref[l], ln2g_ref[l], ln2b_ref[l])

    # ---------------- Head: add GCN feats, attention pooling over seq, fc -----
    xs = h + x_gcn                                                    # (bs,128)
    scores = jnp.sum(xs * attnw_ref[...], axis=-1, keepdims=True) + attnb_ref[...]
    gm = jnp.max(scores, axis=0, keepdims=True)     # global shift; softmax is
    p = jnp.exp(scores - gm)                        # per-batch shift-invariant
    msum = msum_ref[...]                                              # (B,bs)
    num = jnp.dot(msum, xs * p, preferred_element_type=f32)           # (B,128)
    den = jnp.dot(msum, p, preferred_element_type=f32)                # (B,1)
    pooled = num / den
    out = jnp.sum(pooled * fcw_ref[...], axis=-1, keepdims=True) + fcb_ref[...]
    o_ref[...] = jnp.where(out > 0, out, 0.1 * out)                   # LeakyReLU(0.1)


def _prep_inputs(x, params):
    """Tiny JAX-side prep: torch-.view replication, weight transposes, masks."""
    B, N, S, F = x.shape
    BS = B * S
    f32, bf16 = jnp.float32, jnp.bfloat16

    xf = x.astype(f32)
    # GCN node matrix: x.mean(-1).view(B*S, 9)  (same memory reinterpretation)
    xg = jnp.mean(xf, axis=-1).reshape(BS, N)
    # Conv input: stock-mean folded in front of the (affine) conv stack, then
    # the torch .view(B*N, F, S) reinterpretation, channels-last, padded.
    xm = jnp.mean(xf, axis=1)                                  # (B,S,F)
    xc = jnp.transpose(xm.reshape(B, F, S), (0, 2, 1)).reshape(BS, F)
    xcp = jnp.pad(xc, ((PAD, PAD), (0, 0)))                    # (BS+2*PAD, F)

    pos = jnp.arange(BS) % S
    cm1 = jnp.stack([((pos + k - 2 >= 0) & (pos + k - 2 < S)).astype(f32)
                     for k in range(5)])[:, :, None]           # (5,BS,1)
    cm2 = jnp.stack([((pos + k - 1 >= 0) & (pos + k - 1 < S)).astype(f32)
                     for k in range(3)])[:, :, None]           # (3,BS,1)
    gmask = (jnp.arange(BS) < N_STOCKS).astype(f32)[:, None]   # (BS,1)
    bid = jnp.arange(BS) // S
    amask = jnp.where(bid[:, None] == bid[None, :], 0.0, NEG_INF).astype(f32)
    msum = (bid[None, :] == jnp.arange(B)[:, None]).astype(f32)  # (B,BS)

    # Conv weights, tap-major channels-last; eval-mode BN folded into conv2.
    w1k = jnp.transpose(params["conv1_w"], (2, 1, 0)).astype(bf16)       # (5,7,64)
    b1 = params["conv1_b"].reshape(1, -1).astype(f32)
    bn_scale = params["bn_gamma"] / jnp.sqrt(params["bn_var"] + BN_EPS)
    bn_shift = params["bn_beta"] - params["bn_mean"] * bn_scale
    w2k = (jnp.transpose(params["conv2_w"], (2, 1, 0))
           * bn_scale[None, None, :]).astype(bf16)                        # (3,64,128)
    b2 = (params["conv2_b"] * bn_scale + bn_shift).reshape(1, -1).astype(f32)

    g1w = params["gcn1_w"].T.astype(bf16)
    g1b = params["gcn1_b"].reshape(1, -1).astype(f32)
    g2w = params["gcn2_w"].T.astype(bf16)
    g2b = params["gcn2_b"].reshape(1, -1).astype(f32)

    layers = params["layers"]
    stk = lambda key, fn: jnp.stack([fn(ly[key]) for ly in layers])
    win = stk("w_in", lambda w: w.T).astype(bf16)            # (L,128,384)
    bin_ = stk("b_in", lambda b: b.reshape(1, -1)).astype(f32)
    wout = stk("w_out", lambda w: w.T).astype(bf16)          # (L,128,128)
    bout = stk("b_out", lambda b: b.reshape(1, -1)).astype(f32)
    ln1g = stk("ln1_g", lambda b: b.reshape(1, -1)).astype(f32)
    ln1b = stk("ln1_b", lambda b: b.reshape(1, -1)).astype(f32)
    wff1 = stk("w_ff1", lambda w: w.T).astype(bf16)          # (L,128,2048)
    bff1 = stk("b_ff1", lambda b: b.reshape(1, -1)).astype(f32)
    wff2 = stk("w_ff2", lambda w: w.T).astype(bf16)          # (L,2048,128)
    bff2 = stk("b_ff2", lambda b: b.reshape(1, -1)).astype(f32)
    ln2g = stk("ln2_g", lambda b: b.reshape(1, -1)).astype(f32)
    ln2b = stk("ln2_b", lambda b: b.reshape(1, -1)).astype(f32)

    attnw = params["attn_w"].reshape(1, -1).astype(f32)
    attnb = params["attn_b"].reshape(1, 1).astype(f32)
    fcw = params["fc_w"].reshape(1, -1).astype(f32)
    fcb = params["fc_b"].reshape(1, 1).astype(f32)

    # params["adj"] does not influence the output: softmax(adj) is strictly
    # positive, so dense_to_sparse yields the full edge set, and its edge
    # weights are never passed to GCNConv.
    return [xg, xcp, cm1, cm2, gmask, amask, msum,
            w1k, b1, w2k, b2, g1w, g1b, g2w, g2b,
            win, bin_, wout, bout, ln1g, ln1b,
            wff1, bff1, wff2, bff2, ln2g, ln2b,
            attnw, attnb, fcw, fcb]


def graphforecast_pred(x, params):
    B, N, S, F = x.shape
    assert (N, S, F) == (N_STOCKS, SEQ, FEAT)
    bs = B * S
    inputs = _prep_inputs(x, params)
    kern = partial(_fused_kernel, num_layers=len(params["layers"]), bs=bs)
    return pl.pallas_call(
        kern,
        out_shape=jax.ShapeDtypeStruct((B, 1), jnp.float32),
        grid=(1,),
        in_specs=[pl.BlockSpec(a.shape, lambda i, nd=a.ndim: (0,) * nd)
                  for a in inputs],
        out_specs=pl.BlockSpec((B, 1), lambda i: (0, 0)),
        scratch_shapes=[pltpu.VMEM((bs + 2 * PAD, 64), jnp.float32)],
        compiler_params=pltpu.CompilerParams(
            dimension_semantics=("arbitrary",),
            vmem_limit_bytes=32 * 1024 * 1024),
    )(*inputs)


def init_params(key):
    ks = jax.random.split(key, 40)
    it = iter(ks)

    def nrm(shape, scale=0.05):
        return scale * jax.random.normal(next(it), shape, jnp.float32)

    params = dict(
        adj=nrm((N_STOCKS, N_STOCKS), 1.0),   # kept for fidelity; unused numerically
        gcn1_w=nrm((64, N_STOCKS)), gcn1_b=nrm((64,)),
        gcn2_w=nrm((128, 64)), gcn2_b=nrm((128,)),
        conv1_w=nrm((64, FEAT, 5)), conv1_b=nrm((64,)),
        conv2_w=nrm((128, 64, 3)), conv2_b=nrm((128,)),
        bn_gamma=jnp.ones((128,), jnp.float32), bn_beta=jnp.zeros((128,), jnp.float32),
        bn_mean=jnp.zeros((128,), jnp.float32), bn_var=jnp.ones((128,), jnp.float32),
        attn_w=nrm((1, 128)), attn_b=nrm((1,)),
        fc_w=nrm((1, 128)), fc_b=nrm((1,)),
    )
    layers = []
    for _ in range(2):
        layers.append(dict(
            w_in=nrm((3 * D, D)), b_in=nrm((3 * D,)),
            w_out=nrm((D, D)), b_out=nrm((D,)),
            ln1_g=jnp.ones((D,), jnp.float32), ln1_b=jnp.zeros((D,), jnp.float32),
            w_ff1=nrm((FF, D)), b_ff1=nrm((FF,)),
            w_ff2=nrm((D, FF)), b_ff2=nrm((D,)),
            ln2_g=jnp.ones((D,), jnp.float32), ln2_b=jnp.zeros((D,), jnp.float32),
        ))
    params["layers"] = layers
    return params


if __name__ == "__main__":
    key = jax.random.PRNGKey(0)
    pkey, xkey = jax.random.split(key)
    params = init_params(pkey)
    # (batch=2, num_stocks=9, seq_len=36, num_features=7) — fixed by the module.
    x = jax.random.normal(xkey, (2, N_STOCKS, SEQ, FEAT), jnp.float32)
    out = jax.jit(graphforecast_pred)(x, params)
    out = jax.block_until_ready(out)
    assert out.shape == (2, 1) and out.dtype == jnp.float32
    print("KERNEL_OK")
</pallas_src>

<mosaic_0001>
module attributes {stable_mosaic.version = 11 : i64} {
  func.func @_fused_kernel(%arg0: i32, %arg1: memref<72x9xf32, #tpu.memory_space<vmem>>, %arg2: memref<88x7xf32, #tpu.memory_space<vmem>>, %arg3: memref<5x72x1xf32, #tpu.memory_space<vmem>>, %arg4: memref<3x72x1xf32, #tpu.memory_space<vmem>>, %arg5: memref<72x1xf32, #tpu.memory_space<vmem>>, %arg6: memref<72x72xf32, #tpu.memory_space<vmem>>, %arg7: memref<2x72xf32, #tpu.memory_space<vmem>>, %arg8: memref<5x7x64xbf16, #tpu.memory_space<vmem>>, %arg9: memref<1x64xf32, #tpu.memory_space<vmem>>, %arg10: memref<3x64x128xbf16, #tpu.memory_space<vmem>>, %arg11: memref<1x128xf32, #tpu.memory_space<vmem>>, %arg12: memref<9x64xbf16, #tpu.memory_space<vmem>>, %arg13: memref<1x64xf32, #tpu.memory_space<vmem>>, %arg14: memref<64x128xbf16, #tpu.memory_space<vmem>>, %arg15: memref<1x128xf32, #tpu.memory_space<vmem>>, %arg16: memref<2x128x384xbf16, #tpu.memory_space<vmem>>, %arg17: memref<2x1x384xf32, #tpu.memory_space<vmem>>, %arg18: memref<2x128x128xbf16, #tpu.memory_space<vmem>>, %arg19: memref<2x1x128xf32, #tpu.memory_space<vmem>>, %arg20: memref<2x1x128xf32, #tpu.memory_space<vmem>>, %arg21: memref<2x1x128xf32, #tpu.memory_space<vmem>>, %arg22: memref<2x128x2048xbf16, #tpu.memory_space<vmem>>, %arg23: memref<2x1x2048xf32, #tpu.memory_space<vmem>>, %arg24: memref<2x2048x128xbf16, #tpu.memory_space<vmem>>, %arg25: memref<2x1x128xf32, #tpu.memory_space<vmem>>, %arg26: memref<2x1x128xf32, #tpu.memory_space<vmem>>, %arg27: memref<2x1x128xf32, #tpu.memory_space<vmem>>, %arg28: memref<1x128xf32, #tpu.memory_space<vmem>>, %arg29: memref<1x1xf32, #tpu.memory_space<vmem>>, %arg30: memref<1x128xf32, #tpu.memory_space<vmem>>, %arg31: memref<1x1xf32, #tpu.memory_space<vmem>>, %arg32: memref<2x1xf32, #tpu.memory_space<vmem>>, %arg33: memref<88x64xf32, #tpu.memory_space<vmem>>) attributes {dimension_semantics = [#tpu.dimension_semantics<arbitrary>], iteration_bounds = array<i64: 1>, scalar_prefetch = 0 : i64, scratch_operands = 1 : i64, tpu.core_type = #tpu.core_type<tc>, window_params = [{pipeline_mode = #tpu.pipeline_mode<synchronous>, transform_indices = @transform_0, window_bounds = array<i64: 72, 9>}, {pipeline_mode = #tpu.pipeline_mode<synchronous>, transform_indices = @transform_1, window_bounds = array<i64: 88, 7>}, {pipeline_mode = #tpu.pipeline_mode<synchronous>, transform_indices = @transform_2, window_bounds = array<i64: 5, 72, 1>}, {pipeline_mode = #tpu.pipeline_mode<synchronous>, transform_indices = @transform_3, window_bounds = array<i64: 3, 72, 1>}, {pipeline_mode = #tpu.pipeline_mode<synchronous>, transform_indices = @transform_4, window_bounds = array<i64: 72, 1>}, {pipeline_mode = #tpu.pipeline_mode<synchronous>, transform_indices = @transform_5, window_bounds = array<i64: 72, 72>}, {pipeline_mode = #tpu.pipeline_mode<synchronous>, transform_indices = @transform_6, window_bounds = array<i64: 2, 72>}, {pipeline_mode = #tpu.pipeline_mode<synchronous>, transform_indices = @transform_7, window_bounds = array<i64: 5, 7, 64>}, {pipeline_mode = #tpu.pipeline_mode<synchronous>, transform_indices = @transform_8, window_bounds = array<i64: 1, 64>}, {pipeline_mode = #tpu.pipeline_mode<synchronous>, transform_indices = @transform_9, window_bounds = array<i64: 3, 64, 128>}, {pipeline_mode = #tpu.pipeline_mode<synchronous>, transform_indices = @transform_10, window_bounds = array<i64: 1, 128>}, {pipeline_mode = #tpu.pipeline_mode<synchronous>, transform_indices = @transform_11, window_bounds = array<i64: 9, 64>}, {pipeline_mode = #tpu.pipeline_mode<synchronous>, transform_indices = @transform_12, window_bounds = array<i64: 1, 64>}, {pipeline_mode = #tpu.pipeline_mode<synchronous>, transform_indices = @transform_13, window_bounds = array<i64: 64, 128>}, {pipeline_mode = #tpu.pipeline_mode<synchronous>, transform_indices = @transform_14, window_bounds = array<i64: 1, 128>}, {pipeline_mode = #tpu.pipeline_mode<synchronous>, transform_indices = @transform_15, window_bounds = array<i64: 2, 128, 384>}, {pipeline_mode = #tpu.pipeline_mode<synchronous>, transform_indices = @transform_16, window_bounds = array<i64: 2, 1, 384>}, {pipeline_mode = #tpu.pipeline_mode<synchronous>, transform_indices = @transform_17, window_bounds = array<i64: 2, 128, 128>}, {pipeline_mode = #tpu.pipeline_mode<synchronous>, transform_indices = @transform_18, window_bounds = array<i64: 2, 1, 128>}, {pipeline_mode = #tpu.pipeline_mode<synchronous>, transform_indices = @transform_19, window_bounds = array<i64: 2, 1, 128>}, {pipeline_mode = #tpu.pipeline_mode<synchronous>, transform_indices = @transform_20, window_bounds = array<i64: 2, 1, 128>}, {pipeline_mode = #tpu.pipeline_mode<synchronous>, transform_indices = @transform_21, window_bounds = array<i64: 2, 128, 2048>}, {pipeline_mode = #tpu.pipeline_mode<synchronous>, transform_indices = @transform_22, window_bounds = array<i64: 2, 1, 2048>}, {pipeline_mode = #tpu.pipeline_mode<synchronous>, transform_indices = @transform_23, window_bounds = array<i64: 2, 2048, 128>}, {pipeline_mode = #tpu.pipeline_mode<synchronous>, transform_indices = @transform_24, window_bounds = array<i64: 2, 1, 128>}, {pipeline_mode = #tpu.pipeline_mode<synchronous>, transform_indices = @transform_25, window_bounds = array<i64: 2, 1, 128>}, {pipeline_mode = #tpu.pipeline_mode<synchronous>, transform_indices = @transform_26, window_bounds = array<i64: 2, 1, 128>}, {pipeline_mode = #tpu.pipeline_mode<synchronous>, transform_indices = @transform_27, window_bounds = array<i64: 1, 128>}, {pipeline_mode = #tpu.pipeline_mode<synchronous>, transform_indices = @transform_28, window_bounds = array<i64: 1, 1>}, {pipeline_mode = #tpu.pipeline_mode<synchronous>, transform_indices = @transform_29, window_bounds = array<i64: 1, 128>}, {pipeline_mode = #tpu.pipeline_mode<synchronous>, transform_indices = @transform_30, window_bounds = array<i64: 1, 1>}, {pipeline_mode = #tpu.pipeline_mode<synchronous>, transform_indices = @transform_31, window_bounds = array<i64: 2, 1>}]} {
    %c0 = arith.constant 0 : index
    %c0_0 = arith.constant 0 : index
    %0 = vector.load %arg5[%c0, %c0_0] : memref<72x1xf32, #tpu.memory_space<vmem>>, vector<72x1xf32>
    %c0_1 = arith.constant 0 : index
    %c0_2 = arith.constant 0 : index
    %1 = vector.load %arg1[%c0_1, %c0_2] : memref<72x9xf32, #tpu.memory_space<vmem>>, vector<72x9xf32>
    %2 = arith.truncf %1 : vector<72x9xf32> to vector<72x9xbf16>
    %c0_3 = arith.constant 0 : index
    %c0_4 = arith.constant 0 : index
    %3 = vector.load %arg12[%c0_3, %c0_4] : memref<9x64xbf16, #tpu.memory_space<vmem>>, vector<9x64xbf16>
    %cst = arith.constant dense<0.000000e+00> : vector<72x64xf32>
    %4 = tpu.matmul %2, %3, %cst {dimension_numbers = #tpu.dot_dimension_numbers<[1], [0], [0], [1], [0, 0, 1, 1], [], []>} : vector<72x9xbf16>, vector<9x64xbf16>, vector<72x64xf32> -> vector<72x64xf32>
    %5 = vector.broadcast %0 : vector<72x1xf32> to vector<72x64xf32>
    %6 = arith.mulf %4, %5 : vector<72x64xf32>
    %cst_5 = arith.constant dense<0.000000e+00> : vector<64xf32>
    %7 = vector.multi_reduction <add>, %6, %cst_5 [0] : vector<72x64xf32> to vector<64xf32>
    %8 = vector.shape_cast %7 : vector<64xf32> to vector<1x64xf32>
    %cst_6 = arith.constant 0.111111112 : f32
    %9 = vector.broadcast %cst_6 : f32 to vector<1x64xf32>
    %10 = arith.mulf %8, %9 : vector<1x64xf32>
    %11 = vector.broadcast %0 : vector<72x1xf32> to vector<72x64xf32>
    %12 = vector.broadcast %10 : vector<1x64xf32> to vector<72x64xf32>
    %13 = arith.mulf %11, %12 : vector<72x64xf32>
    %cst_7 = arith.constant 1.000000e+00 : f32
    %14 = vector.broadcast %cst_7 : f32 to vector<72x1xf32>
    %15 = arith.subf %14, %0 : vector<72x1xf32>
    %16 = vector.broadcast %15 : vector<72x1xf32> to vector<72x64xf32>
    %17 = arith.mulf %16, %4 : vector<72x64xf32>
    %18 = arith.addf %13, %17 : vector<72x64xf32>
    %c0_8 = arith.constant 0 : index
    %c0_9 = arith.constant 0 : index
    %19 = vector.load %arg13[%c0_8, %c0_9] : memref<1x64xf32, #tpu.memory_space<vmem>>, vector<1x64xf32>
    %20 = vector.broadcast %19 : vector<1x64xf32> to vector<72x64xf32>
    %21 = arith.addf %18, %20 : vector<72x64xf32>
    %cst_10 = arith.constant 0.000000e+00 : f32
    %22 = vector.broadcast %cst_10 : f32 to vector<72x64xf32>
    %23 = arith.maximumf %21, %22 : vector<72x64xf32>
    %24 = arith.truncf %23 : vector<72x64xf32> to vector<72x64xbf16>
    %c0_11 = arith.constant 0 : index
    %c0_12 = arith.constant 0 : index
    %25 = vector.load %arg14[%c0_11, %c0_12] : memref<64x128xbf16, #tpu.memory_space<vmem>>, vector<64x128xbf16>
    %cst_13 = arith.constant dense<0.000000e+00> : vector<72x128xf32>
    %26 = tpu.matmul %24, %25, %cst_13 {dimension_numbers = #tpu.dot_dimension_numbers<[1], [0], [0], [1], [0, 0, 1, 1], [], []>} : vector<72x64xbf16>, vector<64x128xbf16>, vector<72x128xf32> -> vector<72x128xf32>
    %27 = vector.broadcast %0 : vector<72x1xf32> to vector<72x128xf32>
    %28 = arith.mulf %26, %27 : vector<72x128xf32>
    %cst_14 = arith.constant dense<0.000000e+00> : vector<128xf32>
    %29 = vector.multi_reduction <add>, %28, %cst_14 [0] : vector<72x128xf32> to vector<128xf32>
    %30 = vector.shape_cast %29 : vector<128xf32> to vector<1x128xf32>
    %cst_15 = arith.constant 0.111111112 : f32
    %31 = vector.broadcast %cst_15 : f32 to vector<1x128xf32>
    %32 = arith.mulf %30, %31 : vector<1x128xf32>
    %33 = vector.broadcast %0 : vector<72x1xf32> to vector<72x128xf32>
    %34 = vector.broadcast %32 : vector<1x128xf32> to vector<72x128xf32>
    %35 = arith.mulf %33, %34 : vector<72x128xf32>
    %cst_16 = arith.constant 1.000000e+00 : f32
    %36 = vector.broadcast %cst_16 : f32 to vector<72x1xf32>
    %37 = arith.subf %36, %0 : vector<72x1xf32>
    %38 = vector.broadcast %37 : vector<72x1xf32> to vector<72x128xf32>
    %39 = arith.mulf %38, %26 : vector<72x128xf32>
    %40 = arith.addf %35, %39 : vector<72x128xf32>
    %c0_17 = arith.constant 0 : index
    %c0_18 = arith.constant 0 : index
    %41 = vector.load %arg15[%c0_17, %c0_18] : memref<1x128xf32, #tpu.memory_space<vmem>>, vector<1x128xf32>
    %42 = vector.broadcast %41 : vector<1x128xf32> to vector<72x128xf32>
    %43 = arith.addf %40, %42 : vector<72x128xf32>
    %cst_19 = arith.constant 0.000000e+00 : f32
    %44 = vector.broadcast %cst_19 : f32 to vector<72x128xf32>
    %45 = arith.maximumf %43, %44 : vector<72x128xf32>
    %cst_20 = arith.constant 0.000000e+00 : f32
    %46 = vector.broadcast %cst_20 : f32 to vector<72x64xf32>
    %c6 = arith.constant 6 : index
    %c0_21 = arith.constant 0 : index
    %47 = vector.load %arg2[%c6, %c0_21] : memref<88x7xf32, #tpu.memory_space<vmem>>, vector<72x7xf32>
    %c0_22 = arith.constant 0 : index
    %c0_23 = arith.constant 0 : index
    %c0_24 = arith.constant 0 : index
    %48 = vector.load %arg3[%c0_22, %c0_23, %c0_24] : memref<5x72x1xf32, #tpu.memory_space<vmem>>, vector<1x72x1xf32>
    %49 = vector.shape_cast %48 : vector<1x72x1xf32> to vector<72x1xf32>
    %50 = vector.broadcast %49 : vector<72x1xf32> to vector<72x7xf32>
    %51 = arith.mulf %47, %50 : vector<72x7xf32>
    %52 = arith.truncf %51 : vector<72x7xf32> to vector<72x7xbf16>
    %c0_25 = arith.constant 0 : index
    %c0_26 = arith.constant 0 : index
    %c0_27 = arith.constant 0 : index
    %53 = vector.load %arg8[%c0_25, %c0_26, %c0_27] : memref<5x7x64xbf16, #tpu.memory_space<vmem>>, vector<1x7x64xbf16>
    %54 = vector.shape_cast %53 : vector<1x7x64xbf16> to vector<7x64xbf16>
    %cst_28 = arith.constant dense<0.000000e+00> : vector<72x64xf32>
    %55 = tpu.matmul %52, %54, %cst_28 {dimension_numbers = #tpu.dot_dimension_numbers<[1], [0], [0], [1], [0, 0, 1, 1], [], []>} : vector<72x7xbf16>, vector<7x64xbf16>, vector<72x64xf32> -> vector<72x64xf32>
    %56 = arith.addf %46, %55 : vector<72x64xf32>
    %c7 = arith.constant 7 : index
    %c0_29 = arith.constant 0 : index
    %57 = vector.load %arg2[%c7, %c0_29] : memref<88x7xf32, #tpu.memory_space<vmem>>, vector<72x7xf32>
    %c1 = arith.constant 1 : index
    %c0_30 = arith.constant 0 : index
    %c0_31 = arith.constant 0 : index
    %58 = vector.load %arg3[%c1, %c0_30, %c0_31] : memref<5x72x1xf32, #tpu.memory_space<vmem>>, vector<1x72x1xf32>
    %59 = vector.shape_cast %58 : vector<1x72x1xf32> to vector<72x1xf32>
    %60 = vector.broadcast %59 : vector<72x1xf32> to vector<72x7xf32>
    %61 = arith.mulf %57, %60 : vector<72x7xf32>
    %62 = arith.truncf %61 : vector<72x7xf32> to vector<72x7xbf16>
    %c1_32 = arith.constant 1 : index
    %c0_33 = arith.constant 0 : index
    %c0_34 = arith.constant 0 : index
    %63 = vector.load %arg8[%c1_32, %c0_33, %c0_34] : memref<5x7x64xbf16, #tpu.memory_space<vmem>>, vector<1x7x64xbf16>
    %64 = vector.shape_cast %63 : vector<1x7x64xbf16> to vector<7x64xbf16>
    %cst_35 = arith.constant dense<0.000000e+00> : vector<72x64xf32>
    %65 = tpu.matmul %62, %64, %cst_35 {dimension_numbers = #tpu.dot_dimension_numbers<[1], [0], [0], [1], [0, 0, 1, 1], [], []>} : vector<72x7xbf16>, vector<7x64xbf16>, vector<72x64xf32> -> vector<72x64xf32>
    %66 = arith.addf %56, %65 : vector<72x64xf32>
    %c8 = arith.constant 8 : index
    %c0_36 = arith.constant 0 : index
    %67 = vector.load %arg2[%c8, %c0_36] : memref<88x7xf32, #tpu.memory_space<vmem>>, vector<72x7xf32>
    %c2 = arith.constant 2 : index
    %c0_37 = arith.constant 0 : index
    %c0_38 = arith.constant 0 : index
    %68 = vector.load %arg3[%c2, %c0_37, %c0_38] : memref<5x72x1xf32, #tpu.memory_space<vmem>>, vector<1x72x1xf32>
    %69 = vector.shape_cast %68 : vector<1x72x1xf32> to vector<72x1xf32>
    %70 = vector.broadcast %69 : vector<72x1xf32> to vector<72x7xf32>
    %71 = arith.mulf %67, %70 : vector<72x7xf32>
    %72 = arith.truncf %71 : vector<72x7xf32> to vector<72x7xbf16>
    %c2_39 = arith.constant 2 : index
    %c0_40 = arith.constant 0 : index
    %c0_41 = arith.constant 0 : index
    %73 = vector.load %arg8[%c2_39, %c0_40, %c0_41] : memref<5x7x64xbf16, #tpu.memory_space<vmem>>, vector<1x7x64xbf16>
    %74 = vector.shape_cast %73 : vector<1x7x64xbf16> to vector<7x64xbf16>
    %cst_42 = arith.constant dense<0.000000e+00> : vector<72x64xf32>
    %75 = tpu.matmul %72, %74, %cst_42 {dimension_numbers = #tpu.dot_dimension_numbers<[1], [0], [0], [1], [0, 0, 1, 1], [], []>} : vector<72x7xbf16>, vector<7x64xbf16>, vector<72x64xf32> -> vector<72x64xf32>
    %76 = arith.addf %66, %75 : vector<72x64xf32>
    %c9 = arith.constant 9 : index
    %c0_43 = arith.constant 0 : index
    %77 = vector.load %arg2[%c9, %c0_43] : memref<88x7xf32, #tpu.memory_space<vmem>>, vector<72x7xf32>
    %c3 = arith.constant 3 : index
    %c0_44 = arith.constant 0 : index
    %c0_45 = arith.constant 0 : index
    %78 = vector.load %arg3[%c3, %c0_44, %c0_45] : memref<5x72x1xf32, #tpu.memory_space<vmem>>, vector<1x72x1xf32>
    %79 = vector.shape_cast %78 : vector<1x72x1xf32> to vector<72x1xf32>
    %80 = vector.broadcast %79 : vector<72x1xf32> to vector<72x7xf32>
    %81 = arith.mulf %77, %80 : vector<72x7xf32>
    %82 = arith.truncf %81 : vector<72x7xf32> to vector<72x7xbf16>
    %c3_46 = arith.constant 3 : index
    %c0_47 = arith.constant 0 : index
    %c0_48 = arith.constant 0 : index
    %83 = vector.load %arg8[%c3_46, %c0_47, %c0_48] : memref<5x7x64xbf16, #tpu.memory_space<vmem>>, vector<1x7x64xbf16>
    %84 = vector.shape_cast %83 : vector<1x7x64xbf16> to vector<7x64xbf16>
    %cst_49 = arith.constant dense<0.000000e+00> : vector<72x64xf32>
    %85 = tpu.matmul %82, %84, %cst_49 {dimension_numbers = #tpu.dot_dimension_numbers<[1], [0], [0], [1], [0, 0, 1, 1], [], []>} : vector<72x7xbf16>, vector<7x64xbf16>, vector<72x64xf32> -> vector<72x64xf32>
    %86 = arith.addf %76, %85 : vector<72x64xf32>
    %c10 = arith.constant 10 : index
    %c0_50 = arith.constant 0 : index
    %87 = vector.load %arg2[%c10, %c0_50] : memref<88x7xf32, #tpu.memory_space<vmem>>, vector<72x7xf32>
    %c4 = arith.constant 4 : index
    %c0_51 = arith.constant 0 : index
    %c0_52 = arith.constant 0 : index
    %88 = vector.load %arg3[%c4, %c0_51, %c0_52] : memref<5x72x1xf32, #tpu.memory_space<vmem>>, vector<1x72x1xf32>
    %89 = vector.shape_cast %88 : vector<1x72x1xf32> to vector<72x1xf32>
    %90 = vector.broadcast %89 : vector<72x1xf32> to vector<72x7xf32>
    %91 = arith.mulf %87, %90 : vector<72x7xf32>
    %92 = arith.truncf %91 : vector<72x7xf32> to vector<72x7xbf16>
    %c4_53 = arith.constant 4 : index
    %c0_54 = arith.constant 0 : index
    %c0_55 = arith.constant 0 : index
    %93 = vector.load %arg8[%c4_53, %c0_54, %c0_55] : memref<5x7x64xbf16, #tpu.memory_space<vmem>>, vector<1x7x64xbf16>
    %94 = vector.shape_cast %93 : vector<1x7x64xbf16> to vector<7x64xbf16>
    %cst_56 = arith.constant dense<0.000000e+00> : vector<72x64xf32>
    %95 = tpu.matmul %92, %94, %cst_56 {dimension_numbers = #tpu.dot_dimension_numbers<[1], [0], [0], [1], [0, 0, 1, 1], [], []>} : vector<72x7xbf16>, vector<7x64xbf16>, vector<72x64xf32> -> vector<72x64xf32>
    %96 = arith.addf %86, %95 : vector<72x64xf32>
    %c0_57 = arith.constant 0 : index
    %c0_58 = arith.constant 0 : index
    %97 = vector.load %arg9[%c0_57, %c0_58] : memref<1x64xf32, #tpu.memory_space<vmem>>, vector<1x64xf32>
    %98 = vector.broadcast %97 : vector<1x64xf32> to vector<72x64xf32>
    %99 = arith.addf %96, %98 : vector<72x64xf32>
    %cst_59 = arith.constant 0.000000e+00 : f32
    %100 = vector.broadcast %cst_59 : f32 to vector<88x64xf32>
    %c0_60 = arith.constant 0 : index
    %c0_61 = arith.constant 0 : index
    %101 = vector.load %arg33[%c0_60, %c0_61] : memref<88x64xf32, #tpu.memory_space<vmem>>, vector<88x64xf32>
    tpu.vector_store %arg33[%c0_60, %c0_61], %100 {strides = array<i32>} : memref<88x64xf32, #tpu.memory_space<vmem>>, vector<88x64xf32>,
    %c8_62 = arith.constant 8 : index
    %c0_63 = arith.constant 0 : index
    %102 = vector.load %arg33[%c8_62, %c0_63] : memref<88x64xf32, #tpu.memory_space<vmem>>, vector<72x64xf32>
    tpu.vector_store %arg33[%c8_62, %c0_63], %99 {strides = array<i32>} : memref<88x64xf32, #tpu.memory_space<vmem>>, vector<72x64xf32>,
    %cst_64 = arith.constant 0.000000e+00 : f32
    %103 = vector.broadcast %cst_64 : f32 to vector<72x128xf32>
    %c7_65 = arith.constant 7 : index
    %c0_66 = arith.constant 0 : index
    %104 = vector.load %arg33[%c7_65, %c0_66] : memref<88x64xf32, #tpu.memory_space<vmem>>, vector<72x64xf32>
    %c0_67 = arith.constant 0 : index
    %c0_68 = arith.constant 0 : index
    %c0_69 = arith.constant 0 : index
    %105 = vector.load %arg4[%c0_67, %c0_68, %c0_69] : memref<3x72x1xf32, #tpu.memory_space<vmem>>, vector<1x72x1xf32>
    %106 = vector.shape_cast %105 : vector<1x72x1xf32> to vector<72x1xf32>
    %107 = vector.broadcast %106 : vector<72x1xf32> to vector<72x64xf32>
    %108 = arith.mulf %104, %107 : vector<72x64xf32>
    %109 = arith.truncf %108 : vector<72x64xf32> to vector<72x64xbf16>
    %c0_70 = arith.constant 0 : index
    %c0_71 = arith.constant 0 : index
    %c0_72 = arith.constant 0 : index
    %110 = vector.load %arg10[%c0_70, %c0_71, %c0_72] : memref<3x64x128xbf16, #tpu.memory_space<vmem>>, vector<1x64x128xbf16>
    %111 = vector.shape_cast %110 : vector<1x64x128xbf16> to vector<64x128xbf16>
    %cst_73 = arith.constant dense<0.000000e+00> : vector<72x128xf32>
    %112 = tpu.matmul %109, %111, %cst_73 {dimension_numbers = #tpu.dot_dimension_numbers<[1], [0], [0], [1], [0, 0, 1, 1], [], []>} : vector<72x64xbf16>, vector<64x128xbf16>, vector<72x128xf32> -> vector<72x128xf32>
    %113 = arith.addf %103, %112 : vector<72x128xf32>
    %c8_74 = arith.constant 8 : index
    %c0_75 = arith.constant 0 : index
    %114 = vector.load %arg33[%c8_74, %c0_75] : memref<88x64xf32, #tpu.memory_space<vmem>>, vector<72x64xf32>
    %c1_76 = arith.constant 1 : index
    %c0_77 = arith.constant 0 : index
    %c0_78 = arith.constant 0 : index
    %115 = vector.load %arg4[%c1_76, %c0_77, %c0_78] : memref<3x72x1xf32, #tpu.memory_space<vmem>>, vector<1x72x1xf32>
    %116 = vector.shape_cast %115 : vector<1x72x1xf32> to vector<72x1xf32>
    %117 = vector.broadcast %116 : vector<72x1xf32> to vector<72x64xf32>
    %118 = arith.mulf %114, %117 : vector<72x64xf32>
    %119 = arith.truncf %118 : vector<72x64xf32> to vector<72x64xbf16>
    %c1_79 = arith.constant 1 : index
    %c0_80 = arith.constant 0 : index
    %c0_81 = arith.constant 0 : index
    %120 = vector.load %arg10[%c1_79, %c0_80, %c0_81] : memref<3x64x128xbf16, #tpu.memory_space<vmem>>, vector<1x64x128xbf16>
    %121 = vector.shape_cast %120 : vector<1x64x128xbf16> to vector<64x128xbf16>
    %cst_82 = arith.constant dense<0.000000e+00> : vector<72x128xf32>
    %122 = tpu.matmul %119, %121, %cst_82 {dimension_numbers = #tpu.dot_dimension_numbers<[1], [0], [0], [1], [0, 0, 1, 1], [], []>} : vector<72x64xbf16>, vector<64x128xbf16>, vector<72x128xf32> -> vector<72x128xf32>
    %123 = arith.addf %113, %122 : vector<72x128xf32>
    %c9_83 = arith.constant 9 : index
    %c0_84 = arith.constant 0 : index
    %124 = vector.load %arg33[%c9_83, %c0_84] : memref<88x64xf32, #tpu.memory_space<vmem>>, vector<72x64xf32>
    %c2_85 = arith.constant 2 : index
    %c0_86 = arith.constant 0 : index
    %c0_87 = arith.constant 0 : index
    %125 = vector.load %arg4[%c2_85, %c0_86, %c0_87] : memref<3x72x1xf32, #tpu.memory_space<vmem>>, vector<1x72x1xf32>
    %126 = vector.shape_cast %125 : vector<1x72x1xf32> to vector<72x1xf32>
    %127 = vector.broadcast %126 : vector<72x1xf32> to vector<72x64xf32>
    %128 = arith.mulf %124, %127 : vector<72x64xf32>
    %129 = arith.truncf %128 : vector<72x64xf32> to vector<72x64xbf16>
    %c2_88 = arith.constant 2 : index
    %c0_89 = arith.constant 0 : index
    %c0_90 = arith.constant 0 : index
    %130 = vector.load %arg10[%c2_88, %c0_89, %c0_90] : memref<3x64x128xbf16, #tpu.memory_space<vmem>>, vector<1x64x128xbf16>
    %131 = vector.shape_cast %130 : vector<1x64x128xbf16> to vector<64x128xbf16>
    %cst_91 = arith.constant dense<0.000000e+00> : vector<72x128xf32>
    %132 = tpu.matmul %129, %131, %cst_91 {dimension_numbers = #tpu.dot_dimension_numbers<[1], [0], [0], [1], [0, 0, 1, 1], [], []>} : vector<72x64xbf16>, vector<64x128xbf16>, vector<72x128xf32> -> vector<72x128xf32>
    %133 = arith.addf %123, %132 : vector<72x128xf32>
    %c0_92 = arith.constant 0 : index
    %c0_93 = arith.constant 0 : index
    %134 = vector.load %arg11[%c0_92, %c0_93] : memref<1x128xf32, #tpu.memory_space<vmem>>, vector<1x128xf32>
    %135 = vector.broadcast %134 : vector<1x128xf32> to vector<72x128xf32>
    %136 = arith.addf %133, %135 : vector<72x128xf32>
    %c0_94 = arith.constant 0 : index
    %c0_95 = arith.constant 0 : index
    %137 = vector.load %arg6[%c0_94, %c0_95] : memref<72x72xf32, #tpu.memory_space<vmem>>, vector<72x72xf32>
    %138 = arith.truncf %136 : vector<72x128xf32> to vector<72x128xbf16>
    %c0_96 = arith.constant 0 : index
    %c0_97 = arith.constant 0 : index
    %c0_98 = arith.constant 0 : index
    %139 = vector.load %arg16[%c0_96, %c0_97, %c0_98] : memref<2x128x384xbf16, #tpu.memory_space<vmem>>, vector<1x128x384xbf16>
    %140 = vector.shape_cast %139 : vector<1x128x384xbf16> to vector<128x384xbf16>
    %cst_99 = arith.constant dense<0.000000e+00> : vector<72x384xf32>
    %141 = tpu.matmul %138, %140, %cst_99 {dimension_numbers = #tpu.dot_dimension_numbers<[1], [0], [0], [1], [0, 0, 1, 1], [], []>} : vector<72x128xbf16>, vector<128x384xbf16>, vector<72x384xf32> -> vector<72x384xf32>
    %c0_100 = arith.constant 0 : index
    %c0_101 = arith.constant 0 : index
    %c0_102 = arith.constant 0 : index
    %142 = vector.load %arg17[%c0_100, %c0_101, %c0_102] : memref<2x1x384xf32, #tpu.memory_space<vmem>>, vector<1x1x384xf32>
    %143 = vector.shape_cast %142 : vector<1x1x384xf32> to vector<1x384xf32>
    %144 = vector.broadcast %143 : vector<1x384xf32> to vector<72x384xf32>
    %145 = arith.addf %141, %144 : vector<72x384xf32>
    %cst_103 = arith.constant 0.000000e+00 : f32
    %146 = vector.broadcast %cst_103 : f32 to vector<72x128xf32>
    %147 = vector.extract_strided_slice %145 {offsets = [0, 0], sizes = [72, 64], strides = [1, 1]} : vector<72x384xf32> to vector<72x64xf32>
    %cst_104 = arith.constant 1.250000e-01 : f32
    %148 = vector.broadcast %cst_104 : f32 to vector<72x64xf32>
    %149 = arith.mulf %147, %148 : vector<72x64xf32>
    %150 = arith.truncf %149 : vector<72x64xf32> to vector<72x64xbf16>
    %151 = vector.extract_strided_slice %145 {offsets = [0, 128], sizes = [72, 64], strides = [1, 1]} : vector<72x384xf32> to vector<72x64xf32>
    %152 = vector.extract_strided_slice %145 {offsets = [0, 256], sizes = [72, 64], strides = [1, 1]} : vector<72x384xf32> to vector<72x64xf32>
    %153 = arith.truncf %152 : vector<72x64xf32> to vector<72x64xbf16>
    %154 = tpu.transpose %151, [1, 0] : vector<72x64xf32> -> vector<64x72xf32>
    %155 = arith.truncf %154 : vector<64x72xf32> to vector<64x72xbf16>
    %cst_105 = arith.constant dense<0.000000e+00> : vector<72x72xf32>
    %156 = tpu.matmul %150, %155, %cst_105 {dimension_numbers = #tpu.dot_dimension_numbers<[1], [0], [0], [1], [0, 0, 1, 1], [], []>} : vector<72x64xbf16>, vector<64x72xbf16>, vector<72x72xf32> -> vector<72x72xf32>
    %157 = arith.addf %156, %137 : vector<72x72xf32>
    %cst_106 = arith.constant dense<0xFF800000> : vector<72xf32>
    %158 = vector.multi_reduction <maximumf>, %157, %cst_106 [1] : vector<72x72xf32> to vector<72xf32>
    %159 = vector.shape_cast %158 : vector<72xf32> to vector<72x1xf32>
    %160 = vector.broadcast %159 : vector<72x1xf32> to vector<72x72xf32>
    %161 = arith.subf %157, %160 : vector<72x72xf32>
    %162 = math.exp %161 : vector<72x72xf32>
    %cst_107 = arith.constant dense<0.000000e+00> : vector<72xf32>
    %163 = vector.multi_reduction <add>, %162, %cst_107 [1] : vector<72x72xf32> to vector<72xf32>
    %164 = vector.shape_cast %163 : vector<72xf32> to vector<72x1xf32>
    %165 = tpu.reciprocal %164 {approx = true} : vector<72x1xf32> -> vector<72x1xf32>
    %166 = vector.broadcast %165 : vector<72x1xf32> to vector<72x72xf32>
    %167 = arith.mulf %162, %166 : vector<72x72xf32>
    %168 = arith.truncf %167 : vector<72x72xf32> to vector<72x72xbf16>
    %cst_108 = arith.constant dense<0.000000e+00> : vector<72x64xf32>
    %169 = tpu.matmul %168, %153, %cst_108 {dimension_numbers = #tpu.dot_dimension_numbers<[1], [0], [0], [1], [0, 0, 1, 1], [], []>} : vector<72x72xbf16>, vector<72x64xbf16>, vector<72x64xf32> -> vector<72x64xf32>
    %170 = arith.truncf %169 : vector<72x64xf32> to vector<72x64xbf16>
    %c0_109 = arith.constant 0 : index
    %c0_110 = arith.constant 0 : index
    %c0_111 = arith.constant 0 : index
    %171 = vector.load %arg18[%c0_109, %c0_110, %c0_111] : memref<2x128x128xbf16, #tpu.memory_space<vmem>>, vector<1x64x128xbf16>
    %172 = vector.shape_cast %171 : vector<1x64x128xbf16> to vector<64x128xbf16>
    %cst_112 = arith.constant dense<0.000000e+00> : vector<72x128xf32>
    %173 = tpu.matmul %170, %172, %cst_112 {dimension_numbers = #tpu.dot_dimension_numbers<[1], [0], [0], [1], [0, 0, 1, 1], [], []>} : vector<72x64xbf16>, vector<64x128xbf16>, vector<72x128xf32> -> vector<72x128xf32>
    %174 = arith.addf %146, %173 : vector<72x128xf32>
    %175 = vector.extract_strided_slice %145 {offsets = [0, 64], sizes = [72, 64], strides = [1, 1]} : vector<72x384xf32> to vector<72x64xf32>
    %cst_113 = arith.constant 1.250000e-01 : f32
    %176 = vector.broadcast %cst_113 : f32 to vector<72x64xf32>
    %177 = arith.mulf %175, %176 : vector<72x64xf32>
    %178 = arith.truncf %177 : vector<72x64xf32> to vector<72x64xbf16>
    %179 = vector.extract_strided_slice %145 {offsets = [0, 192], sizes = [72, 64], strides = [1, 1]} : vector<72x384xf32> to vector<72x64xf32>
    %180 = vector.extract_strided_slice %145 {offsets = [0, 320], sizes = [72, 64], strides = [1, 1]} : vector<72x384xf32> to vector<72x64xf32>
    %181 = arith.truncf %180 : vector<72x64xf32> to vector<72x64xbf16>
    %182 = tpu.transpose %179, [1, 0] : vector<72x64xf32> -> vector<64x72xf32>
    %183 = arith.truncf %182 : vector<64x72xf32> to vector<64x72xbf16>
    %cst_114 = arith.constant dense<0.000000e+00> : vector<72x72xf32>
    %184 = tpu.matmul %178, %183, %cst_114 {dimension_numbers = #tpu.dot_dimension_numbers<[1], [0], [0], [1], [0, 0, 1, 1], [], []>} : vector<72x64xbf16>, vector<64x72xbf16>, vector<72x72xf32> -> vector<72x72xf32>
    %185 = arith.addf %184, %137 : vector<72x72xf32>
    %cst_115 = arith.constant dense<0xFF800000> : vector<72xf32>
    %186 = vector.multi_reduction <maximumf>, %185, %cst_115 [1] : vector<72x72xf32> to vector<72xf32>
    %187 = vector.shape_cast %186 : vector<72xf32> to vector<72x1xf32>
    %188 = vector.broadcast %187 : vector<72x1xf32> to vector<72x72xf32>
    %189 = arith.subf %185, %188 : vector<72x72xf32>
    %190 = math.exp %189 : vector<72x72xf32>
    %cst_116 = arith.constant dense<0.000000e+00> : vector<72xf32>
    %191 = vector.multi_reduction <add>, %190, %cst_116 [1] : vector<72x72xf32> to vector<72xf32>
    %192 = vector.shape_cast %191 : vector<72xf32> to vector<72x1xf32>
    %193 = tpu.reciprocal %192 {approx = true} : vector<72x1xf32> -> vector<72x1xf32>
    %194 = vector.broadcast %193 : vector<72x1xf32> to vector<72x72xf32>
    %195 = arith.mulf %190, %194 : vector<72x72xf32>
    %196 = arith.truncf %195 : vector<72x72xf32> to vector<72x72xbf16>
    %cst_117 = arith.constant dense<0.000000e+00> : vector<72x64xf32>
    %197 = tpu.matmul %196, %181, %cst_117 {dimension_numbers = #tpu.dot_dimension_numbers<[1], [0], [0], [1], [0, 0, 1, 1], [], []>} : vector<72x72xbf16>, vector<72x64xbf16>, vector<72x64xf32> -> vector<72x64xf32>
    %198 = arith.truncf %197 : vector<72x64xf32> to vector<72x64xbf16>
    %c0_118 = arith.constant 0 : index
    %c64 = arith.constant 64 : index
    %c0_119 = arith.constant 0 : index
    %199 = vector.load %arg18[%c0_118, %c64, %c0_119] : memref<2x128x128xbf16, #tpu.memory_space<vmem>>, vector<1x64x128xbf16>
    %200 = vector.shape_cast %199 : vector<1x64x128xbf16> to vector<64x128xbf16>
    %cst_120 = arith.constant dense<0.000000e+00> : vector<72x128xf32>
    %201 = tpu.matmul %198, %200, %cst_120 {dimension_numbers = #tpu.dot_dimension_numbers<[1], [0], [0], [1], [0, 0, 1, 1], [], []>} : vector<72x64xbf16>, vector<64x128xbf16>, vector<72x128xf32> -> vector<72x128xf32>
    %202 = arith.addf %174, %201 : vector<72x128xf32>
    %203 = arith.addf %136, %202 : vector<72x128xf32>
    %c0_121 = arith.constant 0 : index
    %c0_122 = arith.constant 0 : index
    %c0_123 = arith.constant 0 : index
    %204 = vector.load %arg19[%c0_121, %c0_122, %c0_123] : memref<2x1x128xf32, #tpu.memory_space<vmem>>, vector<1x1x128xf32>
    %205 = vector.shape_cast %204 : vector<1x1x128xf32> to vector<1x128xf32>
    %206 = vector.broadcast %205 : vector<1x128xf32> to vector<72x128xf32>
    %207 = arith.addf %203, %206 : vector<72x128xf32>
    %c0_124 = arith.constant 0 : index
    %c0_125 = arith.constant 0 : index
    %c0_126 = arith.constant 0 : index
    %208 = vector.load %arg20[%c0_124, %c0_125, %c0_126] : memref<2x1x128xf32, #tpu.memory_space<vmem>>, vector<1x1x128xf32>
    %209 = vector.shape_cast %208 : vector<1x1x128xf32> to vector<1x128xf32>
    %c0_127 = arith.constant 0 : index
    %c0_128 = arith.constant 0 : index
    %c0_129 = arith.constant 0 : index
    %210 = vector.load %arg21[%c0_127, %c0_128, %c0_129] : memref<2x1x128xf32, #tpu.memory_space<vmem>>, vector<1x1x128xf32>
    %211 = vector.shape_cast %210 : vector<1x1x128xf32> to vector<1x128xf32>
    %cst_130 = arith.constant dense<0.000000e+00> : vector<72xf32>
    %212 = vector.multi_reduction <add>, %207, %cst_130 [1] : vector<72x128xf32> to vector<72xf32>
    %213 = vector.shape_cast %212 : vector<72xf32> to vector<72x1xf32>
    %cst_131 = arith.constant 1.280000e+02 : f32
    %214 = vector.broadcast %cst_131 : f32 to vector<72x1xf32>
    %215 = arith.divf %213, %214 : vector<72x1xf32>
    %216 = vector.broadcast %215 : vector<72x1xf32> to vector<72x128xf32>
    %217 = arith.subf %207, %216 : vector<72x128xf32>
    %218 = arith.mulf %217, %217 : vector<72x128xf32>
    %cst_132 = arith.constant dense<0.000000e+00> : vector<72xf32>
    %219 = vector.multi_reduction <add>, %218, %cst_132 [1] : vector<72x128xf32> to vector<72xf32>
    %220 = vector.shape_cast %219 : vector<72xf32> to vector<72x1xf32>
    %cst_133 = arith.constant 1.280000e+02 : f32
    %221 = vector.broadcast %cst_133 : f32 to vector<72x1xf32>
    %222 = arith.divf %220, %221 : vector<72x1xf32>
    %223 = vector.broadcast %215 : vector<72x1xf32> to vector<72x128xf32>
    %224 = arith.subf %207, %223 : vector<72x128xf32>
    %cst_134 = arith.constant 9.99999974E-6 : f32
    %225 = vector.broadcast %cst_134 : f32 to vector<72x1xf32>
    %226 = arith.addf %222, %225 : vector<72x1xf32>
    %227 = math.rsqrt %226 : vector<72x1xf32>
    %228 = vector.broadcast %227 : vector<72x1xf32> to vector<72x128xf32>
    %229 = arith.mulf %224, %228 : vector<72x128xf32>
    %230 = vector.broadcast %209 : vector<1x128xf32> to vector<72x128xf32>
    %231 = arith.mulf %229, %230 : vector<72x128xf32>
    %232 = vector.broadcast %211 : vector<1x128xf32> to vector<72x128xf32>
    %233 = arith.addf %231, %232 : vector<72x128xf32>
    %234 = arith.truncf %233 : vector<72x128xf32> to vector<72x128xbf16>
    %cst_135 = arith.constant 0.000000e+00 : f32
    %235 = vector.broadcast %cst_135 : f32 to vector<72x128xf32>
    %c0_136 = arith.constant 0 : index
    %c0_137 = arith.constant 0 : index
    %c0_138 = arith.constant 0 : index
    %236 = vector.load %arg22[%c0_136, %c0_137, %c0_138] : memref<2x128x2048xbf16, #tpu.memory_space<vmem>>, vector<1x128x512xbf16>
    %237 = vector.shape_cast %236 : vector<1x128x512xbf16> to vector<128x512xbf16>
    %cst_139 = arith.constant dense<0.000000e+00> : vector<72x512xf32>
    %238 = tpu.matmul %234, %237, %cst_139 {dimension_numbers = #tpu.dot_dimension_numbers<[1], [0], [0], [1], [0, 0, 1, 1], [], []>} : vector<72x128xbf16>, vector<128x512xbf16>, vector<72x512xf32> -> vector<72x512xf32>
    %c0_140 = arith.constant 0 : index
    %c0_141 = arith.constant 0 : index
    %c0_142 = arith.constant 0 : index
    %239 = vector.load %arg23[%c0_140, %c0_141, %c0_142] : memref<2x1x2048xf32, #tpu.memory_space<vmem>>, vector<1x1x512xf32>
    %240 = vector.shape_cast %239 : vector<1x1x512xf32> to vector<1x512xf32>
    %241 = vector.broadcast %240 : vector<1x512xf32> to vector<72x512xf32>
    %242 = arith.addf %238, %241 : vector<72x512xf32>
    %cst_143 = arith.constant 0.000000e+00 : f32
    %243 = vector.broadcast %cst_143 : f32 to vector<72x512xf32>
    %244 = arith.maximumf %242, %243 : vector<72x512xf32>
    %245 = arith.truncf %244 : vector<72x512xf32> to vector<72x512xbf16>
    %c0_144 = arith.constant 0 : index
    %c0_145 = arith.constant 0 : index
    %c0_146 = arith.constant 0 : index
    %246 = vector.load %arg24[%c0_144, %c0_145, %c0_146] : memref<2x2048x128xbf16, #tpu.memory_space<vmem>>, vector<1x512x128xbf16>
    %247 = vector.shape_cast %246 : vector<1x512x128xbf16> to vector<512x128xbf16>
    %cst_147 = arith.constant dense<0.000000e+00> : vector<72x128xf32>
    %248 = tpu.matmul %245, %247, %cst_147 {dimension_numbers = #tpu.dot_dimension_numbers<[1], [0], [0], [1], [0, 0, 1, 1], [], []>} : vector<72x512xbf16>, vector<512x128xbf16>, vector<72x128xf32> -> vector<72x128xf32>
    %249 = arith.addf %235, %248 : vector<72x128xf32>
    %c0_148 = arith.constant 0 : index
    %c0_149 = arith.constant 0 : index
    %c512 = arith.constant 512 : index
    %250 = vector.load %arg22[%c0_148, %c0_149, %c512] : memref<2x128x2048xbf16, #tpu.memory_space<vmem>>, vector<1x128x512xbf16>
    %251 = vector.shape_cast %250 : vector<1x128x512xbf16> to vector<128x512xbf16>
    %cst_150 = arith.constant dense<0.000000e+00> : vector<72x512xf32>
    %252 = tpu.matmul %234, %251, %cst_150 {dimension_numbers = #tpu.dot_dimension_numbers<[1], [0], [0], [1], [0, 0, 1, 1], [], []>} : vector<72x128xbf16>, vector<128x512xbf16>, vector<72x512xf32> -> vector<72x512xf32>
    %c0_151 = arith.constant 0 : index
    %c0_152 = arith.constant 0 : index
    %c512_153 = arith.constant 512 : index
    %253 = vector.load %arg23[%c0_151, %c0_152, %c512_153] : memref<2x1x2048xf32, #tpu.memory_space<vmem>>, vector<1x1x512xf32>
    %254 = vector.shape_cast %253 : vector<1x1x512xf32> to vector<1x512xf32>
    %255 = vector.broadcast %254 : vector<1x512xf32> to vector<72x512xf32>
    %256 = arith.addf %252, %255 : vector<72x512xf32>
    %cst_154 = arith.constant 0.000000e+00 : f32
    %257 = vector.broadcast %cst_154 : f32 to vector<72x512xf32>
    %258 = arith.maximumf %256, %257 : vector<72x512xf32>
    %259 = arith.truncf %258 : vector<72x512xf32> to vector<72x512xbf16>
    %c0_155 = arith.constant 0 : index
    %c512_156 = arith.constant 512 : index
    %c0_157 = arith.constant 0 : index
    %260 = vector.load %arg24[%c0_155, %c512_156, %c0_157] : memref<2x2048x128xbf16, #tpu.memory_space<vmem>>, vector<1x512x128xbf16>
    %261 = vector.shape_cast %260 : vector<1x512x128xbf16> to vector<512x128xbf16>
    %cst_158 = arith.constant dense<0.000000e+00> : vector<72x128xf32>
    %262 = tpu.matmul %259, %261, %cst_158 {dimension_numbers = #tpu.dot_dimension_numbers<[1], [0], [0], [1], [0, 0, 1, 1], [], []>} : vector<72x512xbf16>, vector<512x128xbf16>, vector<72x128xf32> -> vector<72x128xf32>
    %263 = arith.addf %249, %262 : vector<72x128xf32>
    %c0_159 = arith.constant 0 : index
    %c0_160 = arith.constant 0 : index
    %c1024 = arith.constant 1024 : index
    %264 = vector.load %arg22[%c0_159, %c0_160, %c1024] : memref<2x128x2048xbf16, #tpu.memory_space<vmem>>, vector<1x128x512xbf16>
    %265 = vector.shape_cast %264 : vector<1x128x512xbf16> to vector<128x512xbf16>
    %cst_161 = arith.constant dense<0.000000e+00> : vector<72x512xf32>
    %266 = tpu.matmul %234, %265, %cst_161 {dimension_numbers = #tpu.dot_dimension_numbers<[1], [0], [0], [1], [0, 0, 1, 1], [], []>} : vector<72x128xbf16>, vector<128x512xbf16>, vector<72x512xf32> -> vector<72x512xf32>
    %c0_162 = arith.constant 0 : index
    %c0_163 = arith.constant 0 : index
    %c1024_164 = arith.constant 1024 : index
    %267 = vector.load %arg23[%c0_162, %c0_163, %c1024_164] : memref<2x1x2048xf32, #tpu.memory_space<vmem>>, vector<1x1x512xf32>
    %268 = vector.shape_cast %267 : vector<1x1x512xf32> to vector<1x512xf32>
    %269 = vector.broadcast %268 : vector<1x512xf32> to vector<72x512xf32>
    %270 = arith.addf %266, %269 : vector<72x512xf32>
    %cst_165 = arith.constant 0.000000e+00 : f32
    %271 = vector.broadcast %cst_165 : f32 to vector<72x512xf32>
    %272 = arith.maximumf %270, %271 : vector<72x512xf32>
    %273 = arith.truncf %272 : vector<72x512xf32> to vector<72x512xbf16>
    %c0_166 = arith.constant 0 : index
    %c1024_167 = arith.constant 1024 : index
    %c0_168 = arith.constant 0 : index
    %274 = vector.load %arg24[%c0_166, %c1024_167, %c0_168] : memref<2x2048x128xbf16, #tpu.memory_space<vmem>>, vector<1x512x128xbf16>
    %275 = vector.shape_cast %274 : vector<1x512x128xbf16> to vector<512x128xbf16>
    %cst_169 = arith.constant dense<0.000000e+00> : vector<72x128xf32>
    %276 = tpu.matmul %273, %275, %cst_169 {dimension_numbers = #tpu.dot_dimension_numbers<[1], [0], [0], [1], [0, 0, 1, 1], [], []>} : vector<72x512xbf16>, vector<512x128xbf16>, vector<72x128xf32> -> vector<72x128xf32>
    %277 = arith.addf %263, %276 : vector<72x128xf32>
    %c0_170 = arith.constant 0 : index
    %c0_171 = arith.constant 0 : index
    %c1536 = arith.constant 1536 : index
    %278 = vector.load %arg22[%c0_170, %c0_171, %c1536] : memref<2x128x2048xbf16, #tpu.memory_space<vmem>>, vector<1x128x512xbf16>
    %279 = vector.shape_cast %278 : vector<1x128x512xbf16> to vector<128x512xbf16>
    %cst_172 = arith.constant dense<0.000000e+00> : vector<72x512xf32>
    %280 = tpu.matmul %234, %279, %cst_172 {dimension_numbers = #tpu.dot_dimension_numbers<[1], [0], [0], [1], [0, 0, 1, 1], [], []>} : vector<72x128xbf16>, vector<128x512xbf16>, vector<72x512xf32> -> vector<72x512xf32>
    %c0_173 = arith.constant 0 : index
    %c0_174 = arith.constant 0 : index
    %c1536_175 = arith.constant 1536 : index
    %281 = vector.load %arg23[%c0_173, %c0_174, %c1536_175] : memref<2x1x2048xf32, #tpu.memory_space<vmem>>, vector<1x1x512xf32>
    %282 = vector.shape_cast %281 : vector<1x1x512xf32> to vector<1x512xf32>
    %283 = vector.broadcast %282 : vector<1x512xf32> to vector<72x512xf32>
    %284 = arith.addf %280, %283 : vector<72x512xf32>
    %cst_176 = arith.constant 0.000000e+00 : f32
    %285 = vector.broadcast %cst_176 : f32 to vector<72x512xf32>
    %286 = arith.maximumf %284, %285 : vector<72x512xf32>
    %287 = arith.truncf %286 : vector<72x512xf32> to vector<72x512xbf16>
    %c0_177 = arith.constant 0 : index
    %c1536_178 = arith.constant 1536 : index
    %c0_179 = arith.constant 0 : index
    %288 = vector.load %arg24[%c0_177, %c1536_178, %c0_179] : memref<2x2048x128xbf16, #tpu.memory_space<vmem>>, vector<1x512x128xbf16>
    %289 = vector.shape_cast %288 : vector<1x512x128xbf16> to vector<512x128xbf16>
    %cst_180 = arith.constant dense<0.000000e+00> : vector<72x128xf32>
    %290 = tpu.matmul %287, %289, %cst_180 {dimension_numbers = #tpu.dot_dimension_numbers<[1], [0], [0], [1], [0, 0, 1, 1], [], []>} : vector<72x512xbf16>, vector<512x128xbf16>, vector<72x128xf32> -> vector<72x128xf32>
    %291 = arith.addf %277, %290 : vector<72x128xf32>
    %292 = arith.addf %233, %291 : vector<72x128xf32>
    %c0_181 = arith.constant 0 : index
    %c0_182 = arith.constant 0 : index
    %c0_183 = arith.constant 0 : index
    %293 = vector.load %arg25[%c0_181, %c0_182, %c0_183] : memref<2x1x128xf32, #tpu.memory_space<vmem>>, vector<1x1x128xf32>
    %294 = vector.shape_cast %293 : vector<1x1x128xf32> to vector<1x128xf32>
    %295 = vector.broadcast %294 : vector<1x128xf32> to vector<72x128xf32>
    %296 = arith.addf %292, %295 : vector<72x128xf32>
    %c0_184 = arith.constant 0 : index
    %c0_185 = arith.constant 0 : index
    %c0_186 = arith.constant 0 : index
    %297 = vector.load %arg26[%c0_184, %c0_185, %c0_186] : memref<2x1x128xf32, #tpu.memory_space<vmem>>, vector<1x1x128xf32>
    %298 = vector.shape_cast %297 : vector<1x1x128xf32> to vector<1x128xf32>
    %c0_187 = arith.constant 0 : index
    %c0_188 = arith.constant 0 : index
    %c0_189 = arith.constant 0 : index
    %299 = vector.load %arg27[%c0_187, %c0_188, %c0_189] : memref<2x1x128xf32, #tpu.memory_space<vmem>>, vector<1x1x128xf32>
    %300 = vector.shape_cast %299 : vector<1x1x128xf32> to vector<1x128xf32>
    %cst_190 = arith.constant dense<0.000000e+00> : vector<72xf32>
    %301 = vector.multi_reduction <add>, %296, %cst_190 [1] : vector<72x128xf32> to vector<72xf32>
    %302 = vector.shape_cast %301 : vector<72xf32> to vector<72x1xf32>
    %cst_191 = arith.constant 1.280000e+02 : f32
    %303 = vector.broadcast %cst_191 : f32 to vector<72x1xf32>
    %304 = arith.divf %302, %303 : vector<72x1xf32>
    %305 = vector.broadcast %304 : vector<72x1xf32> to vector<72x128xf32>
    %306 = arith.subf %296, %305 : vector<72x128xf32>
    %307 = arith.mulf %306, %306 : vector<72x128xf32>
    %cst_192 = arith.constant dense<0.000000e+00> : vector<72xf32>
    %308 = vector.multi_reduction <add>, %307, %cst_192 [1] : vector<72x128xf32> to vector<72xf32>
    %309 = vector.shape_cast %308 : vector<72xf32> to vector<72x1xf32>
    %cst_193 = arith.constant 1.280000e+02 : f32
    %310 = vector.broadcast %cst_193 : f32 to vector<72x1xf32>
    %311 = arith.divf %309, %310 : vector<72x1xf32>
    %312 = vector.broadcast %304 : vector<72x1xf32> to vector<72x128xf32>
    %313 = arith.subf %296, %312 : vector<72x128xf32>
    %cst_194 = arith.constant 9.99999974E-6 : f32
    %314 = vector.broadcast %cst_194 : f32 to vector<72x1xf32>
    %315 = arith.addf %311, %314 : vector<72x1xf32>
    %316 = math.rsqrt %315 : vector<72x1xf32>
    %317 = vector.broadcast %316 : vector<72x1xf32> to vector<72x128xf32>
    %318 = arith.mulf %313, %317 : vector<72x128xf32>
    %319 = vector.broadcast %298 : vector<1x128xf32> to vector<72x128xf32>
    %320 = arith.mulf %318, %319 : vector<72x128xf32>
    %321 = vector.broadcast %300 : vector<1x128xf32> to vector<72x128xf32>
    %322 = arith.addf %320, %321 : vector<72x128xf32>
    %323 = arith.truncf %322 : vector<72x128xf32> to vector<72x128xbf16>
    %c1_195 = arith.constant 1 : index
    %c0_196 = arith.constant 0 : index
    %c0_197 = arith.constant 0 : index
    %324 = vector.load %arg16[%c1_195, %c0_196, %c0_197] : memref<2x128x384xbf16, #tpu.memory_space<vmem>>, vector<1x128x384xbf16>
    %325 = vector.shape_cast %324 : vector<1x128x384xbf16> to vector<128x384xbf16>
    %cst_198 = arith.constant dense<0.000000e+00> : vector<72x384xf32>
    %326 = tpu.matmul %323, %325, %cst_198 {dimension_numbers = #tpu.dot_dimension_numbers<[1], [0], [0], [1], [0, 0, 1, 1], [], []>} : vector<72x128xbf16>, vector<128x384xbf16>, vector<72x384xf32> -> vector<72x384xf32>
    %c1_199 = arith.constant 1 : index
    %c0_200 = arith.constant 0 : index
    %c0_201 = arith.constant 0 : index
    %327 = vector.load %arg17[%c1_199, %c0_200, %c0_201] : memref<2x1x384xf32, #tpu.memory_space<vmem>>, vector<1x1x384xf32>
    %328 = vector.shape_cast %327 : vector<1x1x384xf32> to vector<1x384xf32>
    %329 = vector.broadcast %328 : vector<1x384xf32> to vector<72x384xf32>
    %330 = arith.addf %326, %329 : vector<72x384xf32>
    %cst_202 = arith.constant 0.000000e+00 : f32
    %331 = vector.broadcast %cst_202 : f32 to vector<72x128xf32>
    %332 = vector.extract_strided_slice %330 {offsets = [0, 0], sizes = [72, 64], strides = [1, 1]} : vector<72x384xf32> to vector<72x64xf32>
    %cst_203 = arith.constant 1.250000e-01 : f32
    %333 = vector.broadcast %cst_203 : f32 to vector<72x64xf32>
    %334 = arith.mulf %332, %333 : vector<72x64xf32>
    %335 = arith.truncf %334 : vector<72x64xf32> to vector<72x64xbf16>
    %336 = vector.extract_strided_slice %330 {offsets = [0, 128], sizes = [72, 64], strides = [1, 1]} : vector<72x384xf32> to vector<72x64xf32>
    %337 = vector.extract_strided_slice %330 {offsets = [0, 256], sizes = [72, 64], strides = [1, 1]} : vector<72x384xf32> to vector<72x64xf32>
    %338 = arith.truncf %337 : vector<72x64xf32> to vector<72x64xbf16>
    %339 = tpu.transpose %336, [1, 0] : vector<72x64xf32> -> vector<64x72xf32>
    %340 = arith.truncf %339 : vector<64x72xf32> to vector<64x72xbf16>
    %cst_204 = arith.constant dense<0.000000e+00> : vector<72x72xf32>
    %341 = tpu.matmul %335, %340, %cst_204 {dimension_numbers = #tpu.dot_dimension_numbers<[1], [0], [0], [1], [0, 0, 1, 1], [], []>} : vector<72x64xbf16>, vector<64x72xbf16>, vector<72x72xf32> -> vector<72x72xf32>
    %342 = arith.addf %341, %137 : vector<72x72xf32>
    %cst_205 = arith.constant dense<0xFF800000> : vector<72xf32>
    %343 = vector.multi_reduction <maximumf>, %342, %cst_205 [1] : vector<72x72xf32> to vector<72xf32>
    %344 = vector.shape_cast %343 : vector<72xf32> to vector<72x1xf32>
    %345 = vector.broadcast %344 : vector<72x1xf32> to vector<72x72xf32>
    %346 = arith.subf %342, %345 : vector<72x72xf32>
    %347 = math.exp %346 : vector<72x72xf32>
    %cst_206 = arith.constant dense<0.000000e+00> : vector<72xf32>
    %348 = vector.multi_reduction <add>, %347, %cst_206 [1] : vector<72x72xf32> to vector<72xf32>
    %349 = vector.shape_cast %348 : vector<72xf32> to vector<72x1xf32>
    %350 = tpu.reciprocal %349 {approx = true} : vector<72x1xf32> -> vector<72x1xf32>
    %351 = vector.broadcast %350 : vector<72x1xf32> to vector<72x72xf32>
    %352 = arith.mulf %347, %351 : vector<72x72xf32>
    %353 = arith.truncf %352 : vector<72x72xf32> to vector<72x72xbf16>
    %cst_207 = arith.constant dense<0.000000e+00> : vector<72x64xf32>
    %354 = tpu.matmul %353, %338, %cst_207 {dimension_numbers = #tpu.dot_dimension_numbers<[1], [0], [0], [1], [0, 0, 1, 1], [], []>} : vector<72x72xbf16>, vector<72x64xbf16>, vector<72x64xf32> -> vector<72x64xf32>
    %355 = arith.truncf %354 : vector<72x64xf32> to vector<72x64xbf16>
    %c1_208 = arith.constant 1 : index
    %c0_209 = arith.constant 0 : index
    %c0_210 = arith.constant 0 : index
    %356 = vector.load %arg18[%c1_208, %c0_209, %c0_210] : memref<2x128x128xbf16, #tpu.memory_space<vmem>>, vector<1x64x128xbf16>
    %357 = vector.shape_cast %356 : vector<1x64x128xbf16> to vector<64x128xbf16>
    %cst_211 = arith.constant dense<0.000000e+00> : vector<72x128xf32>
    %358 = tpu.matmul %355, %357, %cst_211 {dimension_numbers = #tpu.dot_dimension_numbers<[1], [0], [0], [1], [0, 0, 1, 1], [], []>} : vector<72x64xbf16>, vector<64x128xbf16>, vector<72x128xf32> -> vector<72x128xf32>
    %359 = arith.addf %331, %358 : vector<72x128xf32>
    %360 = vector.extract_strided_slice %330 {offsets = [0, 64], sizes = [72, 64], strides = [1, 1]} : vector<72x384xf32> to vector<72x64xf32>
    %cst_212 = arith.constant 1.250000e-01 : f32
    %361 = vector.broadcast %cst_212 : f32 to vector<72x64xf32>
    %362 = arith.mulf %360, %361 : vector<72x64xf32>
    %363 = arith.truncf %362 : vector<72x64xf32> to vector<72x64xbf16>
    %364 = vector.extract_strided_slice %330 {offsets = [0, 192], sizes = [72, 64], strides = [1, 1]} : vector<72x384xf32> to vector<72x64xf32>
    %365 = vector.extract_strided_slice %330 {offsets = [0, 320], sizes = [72, 64], strides = [1, 1]} : vector<72x384xf32> to vector<72x64xf32>
    %366 = arith.truncf %365 : vector<72x64xf32> to vector<72x64xbf16>
    %367 = tpu.transpose %364, [1, 0] : vector<72x64xf32> -> vector<64x72xf32>
    %368 = arith.truncf %367 : vector<64x72xf32> to vector<64x72xbf16>
    %cst_213 = arith.constant dense<0.000000e+00> : vector<72x72xf32>
    %369 = tpu.matmul %363, %368, %cst_213 {dimension_numbers = #tpu.dot_dimension_numbers<[1], [0], [0], [1], [0, 0, 1, 1], [], []>} : vector<72x64xbf16>, vector<64x72xbf16>, vector<72x72xf32> -> vector<72x72xf32>
    %370 = arith.addf %369, %137 : vector<72x72xf32>
    %cst_214 = arith.constant dense<0xFF800000> : vector<72xf32>
    %371 = vector.multi_reduction <maximumf>, %370, %cst_214 [1] : vector<72x72xf32> to vector<72xf32>
    %372 = vector.shape_cast %371 : vector<72xf32> to vector<72x1xf32>
    %373 = vector.broadcast %372 : vector<72x1xf32> to vector<72x72xf32>
    %374 = arith.subf %370, %373 : vector<72x72xf32>
    %375 = math.exp %374 : vector<72x72xf32>
    %cst_215 = arith.constant dense<0.000000e+00> : vector<72xf32>
    %376 = vector.multi_reduction <add>, %375, %cst_215 [1] : vector<72x72xf32> to vector<72xf32>
    %377 = vector.shape_cast %376 : vector<72xf32> to vector<72x1xf32>
    %378 = tpu.reciprocal %377 {approx = true} : vector<72x1xf32> -> vector<72x1xf32>
    %379 = vector.broadcast %378 : vector<72x1xf32> to vector<72x72xf32>
    %380 = arith.mulf %375, %379 : vector<72x72xf32>
    %381 = arith.truncf %380 : vector<72x72xf32> to vector<72x72xbf16>
    %cst_216 = arith.constant dense<0.000000e+00> : vector<72x64xf32>
    %382 = tpu.matmul %381, %366, %cst_216 {dimension_numbers = #tpu.dot_dimension_numbers<[1], [0], [0], [1], [0, 0, 1, 1], [], []>} : vector<72x72xbf16>, vector<72x64xbf16>, vector<72x64xf32> -> vector<72x64xf32>
    %383 = arith.truncf %382 : vector<72x64xf32> to vector<72x64xbf16>
    %c1_217 = arith.constant 1 : index
    %c64_218 = arith.constant 64 : index
    %c0_219 = arith.constant 0 : index
    %384 = vector.load %arg18[%c1_217, %c64_218, %c0_219] : memref<2x128x128xbf16, #tpu.memory_space<vmem>>, vector<1x64x128xbf16>
    %385 = vector.shape_cast %384 : vector<1x64x128xbf16> to vector<64x128xbf16>
    %cst_220 = arith.constant dense<0.000000e+00> : vector<72x128xf32>
    %386 = tpu.matmul %383, %385, %cst_220 {dimension_numbers = #tpu.dot_dimension_numbers<[1], [0], [0], [1], [0, 0, 1, 1], [], []>} : vector<72x64xbf16>, vector<64x128xbf16>, vector<72x128xf32> -> vector<72x128xf32>
    %387 = arith.addf %359, %386 : vector<72x128xf32>
    %388 = arith.addf %322, %387 : vector<72x128xf32>
    %c1_221 = arith.constant 1 : index
    %c0_222 = arith.constant 0 : index
    %c0_223 = arith.constant 0 : index
    %389 = vector.load %arg19[%c1_221, %c0_222, %c0_223] : memref<2x1x128xf32, #tpu.memory_space<vmem>>, vector<1x1x128xf32>
    %390 = vector.shape_cast %389 : vector<1x1x128xf32> to vector<1x128xf32>
    %391 = vector.broadcast %390 : vector<1x128xf32> to vector<72x128xf32>
    %392 = arith.addf %388, %391 : vector<72x128xf32>
    %c1_224 = arith.constant 1 : index
    %c0_225 = arith.constant 0 : index
    %c0_226 = arith.constant 0 : index
    %393 = vector.load %arg20[%c1_224, %c0_225, %c0_226] : memref<2x1x128xf32, #tpu.memory_space<vmem>>, vector<1x1x128xf32>
    %394 = vector.shape_cast %393 : vector<1x1x128xf32> to vector<1x128xf32>
    %c1_227 = arith.constant 1 : index
    %c0_228 = arith.constant 0 : index
    %c0_229 = arith.constant 0 : index
    %395 = vector.load %arg21[%c1_227, %c0_228, %c0_229] : memref<2x1x128xf32, #tpu.memory_space<vmem>>, vector<1x1x128xf32>
    %396 = vector.shape_cast %395 : vector<1x1x128xf32> to vector<1x128xf32>
    %cst_230 = arith.constant dense<0.000000e+00> : vector<72xf32>
    %397 = vector.multi_reduction <add>, %392, %cst_230 [1] : vector<72x128xf32> to vector<72xf32>
    %398 = vector.shape_cast %397 : vector<72xf32> to vector<72x1xf32>
    %cst_231 = arith.constant 1.280000e+02 : f32
    %399 = vector.broadcast %cst_231 : f32 to vector<72x1xf32>
    %400 = arith.divf %398, %399 : vector<72x1xf32>
    %401 = vector.broadcast %400 : vector<72x1xf32> to vector<72x128xf32>
    %402 = arith.subf %392, %401 : vector<72x128xf32>
    %403 = arith.mulf %402, %402 : vector<72x128xf32>
    %cst_232 = arith.constant dense<0.000000e+00> : vector<72xf32>
    %404 = vector.multi_reduction <add>, %403, %cst_232 [1] : vector<72x128xf32> to vector<72xf32>
    %405 = vector.shape_cast %404 : vector<72xf32> to vector<72x1xf32>
    %cst_233 = arith.constant 1.280000e+02 : f32
    %406 = vector.broadcast %cst_233 : f32 to vector<72x1xf32>
    %407 = arith.divf %405, %406 : vector<72x1xf32>
    %408 = vector.broadcast %400 : vector<72x1xf32> to vector<72x128xf32>
    %409 = arith.subf %392, %408 : vector<72x128xf32>
    %cst_234 = arith.constant 9.99999974E-6 : f32
    %410 = vector.broadcast %cst_234 : f32 to vector<72x1xf32>
    %411 = arith.addf %407, %410 : vector<72x1xf32>
    %412 = math.rsqrt %411 : vector<72x1xf32>
    %413 = vector.broadcast %412 : vector<72x1xf32> to vector<72x128xf32>
    %414 = arith.mulf %409, %413 : vector<72x128xf32>
    %415 = vector.broadcast %394 : vector<1x128xf32> to vector<72x128xf32>
    %416 = arith.mulf %414, %415 : vector<72x128xf32>
    %417 = vector.broadcast %396 : vector<1x128xf32> to vector<72x128xf32>
    %418 = arith.addf %416, %417 : vector<72x128xf32>
    %419 = arith.truncf %418 : vector<72x128xf32> to vector<72x128xbf16>
    %cst_235 = arith.constant 0.000000e+00 : f32
    %420 = vector.broadcast %cst_235 : f32 to vector<72x128xf32>
    %c1_236 = arith.constant 1 : index
    %c0_237 = arith.constant 0 : index
    %c0_238 = arith.constant 0 : index
    %421 = vector.load %arg22[%c1_236, %c0_237, %c0_238] : memref<2x128x2048xbf16, #tpu.memory_space<vmem>>, vector<1x128x512xbf16>
    %422 = vector.shape_cast %421 : vector<1x128x512xbf16> to vector<128x512xbf16>
    %cst_239 = arith.constant dense<0.000000e+00> : vector<72x512xf32>
    %423 = tpu.matmul %419, %422, %cst_239 {dimension_numbers = #tpu.dot_dimension_numbers<[1], [0], [0], [1], [0, 0, 1, 1], [], []>} : vector<72x128xbf16>, vector<128x512xbf16>, vector<72x512xf32> -> vector<72x512xf32>
    %c1_240 = arith.constant 1 : index
    %c0_241 = arith.constant 0 : index
    %c0_242 = arith.constant 0 : index
    %424 = vector.load %arg23[%c1_240, %c0_241, %c0_242] : memref<2x1x2048xf32, #tpu.memory_space<vmem>>, vector<1x1x512xf32>
    %425 = vector.shape_cast %424 : vector<1x1x512xf32> to vector<1x512xf32>
    %426 = vector.broadcast %425 : vector<1x512xf32> to vector<72x512xf32>
    %427 = arith.addf %423, %426 : vector<72x512xf32>
    %cst_243 = arith.constant 0.000000e+00 : f32
    %428 = vector.broadcast %cst_243 : f32 to vector<72x512xf32>
    %429 = arith.maximumf %427, %428 : vector<72x512xf32>
    %430 = arith.truncf %429 : vector<72x512xf32> to vector<72x512xbf16>
    %c1_244 = arith.constant 1 : index
    %c0_245 = arith.constant 0 : index
    %c0_246 = arith.constant 0 : index
    %431 = vector.load %arg24[%c1_244, %c0_245, %c0_246] : memref<2x2048x128xbf16, #tpu.memory_space<vmem>>, vector<1x512x128xbf16>
    %432 = vector.shape_cast %431 : vector<1x512x128xbf16> to vector<512x128xbf16>
    %cst_247 = arith.constant dense<0.000000e+00> : vector<72x128xf32>
    %433 = tpu.matmul %430, %432, %cst_247 {dimension_numbers = #tpu.dot_dimension_numbers<[1], [0], [0], [1], [0, 0, 1, 1], [], []>} : vector<72x512xbf16>, vector<512x128xbf16>, vector<72x128xf32> -> vector<72x128xf32>
    %434 = arith.addf %420, %433 : vector<72x128xf32>
    %c1_248 = arith.constant 1 : index
    %c0_249 = arith.constant 0 : index
    %c512_250 = arith.constant 512 : index
    %435 = vector.load %arg22[%c1_248, %c0_249, %c512_250] : memref<2x128x2048xbf16, #tpu.memory_space<vmem>>, vector<1x128x512xbf16>
    %436 = vector.shape_cast %435 : vector<1x128x512xbf16> to vector<128x512xbf16>
    %cst_251 = arith.constant dense<0.000000e+00> : vector<72x512xf32>
    %437 = tpu.matmul %419, %436, %cst_251 {dimension_numbers = #tpu.dot_dimension_numbers<[1], [0], [0], [1], [0, 0, 1, 1], [], []>} : vector<72x128xbf16>, vector<128x512xbf16>, vector<72x512xf32> -> vector<72x512xf32>
    %c1_252 = arith.constant 1 : index
    %c0_253 = arith.constant 0 : index
    %c512_254 = arith.constant 512 : index
    %438 = vector.load %arg23[%c1_252, %c0_253, %c512_254] : memref<2x1x2048xf32, #tpu.memory_space<vmem>>, vector<1x1x512xf32>
    %439 = vector.shape_cast %438 : vector<1x1x512xf32> to vector<1x512xf32>
    %440 = vector.broadcast %439 : vector<1x512xf32> to vector<72x512xf32>
    %441 = arith.addf %437, %440 : vector<72x512xf32>
    %cst_255 = arith.constant 0.000000e+00 : f32
    %442 = vector.broadcast %cst_255 : f32 to vector<72x512xf32>
    %443 = arith.maximumf %441, %442 : vector<72x512xf32>
    %444 = arith.truncf %443 : vector<72x512xf32> to vector<72x512xbf16>
    %c1_256 = arith.constant 1 : index
    %c512_257 = arith.constant 512 : index
    %c0_258 = arith.constant 0 : index
    %445 = vector.load %arg24[%c1_256, %c512_257, %c0_258] : memref<2x2048x128xbf16, #tpu.memory_space<vmem>>, vector<1x512x128xbf16>
    %446 = vector.shape_cast %445 : vector<1x512x128xbf16> to vector<512x128xbf16>
    %cst_259 = arith.constant dense<0.000000e+00> : vector<72x128xf32>
    %447 = tpu.matmul %444, %446, %cst_259 {dimension_numbers = #tpu.dot_dimension_numbers<[1], [0], [0], [1], [0, 0, 1, 1], [], []>} : vector<72x512xbf16>, vector<512x128xbf16>, vector<72x128xf32> -> vector<72x128xf32>
    %448 = arith.addf %434, %447 : vector<72x128xf32>
    %c1_260 = arith.constant 1 : index
    %c0_261 = arith.constant 0 : index
    %c1024_262 = arith.constant 1024 : index
    %449 = vector.load %arg22[%c1_260, %c0_261, %c1024_262] : memref<2x128x2048xbf16, #tpu.memory_space<vmem>>, vector<1x128x512xbf16>
    %450 = vector.shape_cast %449 : vector<1x128x512xbf16> to vector<128x512xbf16>
    %cst_263 = arith.constant dense<0.000000e+00> : vector<72x512xf32>
    %451 = tpu.matmul %419, %450, %cst_263 {dimension_numbers = #tpu.dot_dimension_numbers<[1], [0], [0], [1], [0, 0, 1, 1], [], []>} : vector<72x128xbf16>, vector<128x512xbf16>, vector<72x512xf32> -> vector<72x512xf32>
    %c1_264 = arith.constant 1 : index
    %c0_265 = arith.constant 0 : index
    %c1024_266 = arith.constant 1024 : index
    %452 = vector.load %arg23[%c1_264, %c0_265, %c1024_266] : memref<2x1x2048xf32, #tpu.memory_space<vmem>>, vector<1x1x512xf32>
    %453 = vector.shape_cast %452 : vector<1x1x512xf32> to vector<1x512xf32>
    %454 = vector.broadcast %453 : vector<1x512xf32> to vector<72x512xf32>
    %455 = arith.addf %451, %454 : vector<72x512xf32>
    %cst_267 = arith.constant 0.000000e+00 : f32
    %456 = vector.broadcast %cst_267 : f32 to vector<72x512xf32>
    %457 = arith.maximumf %455, %456 : vector<72x512xf32>
    %458 = arith.truncf %457 : vector<72x512xf32> to vector<72x512xbf16>
    %c1_268 = arith.constant 1 : index
    %c1024_269 = arith.constant 1024 : index
    %c0_270 = arith.constant 0 : index
    %459 = vector.load %arg24[%c1_268, %c1024_269, %c0_270] : memref<2x2048x128xbf16, #tpu.memory_space<vmem>>, vector<1x512x128xbf16>
    %460 = vector.shape_cast %459 : vector<1x512x128xbf16> to vector<512x128xbf16>
    %cst_271 = arith.constant dense<0.000000e+00> : vector<72x128xf32>
    %461 = tpu.matmul %458, %460, %cst_271 {dimension_numbers = #tpu.dot_dimension_numbers<[1], [0], [0], [1], [0, 0, 1, 1], [], []>} : vector<72x512xbf16>, vector<512x128xbf16>, vector<72x128xf32> -> vector<72x128xf32>
    %462 = arith.addf %448, %461 : vector<72x128xf32>
    %c1_272 = arith.constant 1 : index
    %c0_273 = arith.constant 0 : index
    %c1536_274 = arith.constant 1536 : index
    %463 = vector.load %arg22[%c1_272, %c0_273, %c1536_274] : memref<2x128x2048xbf16, #tpu.memory_space<vmem>>, vector<1x128x512xbf16>
    %464 = vector.shape_cast %463 : vector<1x128x512xbf16> to vector<128x512xbf16>
    %cst_275 = arith.constant dense<0.000000e+00> : vector<72x512xf32>
    %465 = tpu.matmul %419, %464, %cst_275 {dimension_numbers = #tpu.dot_dimension_numbers<[1], [0], [0], [1], [0, 0, 1, 1], [], []>} : vector<72x128xbf16>, vector<128x512xbf16>, vector<72x512xf32> -> vector<72x512xf32>
    %c1_276 = arith.constant 1 : index
    %c0_277 = arith.constant 0 : index
    %c1536_278 = arith.constant 1536 : index
    %466 = vector.load %arg23[%c1_276, %c0_277, %c1536_278] : memref<2x1x2048xf32, #tpu.memory_space<vmem>>, vector<1x1x512xf32>
    %467 = vector.shape_cast %466 : vector<1x1x512xf32> to vector<1x512xf32>
    %468 = vector.broadcast %467 : vector<1x512xf32> to vector<72x512xf32>
    %469 = arith.addf %465, %468 : vector<72x512xf32>
    %cst_279 = arith.constant 0.000000e+00 : f32
    %470 = vector.broadcast %cst_279 : f32 to vector<72x512xf32>
    %471 = arith.maximumf %469, %470 : vector<72x512xf32>
    %472 = arith.truncf %471 : vector<72x512xf32> to vector<72x512xbf16>
    %c1_280 = arith.constant 1 : index
    %c1536_281 = arith.constant 1536 : index
    %c0_282 = arith.constant 0 : index
    %473 = vector.load %arg24[%c1_280, %c1536_281, %c0_282] : memref<2x2048x128xbf16, #tpu.memory_space<vmem>>, vector<1x512x128xbf16>
    %474 = vector.shape_cast %473 : vector<1x512x128xbf16> to vector<512x128xbf16>
    %cst_283 = arith.constant dense<0.000000e+00> : vector<72x128xf32>
    %475 = tpu.matmul %472, %474, %cst_283 {dimension_numbers = #tpu.dot_dimension_numbers<[1], [0], [0], [1], [0, 0, 1, 1], [], []>} : vector<72x512xbf16>, vector<512x128xbf16>, vector<72x128xf32> -> vector<72x128xf32>
    %476 = arith.addf %462, %475 : vector<72x128xf32>
    %477 = arith.addf %418, %476 : vector<72x128xf32>
    %c1_284 = arith.constant 1 : index
    %c0_285 = arith.constant 0 : index
    %c0_286 = arith.constant 0 : index
    %478 = vector.load %arg25[%c1_284, %c0_285, %c0_286] : memref<2x1x128xf32, #tpu.memory_space<vmem>>, vector<1x1x128xf32>
    %479 = vector.shape_cast %478 : vector<1x1x128xf32> to vector<1x128xf32>
    %480 = vector.broadcast %479 : vector<1x128xf32> to vector<72x128xf32>
    %481 = arith.addf %477, %480 : vector<72x128xf32>
    %c1_287 = arith.constant 1 : index
    %c0_288 = arith.constant 0 : index
    %c0_289 = arith.constant 0 : index
    %482 = vector.load %arg26[%c1_287, %c0_288, %c0_289] : memref<2x1x128xf32, #tpu.memory_space<vmem>>, vector<1x1x128xf32>
    %483 = vector.shape_cast %482 : vector<1x1x128xf32> to vector<1x128xf32>
    %c1_290 = arith.constant 1 : index
    %c0_291 = arith.constant 0 : index
    %c0_292 = arith.constant 0 : index
    %484 = vector.load %arg27[%c1_290, %c0_291, %c0_292] : memref<2x1x128xf32, #tpu.memory_space<vmem>>, vector<1x1x128xf32>
    %485 = vector.shape_cast %484 : vector<1x1x128xf32> to vector<1x128xf32>
    %cst_293 = arith.constant dense<0.000000e+00> : vector<72xf32>
    %486 = vector.multi_reduction <add>, %481, %cst_293 [1] : vector<72x128xf32> to vector<72xf32>
    %487 = vector.shape_cast %486 : vector<72xf32> to vector<72x1xf32>
    %cst_294 = arith.constant 1.280000e+02 : f32
    %488 = vector.broadcast %cst_294 : f32 to vector<72x1xf32>
    %489 = arith.divf %487, %488 : vector<72x1xf32>
    %490 = vector.broadcast %489 : vector<72x1xf32> to vector<72x128xf32>
    %491 = arith.subf %481, %490 : vector<72x128xf32>
    %492 = arith.mulf %491, %491 : vector<72x128xf32>
    %cst_295 = arith.constant dense<0.000000e+00> : vector<72xf32>
    %493 = vector.multi_reduction <add>, %492, %cst_295 [1] : vector<72x128xf32> to vector<72xf32>
    %494 = vector.shape_cast %493 : vector<72xf32> to vector<72x1xf32>
    %cst_296 = arith.constant 1.280000e+02 : f32
    %495 = vector.broadcast %cst_296 : f32 to vector<72x1xf32>
    %496 = arith.divf %494, %495 : vector<72x1xf32>
    %497 = vector.broadcast %489 : vector<72x1xf32> to vector<72x128xf32>
    %498 = arith.subf %481, %497 : vector<72x128xf32>
    %cst_297 = arith.constant 9.99999974E-6 : f32
    %499 = vector.broadcast %cst_297 : f32 to vector<72x1xf32>
    %500 = arith.addf %496, %499 : vector<72x1xf32>
    %501 = math.rsqrt %500 : vector<72x1xf32>
    %502 = vector.broadcast %501 : vector<72x1xf32> to vector<72x128xf32>
    %503 = arith.mulf %498, %502 : vector<72x128xf32>
    %504 = vector.broadcast %483 : vector<1x128xf32> to vector<72x128xf32>
    %505 = arith.mulf %503, %504 : vector<72x128xf32>
    %506 = vector.broadcast %485 : vector<1x128xf32> to vector<72x128xf32>
    %507 = arith.addf %505, %506 : vector<72x128xf32>
    %508 = arith.addf %507, %45 : vector<72x128xf32>
    %c0_298 = arith.constant 0 : index
    %c0_299 = arith.constant 0 : index
    %509 = vector.load %arg28[%c0_298, %c0_299] : memref<1x128xf32, #tpu.memory_space<vmem>>, vector<1x128xf32>
    %510 = vector.broadcast %509 : vector<1x128xf32> to vector<72x128xf32>
    %511 = arith.mulf %508, %510 : vector<72x128xf32>
    %cst_300 = arith.constant dense<0.000000e+00> : vector<72xf32>
    %512 = vector.multi_reduction <add>, %511, %cst_300 [1] : vector<72x128xf32> to vector<72xf32>
    %513 = vector.shape_cast %512 : vector<72xf32> to vector<72x1xf32>
    %c0_301 = arith.constant 0 : index
    %c0_302 = arith.constant 0 : index
    %514 = vector.load %arg29[%c0_301, %c0_302] : memref<1x1xf32, #tpu.memory_space<vmem>>, vector<1x1xf32>
    %515 = vector.broadcast %514 : vector<1x1xf32> to vector<72x1xf32>
    %516 = arith.addf %513, %515 : vector<72x1xf32>
    %cst_303 = arith.constant dense<0xFF800000> : vector<1xf32>
    %517 = vector.multi_reduction <maximumf>, %516, %cst_303 [0] : vector<72x1xf32> to vector<1xf32>
    %518 = vector.shape_cast %517 : vector<1xf32> to vector<1x1xf32>
    %519 = vector.broadcast %518 : vector<1x1xf32> to vector<72x1xf32>
    %520 = arith.subf %516, %519 : vector<72x1xf32>
    %521 = math.exp %520 : vector<72x1xf32>
    %c0_304 = arith.constant 0 : index
    %c0_305 = arith.constant 0 : index
    %522 = vector.load %arg7[%c0_304, %c0_305] : memref<2x72xf32, #tpu.memory_space<vmem>>, vector<2x72xf32>
    %523 = vector.broadcast %521 : vector<72x1xf32> to vector<72x128xf32>
    %524 = arith.mulf %508, %523 : vector<72x128xf32>
    %cst_306 = arith.constant dense<0.000000e+00> : vector<2x128xf32>
    %525 = tpu.matmul %522, %524, %cst_306 {dimension_numbers = #tpu.dot_dimension_numbers<[1], [0], [0], [1], [0, 0, 1, 1], [], []>} : vector<2x72xf32>, vector<72x128xf32>, vector<2x128xf32> -> vector<2x128xf32>
    %cst_307 = arith.constant dense<0.000000e+00> : vector<2x1xf32>
    %526 = tpu.matmul %522, %521, %cst_307 {dimension_numbers = #tpu.dot_dimension_numbers<[1], [0], [0], [1], [0, 0, 1, 1], [], []>} : vector<2x72xf32>, vector<72x1xf32>, vector<2x1xf32> -> vector<2x1xf32>
    %527 = vector.broadcast %526 : vector<2x1xf32> to vector<2x128xf32>
    %528 = arith.divf %525, %527 : vector<2x128xf32>
    %c0_308 = arith.constant 0 : index
    %c0_309 = arith.constant 0 : index
    %529 = vector.load %arg30[%c0_308, %c0_309] : memref<1x128xf32, #tpu.memory_space<vmem>>, vector<1x128xf32>
    %530 = vector.broadcast %529 : vector<1x128xf32> to vector<2x128xf32>
    %531 = arith.mulf %528, %530 : vector<2x128xf32>
    %cst_310 = arith.constant dense<0.000000e+00> : vector<2xf32>
    %532 = vector.multi_reduction <add>, %531, %cst_310 [1] : vector<2x128xf32> to vector<2xf32>
    %533 = vector.shape_cast %532 : vector<2xf32> to vector<2x1xf32>
    %c0_311 = arith.constant 0 : index
    %c0_312 = arith.constant 0 : index
    %534 = vector.load %arg31[%c0_311, %c0_312] : memref<1x1xf32, #tpu.memory_space<vmem>>, vector<1x1xf32>
    %535 = vector.broadcast %534 : vector<1x1xf32> to vector<2x1xf32>
    %536 = arith.addf %533, %535 : vector<2x1xf32>
    %cst_313 = arith.constant 0.000000e+00 : f32
    %537 = vector.broadcast %cst_313 : f32 to vector<2x1xf32>
    %538 = arith.cmpf ogt, %536, %537 : vector<2x1xf32>
    %cst_314 = arith.constant 1.000000e-01 : f32
    %539 = vector.broadcast %cst_314 : f32 to vector<2x1xf32>
    %540 = arith.mulf %539, %536 : vector<2x1xf32>
    %541 = arith.select %538, %536, %540 : vector<2x1xi1>, vector<2x1xf32>
    %c0_315 = arith.constant 0 : index
    %c0_316 = arith.constant 0 : index
    %542 = vector.load %arg32[%c0_315, %c0_316] : memref<2x1xf32, #tpu.memory_space<vmem>>, vector<2x1xf32>
    tpu.vector_store %arg32[%c0_315, %c0_316], %541 {strides = array<i32>} : memref<2x1xf32, #tpu.memory_space<vmem>>, vector<2x1xf32>,
    return
  }
  func.func @transform_0(%arg0: i32) -> (i32, i32) {
    %c0_i32 = arith.constant 0 : i32
    %c0_i32_0 = arith.constant 0 : i32
    %c0_i32_1 = arith.constant 0 : i32
    return %c0_i32, %c0_i32_0 : i32, i32
  }
  func.func @transform_1(%arg0: i32) -> (i32, i32) {
    %c0_i32 = arith.constant 0 : i32
    %c0_i32_0 = arith.constant 0 : i32
    %c0_i32_1 = arith.constant 0 : i32
    return %c0_i32, %c0_i32_0 : i32, i32
  }
  func.func @transform_2(%arg0: i32) -> (i32, i32, i32) {
    %c0_i32 = arith.constant 0 : i32
    %c0_i32_0 = arith.constant 0 : i32
    %c0_i32_1 = arith.constant 0 : i32
    %c0_i32_2 = arith.constant 0 : i32
    return %c0_i32, %c0_i32_0, %c0_i32_1 : i32, i32, i32
  }
  func.func @transform_3(%arg0: i32) -> (i32, i32, i32) {
    %c0_i32 = arith.constant 0 : i32
    %c0_i32_0 = arith.constant 0 : i32
    %c0_i32_1 = arith.constant 0 : i32
    %c0_i32_2 = arith.constant 0 : i32
    return %c0_i32, %c0_i32_0, %c0_i32_1 : i32, i32, i32
  }
  func.func @transform_4(%arg0: i32) -> (i32, i32) {
    %c0_i32 = arith.constant 0 : i32
    %c0_i32_0 = arith.constant 0 : i32
    %c0_i32_1 = arith.constant 0 : i32
    return %c0_i32, %c0_i32_0 : i32, i32
  }
  func.func @transform_5(%arg0: i32) -> (i32, i32) {
    %c0_i32 = arith.constant 0 : i32
    %c0_i32_0 = arith.constant 0 : i32
    %c0_i32_1 = arith.constant 0 : i32
    return %c0_i32, %c0_i32_0 : i32, i32
  }
  func.func @transform_6(%arg0: i32) -> (i32, i32) {
    %c0_i32 = arith.constant 0 : i32
    %c0_i32_0 = arith.constant 0 : i32
    %c0_i32_1 = arith.constant 0 : i32
    return %c0_i32, %c0_i32_0 : i32, i32
  }
  func.func @transform_7(%arg0: i32) -> (i32, i32, i32) {
    %c0_i32 = arith.constant 0 : i32
    %c0_i32_0 = arith.constant 0 : i32
    %c0_i32_1 = arith.constant 0 : i32
    %c0_i32_2 = arith.constant 0 : i32
    return %c0_i32, %c0_i32_0, %c0_i32_1 : i32, i32, i32
  }
  func.func @transform_8(%arg0: i32) -> (i32, i32) {
    %c0_i32 = arith.constant 0 : i32
    %c0_i32_0 = arith.constant 0 : i32
    %c0_i32_1 = arith.constant 0 : i32
    return %c0_i32, %c0_i32_0 : i32, i32
  }
  func.func @transform_9(%arg0: i32) -> (i32, i32, i32) {
    %c0_i32 = arith.constant 0 : i32
    %c0_i32_0 = arith.constant 0 : i32
    %c0_i32_1 = arith.constant 0 : i32
    %c0_i32_2 = arith.constant 0 : i32
    return %c0_i32, %c0_i32_0, %c0_i32_1 : i32, i32, i32
  }
  func.func @transform_10(%arg0: i32) -> (i32, i32) {
    %c0_i32 = arith.constant 0 : i32
    %c0_i32_0 = arith.constant 0 : i32
    %c0_i32_1 = arith.constant 0 : i32
    return %c0_i32, %c0_i32_0 : i32, i32
  }
  func.func @transform_11(%arg0: i32) -> (i32, i32) {
    %c0_i32 = arith.constant 0 : i32
    %c0_i32_0 = arith.constant 0 : i32
    %c0_i32_1 = arith.constant 0 : i32
    return %c0_i32, %c0_i32_0 : i32, i32
  }
  func.func @transform_12(%arg0: i32) -> (i32, i32) {
    %c0_i32 = arith.constant 0 : i32
    %c0_i32_0 = arith.constant 0 : i32
    %c0_i32_1 = arith.constant 0 : i32
    return %c0_i32, %c0_i32_0 : i32, i32
  }
  func.func @transform_13(%arg0: i32) -> (i32, i32) {
    %c0_i32 = arith.constant 0 : i32
    %c0_i32_0 = arith.constant 0 : i32
    %c0_i32_1 = arith.constant 0 : i32
    return %c0_i32, %c0_i32_0 : i32, i32
  }
  func.func @transform_14(%arg0: i32) -> (i32, i32) {
    %c0_i32 = arith.constant 0 : i32
    %c0_i32_0 = arith.constant 0 : i32
    %c0_i32_1 = arith.constant 0 : i32
    return %c0_i32, %c0_i32_0 : i32, i32
  }
  func.func @transform_15(%arg0: i32) -> (i32, i32, i32) {
    %c0_i32 = arith.constant 0 : i32
    %c0_i32_0 = arith.constant 0 : i32
    %c0_i32_1 = arith.constant 0 : i32
    %c0_i32_2 = arith.constant 0 : i32
    return %c0_i32, %c0_i32_0, %c0_i32_1 : i32, i32, i32
  }
  func.func @transform_16(%arg0: i32) -> (i32, i32, i32) {
    %c0_i32 = arith.constant 0 : i32
    %c0_i32_0 = arith.constant 0 : i32
    %c0_i32_1 = arith.constant 0 : i32
    %c0_i32_2 = arith.constant 0 : i32
    return %c0_i32, %c0_i32_0, %c0_i32_1 : i32, i32, i32
  }
  func.func @transform_17(%arg0: i32) -> (i32, i32, i32) {
    %c0_i32 = arith.constant 0 : i32
    %c0_i32_0 = arith.constant 0 : i32
    %c0_i32_1 = arith.constant 0 : i32
    %c0_i32_2 = arith.constant 0 : i32
    return %c0_i32, %c0_i32_0, %c0_i32_1 : i32, i32, i32
  }
  func.func @transform_18(%arg0: i32) -> (i32, i32, i32) {
    %c0_i32 = arith.constant 0 : i32
    %c0_i32_0 = arith.constant 0 : i32
    %c0_i32_1 = arith.constant 0 : i32
    %c0_i32_2 = arith.constant 0 : i32
    return %c0_i32, %c0_i32_0, %c0_i32_1 : i32, i32, i32
  }
  func.func @transform_19(%arg0: i32) -> (i32, i32, i32) {
    %c0_i32 = arith.constant 0 : i32
    %c0_i32_0 = arith.constant 0 : i32
    %c0_i32_1 = arith.constant 0 : i32
    %c0_i32_2 = arith.constant 0 : i32
    return %c0_i32, %c0_i32_0, %c0_i32_1 : i32, i32, i32
  }
  func.func @transform_20(%arg0: i32) -> (i32, i32, i32) {
    %c0_i32 = arith.constant 0 : i32
    %c0_i32_0 = arith.constant 0 : i32
    %c0_i32_1 = arith.constant 0 : i32
    %c0_i32_2 = arith.constant 0 : i32
    return %c0_i32, %c0_i32_0, %c0_i32_1 : i32, i32, i32
  }
  func.func @transform_21(%arg0: i32) -> (i32, i32, i32) {
    %c0_i32 = arith.constant 0 : i32
    %c0_i32_0 = arith.constant 0 : i32
    %c0_i32_1 = arith.constant 0 : i32
    %c0_i32_2 = arith.constant 0 : i32
    return %c0_i32, %c0_i32_0, %c0_i32_1 : i32, i32, i32
  }
  func.func @transform_22(%arg0: i32) -> (i32, i32, i32) {
    %c0_i32 = arith.constant 0 : i32
    %c0_i32_0 = arith.constant 0 : i32
    %c0_i32_1 = arith.constant 0 : i32
    %c0_i32_2 = arith.constant 0 : i32
    return %c0_i32, %c0_i32_0, %c0_i32_1 : i32, i32, i32
  }
  func.func @transform_23(%arg0: i32) -> (i32, i32, i32) {
    %c0_i32 = arith.constant 0 : i32
    %c0_i32_0 = arith.constant 0 : i32
    %c0_i32_1 = arith.constant 0 : i32
    %c0_i32_2 = arith.constant 0 : i32
    return %c0_i32, %c0_i32_0, %c0_i32_1 : i32, i32, i32
  }
  func.func @transform_24(%arg0: i32) -> (i32, i32, i32) {
    %c0_i32 = arith.constant 0 : i32
    %c0_i32_0 = arith.constant 0 : i32
    %c0_i32_1 = arith.constant 0 : i32
    %c0_i32_2 = arith.constant 0 : i32
    return %c0_i32, %c0_i32_0, %c0_i32_1 : i32, i32, i32
  }
  func.func @transform_25(%arg0: i32) -> (i32, i32, i32) {
    %c0_i32 = arith.constant 0 : i32
    %c0_i32_0 = arith.constant 0 : i32
    %c0_i32_1 = arith.constant 0 : i32
    %c0_i32_2 = arith.constant 0 : i32
    return %c0_i32, %c0_i32_0, %c0_i32_1 : i32, i32, i32
  }
  func.func @transform_26(%arg0: i32) -> (i32, i32, i32) {
    %c0_i32 = arith.constant 0 : i32
    %c0_i32_0 = arith.constant 0 : i32
    %c0_i32_1 = arith.constant 0 : i32
    %c0_i32_2 = arith.constant 0 : i32
    return %c0_i32, %c0_i32_0, %c0_i32_1 : i32, i32, i32
  }
  func.func @transform_27(%arg0: i32) -> (i32, i32) {
    %c0_i32 = arith.constant 0 : i32
    %c0_i32_0 = arith.constant 0 : i32
    %c0_i32_1 = arith.constant 0 : i32
    return %c0_i32, %c0_i32_0 : i32, i32
  }
  func.func @transform_28(%arg0: i32) -> (i32, i32) {
    %c0_i32 = arith.constant 0 : i32
    %c0_i32_0 = arith.constant 0 : i32
    %c0_i32_1 = arith.constant 0 : i32
    return %c0_i32, %c0_i32_0 : i32, i32
  }
  func.func @transform_29(%arg0: i32) -> (i32, i32) {
    %c0_i32 = arith.constant 0 : i32
    %c0_i32_0 = arith.constant 0 : i32
    %c0_i32_1 = arith.constant 0 : i32
    return %c0_i32, %c0_i32_0 : i32, i32
  }
  func.func @transform_30(%arg0: i32) -> (i32, i32) {
    %c0_i32 = arith.constant 0 : i32
    %c0_i32_0 = arith.constant 0 : i32
    %c0_i32_1 = arith.constant 0 : i32
    return %c0_i32, %c0_i32_0 : i32, i32
  }
  func.func @transform_31(%arg0: i32) -> (i32, i32) {
    %c0_i32 = arith.constant 0 : i32
    %c0_i32_0 = arith.constant 0 : i32
    %c0_i32_1 = arith.constant 0 : i32
    return %c0_i32, %c0_i32_0 : i32, i32
  }
}

</mosaic_0001>

<llo_original>
// kernel: graphforecast_pred.1
$region0: #{graphforecast_pred.1}
  #allocation0 [shape = 'u32[]', space=smem, size = 0x4, offset = 0x4, fixed_abs, tag = 'smem constant byte address 0x4 - core index']
  #allocation1 [shape = 'u32[144,128]{1,0:T(1,128)}', space=vmem, size = 0x12000, scoped, tag = 'internal scratch']
  #allocation2 [shape = 'f32[88,64]{1,0:T(8,128)}', space=vmem, size = 0xb000, scoped, tag = 'scratch operand']
  #allocation3 [shape = 'f32[1,1]{1,0:T(1,128)S(1)}', space=vmem, size = 0x200, scoped, tag = 'scoped memory for graphforecast_pred.1']
  #allocation4 [shape = 'f32[1,1]{1,0:T(1,128)S(1)}', space=vmem, size = 0x200, scoped, tag = 'scoped memory for graphforecast_pred.1']
  %s0 = inlined_call_operand.smem [shape: u32[32], index: -1, kind: input, shape index: {}]
  %s1 = sld [smem:[%s0]]
  %s2 = scalar_lea.smem %s0, 1
  %s3 = sld [smem:[%s2]]
  %s4 = scalar_lea.smem %s0, 2
  %s5 = sld [smem:[%s4]]
  %s6 = scalar_lea.smem %s0, 3
  %s7 = sld [smem:[%s6]]
  %s8 = scalar_lea.smem %s0, 4
  %s9 = sld [smem:[%s8]]
  %s10 = scalar_lea.smem %s0, 5
  %s11 = sld [smem:[%s10]]
  %s12 = scalar_lea.smem %s0, 6
  %s13 = sld [smem:[%s12]]
  %s14 = scalar_lea.smem %s0, 7
  %s15 = sld [smem:[%s14]]
  %s16 = scalar_lea.smem %s0, 8
  %s17 = sld [smem:[%s16]]
  %s18 = scalar_lea.smem %s0, 9
  %s19 = sld [smem:[%s18]]
  %s20 = scalar_lea.smem %s0, 10
  %s21 = sld [smem:[%s20]]
  %s22 = scalar_lea.smem %s0, 11
  %s23 = sld [smem:[%s22]]
  %s24 = scalar_lea.smem %s0, 12
  %s25 = sld [smem:[%s24]]
  %s26 = scalar_lea.smem %s0, 13
  %s27 = sld [smem:[%s26]]
  %s28 = scalar_lea.smem %s0, 14
  %s29 = sld [smem:[%s28]]
  %s30 = scalar_lea.smem %s0, 15
  %s31 = sld [smem:[%s30]]
  %s32 = scalar_lea.smem %s0, 16
  %s33 = sld [smem:[%s32]]
  %s34 = scalar_lea.smem %s0, 17
  %s35 = sld [smem:[%s34]]
  %s36 = scalar_lea.smem %s0, 18
  %s37 = sld [smem:[%s36]]
  %s38 = scalar_lea.smem %s0, 19
  %s39 = sld [smem:[%s38]]
  %s40 = scalar_lea.smem %s0, 20
  %s41 = sld [smem:[%s40]]
  %s42 = scalar_lea.smem %s0, 21
  %s43 = sld [smem:[%s42]]
  %s44 = scalar_lea.smem %s0, 22
  %s45 = sld [smem:[%s44]]
  %s46 = scalar_lea.smem %s0, 23
  %s47 = sld [smem:[%s46]]
  %s48 = scalar_lea.smem %s0, 24
  %s49 = sld [smem:[%s48]]
  %s50 = scalar_lea.smem %s0, 25
  %s51 = sld [smem:[%s50]]
  %s52 = scalar_lea.smem %s0, 26
  %s53 = sld [smem:[%s52]]
  %s54 = scalar_lea.smem %s0, 27
  %s55 = sld [smem:[%s54]]
  %s56 = scalar_lea.smem %s0, 28
  %s57 = sld [smem:[%s56]]
  %s58 = scalar_lea.smem %s0, 29
  %s59 = sld [smem:[%s58]]
  %s60 = scalar_lea.smem %s0, 30
  %s61 = sld [smem:[%s60]]
  %s62 = scalar_lea.smem %s0, 31
  %s63 = sld [smem:[%s62]]
  %s64 = sld [smem:[#allocation0]]
  $region134: #{graphforecast_pred.1} parent=0
    _
  %s66 = ssub.s32 1, %s64
  %s67 = scalar_select 0, %s66, %s64
  %v68 = vstv %s57
  %69 = vst [vmem:[#allocation3] sm:$0x1] %v68
  %v70 = vstv %s61
  %71 = vst [vmem:[#allocation4] sm:$0x1] %v70
  // Predicated region
  $region2: #{graphforecast_pred.1} parent=0 // pred_check
    _
  $region3: #{graphforecast_pred.1} parent=0 // pred_check_branch
    %73 = sbr.rel (0) target = $region5
  $region4: #{graphforecast_pred.1} parent=0 // pred_region
    _
  $region5: #{graphforecast_pred.1} parent=0 // pred_fallthru
    _
  // Predicated region
  $region6: #{graphforecast_pred.1} parent=0 // pred_check
    _
  $region7: #{graphforecast_pred.1} parent=0 // pred_check_branch
    %75 = sbr.rel (0) target = $region9
  $region8: #{graphforecast_pred.1} parent=0 // pred_region
    _
  $region9: #{graphforecast_pred.1} parent=0 // pred_fallthru
    _
  // Predicated region
  $region10: #{graphforecast_pred.1} parent=0 // pred_check
    _
  $region11: #{graphforecast_pred.1} parent=0 // pred_check_branch
    %77 = sbr.rel (0) target = $region13
  $region12: #{graphforecast_pred.1} parent=0 // pred_region
    _
  $region13: #{graphforecast_pred.1} parent=0 // pred_fallthru
    _
  // Predicated region
  $region14: #{graphforecast_pred.1} parent=0 // pred_check
    _
  $region15: #{graphforecast_pred.1} parent=0 // pred_check_branch
    %79 = sbr.rel (0) target = $region17
  $region16: #{graphforecast_pred.1} parent=0 // pred_region
    _
  $region17: #{graphforecast_pred.1} parent=0 // pred_fallthru
    _
  // Predicated region
  $region18: #{graphforecast_pred.1} parent=0 // pred_check
    _
  $region19: #{graphforecast_pred.1} parent=0 // pred_check_branch
    %81 = sbr.rel (0) target = $region21
  $region20: #{graphforecast_pred.1} parent=0 // pred_region
    _
  $region21: #{graphforecast_pred.1} parent=0 // pred_fallthru
    _
  // Predicated region
  $region22: #{graphforecast_pred.1} parent=0 // pred_check
    _
  $region23: #{graphforecast_pred.1} parent=0 // pred_check_branch
    %83 = sbr.rel (0) target = $region25
  $region24: #{graphforecast_pred.1} parent=0 // pred_region
    _
  $region25: #{graphforecast_pred.1} parent=0 // pred_fallthru
    _
  // Predicated region
  $region26: #{graphforecast_pred.1} parent=0 // pred_check
    _
  $region27: #{graphforecast_pred.1} parent=0 // pred_check_branch
    %85 = sbr.rel (0) target = $region29
  $region28: #{graphforecast_pred.1} parent=0 // pred_region
    _
  $region29: #{graphforecast_pred.1} parent=0 // pred_fallthru
    _
  // Predicated region
  $region30: #{graphforecast_pred.1} parent=0 // pred_check
    _
  $region31: #{graphforecast_pred.1} parent=0 // pred_check_branch
    %87 = sbr.rel (0) target = $region33
  $region32: #{graphforecast_pred.1} parent=0 // pred_region
    _
  $region33: #{graphforecast_pred.1} parent=0 // pred_fallthru
    _
  // Predicated region
  $region34: #{graphforecast_pred.1} parent=0 // pred_check
    _
  $region35: #{graphforecast_pred.1} parent=0 // pred_check_branch
    %89 = sbr.rel (0) target = $region37
  $region36: #{graphforecast_pred.1} parent=0 // pred_region
    _
  $region37: #{graphforecast_pred.1} parent=0 // pred_fallthru
    _
  // Predicated region
  $region38: #{graphforecast_pred.1} parent=0 // pred_check
    _
  $region39: #{graphforecast_pred.1} parent=0 // pred_check_branch
    %91 = sbr.rel (0) target = $region41
  $region40: #{graphforecast_pred.1} parent=0 // pred_region
    _
  $region41: #{graphforecast_pred.1} parent=0 // pred_fallthru
    _
  // Predicated region
  $region42: #{graphforecast_pred.1} parent=0 // pred_check
    _
  $region43: #{graphforecast_pred.1} parent=0 // pred_check_branch
    %93 = sbr.rel (0) target = $region45
  $region44: #{graphforecast_pred.1} parent=0 // pred_region
    _
  $region45: #{graphforecast_pred.1} parent=0 // pred_fallthru
    _
  // Predicated region
  $region46: #{graphforecast_pred.1} parent=0 // pred_check
    _
  $region47: #{graphforecast_pred.1} parent=0 // pred_check_branch
    %95 = sbr.rel (0) target = $region49
  $region48: #{graphforecast_pred.1} parent=0 // pred_region
    _
  $region49: #{graphforecast_pred.1} parent=0 // pred_fallthru
    _
  // Predicated region
  $region50: #{graphforecast_pred.1} parent=0 // pred_check
    _
  $region51: #{graphforecast_pred.1} parent=0 // pred_check_branch
    %97 = sbr.rel (0) target = $region53
  $region52: #{graphforecast_pred.1} parent=0 // pred_region
    _
  $region53: #{graphforecast_pred.1} parent=0 // pred_fallthru
    _
  // Predicated region
  $region54: #{graphforecast_pred.1} parent=0 // pred_check
    _
  $region55: #{graphforecast_pred.1} parent=0 // pred_check_branch
    %99 = sbr.rel (0) target = $region57
  $region56: #{graphforecast_pred.1} parent=0 // pred_region
    _
  $region57: #{graphforecast_pred.1} parent=0 // pred_fallthru
    _
  // Predicated region
  $region58: #{graphforecast_pred.1} parent=0 // pred_check
    _
  $region59: #{graphforecast_pred.1} parent=0 // pred_check_branch
    %101 = sbr.rel (0) target = $region61
  $region60: #{graphforecast_pred.1} parent=0 // pred_region
    _
  $region61: #{graphforecast_pred.1} parent=0 // pred_fallthru
    _
  // Predicated region
  $region62: #{graphforecast_pred.1} parent=0 // pred_check
    _
  $region63: #{graphforecast_pred.1} parent=0 // pred_check_branch
    %103 = sbr.rel (0) target = $region65
  $region64: #{graphforecast_pred.1} parent=0 // pred_region
    _
  $region65: #{graphforecast_pred.1} parent=0 // pred_fallthru
    _
  // Predicated region
  $region66: #{graphforecast_pred.1} parent=0 // pred_check
    _
  $region67: #{graphforecast_pred.1} parent=0 // pred_check_branch
    %105 = sbr.rel (0) target = $region69
  $region68: #{graphforecast_pred.1} parent=0 // pred_region
    _
  $region69: #{graphforecast_pred.1} parent=0 // pred_fallthru
    _
  // Predicated region
  $region70: #{graphforecast_pred.1} parent=0 // pred_check
    _
  $region71: #{graphforecast_pred.1} parent=0 // pred_check_branch
    %107 = sbr.rel (0) target = $region73
  $region72: #{graphforecast_pred.1} parent=0 // pred_region
    _
  $region73: #{graphforecast_pred.1} parent=0 // pred_fallthru
    _
  // Predicated region
  $region74: #{graphforecast_pred.1} parent=0 // pred_check
    _
  $region75: #{graphforecast_pred.1} parent=0 // pred_check_branch
    %109 = sbr.rel (0) target = $region77
  $region76: #{graphforecast_pred.1} parent=0 // pred_region
    _
  $region77: #{graphforecast_pred.1} parent=0 // pred_fallthru
    _
  // Predicated region
  $region78: #{graphforecast_pred.1} parent=0 // pred_check
    _
  $region79: #{graphforecast_pred.1} parent=0 // pred_check_branch
    %111 = sbr.rel (0) target = $region81
  $region80: #{graphforecast_pred.1} parent=0 // pred_region
    _
  $region81: #{graphforecast_pred.1} parent=0 // pred_fallthru
    _
  // Predicated region
  $region82: #{graphforecast_pred.1} parent=0 // pred_check
    _
  $region83: #{graphforecast_pred.1} parent=0 // pred_check_branch
    %113 = sbr.rel (0) target = $region85
  $region84: #{graphforecast_pred.1} parent=0 // pred_region
    _
  $region85: #{graphforecast_pred.1} parent=0 // pred_fallthru
    _
  // Predicated region
  $region86: #{graphforecast_pred.1} parent=0 // pred_check
    _
  $region87: #{graphforecast_pred.1} parent=0 // pred_check_branch
    %115 = sbr.rel (0) target = $region89
  $region88: #{graphforecast_pred.1} parent=0 // pred_region
    _
  $region89: #{graphforecast_pred.1} parent=0 // pred_fallthru
    _
  // Predicated region
  $region90: #{graphforecast_pred.1} parent=0 // pred_check
    _
  $region91: #{graphforecast_pred.1} parent=0 // pred_check_branch
    %117 = sbr.rel (0) target = $region93
  $region92: #{graphforecast_pred.1} parent=0 // pred_region
    _
  $region93: #{graphforecast_pred.1} parent=0 // pred_fallthru
    _
  // Predicated region
  $region94: #{graphforecast_pred.1} parent=0 // pred_check
    _
  $region95: #{graphforecast_pred.1} parent=0 // pred_check_branch
    %119 = sbr.rel (0) target = $region97
  $region96: #{graphforecast_pred.1} parent=0 // pred_region
    _
  $region97: #{graphforecast_pred.1} parent=0 // pred_fallthru
    _
  // Predicated region
  $region98: #{graphforecast_pred.1} parent=0 // pred_check
    _
  $region99: #{graphforecast_pred.1} parent=0 // pred_check_branch
    %121 = sbr.rel (0) target = $region101
  $region100: #{graphforecast_pred.1} parent=0 // pred_region
    _
  $region101: #{graphforecast_pred.1} parent=0 // pred_fallthru
    _
  // Predicated region
  $region102: #{graphforecast_pred.1} parent=0 // pred_check
    _
  $region103: #{graphforecast_pred.1} parent=0 // pred_check_branch
    %123 = sbr.rel (0) target = $region105
  $region104: #{graphforecast_pred.1} parent=0 // pred_region
    _
  $region105: #{graphforecast_pred.1} parent=0 // pred_fallthru
    _
  // Predicated region
  $region106: #{graphforecast_pred.1} parent=0 // pred_check
    _
  $region107: #{graphforecast_pred.1} parent=0 // pred_check_branch
    %125 = sbr.rel (0) target = $region109
  $region108: #{graphforecast_pred.1} parent=0 // pred_region
    _
  $region109: #{graphforecast_pred.1} parent=0 // pred_fallthru
    _
  // Predicated region
  $region110: #{graphforecast_pred.1} parent=0 // pred_check
    _
  $region111: #{graphforecast_pred.1} parent=0 // pred_check_branch
    %127 = sbr.rel (0) target = $region113
  $region112: #{graphforecast_pred.1} parent=0 // pred_region
    _
  $region113: #{graphforecast_pred.1} parent=0 // pred_fallthru
    _
  // Predicated region
  $region114: #{graphforecast_pred.1} parent=0 // pred_check
    _
  $region115: #{graphforecast_pred.1} parent=0 // pred_check_branch
    %129 = sbr.rel (0) target = $region117
  $region116: #{graphforecast_pred.1} parent=0 // pred_region
    _
  $region117: #{graphforecast_pred.1} parent=0 // pred_fallthru
    _
  // Predicated region
  $region118: #{graphforecast_pred.1} parent=0 // pred_check
    _
  $region119: #{graphforecast_pred.1} parent=0 // pred_check_branch
    %131 = sbr.rel (0) target = $region121
  $region120: #{graphforecast_pred.1} parent=0 // pred_region
    _
  $region121: #{graphforecast_pred.1} parent=0 // pred_fallthru
    _
  // Predicated region
  $region122: #{graphforecast_pred.1} parent=0 // pred_check
    _
  $region123: #{graphforecast_pred.1} parent=0 // pred_check_branch
    %133 = sbr.rel (0) target = $region125
  $region124: #{graphforecast_pred.1} parent=0 // pred_region
    _
  $region125: #{graphforecast_pred.1} parent=0 // pred_fallthru
    _
  %v135 = vld [vmem:[%s9] sm:$0xff]
  %v136 = vld [vmem:[%s9 + $0x8] sm:$0xff]
  %v137 = vld [vmem:[%s9 + $0x10] sm:$0xff]
  %v138 = vld [vmem:[%s9 + $0x18] sm:$0xff]
  %v139 = vld [vmem:[%s9 + $0x20] sm:$0xff]
  %v140 = vld [vmem:[%s9 + $0x28] sm:$0xff]
  %v141 = vld [vmem:[%s9 + $0x30] sm:$0xff]
  %v142 = vld [vmem:[%s9 + $0x38] sm:$0xff]
  %v143 = vld [vmem:[%s9 + $0x40] sm:$0xff]
  %v144 = vld [vmem:[%s1] sm:$0xff]
  %v145 = vld [vmem:[%s1 + $0x8] sm:$0xff]
  %v146 = vld [vmem:[%s1 + $0x10] sm:$0xff]
  %v147 = vld [vmem:[%s1 + $0x18] sm:$0xff]
  %v148 = vld [vmem:[%s1 + $0x20] sm:$0xff]
  %v149 = vld [vmem:[%s1 + $0x28] sm:$0xff]
  %v150 = vld [vmem:[%s1 + $0x30] sm:$0xff]
  %v151 = vld [vmem:[%s1 + $0x38] sm:$0xff]
  %v152 = vld [vmem:[%s1 + $0x40] sm:$0xff]
  %v153 = vpack.c.bf16 %v145, %v144
  %v154 = vpack.c.bf16 %v147, %v146
  %v155 = vpack.c.bf16 %v149, %v148
  %v156 = vpack.c.bf16 %v151, %v150
  %v157 = vpack.c.bf16 %v152, %v152
  %v158 = vld [vmem:[%s23] sm:$0xf]
  %v159 = vld [vmem:[%s23 + $0x4] sm:$0x1]
  %v162 = vunpack.c.l.b16 %v158
  %v163 = vunpack.c.l.b16 %v159
  %v164 = vpack.c.b16 %v163, %v162
  %vm165 = vcmask 72704
  %v167 = vsel %vm165, %v153, 0
  %v170 = vsel %vm165, %v154, 0
  %v173 = vsel %vm165, %v155, 0
  %v176 = vsel %vm165, %v156, 0
  %v179 = vsel %vm165, %v157, 0
  %vm181 = vcmask 1043456
  %vm182 = vcmask 1044480
  %v183 = vsel %vm181, 4294967295, 65535
  %v184 = vsel %vm182, %v183, 0
  %v186 = vand.u32 %v164, %v184
  %188 = vmatprep.subr.bf16.mxu0 0
  %189 = vmatpush1.bf16.msra.mxu0 0
  %190 = vmatprep.subr.bf16.mxu0 0
  %191 = vmatpush1.bf16.msra.mxu0 0
  %192 = vmatprep.subr.bf16.mxu0 0
  %193 = vmatpush1.bf16.msra.mxu0 0
  %194 = vmatprep.subr.bf16.mxu0 0
  %195 = vmatpush1.bf16.msra.mxu0 0
  %196 = vmatprep.subr.bf16.mxu0 0
  %197 = vmatpush1.bf16.msra.mxu0 0
  %198 = vmatprep.subr.bf16.mxu0 0
  %199 = vmatpush1.bf16.msra.mxu0 0
  %200 = vmatprep.subr.bf16.mxu0 0
  %201 = vmatpush1.bf16.msra.mxu0 0
  %202 = vmatprep.subr.bf16.mxu0 0
  %203 = vmatpush1.bf16.msra.mxu0 %v186
  %204 = vmatprep.subr.bf16.mxu0 0
  %205 = vmatpush2.bf16.msra.mxu0 0
  %206 = vmatprep.subr.bf16.mxu0 0
  %207 = vmatpush2.bf16.msra.mxu0 0
  %208 = vmatprep.subr.bf16.mxu0 0
  %209 = vmatpush2.bf16.msra.mxu0 0
  %210 = vmatprep.subr.bf16.mxu0 0
  %211 = vmatpush2.bf16.msra.mxu0 0
  %212 = vmatprep.subr.bf16.mxu0 0
  %213 = vmatpush2.bf16.msra.mxu0 0
  %214 = vmatprep.subr.bf16.mxu0 0
  %215 = vmatpush2.bf16.msra.mxu0 0
  %216 = vmatprep.subr.bf16.mxu0 0
  %217 = vmatpush2.bf16.msra.mxu0 0
  %218 = vmatprep.subr.bf16.mxu0 0
  %219 = vmatpush2.bf16.msra.mxu0 0
  %220 = vmatprep.mubr.bf16.mxu0 0
  %221 = vmatmul.mubr.bf16.gmra.mxu0 %v167
  %v222 = vpop.f32.mrf.mxu0
  %v223 = vadd.f32 0.0, %v222
  %v224 = vpop.f32.mrf.mxu0
  %v225 = vpop.f32.mrf.mxu0
  %v226 = vadd.f32 0.0, %v225
  %v227 = vpop.f32.mrf.mxu0
  %228 = vmatprep.mubr.bf16.mxu0 0
  %229 = vmatmul.mubr.bf16.gmra.mxu0 %v170
  %v230 = vpop.f32.mrf.mxu0
  %v231 = vadd.f32 0.0, %v230
  %v232 = vpop.f32.mrf.mxu0
  %v233 = vpop.f32.mrf.mxu0
  %v234 = vadd.f32 0.0, %v233
  %v235 = vpop.f32.mrf.mxu0
  %236 = vmatprep.mubr.bf16.mxu0 0
  %237 = vmatmul.mubr.bf16.gmra.mxu0 %v173
  %v238 = vpop.f32.mrf.mxu0
  %v239 = vadd.f32 0.0, %v238
  %v240 = vpop.f32.mrf.mxu0
  %v241 = vpop.f32.mrf.mxu0
  %v242 = vadd.f32 0.0, %v241
  %v243 = vpop.f32.mrf.mxu0
  %244 = vmatprep.mubr.bf16.mxu0 0
  %245 = vmatmul.mubr.bf16.gmra.mxu0 %v176
  %v246 = vpop.f32.mrf.mxu0
  %v247 = vadd.f32 0.0, %v246
  %v248 = vpop.f32.mrf.mxu0
  %v249 = vpop.f32.mrf.mxu0
  %v250 = vadd.f32 0.0, %v249
  %v251 = vpop.f32.mrf.mxu0
  %252 = vmatprep.mubr.bf16.mxu0 0
  %253 = vmatmul.mubr.bf16.gmra.mxu0 %v179
  %v254 = vpop.f32.mrf.mxu0
  %v255 = vadd.f32 0.0, %v254
  %v256 = vpop.f32.mrf.mxu0
  %v257 = vpop.f32.mrf.mxu0
  %v258 = vpop.f32.mrf.mxu0
  %259 = vdwg.mxu0
  %261 = vset.pattern.permute.xlu0 0
  %262 = vperm.xlu0 %261, %v135
  %v263 = vpop.permute.xlu0 %262
  %266 = vset.pattern.permute.xlu0 0
  %267 = vperm.xlu0 %266, %v136
  %v268 = vpop.permute.xlu0 %267
  %271 = vset.pattern.permute.xlu0 0
  %272 = vperm.xlu0 %271, %v137
  %v273 = vpop.permute.xlu0 %272
  %276 = vset.pattern.permute.xlu0 0
  %277 = vperm.xlu0 %276, %v138
  %v278 = vpop.permute.xlu0 %277
  %281 = vset.pattern.permute.xlu0 0
  %282 = vperm.xlu0 %281, %v139
  %v283 = vpop.permute.xlu0 %282
  %286 = vset.pattern.permute.xlu0 0
  %287 = vperm.xlu0 %286, %v140
  %v288 = vpop.permute.xlu0 %287
  %291 = vset.pattern.permute.xlu0 0
  %292 = vperm.xlu0 %291, %v141
  %v293 = vpop.permute.xlu0 %292
  %296 = vset.pattern.permute.xlu0 0
  %297 = vperm.xlu0 %296, %v142
  %v298 = vpop.permute.xlu0 %297
  %301 = vset.pattern.permute.xlu0 0
  %302 = vperm.xlu0 %301, %v143
  %v303 = vpop.permute.xlu0 %302
  %v305 = vmul.f32 %v223, %v263
  %v306 = vmul.f32 %v226, %v268
  %v307 = vmul.f32 %v231, %v273
  %v308 = vmul.f32 %v234, %v278
  %v309 = vmul.f32 %v239, %v283
  %v310 = vmul.f32 %v242, %v288
  %v311 = vmul.f32 %v247, %v293
  %v312 = vmul.f32 %v250, %v298
  %v313 = vmul.f32 %v255, %v303
  %vm314 = vcmask 523264
  %v315 = vsel %vm314, %v305, 0.0
  %v316 = vsel %vm314, %v306, 0.0
  %v317 = vadd.f32 %v315, %v316
  %v318 = vsel %vm314, %v307, 0.0
  %v319 = vadd.f32 %v317, %v318
  %v320 = vsel %vm314, %v308, 0.0
  %v321 = vadd.f32 %v319, %v320
  %v322 = vsel %vm314, %v309, 0.0
  %v323 = vadd.f32 %v321, %v322
  %v324 = vsel %vm314, %v310, 0.0
  %v325 = vadd.f32 %v323, %v324
  %v326 = vsel %vm314, %v311, 0.0
  %v327 = vadd.f32 %v325, %v326
  %v328 = vsel %vm314, %v312, 0.0
  %v329 = vadd.f32 %v327, %v328
  %v330 = vsel %vm314, %v313, 0.0
  %v331 = vadd.f32 %v329, %v330
  %v332 = vrot.slane %v331, 4
  %v333 = vadd.f32 %v331, %v332
  %v334 = vrot.slane %v333, 2
  %v335 = vadd.f32 %v333, %v334
  %v336 = vrot.slane %v335, 1
  %v337 = vadd.f32 %v335, %v336
  %v338 = vmul.f32 %v337, 0.11111111
  %v339 = vmul.f32 %v263, %v338
  %v340 = vmul.f32 %v268, %v338
  %v341 = vmul.f32 %v273, %v338
  %v342 = vmul.f32 %v278, %v338
  %v343 = vmul.f32 %v283, %v338
  %v344 = vmul.f32 %v288, %v338
  %v345 = vmul.f32 %v293, %v338
  %v346 = vmul.f32 %v298, %v338
  %v347 = vmul.f32 %v303, %v338
  %v348 = vsub.f32 1.0, %v135
  %v349 = vsub.f32 1.0, %v136
  %v350 = vsub.f32 1.0, %v137
  %v351 = vsub.f32 1.0, %v138
  %v352 = vsub.f32 1.0, %v139
  %v353 = vsub.f32 1.0, %v140
  %v354 = vsub.f32 1.0, %v141
  %v355 = vsub.f32 1.0, %v142
  %v356 = vsub.f32 1.0, %v143
  %358 = vset.pattern.permute.xlu0 0
  %359 = vperm.xlu0 %358, %v348
  %v360 = vpop.permute.xlu0 %359
  %363 = vset.pattern.permute.xlu0 0
  %364 = vperm.xlu0 %363, %v349
  %v365 = vpop.permute.xlu0 %364
  %368 = vset.pattern.permute.xlu0 0
  %369 = vperm.xlu0 %368, %v350
  %v370 = vpop.permute.xlu0 %369
  %373 = vset.pattern.permute.xlu0 0
  %374 = vperm.xlu0 %373, %v351
  %v375 = vpop.permute.xlu0 %374
  %378 = vset.pattern.permute.xlu0 0
  %379 = vperm.xlu0 %378, %v352
  %v380 = vpop.permute.xlu0 %379
  %383 = vset.pattern.permute.xlu0 0
  %384 = vperm.xlu0 %383, %v353
  %v385 = vpop.permute.xlu0 %384
  %388 = vset.pattern.permute.xlu0 0
  %389 = vperm.xlu0 %388, %v354
  %v390 = vpop.permute.xlu0 %389
  %393 = vset.pattern.permute.xlu0 0
  %394 = vperm.xlu0 %393, %v355
  %v395 = vpop.permute.xlu0 %394
  %398 = vset.pattern.permute.xlu0 0
  %399 = vperm.xlu0 %398, %v356
  %v400 = vpop.permute.xlu0 %399
  %v402 = vmul.f32 %v360, %v223
  %v403 = vmul.f32 %v365, %v226
  %v404 = vmul.f32 %v370, %v231
  %v405 = vmul.f32 %v375, %v234
  %v406 = vmul.f32 %v380, %v239
  %v407 = vmul.f32 %v385, %v242
  %v408 = vmul.f32 %v390, %v247
  %v409 = vmul.f32 %v395, %v250
  %v410 = vmul.f32 %v400, %v255
  %v411 = vadd.f32 %v339, %v402
  %v412 = vadd.f32 %v340, %v403
  %v413 = vadd.f32 %v341, %v404
  %v414 = vadd.f32 %v342, %v405
  %v415 = vadd.f32 %v343, %v406
  %v416 = vadd.f32 %v344, %v407
  %v417 = vadd.f32 %v345, %v408
  %v418 = vadd.f32 %v346, %v409
  %v419 = vadd.f32 %v347, %v410
  %v420 = vld [vmem:[%s25] sm:$0x1]
  %v422 = vlaneseq
  %v423 = vshrl.u32 %v422, 7
  %v424 = vsub.s32 0, %v423
  %v425 = vrot.slane %v420, %v424
  %v427 = vadd.f32 %v411, %v425
  %v428 = vadd.f32 %v412, %v425
  %v429 = vadd.f32 %v413, %v425
  %v430 = vadd.f32 %v414, %v425
  %v431 = vadd.f32 %v415, %v425
  %v432 = vadd.f32 %v416, %v425
  %v433 = vadd.f32 %v417, %v425
  %v434 = vadd.f32 %v418, %v425
  %v435 = vadd.f32 %v419, %v425
  %v436 = vmax.f32 %v427, 0.0
  %v437 = vmax.f32 %v428, 0.0
  %v438 = vmax.f32 %v429, 0.0
  %v439 = vmax.f32 %v430, 0.0
  %v440 = vmax.f32 %v431, 0.0
  %v441 = vmax.f32 %v432, 0.0
  %v442 = vmax.f32 %v433, 0.0
  %v443 = vmax.f32 %v434, 0.0
  %v444 = vmax.f32 %v435, 0.0
  %v445 = vpack.c.bf16 %v437, %v436
  %v446 = vpack.c.bf16 %v439, %v438
  %v447 = vpack.c.bf16 %v441, %v440
  %v448 = vpack.c.bf16 %v443, %v442
  %v449 = vpack.c.bf16 %v444, %v444
  %v450 = vld [vmem:[%s27] sm:$0xf]
  %v451 = vld [vmem:[%s27 + $0x4] sm:$0xf]
  %v452 = vld [vmem:[%s27 + $0x8] sm:$0xf]
  %v453 = vld [vmem:[%s27 + $0xc] sm:$0xf]
  %v454 = vld [vmem:[%s27 + $0x10] sm:$0xf]
  %v455 = vld [vmem:[%s27 + $0x14] sm:$0xf]
  %v456 = vld [vmem:[%s27 + $0x18] sm:$0xf]
  %v457 = vld [vmem:[%s27 + $0x1c] sm:$0xf]
  %v466 = vunpack.c.l.b16 %v450
  %v467 = vunpack.c.l.b16 %v451
  %v468 = vunpack.c.l.b16 %v452
  %v469 = vunpack.c.l.b16 %v453
  %v470 = vunpack.c.l.b16 %v454
  %v471 = vunpack.c.l.b16 %v455
  %v472 = vunpack.c.l.b16 %v456
  %v473 = vunpack.c.l.b16 %v457
  %v474 = vpack.c.b16 %v467, %v466
  %v475 = vpack.c.b16 %v469, %v468
  %v476 = vpack.c.b16 %v471, %v470
  %v477 = vpack.c.b16 %v473, %v472
  %v483 = vsel %vm314, %v445, 0
  %v486 = vsel %vm314, %v446, 0
  %v489 = vsel %vm314, %v447, 0
  %v492 = vsel %vm314, %v448, 0
  %v495 = vsel %vm314, %v449, 0
  %497 = vmatprep.subr.bf16.mxu0 0
  %498 = vmatpush1.bf16.msra.mxu0 0
  %499 = vmatprep.subr.bf16.mxu0 0
  %500 = vmatpush1.bf16.msra.mxu0 0
  %501 = vmatprep.subr.bf16.mxu0 0
  %502 = vmatpush1.bf16.msra.mxu0 0
  %503 = vmatprep.subr.bf16.mxu0 0
  %504 = vmatpush1.bf16.msra.mxu0 0
  %505 = vmatprep.subr.bf16.mxu0 0
  %506 = vmatpush1.bf16.msra.mxu0 %v477
  %507 = vmatprep.subr.bf16.mxu0 0
  %508 = vmatpush1.bf16.msra.mxu0 %v476
  %509 = vmatprep.subr.bf16.mxu0 0
  %510 = vmatpush1.bf16.msra.mxu0 %v475
  %511 = vmatprep.subr.bf16.mxu0 0
  %512 = vmatpush1.bf16.msra.mxu0 %v474
  %513 = vmatprep.subr.bf16.mxu0 0
  %514 = vmatpush2.bf16.msra.mxu0 0
  %515 = vmatprep.subr.bf16.mxu0 0
  %516 = vmatpush2.bf16.msra.mxu0 0
  %517 = vmatprep.subr.bf16.mxu0 0
  %518 = vmatpush2.bf16.msra.mxu0 0
  %519 = vmatprep.subr.bf16.mxu0 0
  %520 = vmatpush2.bf16.msra.mxu0 0
  %521 = vmatprep.subr.bf16.mxu0 0
  %522 = vmatpush2.bf16.msra.mxu0 0
  %523 = vmatprep.subr.bf16.mxu0 0
  %524 = vmatpush2.bf16.msra.mxu0 0
  %525 = vmatprep.subr.bf16.mxu0 0
  %526 = vmatpush2.bf16.msra.mxu0 0
  %527 = vmatprep.subr.bf16.mxu0 0
  %528 = vmatpush2.bf16.msra.mxu0 0
  %529 = vmatprep.mubr.bf16.mxu0 0
  %530 = vmatmul.mubr.bf16.gmra.mxu0 %v483
  %v531 = vpop.f32.mrf.mxu0
  %v532 = vadd.f32 0.0, %v531
  %v533 = vpop.f32.mrf.mxu0
  %v534 = vpop.f32.mrf.mxu0
  %v535 = vadd.f32 0.0, %v534
  %v536 = vpop.f32.mrf.mxu0
  %537 = vmatprep.mubr.bf16.mxu0 0
  %538 = vmatmul.mubr.bf16.gmra.mxu0 %v486
  %v539 = vpop.f32.mrf.mxu0
  %v540 = vadd.f32 0.0, %v539
  %v541 = vpop.f32.mrf.mxu0
  %v542 = vpop.f32.mrf.mxu0
  %v543 = vadd.f32 0.0, %v542
  %v544 = vpop.f32.mrf.mxu0
  %545 = vmatprep.mubr.bf16.mxu0 0
  %546 = vmatmul.mubr.bf16.gmra.mxu0 %v489
  %v547 = vpop.f32.mrf.mxu0
  %v548 = vadd.f32 0.0, %v547
  %v549 = vpop.f32.mrf.mxu0
  %v550 = vpop.f32.mrf.mxu0
  %v551 = vadd.f32 0.0, %v550
  %v552 = vpop.f32.mrf.mxu0
  %553 = vmatprep.mubr.bf16.mxu0 0
  %554 = vmatmul.mubr.bf16.gmra.mxu0 %v492
  %v555 = vpop.f32.mrf.mxu0
  %v556 = vadd.f32 0.0, %v555
  %v557 = vpop.f32.mrf.mxu0
  %v558 = vpop.f32.mrf.mxu0
  %v559 = vadd.f32 0.0, %v558
  %v560 = vpop.f32.mrf.mxu0
  %561 = vmatprep.mubr.bf16.mxu0 0
  %562 = vmatmul.mubr.bf16.gmra.mxu0 %v495
  %v563 = vpop.f32.mrf.mxu0
  %v564 = vadd.f32 0.0, %v563
  %v565 = vpop.f32.mrf.mxu0
  %v566 = vpop.f32.mrf.mxu0
  %v567 = vpop.f32.mrf.mxu0
  %568 = vdwg.mxu0
  %v569 = vmul.f32 %v532, %v263
  %v570 = vmul.f32 %v535, %v268
  %v571 = vmul.f32 %v540, %v273
  %v572 = vmul.f32 %v543, %v278
  %v573 = vmul.f32 %v548, %v283
  %v574 = vmul.f32 %v551, %v288
  %v575 = vmul.f32 %v556, %v293
  %v576 = vmul.f32 %v559, %v298
  %v577 = vmul.f32 %v564, %v303
  %v578 = vadd.f32 %v569, %v570
  %v579 = vadd.f32 %v578, %v571
  %v580 = vadd.f32 %v579, %v572
  %v581 = vadd.f32 %v580, %v573
  %v582 = vadd.f32 %v581, %v574
  %v583 = vadd.f32 %v582, %v575
  %v584 = vadd.f32 %v583, %v576
  %v585 = vadd.f32 %v584, %v577
  %v586 = vrot.slane %v585, 4
  %v587 = vadd.f32 %v585, %v586
  %v588 = vrot.slane %v587, 2
  %v589 = vadd.f32 %v587, %v588
  %v590 = vrot.slane %v589, 1
  %v591 = vadd.f32 %v589, %v590
  %v592 = vmul.f32 %v591, 0.11111111
  %v593 = vmul.f32 %v263, %v592
  %v594 = vmul.f32 %v268, %v592
  %v595 = vmul.f32 %v273, %v592
  %v596 = vmul.f32 %v278, %v592
  %v597 = vmul.f32 %v283, %v592
  %v598 = vmul.f32 %v288, %v592
  %v599 = vmul.f32 %v293, %v592
  %v600 = vmul.f32 %v298, %v592
  %v601 = vmul.f32 %v303, %v592
  %v602 = vmul.f32 %v360, %v532
  %v603 = vmul.f32 %v365, %v535
  %v604 = vmul.f32 %v370, %v540
  %v605 = vmul.f32 %v375, %v543
  %v606 = vmul.f32 %v380, %v548
  %v607 = vmul.f32 %v385, %v551
  %v608 = vmul.f32 %v390, %v556
  %v609 = vmul.f32 %v395, %v559
  %v610 = vmul.f32 %v400, %v564
  %v611 = vadd.f32 %v593, %v602
  %v612 = vadd.f32 %v594, %v603
  %v613 = vadd.f32 %v595, %v604
  %v614 = vadd.f32 %v596, %v605
  %v615 = vadd.f32 %v597, %v606
  %v616 = vadd.f32 %v598, %v607
  %v617 = vadd.f32 %v599, %v608
  %v618 = vadd.f32 %v600, %v609
  %v619 = vadd.f32 %v601, %v610
  %v620 = vld [vmem:[%s29] sm:$0x1]
  %v622 = vlaneseq
  %v623 = vshrl.u32 %v622, 7
  %v624 = vsub.s32 0, %v623
  %v625 = vrot.slane %v620, %v624
  %v627 = vadd.f32 %v611, %v625
  %v628 = vadd.f32 %v612, %v625
  %v629 = vadd.f32 %v613, %v625
  %v630 = vadd.f32 %v614, %v625
  %v631 = vadd.f32 %v615, %v625
  %v632 = vadd.f32 %v616, %v625
  %v633 = vadd.f32 %v617, %v625
  %v634 = vadd.f32 %v618, %v625
  %v635 = vadd.f32 %v619, %v625
  %v636 = vmax.f32 %v627, 0.0
  %v637 = vmax.f32 %v628, 0.0
  %v638 = vmax.f32 %v629, 0.0
  %v639 = vmax.f32 %v630, 0.0
  %v640 = vmax.f32 %v631, 0.0
  %v641 = vmax.f32 %v632, 0.0
  %v642 = vmax.f32 %v633, 0.0
  %v643 = vmax.f32 %v634, 0.0
  %v644 = vmax.f32 %v635, 0.0
  %v645 = vld [vmem:[%s3 + $0x6] sm:$0xff]
  %v646 = vld [vmem:[%s3 + $0xe] sm:$0xff]
  %v647 = vld [vmem:[%s3 + $0x16] sm:$0xff]
  %v648 = vld [vmem:[%s3 + $0x1e] sm:$0xff]
  %v649 = vld [vmem:[%s3 + $0x26] sm:$0xff]
  %v650 = vld [vmem:[%s3 + $0x2e] sm:$0xff]
  %v651 = vld [vmem:[%s3 + $0x36] sm:$0xff]
  %v652 = vld [vmem:[%s3 + $0x3e] sm:$0xff]
  %v653 = vld [vmem:[%s3 + $0x46] sm:$0xff]
  %v654 = vld [vmem:[%s5] sm:$0xff]
  %v655 = vld [vmem:[%s5 + $0x8] sm:$0xff]
  %v656 = vld [vmem:[%s5 + $0x10] sm:$0xff]
  %v657 = vld [vmem:[%s5 + $0x18] sm:$0xff]
  %v658 = vld [vmem:[%s5 + $0x20] sm:$0xff]
  %v659 = vld [vmem:[%s5 + $0x28] sm:$0xff]
  %v660 = vld [vmem:[%s5 + $0x30] sm:$0xff]
  %v661 = vld [vmem:[%s5 + $0x38] sm:$0xff]
  %v662 = vld [vmem:[%s5 + $0x40] sm:$0xff]
  %664 = vset.pattern.permute.xlu0 0
  %665 = vperm.xlu0 %664, %v654
  %v666 = vpop.permute.xlu0 %665
  %669 = vset.pattern.permute.xlu0 0
  %670 = vperm.xlu0 %669, %v655
  %v671 = vpop.permute.xlu0 %670
  %674 = vset.pattern.permute.xlu0 0
  %675 = vperm.xlu0 %674, %v656
  %v676 = vpop.permute.xlu0 %675
  %679 = vset.pattern.permute.xlu0 0
  %680 = vperm.xlu0 %679, %v657
  %v681 = vpop.permute.xlu0 %680
  %684 = vset.pattern.permute.xlu0 0
  %685 = vperm.xlu0 %684, %v658
  %v686 = vpop.permute.xlu0 %685
  %689 = vset.pattern.permute.xlu0 0
  %690 = vperm.xlu0 %689, %v659
  %v691 = vpop.permute.xlu0 %690
  %694 = vset.pattern.permute.xlu0 0
  %695 = vperm.xlu0 %694, %v660
  %v696 = vpop.permute.xlu0 %695
  %699 = vset.pattern.permute.xlu0 0
  %700 = vperm.xlu0 %699, %v661
  %v701 = vpop.permute.xlu0 %700
  %704 = vset.pattern.permute.xlu0 0
  %705 = vperm.xlu0 %704, %v662
  %v706 = vpop.permute.xlu0 %705
  %v708 = vmul.f32 %v645, %v666
  %v709 = vmul.f32 %v646, %v671
  %v710 = vmul.f32 %v647, %v676
  %v711 = vmul.f32 %v648, %v681
  %v712 = vmul.f32 %v649, %v686
  %v713 = vmul.f32 %v650, %v691
  %v714 = vmul.f32 %v651, %v696
  %v715 = vmul.f32 %v652, %v701
  %v716 = vmul.f32 %v653, %v706
  %v717 = vpack.c.bf16 %v709, %v708
  %v718 = vpack.c.bf16 %v711, %v710
  %v719 = vpack.c.bf16 %v713, %v712
  %v720 = vpack.c.bf16 %v715, %v714
  %v721 = vpack.c.bf16 %v716, %v716
  %v722 = vld [vmem:[%s15] sm:$0xf]
  %v723 = vld [vmem:[%s3 + $0x7] sm:$0xff]
  %v724 = vld [vmem:[%s3 + $0xf] sm:$0xff]
  %v725 = vld [vmem:[%s3 + $0x17] sm:$0xff]
  %v726 = vld [vmem:[%s3 + $0x1f] sm:$0xff]
  %v727 = vld [vmem:[%s3 + $0x27] sm:$0xff]
  %v728 = vld [vmem:[%s3 + $0x2f] sm:$0xff]
  %v729 = vld [vmem:[%s3 + $0x37] sm:$0xff]
  %v730 = vld [vmem:[%s3 + $0x3f] sm:$0xff]
  %v731 = vld [vmem:[%s3 + $0x47] sm:$0xff]
  %s732 = scalar_lea.vmem %s5, 72
  %v733 = vld [vmem:[%s732] sm:$0xff]
  %v734 = vld [vmem:[%s732 + $0x8] sm:$0xff]
  %v735 = vld [vmem:[%s732 + $0x10] sm:$0xff]
  %v736 = vld [vmem:[%s732 + $0x18] sm:$0xff]
  %v737 = vld [vmem:[%s732 + $0x20] sm:$0xff]
  %v738 = vld [vmem:[%s732 + $0x28] sm:$0xff]
  %v739 = vld [vmem:[%s732 + $0x30] sm:$0xff]
  %v740 = vld [vmem:[%s732 + $0x38] sm:$0xff]
  %v741 = vld [vmem:[%s732 + $0x40] sm:$0xff]
  %743 = vset.pattern.permute.xlu0 0
  %744 = vperm.xlu0 %743, %v733
  %v745 = vpop.permute.xlu0 %744
  %748 = vset.pattern.permute.xlu0 0
  %749 = vperm.xlu0 %748, %v734
  %v750 = vpop.permute.xlu0 %749
  %753 = vset.pattern.permute.xlu0 0
  %754 = vperm.xlu0 %753, %v735
  %v755 = vpop.permute.xlu0 %754
  %758 = vset.pattern.permute.xlu0 0
  %759 = vperm.xlu0 %758, %v736
  %v760 = vpop.permute.xlu0 %759
  %763 = vset.pattern.permute.xlu0 0
  %764 = vperm.xlu0 %763, %v737
  %v765 = vpop.permute.xlu0 %764
  %768 = vset.pattern.permute.xlu0 0
  %769 = vperm.xlu0 %768, %v738
  %v770 = vpop.permute.xlu0 %769
  %773 = vset.pattern.permute.xlu0 0
  %774 = vperm.xlu0 %773, %v739
  %v775 = vpop.permute.xlu0 %774
  %778 = vset.pattern.permute.xlu0 0
  %779 = vperm.xlu0 %778, %v740
  %v780 = vpop.permute.xlu0 %779
  %783 = vset.pattern.permute.xlu0 0
  %784 = vperm.xlu0 %783, %v741
  %v785 = vpop.permute.xlu0 %784
  %v787 = vmul.f32 %v723, %v745
  %v788 = vmul.f32 %v724, %v750
  %v789 = vmul.f32 %v725, %v755
  %v790 = vmul.f32 %v726, %v760
  %v791 = vmul.f32 %v727, %v765
  %v792 = vmul.f32 %v728, %v770
  %v793 = vmul.f32 %v729, %v775
  %v794 = vmul.f32 %v730, %v780
  %v795 = vmul.f32 %v731, %v785
  %v796 = vpack.c.bf16 %v788, %v787
  %v797 = vpack.c.bf16 %v790, %v789
  %v798 = vpack.c.bf16 %v792, %v791
  %v799 = vpack.c.bf16 %v794, %v793
  %v800 = vpack.c.bf16 %v795, %v795
  %s801 = scalar_lea.vmem %s15, 4
  %v802 = vld [vmem:[%s801] sm:$0xf]
  %vm803 = vcmask 56320
  %v805 = vsel %vm803, %v796, 0
  %v808 = vsel %vm803, %v797, 0
  %v811 = vsel %vm803, %v798, 0
  %v814 = vsel %vm803, %v799, 0
  %v817 = vsel %vm803, %v800, 0
  %vm819 = vcmask 1042432
  %v820 = vsel %vm819, 4294967295, 65535
  %v821 = vsel %vm181, %v820, 0
  %v823 = vand.u32 %v802, %v821
  %825 = vmatprep.subr.bf16.mxu0 0
  %826 = vmatpush1.bf16.msra.mxu0 0
  %827 = vmatprep.subr.bf16.mxu0 0
  %828 = vmatpush1.bf16.msra.mxu0 0
  %829 = vmatprep.subr.bf16.mxu0 0
  %830 = vmatpush1.bf16.msra.mxu0 0
  %831 = vmatprep.subr.bf16.mxu0 0
  %832 = vmatpush1.bf16.msra.mxu0 0
  %833 = vmatprep.subr.bf16.mxu0 0
  %834 = vmatpush1.bf16.msra.mxu0 0
  %835 = vmatprep.subr.bf16.mxu0 0
  %836 = vmatpush1.bf16.msra.mxu0 0
  %837 = vmatprep.subr.bf16.mxu0 0
  %838 = vmatpush1.bf16.msra.mxu0 0
  %839 = vmatprep.subr.bf16.mxu0 0
  %840 = vmatpush1.bf16.msra.mxu0 %v823
  %841 = vmatprep.subr.bf16.mxu0 0
  %842 = vmatpush2.bf16.msra.mxu0 0
  %843 = vmatprep.subr.bf16.mxu0 0
  %844 = vmatpush2.bf16.msra.mxu0 0
  %845 = vmatprep.subr.bf16.mxu0 0
  %846 = vmatpush2.bf16.msra.mxu0 0
  %847 = vmatprep.subr.bf16.mxu0 0
  %848 = vmatpush2.bf16.msra.mxu0 0
  %849 = vmatprep.subr.bf16.mxu0 0
  %850 = vmatpush2.bf16.msra.mxu0 0
  %851 = vmatprep.subr.bf16.mxu0 0
  %852 = vmatpush2.bf16.msra.mxu0 0
  %853 = vmatprep.subr.bf16.mxu0 0
  %854 = vmatpush2.bf16.msra.mxu0 0
  %855 = vmatprep.subr.bf16.mxu0 0
  %856 = vmatpush2.bf16.msra.mxu0 0
  %857 = vmatprep.mubr.bf16.mxu0 0
  %858 = vmatmul.mubr.bf16.gmra.mxu0 %v805
  %v859 = vpop.f32.mrf.mxu0
  %v860 = vadd.f32 0.0, %v859
  %v861 = vpop.f32.mrf.mxu0
  %v862 = vpop.f32.mrf.mxu0
  %v863 = vadd.f32 0.0, %v862
  %v864 = vpop.f32.mrf.mxu0
  %865 = vmatprep.mubr.bf16.mxu0 0
  %866 = vmatmul.mubr.bf16.gmra.mxu0 %v808
  %v867 = vpop.f32.mrf.mxu0
  %v868 = vadd.f32 0.0, %v867
  %v869 = vpop.f32.mrf.mxu0
  %v870 = vpop.f32.mrf.mxu0
  %v871 = vadd.f32 0.0, %v870
  %v872 = vpop.f32.mrf.mxu0
  %873 = vmatprep.mubr.bf16.mxu0 0
  %874 = vmatmul.mubr.bf16.gmra.mxu0 %v811
  %v875 = vpop.f32.mrf.mxu0
  %v876 = vadd.f32 0.0, %v875
  %v877 = vpop.f32.mrf.mxu0
  %v878 = vpop.f32.mrf.mxu0
  %v879 = vadd.f32 0.0, %v878
  %v880 = vpop.f32.mrf.mxu0
  %881 = vmatprep.mubr.bf16.mxu0 0
  %882 = vmatmul.mubr.bf16.gmra.mxu0 %v814
  %v883 = vpop.f32.mrf.mxu0
  %v884 = vadd.f32 0.0, %v883
  %v885 = vpop.f32.mrf.mxu0
  %v886 = vpop.f32.mrf.mxu0
  %v887 = vadd.f32 0.0, %v886
  %v888 = vpop.f32.mrf.mxu0
  %889 = vmatprep.mubr.bf16.mxu0 0
  %890 = vmatmul.mubr.bf16.gmra.mxu0 %v817
  %v891 = vpop.f32.mrf.mxu0
  %v892 = vadd.f32 0.0, %v891
  %v893 = vpop.f32.mrf.mxu0
  %v894 = vpop.f32.mrf.mxu0
  %v895 = vpop.f32.mrf.mxu0
  %896 = vdwg.mxu0
  %v898 = vsel %vm803, %v717, 0
  %v901 = vsel %vm803, %v718, 0
  %v904 = vsel %vm803, %v719, 0
  %v907 = vsel %vm803, %v720, 0
  %v910 = vsel %vm803, %v721, 0
  %v913 = vand.u32 %v722, %v821
  %915 = vmatprep.subr.bf16.mxu0 0
  %916 = vmatpush1.bf16.msra.mxu0 0
  %917 = vmatprep.subr.bf16.mxu0 0
  %918 = vmatpush1.bf16.msra.mxu0 0
  %919 = vmatprep.subr.bf16.mxu0 0
  %920 = vmatpush1.bf16.msra.mxu0 0
  %921 = vmatprep.subr.bf16.mxu0 0
  %922 = vmatpush1.bf16.msra.mxu0 0
  %923 = vmatprep.subr.bf16.mxu0 0
  %924 = vmatpush1.bf16.msra.mxu0 0
  %925 = vmatprep.subr.bf16.mxu0 0
  %926 = vmatpush1.bf16.msra.mxu0 0
  %927 = vmatprep.subr.bf16.mxu0 0
  %928 = vmatpush1.bf16.msra.mxu0 0
  %929 = vmatprep.subr.bf16.mxu0 0
  %930 = vmatpush1.bf16.msra.mxu0 %v913
  %931 = vmatprep.subr.bf16.mxu0 0
  %932 = vmatpush2.bf16.msra.mxu0 0
  %933 = vmatprep.subr.bf16.mxu0 0
  %934 = vmatpush2.bf16.msra.mxu0 0
  %935 = vmatprep.subr.bf16.mxu0 0
  %936 = vmatpush2.bf16.msra.mxu0 0
  %937 = vmatprep.subr.bf16.mxu0 0
  %938 = vmatpush2.bf16.msra.mxu0 0
  %939 = vmatprep.subr.bf16.mxu0 0
  %940 = vmatpush2.bf16.msra.mxu0 0
  %941 = vmatprep.subr.bf16.mxu0 0
  %942 = vmatpush2.bf16.msra.mxu0 0
  %943 = vmatprep.subr.bf16.mxu0 0
  %944 = vmatpush2.bf16.msra.mxu0 0
  %945 = vmatprep.subr.bf16.mxu0 0
  %946 = vmatpush2.bf16.msra.mxu0 0
  %947 = vmatprep.mubr.bf16.mxu0 0
  %948 = vmatmul.mubr.bf16.gmra.mxu0 %v898
  %v949 = vpop.f32.mrf.mxu0
  %v950 = vadd.f32 %v860, %v949
  %v951 = vpop.f32.mrf.mxu0
  %v952 = vpop.f32.mrf.mxu0
  %v953 = vadd.f32 %v863, %v952
  %v954 = vpop.f32.mrf.mxu0
  %955 = vmatprep.mubr.bf16.mxu0 0
  %956 = vmatmul.mubr.bf16.gmra.mxu0 %v901
  %v957 = vpop.f32.mrf.mxu0
  %v958 = vadd.f32 %v868, %v957
  %v959 = vpop.f32.mrf.mxu0
  %v960 = vpop.f32.mrf.mxu0
  %v961 = vadd.f32 %v871, %v960
  %v962 = vpop.f32.mrf.mxu0
  %963 = vmatprep.mubr.bf16.mxu0 0
  %964 = vmatmul.mubr.bf16.gmra.mxu0 %v904
  %v965 = vpop.f32.mrf.mxu0
  %v966 = vadd.f32 %v876, %v965
  %v967 = vpop.f32.mrf.mxu0
  %v968 = vpop.f32.mrf.mxu0
  %v969 = vadd.f32 %v879, %v968
  %v970 = vpop.f32.mrf.mxu0
  %971 = vmatprep.mubr.bf16.mxu0 0
  %972 = vmatmul.mubr.bf16.gmra.mxu0 %v907
  %v973 = vpop.f32.mrf.mxu0
  %v974 = vadd.f32 %v884, %v973
  %v975 = vpop.f32.mrf.mxu0
  %v976 = vpop.f32.mrf.mxu0
  %v977 = vadd.f32 %v887, %v976
  %v978 = vpop.f32.mrf.mxu0
  %979 = vmatprep.mubr.bf16.mxu0 0
  %980 = vmatmul.mubr.bf16.gmra.mxu0 %v910
  %v981 = vpop.f32.mrf.mxu0
  %v982 = vadd.f32 %v892, %v981
  %v983 = vpop.f32.mrf.mxu0
  %v984 = vpop.f32.mrf.mxu0
  %v985 = vpop.f32.mrf.mxu0
  %986 = vdwg.mxu0
  %v987 = vld [vmem:[%s3 + $0x8] sm:$0xff]
  %v988 = vld [vmem:[%s3 + $0x10] sm:$0xff]
  %v989 = vld [vmem:[%s3 + $0x18] sm:$0xff]
  %v990 = vld [vmem:[%s3 + $0x20] sm:$0xff]
  %v991 = vld [vmem:[%s3 + $0x28] sm:$0xff]
  %v992 = vld [vmem:[%s3 + $0x30] sm:$0xff]
  %v993 = vld [vmem:[%s3 + $0x38] sm:$0xff]
  %v994 = vld [vmem:[%s3 + $0x40] sm:$0xff]
  %v995 = vld [vmem:[%s3 + $0x48] sm:$0xff]
  %s996 = scalar_lea.vmem %s5, 144
  %v997 = vld [vmem:[%s996] sm:$0xff]
  %v998 = vld [vmem:[%s996 + $0x8] sm:$0xff]
  %v999 = vld [vmem:[%s996 + $0x10] sm:$0xff]
  %v1000 = vld [vmem:[%s996 + $0x18] sm:$0xff]
  %v1001 = vld [vmem:[%s996 + $0x20] sm:$0xff]
  %v1002 = vld [vmem:[%s996 + $0x28] sm:$0xff]
  %v1003 = vld [vmem:[%s996 + $0x30] sm:$0xff]
  %v1004 = vld [vmem:[%s996 + $0x38] sm:$0xff]
  %v1005 = vld [vmem:[%s996 + $0x40] sm:$0xff]
  %1007 = vset.pattern.permute.xlu0 0
  %1008 = vperm.xlu0 %1007, %v997
  %v1009 = vpop.permute.xlu0 %1008
  %1012 = vset.pattern.permute.xlu0 0
  %1013 = vperm.xlu0 %1012, %v998
  %v1014 = vpop.permute.xlu0 %1013
  %1017 = vset.pattern.permute.xlu0 0
  %1018 = vperm.xlu0 %1017, %v999
  %v1019 = vpop.permute.xlu0 %1018
  %1022 = vset.pattern.permute.xlu0 0
  %1023 = vperm.xlu0 %1022, %v1000
  %v1024 = vpop.permute.xlu0 %1023
  %1027 = vset.pattern.permute.xlu0 0
  %1028 = vperm.xlu0 %1027, %v1001
  %v1029 = vpop.permute.xlu0 %1028
  %1032 = vset.pattern.permute.xlu0 0
  %1033 = vperm.xlu0 %1032, %v1002
  %v1034 = vpop.permute.xlu0 %1033
  %1037 = vset.pattern.permute.xlu0 0
  %1038 = vperm.xlu0 %1037, %v1003
  %v1039 = vpop.permute.xlu0 %1038
  %1042 = vset.pattern.permute.xlu0 0
  %1043 = vperm.xlu0 %1042, %v1004
  %v1044 = vpop.permute.xlu0 %1043
  %1047 = vset.pattern.permute.xlu0 0
  %1048 = vperm.xlu0 %1047, %v1005
  %v1049 = vpop.permute.xlu0 %1048
  %v1051 = vmul.f32 %v987, %v1009
  %v1052 = vmul.f32 %v988, %v1014
  %v1053 = vmul.f32 %v989, %v1019
  %v1054 = vmul.f32 %v990, %v1024
  %v1055 = vmul.f32 %v991, %v1029
  %v1056 = vmul.f32 %v992, %v1034
  %v1057 = vmul.f32 %v993, %v1039
  %v1058 = vmul.f32 %v994, %v1044
  %v1059 = vmul.f32 %v995, %v1049
  %v1060 = vpack.c.bf16 %v1052, %v1051
  %v1061 = vpack.c.bf16 %v1054, %v1053
  %v1062 = vpack.c.bf16 %v1056, %v1055
  %v1063 = vpack.c.bf16 %v1058, %v1057
  %v1064 = vpack.c.bf16 %v1059, %v1059
  %s1065 = scalar_lea.vmem %s15, 8
  %v1066 = vld [vmem:[%s1065] sm:$0xf]
  %v1068 = vsel %vm803, %v1060, 0
  %v1071 = vsel %vm803, %v1061, 0
  %v1074 = vsel %vm803, %v1062, 0
  %v1077 = vsel %vm803, %v1063, 0
  %v1080 = vsel %vm803, %v1064, 0
  %v1083 = vand.u32 %v1066, %v821
  %1085 = vmatprep.subr.bf16.mxu0 0
  %1086 = vmatpush1.bf16.msra.mxu0 0
  %1087 = vmatprep.subr.bf16.mxu0 0
  %1088 = vmatpush1.bf16.msra.mxu0 0
  %1089 = vmatprep.subr.bf16.mxu0 0
  %1090 = vmatpush1.bf16.msra.mxu0 0
  %1091 = vmatprep.subr.bf16.mxu0 0
  %1092 = vmatpush1.bf16.msra.mxu0 0
  %1093 = vmatprep.subr.bf16.mxu0 0
  %1094 = vmatpush1.bf16.msra.mxu0 0
  %1095 = vmatprep.subr.bf16.mxu0 0
  %1096 = vmatpush1.bf16.msra.mxu0 0
  %1097 = vmatprep.subr.bf16.mxu0 0
  %1098 = vmatpush1.bf16.msra.mxu0 0
  %1099 = vmatprep.subr.bf16.mxu0 0
  %1100 = vmatpush1.bf16.msra.mxu0 %v1083
  %1101 = vmatprep.subr.bf16.mxu0 0
  %1102 = vmatpush2.bf16.msra.mxu0 0
  %1103 = vmatprep.subr.bf16.mxu0 0
  %1104 = vmatpush2.bf16.msra.mxu0 0
  %1105 = vmatprep.subr.bf16.mxu0 0
  %1106 = vmatpush2.bf16.msra.mxu0 0
  %1107 = vmatprep.subr.bf16.mxu0 0
  %1108 = vmatpush2.bf16.msra.mxu0 0
  %1109 = vmatprep.subr.bf16.mxu0 0
  %1110 = vmatpush2.bf16.msra.mxu0 0
  %1111 = vmatprep.subr.bf16.mxu0 0
  %1112 = vmatpush2.bf16.msra.mxu0 0
  %1113 = vmatprep.subr.bf16.mxu0 0
  %1114 = vmatpush2.bf16.msra.mxu0 0
  %1115 = vmatprep.subr.bf16.mxu0 0
  %1116 = vmatpush2.bf16.msra.mxu0 0
  %1117 = vmatprep.mubr.bf16.mxu0 0
  %1118 = vmatmul.mubr.bf16.gmra.mxu0 %v1068
  %v1119 = vpop.f32.mrf.mxu0
  %v1120 = vadd.f32 0.0, %v1119
  %v1121 = vpop.f32.mrf.mxu0
  %v1122 = vpop.f32.mrf.mxu0
  %v1123 = vadd.f32 0.0, %v1122
  %v1124 = vpop.f32.mrf.mxu0
  %1125 = vmatprep.mubr.bf16.mxu0 0
  %1126 = vmatmul.mubr.bf16.gmra.mxu0 %v1071
  %v1127 = vpop.f32.mrf.mxu0
  %v1128 = vadd.f32 0.0, %v1127
  %v1129 = vpop.f32.mrf.mxu0
  %v1130 = vpop.f32.mrf.mxu0
  %v1131 = vadd.f32 0.0, %v1130
  %v1132 = vpop.f32.mrf.mxu0
  %1133 = vmatprep.mubr.bf16.mxu0 0
  %1134 = vmatmul.mubr.bf16.gmra.mxu0 %v1074
  %v1135 = vpop.f32.mrf.mxu0
  %v1136 = vadd.f32 0.0, %v1135
  %v1137 = vpop.f32.mrf.mxu0
  %v1138 = vpop.f32.mrf.mxu0
  %v1139 = vadd.f32 0.0, %v1138
  %v1140 = vpop.f32.mrf.mxu0
  %1141 = vmatprep.mubr.bf16.mxu0 0
  %1142 = vmatmul.mubr.bf16.gmra.mxu0 %v1077
  %v1143 = vpop.f32.mrf.mxu0
  %v1144 = vadd.f32 0.0, %v1143
  %v1145 = vpop.f32.mrf.mxu0
  %v1146 = vpop.f32.mrf.mxu0
  %v1147 = vadd.f32 0.0, %v1146
  %v1148 = vpop.f32.mrf.mxu0
  %1149 = vmatprep.mubr.bf16.mxu0 0
  %1150 = vmatmul.mubr.bf16.gmra.mxu0 %v1080
  %v1151 = vpop.f32.mrf.mxu0
  %v1152 = vadd.f32 0.0, %v1151
  %v1153 = vpop.f32.mrf.mxu0
  %v1154 = vpop.f32.mrf.mxu0
  %v1155 = vpop.f32.mrf.mxu0
  %1156 = vdwg.mxu0
  %v1157 = vadd.f32 %v950, %v1120
  %v1158 = vadd.f32 %v953, %v1123
  %v1159 = vadd.f32 %v958, %v1128
  %v1160 = vadd.f32 %v961, %v1131
  %v1161 = vadd.f32 %v966, %v1136
  %v1162 = vadd.f32 %v969, %v1139
  %v1163 = vadd.f32 %v974, %v1144
  %v1164 = vadd.f32 %v977, %v1147
  %v1165 = vadd.f32 %v982, %v1152
  %v1166 = vld [vmem:[%s3 + $0x9] sm:$0xff]
  %v1167 = vld [vmem:[%s3 + $0x11] sm:$0xff]
  %v1168 = vld [vmem:[%s3 + $0x19] sm:$0xff]
  %v1169 = vld [vmem:[%s3 + $0x21] sm:$0xff]
  %v1170 = vld [vmem:[%s3 + $0x29] sm:$0xff]
  %v1171 = vld [vmem:[%s3 + $0x31] sm:$0xff]
  %v1172 = vld [vmem:[%s3 + $0x39] sm:$0xff]
  %v1173 = vld [vmem:[%s3 + $0x41] sm:$0xff]
  %v1174 = vld [vmem:[%s3 + $0x49] sm:$0xff]
  %s1175 = scalar_lea.vmem %s5, 216
  %v1176 = vld [vmem:[%s1175] sm:$0xff]
  %v1177 = vld [vmem:[%s1175 + $0x8] sm:$0xff]
  %v1178 = vld [vmem:[%s1175 + $0x10] sm:$0xff]
  %v1179 = vld [vmem:[%s1175 + $0x18] sm:$0xff]
  %v1180 = vld [vmem:[%s1175 + $0x20] sm:$0xff]
  %v1181 = vld [vmem:[%s1175 + $0x28] sm:$0xff]
  %v1182 = vld [vmem:[%s1175 + $0x30] sm:$0xff]
  %v1183 = vld [vmem:[%s1175 + $0x38] sm:$0xff]
  %v1184 = vld [vmem:[%s1175 + $0x40] sm:$0xff]
  %1186 = vset.pattern.permute.xlu0 0
  %1187 = vperm.xlu0 %1186, %v1176
  %v1188 = vpop.permute.xlu0 %1187
  %1191 = vset.pattern.permute.xlu0 0
  %1192 = vperm.xlu0 %1191, %v1177
  %v1193 = vpop.permute.xlu0 %1192
  %1196 = vset.pattern.permute.xlu0 0
  %1197 = vperm.xlu0 %1196, %v1178
  %v1198 = vpop.permute.xlu0 %1197
  %1201 = vset.pattern.permute.xlu0 0
  %1202 = vperm.xlu0 %1201, %v1179
  %v1203 = vpop.permute.xlu0 %1202
  %1206 = vset.pattern.permute.xlu0 0
  %1207 = vperm.xlu0 %1206, %v1180
  %v1208 = vpop.permute.xlu0 %1207
  %1211 = vset.pattern.permute.xlu0 0
  %1212 = vperm.xlu0 %1211, %v1181
  %v1213 = vpop.permute.xlu0 %1212
  %1216 = vset.pattern.permute.xlu0 0
  %1217 = vperm.xlu0 %1216, %v1182
  %v1218 = vpop.permute.xlu0 %1217
  %1221 = vset.pattern.permute.xlu0 0
  %1222 = vperm.xlu0 %1221, %v1183
  %v1223 = vpop.permute.xlu0 %1222
  %1226 = vset.pattern.permute.xlu0 0
  %1227 = vperm.xlu0 %1226, %v1184
  %v1228 = vpop.permute.xlu0 %1227
  %v1230 = vmul.f32 %v1166, %v1188
  %v1231 = vmul.f32 %v1167, %v1193
  %v1232 = vmul.f32 %v1168, %v1198
  %v1233 = vmul.f32 %v1169, %v1203
  %v1234 = vmul.f32 %v1170, %v1208
  %v1235 = vmul.f32 %v1171, %v1213
  %v1236 = vmul.f32 %v1172, %v1218
  %v1237 = vmul.f32 %v1173, %v1223
  %v1238 = vmul.f32 %v1174, %v1228
  %v1239 = vpack.c.bf16 %v1231, %v1230
  %v1240 = vpack.c.bf16 %v1233, %v1232
  %v1241 = vpack.c.bf16 %v1235, %v1234
  %v1242 = vpack.c.bf16 %v1237, %v1236
  %v1243 = vpack.c.bf16 %v1238, %v1238
  %s1244 = scalar_lea.vmem %s15, 12
  %v1245 = vld [vmem:[%s1244] sm:$0xf]
  %v1247 = vsel %vm803, %v1239, 0
  %v1250 = vsel %vm803, %v1240, 0
  %v1253 = vsel %vm803, %v1241, 0
  %v1256 = vsel %vm803, %v1242, 0
  %v1259 = vsel %vm803, %v1243, 0
  %v1262 = vand.u32 %v1245, %v821
  %1264 = vmatprep.subr.bf16.mxu0 0
  %1265 = vmatpush1.bf16.msra.mxu0 0
  %1266 = vmatprep.subr.bf16.mxu0 0
  %1267 = vmatpush1.bf16.msra.mxu0 0
  %1268 = vmatprep.subr.bf16.mxu0 0
  %1269 = vmatpush1.bf16.msra.mxu0 0
  %1270 = vmatprep.subr.bf16.mxu0 0
  %1271 = vmatpush1.bf16.msra.mxu0 0
  %1272 = vmatprep.subr.bf16.mxu0 0
  %1273 = vmatpush1.bf16.msra.mxu0 0
  %1274 = vmatprep.subr.bf16.mxu0 0
  %1275 = vmatpush1.bf16.msra.mxu0 0
  %1276 = vmatprep.subr.bf16.mxu0 0
  %1277 = vmatpush1.bf16.msra.mxu0 0
  %1278 = vmatprep.subr.bf16.mxu0 0
  %1279 = vmatpush1.bf16.msra.mxu0 %v1262
  %1280 = vmatprep.subr.bf16.mxu0 0
  %1281 = vmatpush2.bf16.msra.mxu0 0
  %1282 = vmatprep.subr.bf16.mxu0 0
  %1283 = vmatpush2.bf16.msra.mxu0 0
  %1284 = vmatprep.subr.bf16.mxu0 0
  %1285 = vmatpush2.bf16.msra.mxu0 0
  %1286 = vmatprep.subr.bf16.mxu0 0
  %1287 = vmatpush2.bf16.msra.mxu0 0
  %1288 = vmatprep.subr.bf16.mxu0 0
  %1289 = vmatpush2.bf16.msra.mxu0 0
  %1290 = vmatprep.subr.bf16.mxu0 0
  %1291 = vmatpush2.bf16.msra.mxu0 0
  %1292 = vmatprep.subr.bf16.mxu0 0
  %1293 = vmatpush2.bf16.msra.mxu0 0
  %1294 = vmatprep.subr.bf16.mxu0 0
  %1295 = vmatpush2.bf16.msra.mxu0 0
  %1296 = vmatprep.mubr.bf16.mxu0 0
  %1297 = vmatmul.mubr.bf16.gmra.mxu0 %v1247
  %v1298 = vpop.f32.mrf.mxu0
  %v1299 = vadd.f32 0.0, %v1298
  %v1300 = vpop.f32.mrf.mxu0
  %v1301 = vpop.f32.mrf.mxu0
  %v1302 = vadd.f32 0.0, %v1301
  %v1303 = vpop.f32.mrf.mxu0
  %1304 = vmatprep.mubr.bf16.mxu0 0
  %1305 = vmatmul.mubr.bf16.gmra.mxu0 %v1250
  %v1306 = vpop.f32.mrf.mxu0
  %v1307 = vadd.f32 0.0, %v1306
  %v1308 = vpop.f32.mrf.mxu0
  %v1309 = vpop.f32.mrf.mxu0
  %v1310 = vadd.f32 0.0, %v1309
  %v1311 = vpop.f32.mrf.mxu0
  %1312 = vmatprep.mubr.bf16.mxu0 0
  %1313 = vmatmul.mubr.bf16.gmra.mxu0 %v1253
  %v1314 = vpop.f32.mrf.mxu0
  %v1315 = vadd.f32 0.0, %v1314
  %v1316 = vpop.f32.mrf.mxu0
  %v1317 = vpop.f32.mrf.mxu0
  %v1318 = vadd.f32 0.0, %v1317
  %v1319 = vpop.f32.mrf.mxu0
  %1320 = vmatprep.mubr.bf16.mxu0 0
  %1321 = vmatmul.mubr.bf16.gmra.mxu0 %v1256
  %v1322 = vpop.f32.mrf.mxu0
  %v1323 = vadd.f32 0.0, %v1322
  %v1324 = vpop.f32.mrf.mxu0
  %v1325 = vpop.f32.mrf.mxu0
  %v1326 = vadd.f32 0.0, %v1325
  %v1327 = vpop.f32.mrf.mxu0
  %1328 = vmatprep.mubr.bf16.mxu0 0
  %1329 = vmatmul.mubr.bf16.gmra.mxu0 %v1259
  %v1330 = vpop.f32.mrf.mxu0
  %v1331 = vadd.f32 0.0, %v1330
  %v1332 = vpop.f32.mrf.mxu0
  %v1333 = vpop.f32.mrf.mxu0
  %v1334 = vpop.f32.mrf.mxu0
  %1335 = vdwg.mxu0
  %v1336 = vadd.f32 %v1157, %v1299
  %v1337 = vadd.f32 %v1158, %v1302
  %v1338 = vadd.f32 %v1159, %v1307
  %v1339 = vadd.f32 %v1160, %v1310
  %v1340 = vadd.f32 %v1161, %v1315
  %v1341 = vadd.f32 %v1162, %v1318
  %v1342 = vadd.f32 %v1163, %v1323
  %v1343 = vadd.f32 %v1164, %v1326
  %v1344 = vadd.f32 %v1165, %v1331
  %v1345 = vld [vmem:[%s3 + $0xa] sm:$0xff]
  %v1346 = vld [vmem:[%s3 + $0x12] sm:$0xff]
  %v1347 = vld [vmem:[%s3 + $0x1a] sm:$0xff]
  %v1348 = vld [vmem:[%s3 + $0x22] sm:$0xff]
  %v1349 = vld [vmem:[%s3 + $0x2a] sm:$0xff]
  %v1350 = vld [vmem:[%s3 + $0x32] sm:$0xff]
  %v1351 = vld [vmem:[%s3 + $0x3a] sm:$0xff]
  %v1352 = vld [vmem:[%s3 + $0x42] sm:$0xff]
  %v1353 = vld [vmem:[%s3 + $0x4a] sm:$0xff]
  %s1354 = scalar_lea.vmem %s5, 288
  %v1355 = vld [vmem:[%s1354] sm:$0xff]
  %v1356 = vld [vmem:[%s1354 + $0x8] sm:$0xff]
  %v1357 = vld [vmem:[%s1354 + $0x10] sm:$0xff]
  %v1358 = vld [vmem:[%s1354 + $0x18] sm:$0xff]
  %v1359 = vld [vmem:[%s1354 + $0x20] sm:$0xff]
  %v1360 = vld [vmem:[%s1354 + $0x28] sm:$0xff]
  %v1361 = vld [vmem:[%s1354 + $0x30] sm:$0xff]
  %v1362 = vld [vmem:[%s1354 + $0x38] sm:$0xff]
  %v1363 = vld [vmem:[%s1354 + $0x40] sm:$0xff]
  %1365 = vset.pattern.permute.xlu0 0
  %1366 = vperm.xlu0 %1365, %v1355
  %v1367 = vpop.permute.xlu0 %1366
  %1370 = vset.pattern.permute.xlu0 0
  %1371 = vperm.xlu0 %1370, %v1356
  %v1372 = vpop.permute.xlu0 %1371
  %1375 = vset.pattern.permute.xlu0 0
  %1376 = vperm.xlu0 %1375, %v1357
  %v1377 = vpop.permute.xlu0 %1376
  %1380 = vset.pattern.permute.xlu0 0
  %1381 = vperm.xlu0 %1380, %v1358
  %v1382 = vpop.permute.xlu0 %1381
  %1385 = vset.pattern.permute.xlu0 0
  %1386 = vperm.xlu0 %1385, %v1359
  %v1387 = vpop.permute.xlu0 %1386
  %1390 = vset.pattern.permute.xlu0 0
  %1391 = vperm.xlu0 %1390, %v1360
  %v1392 = vpop.permute.xlu0 %1391
  %1395 = vset.pattern.permute.xlu0 0
  %1396 = vperm.xlu0 %1395, %v1361
  %v1397 = vpop.permute.xlu0 %1396
  %1400 = vset.pattern.permute.xlu0 0
  %1401 = vperm.xlu0 %1400, %v1362
  %v1402 = vpop.permute.xlu0 %1401
  %1405 = vset.pattern.permute.xlu0 0
  %1406 = vperm.xlu0 %1405, %v1363
  %v1407 = vpop.permute.xlu0 %1406
  %v1409 = vmul.f32 %v1345, %v1367
  %v1410 = vmul.f32 %v1346, %v1372
  %v1411 = vmul.f32 %v1347, %v1377
  %v1412 = vmul.f32 %v1348, %v1382
  %v1413 = vmul.f32 %v1349, %v1387
  %v1414 = vmul.f32 %v1350, %v1392
  %v1415 = vmul.f32 %v1351, %v1397
  %v1416 = vmul.f32 %v1352, %v1402
  %v1417 = vmul.f32 %v1353, %v1407
  %v1418 = vpack.c.bf16 %v1410, %v1409
  %v1419 = vpack.c.bf16 %v1412, %v1411
  %v1420 = vpack.c.bf16 %v1414, %v1413
  %v1421 = vpack.c.bf16 %v1416, %v1415
  %v1422 = vpack.c.bf16 %v1417, %v1417
  %s1423 = scalar_lea.vmem %s15, 16
  %v1424 = vld [vmem:[%s1423] sm:$0xf]
  %v1426 = vsel %vm803, %v1418, 0
  %v1429 = vsel %vm803, %v1419, 0
  %v1432 = vsel %vm803, %v1420, 0
  %v1435 = vsel %vm803, %v1421, 0
  %v1438 = vsel %vm803, %v1422, 0
  %v1441 = vand.u32 %v1424, %v821
  %1443 = vmatprep.subr.bf16.mxu0 0
  %1444 = vmatpush1.bf16.msra.mxu0 0
  %1445 = vmatprep.subr.bf16.mxu0 0
  %1446 = vmatpush1.bf16.msra.mxu0 0
  %1447 = vmatprep.subr.bf16.mxu0 0
  %1448 = vmatpush1.bf16.msra.mxu0 0
  %1449 = vmatprep.subr.bf16.mxu0 0
  %1450 = vmatpush1.bf16.msra.mxu0 0
  %1451 = vmatprep.subr.bf16.mxu0 0
  %1452 = vmatpush1.bf16.msra.mxu0 0
  %1453 = vmatprep.subr.bf16.mxu0 0
  %1454 = vmatpush1.bf16.msra.mxu0 0
  %1455 = vmatprep.subr.bf16.mxu0 0
  %1456 = vmatpush1.bf16.msra.mxu0 0
  %1457 = vmatprep.subr.bf16.mxu0 0
  %1458 = vmatpush1.bf16.msra.mxu0 %v1441
  %1459 = vmatprep.subr.bf16.mxu0 0
  %1460 = vmatpush2.bf16.msra.mxu0 0
  %1461 = vmatprep.subr.bf16.mxu0 0
  %1462 = vmatpush2.bf16.msra.mxu0 0
  %1463 = vmatprep.subr.bf16.mxu0 0
  %1464 = vmatpush2.bf16.msra.mxu0 0
  %1465 = vmatprep.subr.bf16.mxu0 0
  %1466 = vmatpush2.bf16.msra.mxu0 0
  %1467 = vmatprep.subr.bf16.mxu0 0
  %1468 = vmatpush2.bf16.msra.mxu0 0
  %1469 = vmatprep.subr.bf16.mxu0 0
  %1470 = vmatpush2.bf16.msra.mxu0 0
  %1471 = vmatprep.subr.bf16.mxu0 0
  %1472 = vmatpush2.bf16.msra.mxu0 0
  %1473 = vmatprep.subr.bf16.mxu0 0
  %1474 = vmatpush2.bf16.msra.mxu0 0
  %1475 = vmatprep.mubr.bf16.mxu0 0
  %1476 = vmatmul.mubr.bf16.gmra.mxu0 %v1426
  %v1477 = vpop.f32.mrf.mxu0
  %v1478 = vadd.f32 0.0, %v1477
  %v1479 = vpop.f32.mrf.mxu0
  %v1480 = vpop.f32.mrf.mxu0
  %v1481 = vadd.f32 0.0, %v1480
  %v1482 = vpop.f32.mrf.mxu0
  %1483 = vmatprep.mubr.bf16.mxu0 0
  %1484 = vmatmul.mubr.bf16.gmra.mxu0 %v1429
  %v1485 = vpop.f32.mrf.mxu0
  %v1486 = vadd.f32 0.0, %v1485
  %v1487 = vpop.f32.mrf.mxu0
  %v1488 = vpop.f32.mrf.mxu0
  %v1489 = vadd.f32 0.0, %v1488
  %v1490 = vpop.f32.mrf.mxu0
  %1491 = vmatprep.mubr.bf16.mxu0 0
  %1492 = vmatmul.mubr.bf16.gmra.mxu0 %v1432
  %v1493 = vpop.f32.mrf.mxu0
  %v1494 = vadd.f32 0.0, %v1493
  %v1495 = vpop.f32.mrf.mxu0
  %v1496 = vpop.f32.mrf.mxu0
  %v1497 = vadd.f32 0.0, %v1496
  %v1498 = vpop.f32.mrf.mxu0
  %1499 = vmatprep.mubr.bf16.mxu0 0
  %1500 = vmatmul.mubr.bf16.gmra.mxu0 %v1435
  %v1501 = vpop.f32.mrf.mxu0
  %v1502 = vadd.f32 0.0, %v1501
  %v1503 = vpop.f32.mrf.mxu0
  %v1504 = vpop.f32.mrf.mxu0
  %v1505 = vadd.f32 0.0, %v1504
  %v1506 = vpop.f32.mrf.mxu0
  %1507 = vmatprep.mubr.bf16.mxu0 0
  %1508 = vmatmul.mubr.bf16.gmra.mxu0 %v1438
  %v1509 = vpop.f32.mrf.mxu0
  %v1510 = vadd.f32 0.0, %v1509
  %v1511 = vpop.f32.mrf.mxu0
  %v1512 = vpop.f32.mrf.mxu0
  %v1513 = vpop.f32.mrf.mxu0
  %1514 = vdwg.mxu0
  %v1515 = vadd.f32 %v1336, %v1478
  %v1516 = vadd.f32 %v1337, %v1481
  %v1517 = vadd.f32 %v1338, %v1486
  %v1518 = vadd.f32 %v1339, %v1489
  %v1519 = vadd.f32 %v1340, %v1494
  %v1520 = vadd.f32 %v1341, %v1497
  %v1521 = vadd.f32 %v1342, %v1502
  %v1522 = vadd.f32 %v1343, %v1505
  %v1523 = vadd.f32 %v1344, %v1510
  %v1524 = vld [vmem:[%s17] sm:$0x1]
  %v1526 = vlaneseq
  %v1527 = vshrl.u32 %v1526, 7
  %v1528 = vsub.s32 0, %v1527
  %v1529 = vrot.slane %v1524, %v1528
  %v1531 = vadd.f32 %v1515, %v1529
  %v1532 = vadd.f32 %v1516, %v1529
  %v1533 = vadd.f32 %v1517, %v1529
  %v1534 = vadd.f32 %v1518, %v1529
  %v1535 = vadd.f32 %v1519, %v1529
  %v1536 = vadd.f32 %v1520, %v1529
  %v1537 = vadd.f32 %v1521, %v1529
  %v1538 = vadd.f32 %v1522, %v1529
  %v1539 = vadd.f32 %v1523, %v1529
  %1540 = vst.msk [vmem:[#allocation2] sm:$0xff] %vm314, 0.0
  %1541 = vst.msk [vmem:[#allocation2 + $0x8] sm:$0xff] %vm314, 0.0
  %1542 = vst.msk [vmem:[#allocation2 + $0x10] sm:$0xff] %vm314, 0.0
  %1543 = vst.msk [vmem:[#allocation2 + $0x18] sm:$0xff] %vm314, 0.0
  %1544 = vst.msk [vmem:[#allocation2 + $0x20] sm:$0xff] %vm314, 0.0
  %1545 = vst.msk [vmem:[#allocation2 + $0x28] sm:$0xff] %vm314, 0.0
  %1546 = vst.msk [vmem:[#allocation2 + $0x30] sm:$0xff] %vm314, 0.0
  %1547 = vst.msk [vmem:[#allocation2 + $0x38] sm:$0xff] %vm314, 0.0
  %1548 = vst.msk [vmem:[#allocation2 + $0x40] sm:$0xff] %vm314, 0.0
  %1549 = vst.msk [vmem:[#allocation2 + $0x48] sm:$0xff] %vm314, 0.0
  %1550 = vst.msk [vmem:[#allocation2 + $0x50] sm:$0xff] %vm314, 0.0
  %1551 = vst.msk [vmem:[#allocation2 + $0x8] sm:$0xff] %vm314, %v1531
  %1552 = vst.msk [vmem:[#allocation2 + $0x10] sm:$0xff] %vm314, %v1532
  %1553 = vst.msk [vmem:[#allocation2 + $0x18] sm:$0xff] %vm314, %v1533
  %1554 = vst.msk [vmem:[#allocation2 + $0x20] sm:$0xff] %vm314, %v1534
  %1555 = vst.msk [vmem:[#allocation2 + $0x28] sm:$0xff] %vm314, %v1535
  %1556 = vst.msk [vmem:[#allocation2 + $0x30] sm:$0xff] %vm314, %v1536
  %1557 = vst.msk [vmem:[#allocation2 + $0x38] sm:$0xff] %vm314, %v1537
  %1558 = vst.msk [vmem:[#allocation2 + $0x40] sm:$0xff] %vm314, %v1538
  %1559 = vst.msk [vmem:[#allocation2 + $0x48] sm:$0xff] %vm314, %v1539
  %v1560 = vld [vmem:[#allocation2 + $0x7] sm:$0xff]
  %v1561 = vld [vmem:[#allocation2 + $0xf] sm:$0xff]
  %v1562 = vld [vmem:[#allocation2 + $0x17] sm:$0xff]
  %v1563 = vld [vmem:[#allocation2 + $0x1f] sm:$0xff]
  %v1564 = vld [vmem:[#allocation2 + $0x27] sm:$0xff]
  %v1565 = vld [vmem:[#allocation2 + $0x2f] sm:$0xff]
  %v1566 = vld [vmem:[#allocation2 + $0x37] sm:$0xff]
  %v1567 = vld [vmem:[#allocation2 + $0x3f] sm:$0xff]
  %v1568 = vld [vmem:[#allocation2 + $0x47] sm:$0xff]
  %v1569 = vld [vmem:[%s7] sm:$0xff]
  %v1570 = vld [vmem:[%s7 + $0x8] sm:$0xff]
  %v1571 = vld [vmem:[%s7 + $0x10] sm:$0xff]
  %v1572 = vld [vmem:[%s7 + $0x18] sm:$0xff]
  %v1573 = vld [vmem:[%s7 + $0x20] sm:$0xff]
  %v1574 = vld [vmem:[%s7 + $0x28] sm:$0xff]
  %v1575 = vld [vmem:[%s7 + $0x30] sm:$0xff]
  %v1576 = vld [vmem:[%s7 + $0x38] sm:$0xff]
  %v1577 = vld [vmem:[%s7 + $0x40] sm:$0xff]
  %1579 = vset.pattern.permute.xlu0 0
  %1580 = vperm.xlu0 %1579, %v1569
  %v1581 = vpop.permute.xlu0 %1580
  %1584 = vset.pattern.permute.xlu0 0
  %1585 = vperm.xlu0 %1584, %v1570
  %v1586 = vpop.permute.xlu0 %1585
  %1589 = vset.pattern.permute.xlu0 0
  %1590 = vperm.xlu0 %1589, %v1571
  %v1591 = vpop.permute.xlu0 %1590
  %1594 = vset.pattern.permute.xlu0 0
  %1595 = vperm.xlu0 %1594, %v1572
  %v1596 = vpop.permute.xlu0 %1595
  %1599 = vset.pattern.permute.xlu0 0
  %1600 = vperm.xlu0 %1599, %v1573
  %v1601 = vpop.permute.xlu0 %1600
  %1604 = vset.pattern.permute.xlu0 0
  %1605 = vperm.xlu0 %1604, %v1574
  %v1606 = vpop.permute.xlu0 %1605
  %1609 = vset.pattern.permute.xlu0 0
  %1610 = vperm.xlu0 %1609, %v1575
  %v1611 = vpop.permute.xlu0 %1610
  %1614 = vset.pattern.permute.xlu0 0
  %1615 = vperm.xlu0 %1614, %v1576
  %v1616 = vpop.permute.xlu0 %1615
  %1619 = vset.pattern.permute.xlu0 0
  %1620 = vperm.xlu0 %1619, %v1577
  %v1621 = vpop.permute.xlu0 %1620
  %v1623 = vmul.f32 %v1560, %v1581
  %v1624 = vmul.f32 %v1561, %v1586
  %v1625 = vmul.f32 %v1562, %v1591
  %v1626 = vmul.f32 %v1563, %v1596
  %v1627 = vmul.f32 %v1564, %v1601
  %v1628 = vmul.f32 %v1565, %v1606
  %v1629 = vmul.f32 %v1566, %v1611
  %v1630 = vmul.f32 %v1567, %v1616
  %v1631 = vmul.f32 %v1568, %v1621
  %v1632 = vpack.c.bf16 %v1624, %v1623
  %v1633 = vpack.c.bf16 %v1626, %v1625
  %v1634 = vpack.c.bf16 %v1628, %v1627
  %v1635 = vpack.c.bf16 %v1630, %v1629
  %v1636 = vpack.c.bf16 %v1631, %v1631
  %v1637 = vld [vmem:[%s19] sm:$0xf]
  %v1638 = vld [vmem:[%s19 + $0x4] sm:$0xf]
  %v1639 = vld [vmem:[%s19 + $0x8] sm:$0xf]
  %v1640 = vld [vmem:[%s19 + $0xc] sm:$0xf]
  %v1641 = vld [vmem:[%s19 + $0x10] sm:$0xf]
  %v1642 = vld [vmem:[%s19 + $0x14] sm:$0xf]
  %v1643 = vld [vmem:[%s19 + $0x18] sm:$0xf]
  %v1644 = vld [vmem:[%s19 + $0x1c] sm:$0xf]
  %v1645 = vld [vmem:[#allocation2 + $0x8] sm:$0xff]
  %v1646 = vld [vmem:[#allocation2 + $0x10] sm:$0xff]
  %v1647 = vld [vmem:[#allocation2 + $0x18] sm:$0xff]
  %v1648 = vld [vmem:[#allocation2 + $0x20] sm:$0xff]
  %v1649 = vld [vmem:[#allocation2 + $0x28] sm:$0xff]
  %v1650 = vld [vmem:[#allocation2 + $0x30] sm:$0xff]
  %v1651 = vld [vmem:[#allocation2 + $0x38] sm:$0xff]
  %v1652 = vld [vmem:[#allocation2 + $0x40] sm:$0xff]
  %v1653 = vld [vmem:[#allocation2 + $0x48] sm:$0xff]
  %s1654 = scalar_lea.vmem %s7, 72
  %v1655 = vld [vmem:[%s1654] sm:$0xff]
  %v1656 = vld [vmem:[%s1654 + $0x8] sm:$0xff]
  %v1657 = vld [vmem:[%s1654 + $0x10] sm:$0xff]
  %v1658 = vld [vmem:[%s1654 + $0x18] sm:$0xff]
  %v1659 = vld [vmem:[%s1654 + $0x20] sm:$0xff]
  %v1660 = vld [vmem:[%s1654 + $0x28] sm:$0xff]
  %v1661 = vld [vmem:[%s1654 + $0x30] sm:$0xff]
  %v1662 = vld [vmem:[%s1654 + $0x38] sm:$0xff]
  %v1663 = vld [vmem:[%s1654 + $0x40] sm:$0xff]
  %1665 = vset.pattern.permute.xlu0 0
  %1666 = vperm.xlu0 %1665, %v1655
  %v1667 = vpop.permute.xlu0 %1666
  %1670 = vset.pattern.permute.xlu0 0
  %1671 = vperm.xlu0 %1670, %v1656
  %v1672 = vpop.permute.xlu0 %1671
  %1675 = vset.pattern.permute.xlu0 0
  %1676 = vperm.xlu0 %1675, %v1657
  %v1677 = vpop.permute.xlu0 %1676
  %1680 = vset.pattern.permute.xlu0 0
  %1681 = vperm.xlu0 %1680, %v1658
  %v1682 = vpop.permute.xlu0 %1681
  %1685 = vset.pattern.permute.xlu0 0
  %1686 = vperm.xlu0 %1685, %v1659
  %v1687 = vpop.permute.xlu0 %1686
  %1690 = vset.pattern.permute.xlu0 0
  %1691 = vperm.xlu0 %1690, %v1660
  %v1692 = vpop.permute.xlu0 %1691
  %1695 = vset.pattern.permute.xlu0 0
  %1696 = vperm.xlu0 %1695, %v1661
  %v1697 = vpop.permute.xlu0 %1696
  %1700 = vset.pattern.permute.xlu0 0
  %1701 = vperm.xlu0 %1700, %v1662
  %v1702 = vpop.permute.xlu0 %1701
  %1705 = vset.pattern.permute.xlu0 0
  %1706 = vperm.xlu0 %1705, %v1663
  %v1707 = vpop.permute.xlu0 %1706
  %v1709 = vmul.f32 %v1645, %v1667
  %v1710 = vmul.f32 %v1646, %v1672
  %v1711 = vmul.f32 %v1647, %v1677
  %v1712 = vmul.f32 %v1648, %v1682
  %v1713 = vmul.f32 %v1649, %v1687
  %v1714 = vmul.f32 %v1650, %v1692
  %v1715 = vmul.f32 %v1651, %v1697
  %v1716 = vmul.f32 %v1652, %v1702
  %v1717 = vmul.f32 %v1653, %v1707
  %v1718 = vpack.c.bf16 %v1710, %v1709
  %v1719 = vpack.c.bf16 %v1712, %v1711
  %v1720 = vpack.c.bf16 %v1714, %v1713
  %v1721 = vpack.c.bf16 %v1716, %v1715
  %v1722 = vpack.c.bf16 %v1717, %v1717
  %s1723 = scalar_lea.vmem %s19, 32
  %v1724 = vld [vmem:[%s1723] sm:$0xf]
  %v1725 = vld [vmem:[%s1723 + $0x4] sm:$0xf]
  %v1726 = vld [vmem:[%s1723 + $0x8] sm:$0xf]
  %v1727 = vld [vmem:[%s1723 + $0xc] sm:$0xf]
  %v1728 = vld [vmem:[%s1723 + $0x10] sm:$0xf]
  %v1729 = vld [vmem:[%s1723 + $0x14] sm:$0xf]
  %v1730 = vld [vmem:[%s1723 + $0x18] sm:$0xf]
  %v1731 = vld [vmem:[%s1723 + $0x1c] sm:$0xf]
  %v1740 = vunpack.c.l.b16 %v1724
  %v1741 = vunpack.c.l.b16 %v1725
  %v1742 = vunpack.c.l.b16 %v1726
  %v1743 = vunpack.c.l.b16 %v1727
  %v1744 = vunpack.c.l.b16 %v1728
  %v1745 = vunpack.c.l.b16 %v1729
  %v1746 = vunpack.c.l.b16 %v1730
  %v1747 = vunpack.c.l.b16 %v1731
  %v1748 = vpack.c.b16 %v1741, %v1740
  %v1749 = vpack.c.b16 %v1743, %v1742
  %v1750 = vpack.c.b16 %v1745, %v1744
  %v1751 = vpack.c.b16 %v1747, %v1746
  %v1757 = vsel %vm314, %v1718, 0
  %v1760 = vsel %vm314, %v1719, 0
  %v1763 = vsel %vm314, %v1720, 0
  %v1766 = vsel %vm314, %v1721, 0
  %v1769 = vsel %vm314, %v1722, 0
  %1771 = vmatprep.subr.bf16.mxu0 0
  %1772 = vmatpush1.bf16.msra.mxu0 0
  %1773 = vmatprep.subr.bf16.mxu0 0
  %1774 = vmatpush1.bf16.msra.mxu0 0
  %1775 = vmatprep.subr.bf16.mxu0 0
  %1776 = vmatpush1.bf16.msra.mxu0 0
  %1777 = vmatprep.subr.bf16.mxu0 0
  %1778 = vmatpush1.bf16.msra.mxu0 0
  %1779 = vmatprep.subr.bf16.mxu0 0
  %1780 = vmatpush1.bf16.msra.mxu0 %v1751
  %1781 = vmatprep.subr.bf16.mxu0 0
  %1782 = vmatpush1.bf16.msra.mxu0 %v1750
  %1783 = vmatprep.subr.bf16.mxu0 0
  %1784 = vmatpush1.bf16.msra.mxu0 %v1749
  %1785 = vmatprep.subr.bf16.mxu0 0
  %1786 = vmatpush1.bf16.msra.mxu0 %v1748
  %1787 = vmatprep.subr.bf16.mxu0 0
  %1788 = vmatpush2.bf16.msra.mxu0 0
  %1789 = vmatprep.subr.bf16.mxu0 0
  %1790 = vmatpush2.bf16.msra.mxu0 0
  %1791 = vmatprep.subr.bf16.mxu0 0
  %1792 = vmatpush2.bf16.msra.mxu0 0
  %1793 = vmatprep.subr.bf16.mxu0 0
  %1794 = vmatpush2.bf16.msra.mxu0 0
  %1795 = vmatprep.subr.bf16.mxu0 0
  %1796 = vmatpush2.bf16.msra.mxu0 0
  %1797 = vmatprep.subr.bf16.mxu0 0
  %1798 = vmatpush2.bf16.msra.mxu0 0
  %1799 = vmatprep.subr.bf16.mxu0 0
  %1800 = vmatpush2.bf16.msra.mxu0 0
  %1801 = vmatprep.subr.bf16.mxu0 0
  %1802 = vmatpush2.bf16.msra.mxu0 0
  %1803 = vmatprep.mubr.bf16.mxu0 0
  %1804 = vmatmul.mubr.bf16.gmra.mxu0 %v1757
  %v1805 = vpop.f32.mrf.mxu0
  %v1806 = vadd.f32 0.0, %v1805
  %v1807 = vpop.f32.mrf.mxu0
  %v1808 = vpop.f32.mrf.mxu0
  %v1809 = vadd.f32 0.0, %v1808
  %v1810 = vpop.f32.mrf.mxu0
  %1811 = vmatprep.mubr.bf16.mxu0 0
  %1812 = vmatmul.mubr.bf16.gmra.mxu0 %v1760
  %v1813 = vpop.f32.mrf.mxu0
  %v1814 = vadd.f32 0.0, %v1813
  %v1815 = vpop.f32.mrf.mxu0
  %v1816 = vpop.f32.mrf.mxu0
  %v1817 = vadd.f32 0.0, %v1816
  %v1818 = vpop.f32.mrf.mxu0
  %1819 = vmatprep.mubr.bf16.mxu0 0
  %1820 = vmatmul.mubr.bf16.gmra.mxu0 %v1763
  %v1821 = vpop.f32.mrf.mxu0
  %v1822 = vadd.f32 0.0, %v1821
  %v1823 = vpop.f32.mrf.mxu0
  %v1824 = vpop.f32.mrf.mxu0
  %v1825 = vadd.f32 0.0, %v1824
  %v1826 = vpop.f32.mrf.mxu0
  %1827 = vmatprep.mubr.bf16.mxu0 0
  %1828 = vmatmul.mubr.bf16.gmra.mxu0 %v1766
  %v1829 = vpop.f32.mrf.mxu0
  %v1830 = vadd.f32 0.0, %v1829
  %v1831 = vpop.f32.mrf.mxu0
  %v1832 = vpop.f32.mrf.mxu0
  %v1833 = vadd.f32 0.0, %v1832
  %v1834 = vpop.f32.mrf.mxu0
  %1835 = vmatprep.mubr.bf16.mxu0 0
  %1836 = vmatmul.mubr.bf16.gmra.mxu0 %v1769
  %v1837 = vpop.f32.mrf.mxu0
  %v1838 = vadd.f32 0.0, %v1837
  %v1839 = vpop.f32.mrf.mxu0
  %v1840 = vpop.f32.mrf.mxu0
  %v1841 = vpop.f32.mrf.mxu0
  %1842 = vdwg.mxu0
  %v1851 = vunpack.c.l.b16 %v1637
  %v1852 = vunpack.c.l.b16 %v1638
  %v1853 = vunpack.c.l.b16 %v1639
  %v1854 = vunpack.c.l.b16 %v1640
  %v1855 = vunpack.c.l.b16 %v1641
  %v1856 = vunpack.c.l.b16 %v1642
  %v1857 = vunpack.c.l.b16 %v1643
  %v1858 = vunpack.c.l.b16 %v1644
  %v1859 = vpack.c.b16 %v1852, %v1851
  %v1860 = vpack.c.b16 %v1854, %v1853
  %v1861 = vpack.c.b16 %v1856, %v1855
  %v1862 = vpack.c.b16 %v1858, %v1857
  %v1868 = vsel %vm314, %v1632, 0
  %v1871 = vsel %vm314, %v1633, 0
  %v1874 = vsel %vm314, %v1634, 0
  %v1877 = vsel %vm314, %v1635, 0
  %v1880 = vsel %vm314, %v1636, 0
  %1882 = vmatprep.subr.bf16.mxu0 0
  %1883 = vmatpush1.bf16.msra.mxu0 0
  %1884 = vmatprep.subr.bf16.mxu0 0
  %1885 = vmatpush1.bf16.msra.mxu0 0
  %1886 = vmatprep.subr.bf16.mxu0 0
  %1887 = vmatpush1.bf16.msra.mxu0 0
  %1888 = vmatprep.subr.bf16.mxu0 0
  %1889 = vmatpush1.bf16.msra.mxu0 0
  %1890 = vmatprep.subr.bf16.mxu0 0
  %1891 = vmatpush1.bf16.msra.mxu0 %v1862
  %1892 = vmatprep.subr.bf16.mxu0 0
  %1893 = vmatpush1.bf16.msra.mxu0 %v1861
  %1894 = vmatprep.subr.bf16.mxu0 0
  %1895 = vmatpush1.bf16.msra.mxu0 %v1860
  %1896 = vmatprep.subr.bf16.mxu0 0
  %1897 = vmatpush1.bf16.msra.mxu0 %v1859
  %1898 = vmatprep.subr.bf16.mxu0 0
  %1899 = vmatpush2.bf16.msra.mxu0 0
  %1900 = vmatprep.subr.bf16.mxu0 0
  %1901 = vmatpush2.bf16.msra.mxu0 0
  %1902 = vmatprep.subr.bf16.mxu0 0
  %1903 = vmatpush2.bf16.msra.mxu0 0
  %1904 = vmatprep.subr.bf16.mxu0 0
  %1905 = vmatpush2.bf16.msra.mxu0 0
  %1906 = vmatprep.subr.bf16.mxu0 0
  %1907 = vmatpush2.bf16.msra.mxu0 0
  %1908 = vmatprep.subr.bf16.mxu0 0
  %1909 = vmatpush2.bf16.msra.mxu0 0
  %1910 = vmatprep.subr.bf16.mxu0 0
  %1911 = vmatpush2.bf16.msra.mxu0 0
  %1912 = vmatprep.subr.bf16.mxu0 0
  %1913 = vmatpush2.bf16.msra.mxu0 0
  %1914 = vmatprep.mubr.bf16.mxu0 0
  %1915 = vmatmul.mubr.bf16.gmra.mxu0 %v1868
  %v1916 = vpop.f32.mrf.mxu0
  %v1917 = vadd.f32 %v1806, %v1916
  %v1918 = vpop.f32.mrf.mxu0
  %v1919 = vpop.f32.mrf.mxu0
  %v1920 = vadd.f32 %v1809, %v1919
  %v1921 = vpop.f32.mrf.mxu0
  %1922 = vmatprep.mubr.bf16.mxu0 0
  %1923 = vmatmul.mubr.bf16.gmra.mxu0 %v1871
  %v1924 = vpop.f32.mrf.mxu0
  %v1925 = vadd.f32 %v1814, %v1924
  %v1926 = vpop.f32.mrf.mxu0
  %v1927 = vpop.f32.mrf.mxu0
  %v1928 = vadd.f32 %v1817, %v1927
  %v1929 = vpop.f32.mrf.mxu0
  %1930 = vmatprep.mubr.bf16.mxu0 0
  %1931 = vmatmul.mubr.bf16.gmra.mxu0 %v1874
  %v1932 = vpop.f32.mrf.mxu0
  %v1933 = vadd.f32 %v1822, %v1932
  %v1934 = vpop.f32.mrf.mxu0
  %v1935 = vpop.f32.mrf.mxu0
  %v1936 = vadd.f32 %v1825, %v1935
  %v1937 = vpop.f32.mrf.mxu0
  %1938 = vmatprep.mubr.bf16.mxu0 0
  %1939 = vmatmul.mubr.bf16.gmra.mxu0 %v1877
  %v1940 = vpop.f32.mrf.mxu0
  %v1941 = vadd.f32 %v1830, %v1940
  %v1942 = vpop.f32.mrf.mxu0
  %v1943 = vpop.f32.mrf.mxu0
  %v1944 = vadd.f32 %v1833, %v1943
  %v1945 = vpop.f32.mrf.mxu0
  %1946 = vmatprep.mubr.bf16.mxu0 0
  %1947 = vmatmul.mubr.bf16.gmra.mxu0 %v1880
  %v1948 = vpop.f32.mrf.mxu0
  %v1949 = vadd.f32 %v1838, %v1948
  %v1950 = vpop.f32.mrf.mxu0
  %v1951 = vpop.f32.mrf.mxu0
  %v1952 = vpop.f32.mrf.mxu0
  %1953 = vdwg.mxu0
  %v1954 = vld [vmem:[#allocation2 + $0x9] sm:$0xff]
  %v1955 = vld [vmem:[#allocation2 + $0x11] sm:$0xff]
  %v1956 = vld [vmem:[#allocation2 + $0x19] sm:$0xff]
  %v1957 = vld [vmem:[#allocation2 + $0x21] sm:$0xff]
  %v1958 = vld [vmem:[#allocation2 + $0x29] sm:$0xff]
  %v1959 = vld [vmem:[#allocation2 + $0x31] sm:$0xff]
  %v1960 = vld [vmem:[#allocation2 + $0x39] sm:$0xff]
  %v1961 = vld [vmem:[#allocation2 + $0x41] sm:$0xff]
  %v1962 = vld [vmem:[#allocation2 + $0x49] sm:$0xff]
  %s1963 = scalar_lea.vmem %s7, 144
  %v1964 = vld [vmem:[%s1963] sm:$0xff]
  %v1965 = vld [vmem:[%s1963 + $0x8] sm:$0xff]
  %v1966 = vld [vmem:[%s1963 + $0x10] sm:$0xff]
  %v1967 = vld [vmem:[%s1963 + $0x18] sm:$0xff]
  %v1968 = vld [vmem:[%s1963 + $0x20] sm:$0xff]
  %v1969 = vld [vmem:[%s1963 + $0x28] sm:$0xff]
  %v1970 = vld [vmem:[%s1963 + $0x30] sm:$0xff]
  %v1971 = vld [vmem:[%s1963 + $0x38] sm:$0xff]
  %v1972 = vld [vmem:[%s1963 + $0x40] sm:$0xff]
  %1974 = vset.pattern.permute.xlu0 0
  %1975 = vperm.xlu0 %1974, %v1964
  %v1976 = vpop.permute.xlu0 %1975
  %1979 = vset.pattern.permute.xlu0 0
  %1980 = vperm.xlu0 %1979, %v1965
  %v1981 = vpop.permute.xlu0 %1980
  %1984 = vset.pattern.permute.xlu0 0
  %1985 = vperm.xlu0 %1984, %v1966
  %v1986 = vpop.permute.xlu0 %1985
  %1989 = vset.pattern.permute.xlu0 0
  %1990 = vperm.xlu0 %1989, %v1967
  %v1991 = vpop.permute.xlu0 %1990
  %1994 = vset.pattern.permute.xlu0 0
  %1995 = vperm.xlu0 %1994, %v1968
  %v1996 = vpop.permute.xlu0 %1995
  %1999 = vset.pattern.permute.xlu0 0
  %2000 = vperm.xlu0 %1999, %v1969
  %v2001 = vpop.permute.xlu0 %2000
  %2004 = vset.pattern.permute.xlu0 0
  %2005 = vperm.xlu0 %2004, %v1970
  %v2006 = vpop.permute.xlu0 %2005
  %2009 = vset.pattern.permute.xlu0 0
  %2010 = vperm.xlu0 %2009, %v1971
  %v2011 = vpop.permute.xlu0 %2010
  %2014 = vset.pattern.permute.xlu0 0
  %2015 = vperm.xlu0 %2014, %v1972
  %v2016 = vpop.permute.xlu0 %2015
  %v2018 = vmul.f32 %v1954, %v1976
  %v2019 = vmul.f32 %v1955, %v1981
  %v2020 = vmul.f32 %v1956, %v1986
  %v2021 = vmul.f32 %v1957, %v1991
  %v2022 = vmul.f32 %v1958, %v1996
  %v2023 = vmul.f32 %v1959, %v2001
  %v2024 = vmul.f32 %v1960, %v2006
  %v2025 = vmul.f32 %v1961, %v2011
  %v2026 = vmul.f32 %v1962, %v2016
  %v2027 = vpack.c.bf16 %v2019, %v2018
  %v2028 = vpack.c.bf16 %v2021, %v2020
  %v2029 = vpack.c.bf16 %v2023, %v2022
  %v2030 = vpack.c.bf16 %v2025, %v2024
  %v2031 = vpack.c.bf16 %v2026, %v2026
  %s2032 = scalar_lea.vmem %s19, 64
  %v2033 = vld [vmem:[%s2032] sm:$0xf]
  %v2034 = vld [vmem:[%s2032 + $0x4] sm:$0xf]
  %v2035 = vld [vmem:[%s2032 + $0x8] sm:$0xf]
  %v2036 = vld [vmem:[%s2032 + $0xc] sm:$0xf]
  %v2037 = vld [vmem:[%s2032 + $0x10] sm:$0xf]
  %v2038 = vld [vmem:[%s2032 + $0x14] sm:$0xf]
  %v2039 = vld [vmem:[%s2032 + $0x18] sm:$0xf]
  %v2040 = vld [vmem:[%s2032 + $0x1c] sm:$0xf]
  %v2049 = vunpack.c.l.b16 %v2033
  %v2050 = vunpack.c.l.b16 %v2034
  %v2051 = vunpack.c.l.b16 %v2035
  %v2052 = vunpack.c.l.b16 %v2036
  %v2053 = vunpack.c.l.b16 %v2037
  %v2054 = vunpack.c.l.b16 %v2038
  %v2055 = vunpack.c.l.b16 %v2039
  %v2056 = vunpack.c.l.b16 %v2040
  %v2057 = vpack.c.b16 %v2050, %v2049
  %v2058 = vpack.c.b16 %v2052, %v2051
  %v2059 = vpack.c.b16 %v2054, %v2053
  %v2060 = vpack.c.b16 %v2056, %v2055
  %v2066 = vsel %vm314, %v2027, 0
  %v2069 = vsel %vm314, %v2028, 0
  %v2072 = vsel %vm314, %v2029, 0
  %v2075 = vsel %vm314, %v2030, 0
  %v2078 = vsel %vm314, %v2031, 0
  %2080 = vmatprep.subr.bf16.mxu0 0
  %2081 = vmatpush1.bf16.msra.mxu0 0
  %2082 = vmatprep.subr.bf16.mxu0 0
  %2083 = vmatpush1.bf16.msra.mxu0 0
  %2084 = vmatprep.subr.bf16.mxu0 0
  %2085 = vmatpush1.bf16.msra.mxu0 0
  %2086 = vmatprep.subr.bf16.mxu0 0
  %2087 = vmatpush1.bf16.msra.mxu0 0
  %2088 = vmatprep.subr.bf16.mxu0 0
  %2089 = vmatpush1.bf16.msra.mxu0 %v2060
  %2090 = vmatprep.subr.bf16.mxu0 0
  %2091 = vmatpush1.bf16.msra.mxu0 %v2059
  %2092 = vmatprep.subr.bf16.mxu0 0
  %2093 = vmatpush1.bf16.msra.mxu0 %v2058
  %2094 = vmatprep.subr.bf16.mxu0 0
  %2095 = vmatpush1.bf16.msra.mxu0 %v2057
  %2096 = vmatprep.subr.bf16.mxu0 0
  %2097 = vmatpush2.bf16.msra.mxu0 0
  %2098 = vmatprep.subr.bf16.mxu0 0
  %2099 = vmatpush2.bf16.msra.mxu0 0
  %2100 = vmatprep.subr.bf16.mxu0 0
  %2101 = vmatpush2.bf16.msra.mxu0 0
  %2102 = vmatprep.subr.bf16.mxu0 0
  %2103 = vmatpush2.bf16.msra.mxu0 0
  %2104 = vmatprep.subr.bf16.mxu0 0
  %2105 = vmatpush2.bf16.msra.mxu0 0
  %2106 = vmatprep.subr.bf16.mxu0 0
  %2107 = vmatpush2.bf16.msra.mxu0 0
  %2108 = vmatprep.subr.bf16.mxu0 0
  %2109 = vmatpush2.bf16.msra.mxu0 0
  %2110 = vmatprep.subr.bf16.mxu0 0
  %2111 = vmatpush2.bf16.msra.mxu0 0
  %2112 = vmatprep.mubr.bf16.mxu0 0
  %2113 = vmatmul.mubr.bf16.gmra.mxu0 %v2066
  %v2114 = vpop.f32.mrf.mxu0
  %v2115 = vadd.f32 0.0, %v2114
  %v2116 = vpop.f32.mrf.mxu0
  %v2117 = vpop.f32.mrf.mxu0
  %v2118 = vadd.f32 0.0, %v2117
  %v2119 = vpop.f32.mrf.mxu0
  %2120 = vmatprep.mubr.bf16.mxu0 0
  %2121 = vmatmul.mubr.bf16.gmra.mxu0 %v2069
  %v2122 = vpop.f32.mrf.mxu0
  %v2123 = vadd.f32 0.0, %v2122
  %v2124 = vpop.f32.mrf.mxu0
  %v2125 = vpop.f32.mrf.mxu0
  %v2126 = vadd.f32 0.0, %v2125
  %v2127 = vpop.f32.mrf.mxu0
  %2128 = vmatprep.mubr.bf16.mxu0 0
  %2129 = vmatmul.mubr.bf16.gmra.mxu0 %v2072
  %v2130 = vpop.f32.mrf.mxu0
  %v2131 = vadd.f32 0.0, %v2130
  %v2132 = vpop.f32.mrf.mxu0
  %v2133 = vpop.f32.mrf.mxu0
  %v2134 = vadd.f32 0.0, %v2133
  %v2135 = vpop.f32.mrf.mxu0
  %2136 = vmatprep.mubr.bf16.mxu0 0
  %2137 = vmatmul.mubr.bf16.gmra.mxu0 %v2075
  %v2138 = vpop.f32.mrf.mxu0
  %v2139 = vadd.f32 0.0, %v2138
  %v2140 = vpop.f32.mrf.mxu0
  %v2141 = vpop.f32.mrf.mxu0
  %v2142 = vadd.f32 0.0, %v2141
  %v2143 = vpop.f32.mrf.mxu0
  %2144 = vmatprep.mubr.bf16.mxu0 0
  %2145 = vmatmul.mubr.bf16.gmra.mxu0 %v2078
  %v2146 = vpop.f32.mrf.mxu0
  %v2147 = vadd.f32 0.0, %v2146
  %v2148 = vpop.f32.mrf.mxu0
  %v2149 = vpop.f32.mrf.mxu0
  %v2150 = vpop.f32.mrf.mxu0
  %2151 = vdwg.mxu0
  %v2152 = vadd.f32 %v1917, %v2115
  %v2153 = vadd.f32 %v1920, %v2118
  %v2154 = vadd.f32 %v1925, %v2123
  %v2155 = vadd.f32 %v1928, %v2126
  %v2156 = vadd.f32 %v1933, %v2131
  %v2157 = vadd.f32 %v1936, %v2134
  %v2158 = vadd.f32 %v1941, %v2139
  %v2159 = vadd.f32 %v1944, %v2142
  %v2160 = vadd.f32 %v1949, %v2147
  %v2161 = vld [vmem:[%s21] sm:$0x1]
  %v2163 = vlaneseq
  %v2164 = vshrl.u32 %v2163, 7
  %v2165 = vsub.s32 0, %v2164
  %v2166 = vrot.slane %v2161, %v2165
  %v2168 = vadd.f32 %v2152, %v2166
  %v2169 = vadd.f32 %v2153, %v2166
  %v2170 = vadd.f32 %v2154, %v2166
  %v2171 = vadd.f32 %v2155, %v2166
  %v2172 = vadd.f32 %v2156, %v2166
  %v2173 = vadd.f32 %v2157, %v2166
  %v2174 = vadd.f32 %v2158, %v2166
  %v2175 = vadd.f32 %v2159, %v2166
  %v2176 = vadd.f32 %v2160, %v2166
  %v2177 = vld [vmem:[%s11] sm:$0xff]
  %v2178 = vld [vmem:[%s11 + $0x8] sm:$0xff]
  %v2179 = vld [vmem:[%s11 + $0x10] sm:$0xff]
  %v2180 = vld [vmem:[%s11 + $0x18] sm:$0xff]
  %v2181 = vld [vmem:[%s11 + $0x20] sm:$0xff]
  %v2182 = vld [vmem:[%s11 + $0x28] sm:$0xff]
  %v2183 = vld [vmem:[%s11 + $0x30] sm:$0xff]
  %v2184 = vld [vmem:[%s11 + $0x38] sm:$0xff]
  %v2185 = vld [vmem:[%s11 + $0x40] sm:$0xff]
  %v2186 = vpack.c.bf16 %v2169, %v2168
  %v2187 = vpack.c.bf16 %v2171, %v2170
  %v2188 = vpack.c.bf16 %v2173, %v2172
  %v2189 = vpack.c.bf16 %v2175, %v2174
  %v2190 = vpack.c.bf16 %v2176, %v2176
  %v2191 = vld [vmem:[%s31] sm:$0xff]
  %v2192 = vld [vmem:[%s31 + $0x8] sm:$0xf]
  %v2193 = vld [vmem:[%s31 + $0xc] sm:$0xff]
  %v2194 = vld [vmem:[%s31 + $0x14] sm:$0xf]
  %v2195 = vld [vmem:[%s31 + $0x18] sm:$0xff]
  %v2196 = vld [vmem:[%s31 + $0x20] sm:$0xf]
  %v2197 = vld [vmem:[%s31 + $0x24] sm:$0xff]
  %v2198 = vld [vmem:[%s31 + $0x2c] sm:$0xf]
  %v2199 = vld [vmem:[%s31 + $0x30] sm:$0xff]
  %v2200 = vld [vmem:[%s31 + $0x38] sm:$0xf]
  %v2201 = vld [vmem:[%s31 + $0x3c] sm:$0xff]
  %v2202 = vld [vmem:[%s31 + $0x44] sm:$0xf]
  %v2203 = vld [vmem:[%s31 + $0x48] sm:$0xff]
  %v2204 = vld [vmem:[%s31 + $0x50] sm:$0xf]
  %v2205 = vld [vmem:[%s31 + $0x54] sm:$0xff]
  %v2206 = vld [vmem:[%s31 + $0x5c] sm:$0xf]
  %v2207 = vld [vmem:[%s31 + $0x60] sm:$0xff]
  %v2208 = vld [vmem:[%s31 + $0x68] sm:$0xf]
  %v2209 = vld [vmem:[%s31 + $0x6c] sm:$0xff]
  %v2210 = vld [vmem:[%s31 + $0x74] sm:$0xf]
  %v2211 = vld [vmem:[%s31 + $0x78] sm:$0xff]
  %v2212 = vld [vmem:[%s31 + $0x80] sm:$0xf]
  %v2213 = vld [vmem:[%s31 + $0x84] sm:$0xff]
  %v2214 = vld [vmem:[%s31 + $0x8c] sm:$0xf]
  %v2215 = vld [vmem:[%s31 + $0x90] sm:$0xff]
  %v2216 = vld [vmem:[%s31 + $0x98] sm:$0xf]
  %v2217 = vld [vmem:[%s31 + $0x9c] sm:$0xff]
  %v2218 = vld [vmem:[%s31 + $0xa4] sm:$0xf]
  %v2219 = vld [vmem:[%s31 + $0xa8] sm:$0xff]
  %v2220 = vld [vmem:[%s31 + $0xb0] sm:$0xf]
  %v2221 = vld [vmem:[%s31 + $0xb4] sm:$0xff]
  %v2222 = vld [vmem:[%s31 + $0xbc] sm:$0xf]
  %v2223 = vld [vmem:[%s33] sm:$0x7]
  %v2225 = vlaneseq
  %v2226 = vshrl.u32 %v2225, 7
  %v2227 = vsub.s32 0, %v2226
  %v2228 = vrot.slane %v2223, %v2227
  %v2229 = vlaneseq
  %v2230 = vshrl.u32 %v2229, 7
  %v2231 = vsub.s32 1, %v2230
  %v2232 = vrot.slane %v2223, %v2231
  %v2233 = vlaneseq
  %v2234 = vshrl.u32 %v2233, 7
  %v2235 = vsub.s32 2, %v2234
  %v2236 = vrot.slane %v2223, %v2235
  %v2272 = vunpack.c.l.b16 %v2191
  %v2273 = vunpack.c.h.b16 %v2191
  %v2274 = vunpack.c.l.b16 %v2192
  %v2275 = vunpack.c.l.b16 %v2193
  %v2276 = vunpack.c.h.b16 %v2193
  %v2277 = vunpack.c.l.b16 %v2194
  %v2278 = vunpack.c.l.b16 %v2195
  %v2279 = vunpack.c.h.b16 %v2195
  %v2280 = vunpack.c.l.b16 %v2196
  %v2281 = vunpack.c.l.b16 %v2197
  %v2282 = vunpack.c.h.b16 %v2197
  %v2283 = vunpack.c.l.b16 %v2198
  %v2284 = vunpack.c.l.b16 %v2199
  %v2285 = vunpack.c.h.b16 %v2199
  %v2286 = vunpack.c.l.b16 %v2200
  %v2287 = vunpack.c.l.b16 %v2201
  %v2288 = vunpack.c.h.b16 %v2201
  %v2289 = vunpack.c.l.b16 %v2202
  %v2290 = vunpack.c.l.b16 %v2203
  %v2291 = vunpack.c.h.b16 %v2203
  %v2292 = vunpack.c.l.b16 %v2204
  %v2293 = vunpack.c.l.b16 %v2205
  %v2294 = vunpack.c.h.b16 %v2205
  %v2295 = vunpack.c.l.b16 %v2206
  %v2296 = vunpack.c.l.b16 %v2207
  %v2297 = vunpack.c.h.b16 %v2207
  %v2298 = vunpack.c.l.b16 %v2208
  %v2299 = vunpack.c.l.b16 %v2209
  %v2300 = vunpack.c.h.b16 %v2209
  %v2301 = vunpack.c.l.b16 %v2210
  %v2302 = vunpack.c.l.b16 %v2211
  %v2303 = vunpack.c.h.b16 %v2211
  %v2304 = vunpack.c.l.b16 %v2212
  %v2305 = vunpack.c.l.b16 %v2213
  %v2306 = vunpack.c.h.b16 %v2213
  %v2307 = vunpack.c.l.b16 %v2214
  %v2308 = vunpack.c.l.b16 %v2215
  %v2309 = vunpack.c.h.b16 %v2215
  %v2310 = vunpack.c.l.b16 %v2216
  %v2311 = vunpack.c.l.b16 %v2217
  %v2312 = vunpack.c.h.b16 %v2217
  %v2313 = vunpack.c.l.b16 %v2218
  %v2314 = vunpack.c.l.b16 %v2219
  %v2315 = vunpack.c.h.b16 %v2219
  %v2316 = vunpack.c.l.b16 %v2220
  %v2317 = vunpack.c.l.b16 %v2221
  %v2318 = vunpack.c.h.b16 %v2221
  %v2319 = vunpack.c.l.b16 %v2222
  %v2320 = vpack.c.b16 %v2275, %v2272
  %v2321 = vpack.c.b16 %v2276, %v2273
  %v2322 = vpack.c.b16 %v2277, %v2274
  %v2323 = vpack.c.b16 %v2281, %v2278
  %v2324 = vpack.c.b16 %v2282, %v2279
  %v2325 = vpack.c.b16 %v2283, %v2280
  %v2326 = vpack.c.b16 %v2287, %v2284
  %v2327 = vpack.c.b16 %v2288, %v2285
  %v2328 = vpack.c.b16 %v2289, %v2286
  %v2329 = vpack.c.b16 %v2293, %v2290
  %v2330 = vpack.c.b16 %v2294, %v2291
  %v2331 = vpack.c.b16 %v2295, %v2292
  %v2332 = vpack.c.b16 %v2299, %v2296
  %v2333 = vpack.c.b16 %v2300, %v2297
  %v2334 = vpack.c.b16 %v2301, %v2298
  %v2335 = vpack.c.b16 %v2305, %v2302
  %v2336 = vpack.c.b16 %v2306, %v2303
  %v2337 = vpack.c.b16 %v2307, %v2304
  %v2338 = vpack.c.b16 %v2311, %v2308
  %v2339 = vpack.c.b16 %v2312, %v2309
  %v2340 = vpack.c.b16 %v2313, %v2310
  %v2341 = vpack.c.b16 %v2317, %v2314
  %v2342 = vpack.c.b16 %v2318, %v2315
  %v2343 = vpack.c.b16 %v2319, %v2316
  %2368 = vmatprep.subr.bf16.mxu0 %v2342
  %2369 = vmatpush1.bf16.msra.mxu0 %v2341
  %2370 = vmatprep.subr.bf16.mxu0 %v2339
  %2371 = vmatpush1.bf16.msra.mxu0 %v2338
  %2372 = vmatprep.subr.bf16.mxu0 %v2336
  %2373 = vmatpush1.bf16.msra.mxu0 %v2335
  %2374 = vmatprep.subr.bf16.mxu0 %v2333
  %2375 = vmatpush1.bf16.msra.mxu0 %v2332
  %2376 = vmatprep.subr.bf16.mxu0 %v2330
  %2377 = vmatpush1.bf16.msra.mxu0 %v2329
  %2378 = vmatprep.subr.bf16.mxu0 %v2327
  %2379 = vmatpush1.bf16.msra.mxu0 %v2326
  %2380 = vmatprep.subr.bf16.mxu0 %v2324
  %2381 = vmatpush1.bf16.msra.mxu0 %v2323
  %2382 = vmatprep.subr.bf16.mxu0 %v2321
  %2383 = vmatpush1.bf16.msra.mxu0 %v2320
  %2384 = vmatprep.subr.bf16.mxu0 0
  %2385 = vmatpush2.bf16.msra.mxu0 0
  %2386 = vmatprep.subr.bf16.mxu0 0
  %2387 = vmatpush2.bf16.msra.mxu0 0
  %2388 = vmatprep.subr.bf16.mxu0 0
  %2389 = vmatpush2.bf16.msra.mxu0 0
  %2390 = vmatprep.subr.bf16.mxu0 0
  %2391 = vmatpush2.bf16.msra.mxu0 0
  %2392 = vmatprep.subr.bf16.mxu0 0
  %2393 = vmatpush2.bf16.msra.mxu0 0
  %2394 = vmatprep.subr.bf16.mxu0 0
  %2395 = vmatpush2.bf16.msra.mxu0 0
  %2396 = vmatprep.subr.bf16.mxu0 0
  %2397 = vmatpush2.bf16.msra.mxu0 0
  %2398 = vmatprep.subr.bf16.mxu0 0
  %2399 = vmatpush2.bf16.msra.mxu0 0
  %2400 = vmatprep.mubr.bf16.mxu0 0
  %2401 = vmatmul.mubr.bf16.gmra.mxu0 %v2186
  %v2402 = vpop.f32.mrf.mxu0
  %v2403 = vadd.f32 %v2228, %v2402
  %v2404 = vpop.f32.mrf.mxu0
  %v2405 = vadd.f32 %v2232, %v2404
  %v2406 = vpop.f32.mrf.mxu0
  %v2407 = vadd.f32 %v2228, %v2406
  %v2408 = vpop.f32.mrf.mxu0
  %v2409 = vadd.f32 %v2232, %v2408
  %2410 = vmatprep.mubr.bf16.mxu0 0
  %2411 = vmatmul.mubr.bf16.gmra.mxu0 %v2187
  %v2412 = vpop.f32.mrf.mxu0
  %v2413 = vadd.f32 %v2228, %v2412
  %v2414 = vpop.f32.mrf.mxu0
  %v2415 = vadd.f32 %v2232, %v2414
  %v2416 = vpop.f32.mrf.mxu0
  %v2417 = vadd.f32 %v2228, %v2416
  %v2418 = vpop.f32.mrf.mxu0
  %v2419 = vadd.f32 %v2232, %v2418
  %2420 = vmatprep.mubr.bf16.mxu0 0
  %2421 = vmatmul.mubr.bf16.gmra.mxu0 %v2188
  %v2422 = vpop.f32.mrf.mxu0
  %v2423 = vadd.f32 %v2228, %v2422
  %v2424 = vpop.f32.mrf.mxu0
  %v2425 = vadd.f32 %v2232, %v2424
  %v2426 = vpop.f32.mrf.mxu0
  %v2427 = vadd.f32 %v2228, %v2426
  %v2428 = vpop.f32.mrf.mxu0
  %v2429 = vadd.f32 %v2232, %v2428
  %2430 = vmatprep.mubr.bf16.mxu0 0
  %2431 = vmatmul.mubr.bf16.gmra.mxu0 %v2189
  %v2432 = vpop.f32.mrf.mxu0
  %v2433 = vadd.f32 %v2228, %v2432
  %v2434 = vpop.f32.mrf.mxu0
  %v2435 = vadd.f32 %v2232, %v2434
  %v2436 = vpop.f32.mrf.mxu0
  %v2437 = vadd.f32 %v2228, %v2436
  %v2438 = vpop.f32.mrf.mxu0
  %v2439 = vadd.f32 %v2232, %v2438
  %2440 = vmatprep.mubr.bf16.mxu0 0
  %2441 = vmatmul.mubr.bf16.gmra.mxu0 %v2190
  %v2442 = vpop.f32.mrf.mxu0
  %v2443 = vadd.f32 %v2228, %v2442
  %v2444 = vpop.f32.mrf.mxu0
  %v2445 = vadd.f32 %v2232, %v2444
  %v2446 = vpop.f32.mrf.mxu0
  %v2447 = vpop.f32.mrf.mxu0
  %2448 = vdwg.mxu0
  %2449 = vmatprep.subr.bf16.mxu0 0
  %2450 = vmatpush1.bf16.msra.mxu0 %v2343
  %2451 = vmatprep.subr.bf16.mxu0 0
  %2452 = vmatpush1.bf16.msra.mxu0 %v2340
  %2453 = vmatprep.subr.bf16.mxu0 0
  %2454 = vmatpush1.bf16.msra.mxu0 %v2337
  %2455 = vmatprep.subr.bf16.mxu0 0
  %2456 = vmatpush1.bf16.msra.mxu0 %v2334
  %2457 = vmatprep.subr.bf16.mxu0 0
  %2458 = vmatpush1.bf16.msra.mxu0 %v2331
  %2459 = vmatprep.subr.bf16.mxu0 0
  %2460 = vmatpush1.bf16.msra.mxu0 %v2328
  %2461 = vmatprep.subr.bf16.mxu0 0
  %2462 = vmatpush1.bf16.msra.mxu0 %v2325
  %2463 = vmatprep.subr.bf16.mxu0 0
  %2464 = vmatpush1.bf16.msra.mxu0 %v2322
  %2465 = vmatprep.subr.bf16.mxu0 0
  %2466 = vmatpush2.bf16.msra.mxu0 0
  %2467 = vmatprep.subr.bf16.mxu0 0
  %2468 = vmatpush2.bf16.msra.mxu0 0
  %2469 = vmatprep.subr.bf16.mxu0 0
  %2470 = vmatpush2.bf16.msra.mxu0 0
  %2471 = vmatprep.subr.bf16.mxu0 0
  %2472 = vmatpush2.bf16.msra.mxu0 0
  %2473 = vmatprep.subr.bf16.mxu0 0
  %2474 = vmatpush2.bf16.msra.mxu0 0
  %2475 = vmatprep.subr.bf16.mxu0 0
  %2476 = vmatpush2.bf16.msra.mxu0 0
  %2477 = vmatprep.subr.bf16.mxu0 0
  %2478 = vmatpush2.bf16.msra.mxu0 0
  %2479 = vmatprep.subr.bf16.mxu0 0
  %2480 = vmatpush2.bf16.msra.mxu0 0
  %2481 = vmatprep.mubr.bf16.mxu0 0
  %2482 = vmatmul.mubr.bf16.gmra.mxu0 %v2186
  %v2483 = vpop.f32.mrf.mxu0
  %v2484 = vadd.f32 %v2236, %v2483
  %v2485 = vpop.f32.mrf.mxu0
  %v2486 = vpop.f32.mrf.mxu0
  %v2487 = vadd.f32 %v2236, %v2486
  %v2488 = vpop.f32.mrf.mxu0
  %2489 = vmatprep.mubr.bf16.mxu0 0
  %2490 = vmatmul.mubr.bf16.gmra.mxu0 %v2187
  %v2491 = vpop.f32.mrf.mxu0
  %v2492 = vadd.f32 %v2236, %v2491
  %v2493 = vpop.f32.mrf.mxu0
  %v2494 = vpop.f32.mrf.mxu0
  %v2495 = vadd.f32 %v2236, %v2494
  %v2496 = vpop.f32.mrf.mxu0
  %2497 = vmatprep.mubr.bf16.mxu0 0
  %2498 = vmatmul.mubr.bf16.gmra.mxu0 %v2188
  %v2499 = vpop.f32.mrf.mxu0
  %v2500 = vadd.f32 %v2236, %v2499
  %v2501 = vpop.f32.mrf.mxu0
  %v2502 = vpop.f32.mrf.mxu0
  %v2503 = vadd.f32 %v2236, %v2502
  %v2504 = vpop.f32.mrf.mxu0
  %2505 = vmatprep.mubr.bf16.mxu0 0
  %2506 = vmatmul.mubr.bf16.gmra.mxu0 %v2189
  %v2507 = vpop.f32.mrf.mxu0
  %v2508 = vadd.f32 %v2236, %v2507
  %v2509 = vpop.f32.mrf.mxu0
  %v2510 = vpop.f32.mrf.mxu0
  %v2511 = vadd.f32 %v2236, %v2510
  %v2512 = vpop.f32.mrf.mxu0
  %2513 = vmatprep.mubr.bf16.mxu0 0
  %2514 = vmatmul.mubr.bf16.gmra.mxu0 %v2190
  %v2515 = vpop.f32.mrf.mxu0
  %v2516 = vadd.f32 %v2236, %v2515
  %v2517 = vpop.f32.mrf.mxu0
  %v2518 = vpop.f32.mrf.mxu0
  %v2519 = vpop.f32.mrf.mxu0
  %2520 = vdwg.mxu0
  %v2521 = vmul.f32 %v2403, 0.125
  %v2522 = vmul.f32 %v2407, 0.125
  %v2523 = vmul.f32 %v2413, 0.125
  %v2524 = vmul.f32 %v2417, 0.125
  %v2525 = vmul.f32 %v2423, 0.125
  %v2526 = vmul.f32 %v2427, 0.125
  %v2527 = vmul.f32 %v2433, 0.125
  %v2528 = vmul.f32 %v2437, 0.125
  %v2529 = vmul.f32 %v2443, 0.125
  %v2530 = vpack.c.bf16 %v2522, %v2521
  %v2531 = vpack.c.bf16 %v2524, %v2523
  %v2532 = vpack.c.bf16 %v2526, %v2525
  %v2533 = vpack.c.bf16 %v2528, %v2527
  %v2534 = vpack.c.bf16 %v2529, %v2529
  %v2535 = vpack.c.bf16 %v2487, %v2484
  %v2536 = vpack.c.bf16 %v2495, %v2492
  %v2537 = vpack.c.bf16 %v2503, %v2500
  %v2538 = vpack.c.bf16 %v2511, %v2508
  %v2539 = vpack.c.bf16 %v2516, %v2516
  %2540 = vxpose.xlu0.b32.start [1/16] %v2405, 128
  %2541 = vxpose.xlu0.b32.cont [2/16] %v2409, 128
  %2542 = vxpose.xlu0.b32.cont [3/16] %v2415, 128
  %2543 = vxpose.xlu0.b32.cont [4/16] %v2419, 128
  %2544 = vxpose.xlu0.b32.cont [5/16] %v2425, 128
  %2545 = vxpose.xlu0.b32.cont [6/16] %v2429, 128
  %2546 = vxpose.xlu0.b32.cont [7/16] %v2435, 128
  %2547 = vxpose.xlu0.b32.cont [8/16] %v2439, 128
  %2548 = vxpose.xlu0.b32.cont [9/16] %v2445, 128
  %2549 = vxpose.xlu0.b32.cont [10/16] 0.0, 128
  %2550 = vxpose.xlu0.b32.cont [11/16] 0.0, 128
  %2551 = vxpose.xlu0.b32.cont [12/16] 0.0, 128
  %2552 = vxpose.xlu0.b32.cont [13/16] 0.0, 128
  %2553 = vxpose.xlu0.b32.cont [14/16] 0.0, 128
  %2554 = vxpose.xlu0.b32.cont [15/16] 0.0, 128
  %2555 = vxpose.xlu0.b32.end [16/16] 0.0, 128
  %v2556 = vpop.trf.xlu0
  %v2557 = vpop.trf.xlu0
  %v2558 = vpop.trf.xlu0
  %v2559 = vpop.trf.xlu0
  %v2560 = vpop.trf.xlu0
  %v2561 = vpop.trf.xlu0
  %v2562 = vpop.trf.xlu0
  %v2563 = vpop.trf.xlu0
  %v2564 = vpop.trf.xlu0
  %v2565 = vpop.trf.xlu0
  %v2566 = vpop.trf.xlu0
  %v2567 = vpop.trf.xlu0
  %v2568 = vpop.trf.xlu0
  %v2569 = vpop.trf.xlu0
  %v2570 = vpop.trf.xlu0
  %v2571 = vpop.trf.xlu0
  %v2572 = vpack.c.bf16 %v2557, %v2556
  %v2573 = vpack.c.bf16 %v2559, %v2558
  %v2574 = vpack.c.bf16 %v2561, %v2560
  %v2575 = vpack.c.bf16 %v2563, %v2562
  %v2577 = vsel %vm314, %v2530, 0
  %v2580 = vsel %vm314, %v2531, 0
  %v2583 = vsel %vm314, %v2532, 0
  %v2586 = vsel %vm314, %v2533, 0
  %v2589 = vsel %vm314, %v2534, 0
  %2591 = vmatprep.subr.bf16.mxu0 0
  %2592 = vmatpush1.bf16.msra.mxu0 0
  %2593 = vmatprep.subr.bf16.mxu0 0
  %2594 = vmatpush1.bf16.msra.mxu0 0
  %2595 = vmatprep.subr.bf16.mxu0 0
  %2596 = vmatpush1.bf16.msra.mxu0 0
  %2597 = vmatprep.subr.bf16.mxu0 0
  %2598 = vmatpush1.bf16.msra.mxu0 0
  %2599 = vmatprep.subr.bf16.mxu0 0
  %2600 = vmatpush1.bf16.msra.mxu0 %v2575
  %2601 = vmatprep.subr.bf16.mxu0 0
  %2602 = vmatpush1.bf16.msra.mxu0 %v2574
  %2603 = vmatprep.subr.bf16.mxu0 0
  %2604 = vmatpush1.bf16.msra.mxu0 %v2573
  %2605 = vmatprep.subr.bf16.mxu0 0
  %2606 = vmatpush1.bf16.msra.mxu0 %v2572
  %2607 = vmatprep.subr.bf16.mxu0 0
  %2608 = vmatpush2.bf16.msra.mxu0 0
  %2609 = vmatprep.subr.bf16.mxu0 0
  %2610 = vmatpush2.bf16.msra.mxu0 0
  %2611 = vmatprep.subr.bf16.mxu0 0
  %2612 = vmatpush2.bf16.msra.mxu0 0
  %2613 = vmatprep.subr.bf16.mxu0 0
  %2614 = vmatpush2.bf16.msra.mxu0 0
  %2615 = vmatprep.subr.bf16.mxu0 0
  %2616 = vmatpush2.bf16.msra.mxu0 0
  %2617 = vmatprep.subr.bf16.mxu0 0
  %2618 = vmatpush2.bf16.msra.mxu0 0
  %2619 = vmatprep.subr.bf16.mxu0 0
  %2620 = vmatpush2.bf16.msra.mxu0 0
  %2621 = vmatprep.subr.bf16.mxu0 0
  %2622 = vmatpush2.bf16.msra.mxu0 0
  %2623 = vmatprep.mubr.bf16.mxu0 0
  %2624 = vmatmul.mubr.bf16.gmra.mxu0 %v2577
  %v2625 = vpop.f32.mrf.mxu0
  %v2626 = vadd.f32 %v2177, %v2625
  %v2627 = vpop.f32.mrf.mxu0
  %v2628 = vpop.f32.mrf.mxu0
  %v2629 = vadd.f32 %v2178, %v2628
  %v2630 = vpop.f32.mrf.mxu0
  %2631 = vmatprep.mubr.bf16.mxu0 0
  %2632 = vmatmul.mubr.bf16.gmra.mxu0 %v2580
  %v2633 = vpop.f32.mrf.mxu0
  %v2634 = vadd.f32 %v2179, %v2633
  %v2635 = vpop.f32.mrf.mxu0
  %v2636 = vpop.f32.mrf.mxu0
  %v2637 = vadd.f32 %v2180, %v2636
  %v2638 = vpop.f32.mrf.mxu0
  %2639 = vmatprep.mubr.bf16.mxu0 0
  %2640 = vmatmul.mubr.bf16.gmra.mxu0 %v2583
  %v2641 = vpop.f32.mrf.mxu0
  %v2642 = vadd.f32 %v2181, %v2641
  %v2643 = vpop.f32.mrf.mxu0
  %v2644 = vpop.f32.mrf.mxu0
  %v2645 = vadd.f32 %v2182, %v2644
  %v2646 = vpop.f32.mrf.mxu0
  %2647 = vmatprep.mubr.bf16.mxu0 0
  %2648 = vmatmul.mubr.bf16.gmra.mxu0 %v2586
  %v2649 = vpop.f32.mrf.mxu0
  %v2650 = vadd.f32 %v2183, %v2649
  %v2651 = vpop.f32.mrf.mxu0
  %v2652 = vpop.f32.mrf.mxu0
  %v2653 = vadd.f32 %v2184, %v2652
  %v2654 = vpop.f32.mrf.mxu0
  %2655 = vmatprep.mubr.bf16.mxu0 0
  %2656 = vmatmul.mubr.bf16.gmra.mxu0 %v2589
  %v2657 = vpop.f32.mrf.mxu0
  %v2658 = vadd.f32 %v2185, %v2657
  %v2659 = vpop.f32.mrf.mxu0
  %v2660 = vpop.f32.mrf.mxu0
  %v2661 = vpop.f32.mrf.mxu0
  %2662 = vdwg.mxu0
  %vm2663 = vcmask 588800
  %v2664 = vsel %vm2663, %v2626, -inf
  %2665 = vmax.xlane.f32.xlu0 %v2664
  %v2666 = vpop.xlane.xlu0 %2665
  %v2667 = vsel %vm2663, %v2629, -inf
  %2668 = vmax.xlane.f32.xlu0 %v2667
  %v2669 = vpop.xlane.xlu0 %2668
  %v2670 = vsel %vm2663, %v2634, -inf
  %2671 = vmax.xlane.f32.xlu0 %v2670
  %v2672 = vpop.xlane.xlu0 %2671
  %v2673 = vsel %vm2663, %v2637, -inf
  %2674 = vmax.xlane.f32.xlu0 %v2673
  %v2675 = vpop.xlane.xlu0 %2674
  %v2676 = vsel %vm2663, %v2642, -inf
  %2677 = vmax.xlane.f32.xlu0 %v2676
  %v2678 = vpop.xlane.xlu0 %2677
  %v2679 = vsel %vm2663, %v2645, -inf
  %2680 = vmax.xlane.f32.xlu0 %v2679
  %v2681 = vpop.xlane.xlu0 %2680
  %v2682 = vsel %vm2663, %v2650, -inf
  %2683 = vmax.xlane.f32.xlu0 %v2682
  %v2684 = vpop.xlane.xlu0 %2683
  %v2685 = vsel %vm2663, %v2653, -inf
  %2686 = vmax.xlane.f32.xlu0 %v2685
  %v2687 = vpop.xlane.xlu0 %2686
  %v2688 = vsel %vm2663, %v2658, -inf
  %2689 = vmax.xlane.f32.xlu0 %v2688
  %v2690 = vpop.xlane.xlu0 %2689
  %v2691 = vsub.f32 %v2626, %v2666
  %v2692 = vsub.f32 %v2629, %v2669
  %v2693 = vsub.f32 %v2634, %v2672
  %v2694 = vsub.f32 %v2637, %v2675
  %v2695 = vsub.f32 %v2642, %v2678
  %v2696 = vsub.f32 %v2645, %v2681
  %v2697 = vsub.f32 %v2650, %v2684
  %v2698 = vsub.f32 %v2653, %v2687
  %v2699 = vsub.f32 %v2658, %v2690
  %v2700 = vmul.f32 %v2691, 1.442695
  %v2701 = vpow.pop %v2700
  %v2702 = vmul.f32 %v2692, 1.442695
  %v2703 = vpow.pop %v2702
  %v2704 = vmul.f32 %v2693, 1.442695
  %v2705 = vpow.pop %v2704
  %v2706 = vmul.f32 %v2694, 1.442695
  %v2707 = vpow.pop %v2706
  %v2708 = vmul.f32 %v2695, 1.442695
  %v2709 = vpow.pop %v2708
  %v2710 = vmul.f32 %v2696, 1.442695
  %v2711 = vpow.pop %v2710
  %v2712 = vmul.f32 %v2697, 1.442695
  %v2713 = vpow.pop %v2712
  %v2714 = vmul.f32 %v2698, 1.442695
  %v2715 = vpow.pop %v2714
  %v2716 = vmul.f32 %v2699, 1.442695
  %v2717 = vpow.pop %v2716
  %v2718 = vsel %vm2663, %v2701, 0.0
  %2719 = vadd.xlane.f32.xlu0 %v2718
  %v2720 = vpop.xlane.xlu0 %2719
  %v2721 = vsel %vm2663, %v2703, 0.0
  %2722 = vadd.xlane.f32.xlu0 %v2721
  %v2723 = vpop.xlane.xlu0 %2722
  %v2724 = vsel %vm2663, %v2705, 0.0
  %2725 = vadd.xlane.f32.xlu0 %v2724
  %v2726 = vpop.xlane.xlu0 %2725
  %v2727 = vsel %vm2663, %v2707, 0.0
  %2728 = vadd.xlane.f32.xlu0 %v2727
  %v2729 = vpop.xlane.xlu0 %2728
  %v2730 = vsel %vm2663, %v2709, 0.0
  %2731 = vadd.xlane.f32.xlu0 %v2730
  %v2732 = vpop.xlane.xlu0 %2731
  %v2733 = vsel %vm2663, %v2711, 0.0
  %2734 = vadd.xlane.f32.xlu0 %v2733
  %v2735 = vpop.xlane.xlu0 %2734
  %v2736 = vsel %vm2663, %v2713, 0.0
  %2737 = vadd.xlane.f32.xlu0 %v2736
  %v2738 = vpop.xlane.xlu0 %2737
  %v2739 = vsel %vm2663, %v2715, 0.0
  %2740 = vadd.xlane.f32.xlu0 %v2739
  %v2741 = vpop.xlane.xlu0 %2740
  %v2742 = vsel %vm2663, %v2717, 0.0
  %2743 = vadd.xlane.f32.xlu0 %v2742
  %v2744 = vpop.xlane.xlu0 %2743
  %v2745 = vrcp.pop %v2720
  %v2746 = vrcp.pop %v2723
  %v2747 = vrcp.pop %v2726
  %v2748 = vrcp.pop %v2729
  %v2749 = vrcp.pop %v2732
  %v2750 = vrcp.pop %v2735
  %v2751 = vrcp.pop %v2738
  %v2752 = vrcp.pop %v2741
  %v2753 = vrcp.pop %v2744
  %v2754 = vmul.f32 %v2701, %v2745
  %v2755 = vmul.f32 %v2703, %v2746
  %v2756 = vmul.f32 %v2705, %v2747
  %v2757 = vmul.f32 %v2707, %v2748
  %v2758 = vmul.f32 %v2709, %v2749
  %v2759 = vmul.f32 %v2711, %v2750
  %v2760 = vmul.f32 %v2713, %v2751
  %v2761 = vmul.f32 %v2715, %v2752
  %v2762 = vmul.f32 %v2717, %v2753
  %v2763 = vpack.c.bf16 %v2755, %v2754
  %v2764 = vpack.c.bf16 %v2757, %v2756
  %v2765 = vpack.c.bf16 %v2759, %v2758
  %v2766 = vpack.c.bf16 %v2761, %v2760
  %v2767 = vpack.c.bf16 %v2762, %v2762
  %v2769 = vsel %vm2663, %v2763, 0
  %v2772 = vsel %vm2663, %v2764, 0
  %v2775 = vsel %vm2663, %v2765, 0
  %v2778 = vsel %vm2663, %v2766, 0
  %v2781 = vsel %vm2663, %v2767, 0
  %v2784 = vsel %vm181, %v2539, 0
  %2786 = vmatprep.subr.bf16.mxu0 0
  %2787 = vmatpush1.bf16.msra.mxu0 0
  %2788 = vmatprep.subr.bf16.mxu0 0
  %2789 = vmatpush1.bf16.msra.mxu0 0
  %2790 = vmatprep.subr.bf16.mxu0 0
  %2791 = vmatpush1.bf16.msra.mxu0 0
  %2792 = vmatprep.subr.bf16.mxu0 0
  %2793 = vmatpush1.bf16.msra.mxu0 %v2784
  %2794 = vmatprep.subr.bf16.mxu0 0
  %2795 = vmatpush1.bf16.msra.mxu0 %v2538
  %2796 = vmatprep.subr.bf16.mxu0 0
  %2797 = vmatpush1.bf16.msra.mxu0 %v2537
  %2798 = vmatprep.subr.bf16.mxu0 0
  %2799 = vmatpush1.bf16.msra.mxu0 %v2536
  %2800 = vmatprep.subr.bf16.mxu0 0
  %2801 = vmatpush1.bf16.msra.mxu0 %v2535
  %2802 = vmatprep.subr.bf16.mxu0 0
  %2803 = vmatpush2.bf16.msra.mxu0 0
  %2804 = vmatprep.subr.bf16.mxu0 0
  %2805 = vmatpush2.bf16.msra.mxu0 0
  %2806 = vmatprep.subr.bf16.mxu0 0
  %2807 = vmatpush2.bf16.msra.mxu0 0
  %2808 = vmatprep.subr.bf16.mxu0 0
  %2809 = vmatpush2.bf16.msra.mxu0 0
  %2810 = vmatprep.subr.bf16.mxu0 0
  %2811 = vmatpush2.bf16.msra.mxu0 0
  %2812 = vmatprep.subr.bf16.mxu0 0
  %2813 = vmatpush2.bf16.msra.mxu0 0
  %2814 = vmatprep.subr.bf16.mxu0 0
  %2815 = vmatpush2.bf16.msra.mxu0 0
  %2816 = vmatprep.subr.bf16.mxu0 0
  %2817 = vmatpush2.bf16.msra.mxu0 0
  %2818 = vmatprep.mubr.bf16.mxu0 0
  %2819 = vmatmul.mubr.bf16.gmra.mxu0 %v2769
  %v2820 = vpop.f32.mrf.mxu0
  %v2821 = vadd.f32 0.0, %v2820
  %v2822 = vpop.f32.mrf.mxu0
  %v2823 = vpop.f32.mrf.mxu0
  %v2824 = vadd.f32 0.0, %v2823
  %v2825 = vpop.f32.mrf.mxu0
  %2826 = vmatprep.mubr.bf16.mxu0 0
  %2827 = vmatmul.mubr.bf16.gmra.mxu0 %v2772
  %v2828 = vpop.f32.mrf.mxu0
  %v2829 = vadd.f32 0.0, %v2828
  %v2830 = vpop.f32.mrf.mxu0
  %v2831 = vpop.f32.mrf.mxu0
  %v2832 = vadd.f32 0.0, %v2831
  %v2833 = vpop.f32.mrf.mxu0
  %2834 = vmatprep.mubr.bf16.mxu0 0
  %2835 = vmatmul.mubr.bf16.gmra.mxu0 %v2775
  %v2836 = vpop.f32.mrf.mxu0
  %v2837 = vadd.f32 0.0, %v2836
  %v2838 = vpop.f32.mrf.mxu0
  %v2839 = vpop.f32.mrf.mxu0
  %v2840 = vadd.f32 0.0, %v2839
  %v2841 = vpop.f32.mrf.mxu0
  %2842 = vmatprep.mubr.bf16.mxu0 0
  %2843 = vmatmul.mubr.bf16.gmra.mxu0 %v2778
  %v2844 = vpop.f32.mrf.mxu0
  %v2845 = vadd.f32 0.0, %v2844
  %v2846 = vpop.f32.mrf.mxu0
  %v2847 = vpop.f32.mrf.mxu0
  %v2848 = vadd.f32 0.0, %v2847
  %v2849 = vpop.f32.mrf.mxu0
  %2850 = vmatprep.mubr.bf16.mxu0 0
  %2851 = vmatmul.mubr.bf16.gmra.mxu0 %v2781
  %v2852 = vpop.f32.mrf.mxu0
  %v2853 = vadd.f32 0.0, %v2852
  %v2854 = vpop.f32.mrf.mxu0
  %v2855 = vpop.f32.mrf.mxu0
  %v2856 = vpop.f32.mrf.mxu0
  %2857 = vdwg.mxu0
  %v2858 = vpack.c.bf16 %v2824, %v2821
  %v2859 = vpack.c.bf16 %v2832, %v2829
  %v2860 = vpack.c.bf16 %v2840, %v2837
  %v2861 = vpack.c.bf16 %v2848, %v2845
  %v2862 = vpack.c.bf16 %v2853, %v2853
  %v2863 = vld [vmem:[%s35] sm:$0xf]
  %v2864 = vld [vmem:[%s35 + $0x4] sm:$0xf]
  %v2865 = vld [vmem:[%s35 + $0x8] sm:$0xf]
  %v2866 = vld [vmem:[%s35 + $0xc] sm:$0xf]
  %v2867 = vld [vmem:[%s35 + $0x10] sm:$0xf]
  %v2868 = vld [vmem:[%s35 + $0x14] sm:$0xf]
  %v2869 = vld [vmem:[%s35 + $0x18] sm:$0xf]
  %v2870 = vld [vmem:[%s35 + $0x1c] sm:$0xf]
  %2880 = vrot.lane.b32.xlu0 %v2405, 64
  %v2881 = vpop.permute.xlu0 %2880
  %2882 = vrot.lane.b32.xlu0 %v2409, 64
  %v2883 = vpop.permute.xlu0 %2882
  %2884 = vrot.lane.b32.xlu0 %v2415, 64
  %v2885 = vpop.permute.xlu0 %2884
  %2886 = vrot.lane.b32.xlu0 %v2419, 64
  %v2887 = vpop.permute.xlu0 %2886
  %2888 = vrot.lane.b32.xlu0 %v2425, 64
  %v2889 = vpop.permute.xlu0 %2888
  %2890 = vrot.lane.b32.xlu0 %v2429, 64
  %v2891 = vpop.permute.xlu0 %2890
  %2892 = vrot.lane.b32.xlu0 %v2435, 64
  %v2893 = vpop.permute.xlu0 %2892
  %2894 = vrot.lane.b32.xlu0 %v2439, 64
  %v2895 = vpop.permute.xlu0 %2894
  %2896 = vrot.lane.b32.xlu0 %v2445, 64
  %v2897 = vpop.permute.xlu0 %2896
  %2907 = vxpose.xlu0.b32.start [1/16] %v2881, 128
  %2908 = vxpose.xlu0.b32.cont [2/16] %v2883, 128
  %2909 = vxpose.xlu0.b32.cont [3/16] %v2885, 128
  %2910 = vxpose.xlu0.b32.cont [4/16] %v2887, 128
  %2911 = vxpose.xlu0.b32.cont [5/16] %v2889, 128
  %2912 = vxpose.xlu0.b32.cont [6/16] %v2891, 128
  %2913 = vxpose.xlu0.b32.cont [7/16] %v2893, 128
  %2914 = vxpose.xlu0.b32.cont [8/16] %v2895, 128
  %2915 = vxpose.xlu0.b32.cont [9/16] %v2897, 128
  %2916 = vxpose.xlu0.b32.cont [10/16] 0.0, 128
  %2917 = vxpose.xlu0.b32.cont [11/16] 0.0, 128
  %2918 = vxpose.xlu0.b32.cont [12/16] 0.0, 128
  %2919 = vxpose.xlu0.b32.cont [13/16] 0.0, 128
  %2920 = vxpose.xlu0.b32.cont [14/16] 0.0, 128
  %2921 = vxpose.xlu0.b32.cont [15/16] 0.0, 128
  %2922 = vxpose.xlu0.b32.end [16/16] 0.0, 128
  %v2923 = vpop.trf.xlu0
  %v2924 = vpop.trf.xlu0
  %v2925 = vpop.trf.xlu0
  %v2926 = vpop.trf.xlu0
  %v2927 = vpop.trf.xlu0
  %v2928 = vpop.trf.xlu0
  %v2929 = vpop.trf.xlu0
  %v2930 = vpop.trf.xlu0
  %v2931 = vpop.trf.xlu0
  %v2932 = vpop.trf.xlu0
  %v2933 = vpop.trf.xlu0
  %v2934 = vpop.trf.xlu0
  %v2935 = vpop.trf.xlu0
  %v2936 = vpop.trf.xlu0
  %v2937 = vpop.trf.xlu0
  %v2938 = vpop.trf.xlu0
  %v2939 = vpack.c.bf16 %v2924, %v2923
  %v2940 = vpack.c.bf16 %v2926, %v2925
  %v2941 = vpack.c.bf16 %v2928, %v2927
  %v2942 = vpack.c.bf16 %v2930, %v2929
  %2948 = vrot.lane.b32.xlu0 %v2530, 64
  %v2949 = vpop.permute.xlu0 %2948
  %2950 = vrot.lane.b32.xlu0 %v2531, 64
  %v2951 = vpop.permute.xlu0 %2950
  %2952 = vrot.lane.b32.xlu0 %v2532, 64
  %v2953 = vpop.permute.xlu0 %2952
  %2954 = vrot.lane.b32.xlu0 %v2533, 64
  %v2955 = vpop.permute.xlu0 %2954
  %2956 = vrot.lane.b32.xlu0 %v2534, 64
  %v2957 = vpop.permute.xlu0 %2956
  %v2959 = vsel %vm314, %v2949, 0
  %v2962 = vsel %vm314, %v2951, 0
  %v2965 = vsel %vm314, %v2953, 0
  %v2968 = vsel %vm314, %v2955, 0
  %v2971 = vsel %vm314, %v2957, 0
  %2973 = vmatprep.subr.bf16.mxu0 0
  %2974 = vmatpush1.bf16.msra.mxu0 0
  %2975 = vmatprep.subr.bf16.mxu0 0
  %2976 = vmatpush1.bf16.msra.mxu0 0
  %2977 = vmatprep.subr.bf16.mxu0 0
  %2978 = vmatpush1.bf16.msra.mxu0 0
  %2979 = vmatprep.subr.bf16.mxu0 0
  %2980 = vmatpush1.bf16.msra.mxu0 0
  %2981 = vmatprep.subr.bf16.mxu0 0
  %2982 = vmatpush1.bf16.msra.mxu0 %v2942
  %2983 = vmatprep.subr.bf16.mxu0 0
  %2984 = vmatpush1.bf16.msra.mxu0 %v2941
  %2985 = vmatprep.subr.bf16.mxu0 0
  %2986 = vmatpush1.bf16.msra.mxu0 %v2940
  %2987 = vmatprep.subr.bf16.mxu0 0
  %2988 = vmatpush1.bf16.msra.mxu0 %v2939
  %2989 = vmatprep.subr.bf16.mxu0 0
  %2990 = vmatpush2.bf16.msra.mxu0 0
  %2991 = vmatprep.subr.bf16.mxu0 0
  %2992 = vmatpush2.bf16.msra.mxu0 0
  %2993 = vmatprep.subr.bf16.mxu0 0
  %2994 = vmatpush2.bf16.msra.mxu0 0
  %2995 = vmatprep.subr.bf16.mxu0 0
  %2996 = vmatpush2.bf16.msra.mxu0 0
  %2997 = vmatprep.subr.bf16.mxu0 0
  %2998 = vmatpush2.bf16.msra.mxu0 0
  %2999 = vmatprep.subr.bf16.mxu0 0
  %3000 = vmatpush2.bf16.msra.mxu0 0
  %3001 = vmatprep.subr.bf16.mxu0 0
  %3002 = vmatpush2.bf16.msra.mxu0 0
  %3003 = vmatprep.subr.bf16.mxu0 0
  %3004 = vmatpush2.bf16.msra.mxu0 0
  %3005 = vmatprep.mubr.bf16.mxu0 0
  %3006 = vmatmul.mubr.bf16.gmra.mxu0 %v2959
  %v3007 = vpop.f32.mrf.mxu0
  %v3008 = vadd.f32 %v2177, %v3007
  %v3009 = vpop.f32.mrf.mxu0
  %v3010 = vpop.f32.mrf.mxu0
  %v3011 = vadd.f32 %v2178, %v3010
  %v3012 = vpop.f32.mrf.mxu0
  %3013 = vmatprep.mubr.bf16.mxu0 0
  %3014 = vmatmul.mubr.bf16.gmra.mxu0 %v2962
  %v3015 = vpop.f32.mrf.mxu0
  %v3016 = vadd.f32 %v2179, %v3015
  %v3017 = vpop.f32.mrf.mxu0
  %v3018 = vpop.f32.mrf.mxu0
  %v3019 = vadd.f32 %v2180, %v3018
  %v3020 = vpop.f32.mrf.mxu0
  %3021 = vmatprep.mubr.bf16.mxu0 0
  %3022 = vmatmul.mubr.bf16.gmra.mxu0 %v2965
  %v3023 = vpop.f32.mrf.mxu0
  %v3024 = vadd.f32 %v2181, %v3023
  %v3025 = vpop.f32.mrf.mxu0
  %v3026 = vpop.f32.mrf.mxu0
  %v3027 = vadd.f32 %v2182, %v3026
  %v3028 = vpop.f32.mrf.mxu0
  %3029 = vmatprep.mubr.bf16.mxu0 0
  %3030 = vmatmul.mubr.bf16.gmra.mxu0 %v2968
  %v3031 = vpop.f32.mrf.mxu0
  %v3032 = vadd.f32 %v2183, %v3031
  %v3033 = vpop.f32.mrf.mxu0
  %v3034 = vpop.f32.mrf.mxu0
  %v3035 = vadd.f32 %v2184, %v3034
  %v3036 = vpop.f32.mrf.mxu0
  %3037 = vmatprep.mubr.bf16.mxu0 0
  %3038 = vmatmul.mubr.bf16.gmra.mxu0 %v2971
  %v3039 = vpop.f32.mrf.mxu0
  %v3040 = vadd.f32 %v2185, %v3039
  %v3041 = vpop.f32.mrf.mxu0
  %v3042 = vpop.f32.mrf.mxu0
  %v3043 = vpop.f32.mrf.mxu0
  %3044 = vdwg.mxu0
  %v3045 = vsel %vm2663, %v3008, -inf
  %3046 = vmax.xlane.f32.xlu0 %v3045
  %v3047 = vpop.xlane.xlu0 %3046
  %v3048 = vsel %vm2663, %v3011, -inf
  %3049 = vmax.xlane.f32.xlu0 %v3048
  %v3050 = vpop.xlane.xlu0 %3049
  %v3051 = vsel %vm2663, %v3016, -inf
  %3052 = vmax.xlane.f32.xlu0 %v3051
  %v3053 = vpop.xlane.xlu0 %3052
  %v3054 = vsel %vm2663, %v3019, -inf
  %3055 = vmax.xlane.f32.xlu0 %v3054
  %v3056 = vpop.xlane.xlu0 %3055
  %v3057 = vsel %vm2663, %v3024, -inf
  %3058 = vmax.xlane.f32.xlu0 %v3057
  %v3059 = vpop.xlane.xlu0 %3058
  %v3060 = vsel %vm2663, %v3027, -inf
  %3061 = vmax.xlane.f32.xlu0 %v3060
  %v3062 = vpop.xlane.xlu0 %3061
  %v3063 = vsel %vm2663, %v3032, -inf
  %3064 = vmax.xlane.f32.xlu0 %v3063
  %v3065 = vpop.xlane.xlu0 %3064
  %v3066 = vsel %vm2663, %v3035, -inf
  %3067 = vmax.xlane.f32.xlu0 %v3066
  %v3068 = vpop.xlane.xlu0 %3067
  %v3069 = vsel %vm2663, %v3040, -inf
  %3070 = vmax.xlane.f32.xlu0 %v3069
  %v3071 = vpop.xlane.xlu0 %3070
  %v3072 = vsub.f32 %v3008, %v3047
  %v3073 = vsub.f32 %v3011, %v3050
  %v3074 = vsub.f32 %v3016, %v3053
  %v3075 = vsub.f32 %v3019, %v3056
  %v3076 = vsub.f32 %v3024, %v3059
  %v3077 = vsub.f32 %v3027, %v3062
  %v3078 = vsub.f32 %v3032, %v3065
  %v3079 = vsub.f32 %v3035, %v3068
  %v3080 = vsub.f32 %v3040, %v3071
  %v3081 = vmul.f32 %v3072, 1.442695
  %v3082 = vpow.pop %v3081
  %v3083 = vmul.f32 %v3073, 1.442695
  %v3084 = vpow.pop %v3083
  %v3085 = vmul.f32 %v3074, 1.442695
  %v3086 = vpow.pop %v3085
  %v3087 = vmul.f32 %v3075, 1.442695
  %v3088 = vpow.pop %v3087
  %v3089 = vmul.f32 %v3076, 1.442695
  %v3090 = vpow.pop %v3089
  %v3091 = vmul.f32 %v3077, 1.442695
  %v3092 = vpow.pop %v3091
  %v3093 = vmul.f32 %v3078, 1.442695
  %v3094 = vpow.pop %v3093
  %v3095 = vmul.f32 %v3079, 1.442695
  %v3096 = vpow.pop %v3095
  %v3097 = vmul.f32 %v3080, 1.442695
  %v3098 = vpow.pop %v3097
  %v3099 = vsel %vm2663, %v3082, 0.0
  %3100 = vadd.xlane.f32.xlu0 %v3099
  %v3101 = vpop.xlane.xlu0 %3100
  %v3102 = vsel %vm2663, %v3084, 0.0
  %3103 = vadd.xlane.f32.xlu0 %v3102
  %v3104 = vpop.xlane.xlu0 %3103
  %v3105 = vsel %vm2663, %v3086, 0.0
  %3106 = vadd.xlane.f32.xlu0 %v3105
  %v3107 = vpop.xlane.xlu0 %3106
  %v3108 = vsel %vm2663, %v3088, 0.0
  %3109 = vadd.xlane.f32.xlu0 %v3108
  %v3110 = vpop.xlane.xlu0 %3109
  %v3111 = vsel %vm2663, %v3090, 0.0
  %3112 = vadd.xlane.f32.xlu0 %v3111
  %v3113 = vpop.xlane.xlu0 %3112
  %v3114 = vsel %vm2663, %v3092, 0.0
  %3115 = vadd.xlane.f32.xlu0 %v3114
  %v3116 = vpop.xlane.xlu0 %3115
  %v3117 = vsel %vm2663, %v3094, 0.0
  %3118 = vadd.xlane.f32.xlu0 %v3117
  %v3119 = vpop.xlane.xlu0 %3118
  %v3120 = vsel %vm2663, %v3096, 0.0
  %3121 = vadd.xlane.f32.xlu0 %v3120
  %v3122 = vpop.xlane.xlu0 %3121
  %v3123 = vsel %vm2663, %v3098, 0.0
  %3124 = vadd.xlane.f32.xlu0 %v3123
  %v3125 = vpop.xlane.xlu0 %3124
  %v3126 = vrcp.pop %v3101
  %v3127 = vrcp.pop %v3104
  %v3128 = vrcp.pop %v3107
  %v3129 = vrcp.pop %v3110
  %v3130 = vrcp.pop %v3113
  %v3131 = vrcp.pop %v3116
  %v3132 = vrcp.pop %v3119
  %v3133 = vrcp.pop %v3122
  %v3134 = vrcp.pop %v3125
  %v3135 = vmul.f32 %v3082, %v3126
  %v3136 = vmul.f32 %v3084, %v3127
  %v3137 = vmul.f32 %v3086, %v3128
  %v3138 = vmul.f32 %v3088, %v3129
  %v3139 = vmul.f32 %v3090, %v3130
  %v3140 = vmul.f32 %v3092, %v3131
  %v3141 = vmul.f32 %v3094, %v3132
  %v3142 = vmul.f32 %v3096, %v3133
  %v3143 = vmul.f32 %v3098, %v3134
  %v3144 = vpack.c.bf16 %v3136, %v3135
  %v3145 = vpack.c.bf16 %v3138, %v3137
  %v3146 = vpack.c.bf16 %v3140, %v3139
  %v3147 = vpack.c.bf16 %v3142, %v3141
  %v3148 = vpack.c.bf16 %v3143, %v3143
  %3154 = vrot.lane.b32.xlu0 %v2535, 64
  %v3155 = vpop.permute.xlu0 %3154
  %3156 = vrot.lane.b32.xlu0 %v2536, 64
  %v3157 = vpop.permute.xlu0 %3156
  %3158 = vrot.lane.b32.xlu0 %v2537, 64
  %v3159 = vpop.permute.xlu0 %3158
  %3160 = vrot.lane.b32.xlu0 %v2538, 64
  %v3161 = vpop.permute.xlu0 %3160
  %3162 = vrot.lane.b32.xlu0 %v2539, 64
  %v3163 = vpop.permute.xlu0 %3162
  %v3169 = vsel %vm2663, %v3144, 0
  %v3172 = vsel %vm2663, %v3145, 0
  %v3175 = vsel %vm2663, %v3146, 0
  %v3178 = vsel %vm2663, %v3147, 0
  %v3181 = vsel %vm2663, %v3148, 0
  %v3184 = vsel %vm181, %v3163, 0
  %3186 = vmatprep.subr.bf16.mxu0 0
  %3187 = vmatpush1.bf16.msra.mxu0 0
  %3188 = vmatprep.subr.bf16.mxu0 0
  %3189 = vmatpush1.bf16.msra.mxu0 0
  %3190 = vmatprep.subr.bf16.mxu0 0
  %3191 = vmatpush1.bf16.msra.mxu0 0
  %3192 = vmatprep.subr.bf16.mxu0 0
  %3193 = vmatpush1.bf16.msra.mxu0 %v3184
  %3194 = vmatprep.subr.bf16.mxu0 0
  %3195 = vmatpush1.bf16.msra.mxu0 %v3161
  %3196 = vmatprep.subr.bf16.mxu0 0
  %3197 = vmatpush1.bf16.msra.mxu0 %v3159
  %3198 = vmatprep.subr.bf16.mxu0 0
  %3199 = vmatpush1.bf16.msra.mxu0 %v3157
  %3200 = vmatprep.subr.bf16.mxu0 0
  %3201 = vmatpush1.bf16.msra.mxu0 %v3155
  %3202 = vmatprep.subr.bf16.mxu0 0
  %3203 = vmatpush2.bf16.msra.mxu0 0
  %3204 = vmatprep.subr.bf16.mxu0 0
  %3205 = vmatpush2.bf16.msra.mxu0 0
  %3206 = vmatprep.subr.bf16.mxu0 0
  %3207 = vmatpush2.bf16.msra.mxu0 0
  %3208 = vmatprep.subr.bf16.mxu0 0
  %3209 = vmatpush2.bf16.msra.mxu0 0
  %3210 = vmatprep.subr.bf16.mxu0 0
  %3211 = vmatpush2.bf16.msra.mxu0 0
  %3212 = vmatprep.subr.bf16.mxu0 0
  %3213 = vmatpush2.bf16.msra.mxu0 0
  %3214 = vmatprep.subr.bf16.mxu0 0
  %3215 = vmatpush2.bf16.msra.mxu0 0
  %3216 = vmatprep.subr.bf16.mxu0 0
  %3217 = vmatpush2.bf16.msra.mxu0 0
  %3218 = vmatprep.mubr.bf16.mxu0 0
  %3219 = vmatmul.mubr.bf16.gmra.mxu0 %v3169
  %v3220 = vpop.f32.mrf.mxu0
  %v3221 = vadd.f32 0.0, %v3220
  %v3222 = vpop.f32.mrf.mxu0
  %v3223 = vpop.f32.mrf.mxu0
  %v3224 = vadd.f32 0.0, %v3223
  %v3225 = vpop.f32.mrf.mxu0
  %3226 = vmatprep.mubr.bf16.mxu0 0
  %3227 = vmatmul.mubr.bf16.gmra.mxu0 %v3172
  %v3228 = vpop.f32.mrf.mxu0
  %v3229 = vadd.f32 0.0, %v3228
  %v3230 = vpop.f32.mrf.mxu0
  %v3231 = vpop.f32.mrf.mxu0
  %v3232 = vadd.f32 0.0, %v3231
  %v3233 = vpop.f32.mrf.mxu0
  %3234 = vmatprep.mubr.bf16.mxu0 0
  %3235 = vmatmul.mubr.bf16.gmra.mxu0 %v3175
  %v3236 = vpop.f32.mrf.mxu0
  %v3237 = vadd.f32 0.0, %v3236
  %v3238 = vpop.f32.mrf.mxu0
  %v3239 = vpop.f32.mrf.mxu0
  %v3240 = vadd.f32 0.0, %v3239
  %v3241 = vpop.f32.mrf.mxu0
  %3242 = vmatprep.mubr.bf16.mxu0 0
  %3243 = vmatmul.mubr.bf16.gmra.mxu0 %v3178
  %v3244 = vpop.f32.mrf.mxu0
  %v3245 = vadd.f32 0.0, %v3244
  %v3246 = vpop.f32.mrf.mxu0
  %v3247 = vpop.f32.mrf.mxu0
  %v3248 = vadd.f32 0.0, %v3247
  %v3249 = vpop.f32.mrf.mxu0
  %3250 = vmatprep.mubr.bf16.mxu0 0
  %3251 = vmatmul.mubr.bf16.gmra.mxu0 %v3181
  %v3252 = vpop.f32.mrf.mxu0
  %v3253 = vadd.f32 0.0, %v3252
  %v3254 = vpop.f32.mrf.mxu0
  %v3255 = vpop.f32.mrf.mxu0
  %v3256 = vpop.f32.mrf.mxu0
  %3257 = vdwg.mxu0
  %v3258 = vpack.c.bf16 %v3224, %v3221
  %v3259 = vpack.c.bf16 %v3232, %v3229
  %v3260 = vpack.c.bf16 %v3240, %v3237
  %v3261 = vpack.c.bf16 %v3248, %v3245
  %v3262 = vpack.c.bf16 %v3253, %v3253
  %v3263 = vld [vmem:[%s35 + $0x20] sm:$0xf]
  %v3264 = vld [vmem:[%s35 + $0x24] sm:$0xf]
  %v3265 = vld [vmem:[%s35 + $0x28] sm:$0xf]
  %v3266 = vld [vmem:[%s35 + $0x2c] sm:$0xf]
  %v3267 = vld [vmem:[%s35 + $0x30] sm:$0xf]
  %v3268 = vld [vmem:[%s35 + $0x34] sm:$0xf]
  %v3269 = vld [vmem:[%s35 + $0x38] sm:$0xf]
  %v3270 = vld [vmem:[%s35 + $0x3c] sm:$0xf]
  %v3279 = vunpack.c.l.b16 %v3263
  %v3280 = vunpack.c.l.b16 %v3264
  %v3281 = vunpack.c.l.b16 %v3265
  %v3282 = vunpack.c.l.b16 %v3266
  %v3283 = vunpack.c.l.b16 %v3267
  %v3284 = vunpack.c.l.b16 %v3268
  %v3285 = vunpack.c.l.b16 %v3269
  %v3286 = vunpack.c.l.b16 %v3270
  %v3287 = vpack.c.b16 %v3280, %v3279
  %v3288 = vpack.c.b16 %v3282, %v3281
  %v3289 = vpack.c.b16 %v3284, %v3283
  %v3290 = vpack.c.b16 %v3286, %v3285
  %v3296 = vsel %vm314, %v3258, 0
  %v3299 = vsel %vm314, %v3259, 0
  %v3302 = vsel %vm314, %v3260, 0
  %v3305 = vsel %vm314, %v3261, 0
  %v3308 = vsel %vm314, %v3262, 0
  %3310 = vmatprep.subr.bf16.mxu0 0
  %3311 = vmatpush1.bf16.msra.mxu0 0
  %3312 = vmatprep.subr.bf16.mxu0 0
  %3313 = vmatpush1.bf16.msra.mxu0 0
  %3314 = vmatprep.subr.bf16.mxu0 0
  %3315 = vmatpush1.bf16.msra.mxu0 0
  %3316 = vmatprep.subr.bf16.mxu0 0
  %3317 = vmatpush1.bf16.msra.mxu0 0
  %3318 = vmatprep.subr.bf16.mxu0 0
  %3319 = vmatpush1.bf16.msra.mxu0 %v3290
  %3320 = vmatprep.subr.bf16.mxu0 0
  %3321 = vmatpush1.bf16.msra.mxu0 %v3289
  %3322 = vmatprep.subr.bf16.mxu0 0
  %3323 = vmatpush1.bf16.msra.mxu0 %v3288
  %3324 = vmatprep.subr.bf16.mxu0 0
  %3325 = vmatpush1.bf16.msra.mxu0 %v3287
  %3326 = vmatprep.subr.bf16.mxu0 0
  %3327 = vmatpush2.bf16.msra.mxu0 0
  %3328 = vmatprep.subr.bf16.mxu0 0
  %3329 = vmatpush2.bf16.msra.mxu0 0
  %3330 = vmatprep.subr.bf16.mxu0 0
  %3331 = vmatpush2.bf16.msra.mxu0 0
  %3332 = vmatprep.subr.bf16.mxu0 0
  %3333 = vmatpush2.bf16.msra.mxu0 0
  %3334 = vmatprep.subr.bf16.mxu0 0
  %3335 = vmatpush2.bf16.msra.mxu0 0
  %3336 = vmatprep.subr.bf16.mxu0 0
  %3337 = vmatpush2.bf16.msra.mxu0 0
  %3338 = vmatprep.subr.bf16.mxu0 0
  %3339 = vmatpush2.bf16.msra.mxu0 0
  %3340 = vmatprep.subr.bf16.mxu0 0
  %3341 = vmatpush2.bf16.msra.mxu0 0
  %3342 = vmatprep.mubr.bf16.mxu0 0
  %3343 = vmatmul.mubr.bf16.gmra.mxu0 %v3296
  %v3344 = vpop.f32.mrf.mxu0
  %v3345 = vadd.f32 0.0, %v3344
  %v3346 = vpop.f32.mrf.mxu0
  %v3347 = vpop.f32.mrf.mxu0
  %v3348 = vadd.f32 0.0, %v3347
  %v3349 = vpop.f32.mrf.mxu0
  %3350 = vmatprep.mubr.bf16.mxu0 0
  %3351 = vmatmul.mubr.bf16.gmra.mxu0 %v3299
  %v3352 = vpop.f32.mrf.mxu0
  %v3353 = vadd.f32 0.0, %v3352
  %v3354 = vpop.f32.mrf.mxu0
  %v3355 = vpop.f32.mrf.mxu0
  %v3356 = vadd.f32 0.0, %v3355
  %v3357 = vpop.f32.mrf.mxu0
  %3358 = vmatprep.mubr.bf16.mxu0 0
  %3359 = vmatmul.mubr.bf16.gmra.mxu0 %v3302
  %v3360 = vpop.f32.mrf.mxu0
  %v3361 = vadd.f32 0.0, %v3360
  %v3362 = vpop.f32.mrf.mxu0
  %v3363 = vpop.f32.mrf.mxu0
  %v3364 = vadd.f32 0.0, %v3363
  %v3365 = vpop.f32.mrf.mxu0
  %3366 = vmatprep.mubr.bf16.mxu0 0
  %3367 = vmatmul.mubr.bf16.gmra.mxu0 %v3305
  %v3368 = vpop.f32.mrf.mxu0
  %v3369 = vadd.f32 0.0, %v3368
  %v3370 = vpop.f32.mrf.mxu0
  %v3371 = vpop.f32.mrf.mxu0
  %v3372 = vadd.f32 0.0, %v3371
  %v3373 = vpop.f32.mrf.mxu0
  %3374 = vmatprep.mubr.bf16.mxu0 0
  %3375 = vmatmul.mubr.bf16.gmra.mxu0 %v3308
  %v3376 = vpop.f32.mrf.mxu0
  %v3377 = vadd.f32 0.0, %v3376
  %v3378 = vpop.f32.mrf.mxu0
  %v3379 = vpop.f32.mrf.mxu0
  %v3380 = vpop.f32.mrf.mxu0
  %3381 = vdwg.mxu0
  %v3390 = vunpack.c.l.b16 %v2863
  %v3391 = vunpack.c.l.b16 %v2864
  %v3392 = vunpack.c.l.b16 %v2865
  %v3393 = vunpack.c.l.b16 %v2866
  %v3394 = vunpack.c.l.b16 %v2867
  %v3395 = vunpack.c.l.b16 %v2868
  %v3396 = vunpack.c.l.b16 %v2869
  %v3397 = vunpack.c.l.b16 %v2870
  %v3398 = vpack.c.b16 %v3391, %v3390
  %v3399 = vpack.c.b16 %v3393, %v3392
  %v3400 = vpack.c.b16 %v3395, %v3394
  %v3401 = vpack.c.b16 %v3397, %v3396
  %v3407 = vsel %vm314, %v2858, 0
  %v3410 = vsel %vm314, %v2859, 0
  %v3413 = vsel %vm314, %v2860, 0
  %v3416 = vsel %vm314, %v2861, 0
  %v3419 = vsel %vm314, %v2862, 0
  %3421 = vmatprep.subr.bf16.mxu0 0
  %3422 = vmatpush1.bf16.msra.mxu0 0
  %3423 = vmatprep.subr.bf16.mxu0 0
  %3424 = vmatpush1.bf16.msra.mxu0 0
  %3425 = vmatprep.subr.bf16.mxu0 0
  %3426 = vmatpush1.bf16.msra.mxu0 0
  %3427 = vmatprep.subr.bf16.mxu0 0
  %3428 = vmatpush1.bf16.msra.mxu0 0
  %3429 = vmatprep.subr.bf16.mxu0 0
  %3430 = vmatpush1.bf16.msra.mxu0 %v3401
  %3431 = vmatprep.subr.bf16.mxu0 0
  %3432 = vmatpush1.bf16.msra.mxu0 %v3400
  %3433 = vmatprep.subr.bf16.mxu0 0
  %3434 = vmatpush1.bf16.msra.mxu0 %v3399
  %3435 = vmatprep.subr.bf16.mxu0 0
  %3436 = vmatpush1.bf16.msra.mxu0 %v3398
  %3437 = vmatprep.subr.bf16.mxu0 0
  %3438 = vmatpush2.bf16.msra.mxu0 0
  %3439 = vmatprep.subr.bf16.mxu0 0
  %3440 = vmatpush2.bf16.msra.mxu0 0
  %3441 = vmatprep.subr.bf16.mxu0 0
  %3442 = vmatpush2.bf16.msra.mxu0 0
  %3443 = vmatprep.subr.bf16.mxu0 0
  %3444 = vmatpush2.bf16.msra.mxu0 0
  %3445 = vmatprep.subr.bf16.mxu0 0
  %3446 = vmatpush2.bf16.msra.mxu0 0
  %3447 = vmatprep.subr.bf16.mxu0 0
  %3448 = vmatpush2.bf16.msra.mxu0 0
  %3449 = vmatprep.subr.bf16.mxu0 0
  %3450 = vmatpush2.bf16.msra.mxu0 0
  %3451 = vmatprep.subr.bf16.mxu0 0
  %3452 = vmatpush2.bf16.msra.mxu0 0
  %3453 = vmatprep.mubr.bf16.mxu0 0
  %3454 = vmatmul.mubr.bf16.gmra.mxu0 %v3407
  %v3455 = vpop.f32.mrf.mxu0
  %v3456 = vadd.f32 %v3345, %v3455
  %v3457 = vpop.f32.mrf.mxu0
  %v3458 = vpop.f32.mrf.mxu0
  %v3459 = vadd.f32 %v3348, %v3458
  %v3460 = vpop.f32.mrf.mxu0
  %3461 = vmatprep.mubr.bf16.mxu0 0
  %3462 = vmatmul.mubr.bf16.gmra.mxu0 %v3410
  %v3463 = vpop.f32.mrf.mxu0
  %v3464 = vadd.f32 %v3353, %v3463
  %v3465 = vpop.f32.mrf.mxu0
  %v3466 = vpop.f32.mrf.mxu0
  %v3467 = vadd.f32 %v3356, %v3466
  %v3468 = vpop.f32.mrf.mxu0
  %3469 = vmatprep.mubr.bf16.mxu0 0
  %3470 = vmatmul.mubr.bf16.gmra.mxu0 %v3413
  %v3471 = vpop.f32.mrf.mxu0
  %v3472 = vadd.f32 %v3361, %v3471
  %v3473 = vpop.f32.mrf.mxu0
  %v3474 = vpop.f32.mrf.mxu0
  %v3475 = vadd.f32 %v3364, %v3474
  %v3476 = vpop.f32.mrf.mxu0
  %3477 = vmatprep.mubr.bf16.mxu0 0
  %3478 = vmatmul.mubr.bf16.gmra.mxu0 %v3416
  %v3479 = vpop.f32.mrf.mxu0
  %v3480 = vadd.f32 %v3369, %v3479
  %v3481 = vpop.f32.mrf.mxu0
  %v3482 = vpop.f32.mrf.mxu0
  %v3483 = vadd.f32 %v3372, %v3482
  %v3484 = vpop.f32.mrf.mxu0
  %3485 = vmatprep.mubr.bf16.mxu0 0
  %3486 = vmatmul.mubr.bf16.gmra.mxu0 %v3419
  %v3487 = vpop.f32.mrf.mxu0
  %v3488 = vadd.f32 %v3377, %v3487
  %v3489 = vpop.f32.mrf.mxu0
  %v3490 = vpop.f32.mrf.mxu0
  %v3491 = vpop.f32.mrf.mxu0
  %3492 = vdwg.mxu0
  %v3493 = vadd.f32 %v2168, %v3456
  %v3494 = vadd.f32 %v2169, %v3459
  %v3495 = vadd.f32 %v2170, %v3464
  %v3496 = vadd.f32 %v2171, %v3467
  %v3497 = vadd.f32 %v2172, %v3472
  %v3498 = vadd.f32 %v2173, %v3475
  %v3499 = vadd.f32 %v2174, %v3480
  %v3500 = vadd.f32 %v2175, %v3483
  %v3501 = vadd.f32 %v2176, %v3488
  %v3502 = vld [vmem:[%s37] sm:$0x1]
  %v3504 = vlaneseq
  %v3505 = vshrl.u32 %v3504, 7
  %v3506 = vsub.s32 0, %v3505
  %v3507 = vrot.slane %v3502, %v3506
  %v3509 = vadd.f32 %v3493, %v3507
  %v3510 = vadd.f32 %v3494, %v3507
  %v3511 = vadd.f32 %v3495, %v3507
  %v3512 = vadd.f32 %v3496, %v3507
  %v3513 = vadd.f32 %v3497, %v3507
  %v3514 = vadd.f32 %v3498, %v3507
  %v3515 = vadd.f32 %v3499, %v3507
  %v3516 = vadd.f32 %v3500, %v3507
  %v3517 = vadd.f32 %v3501, %v3507
  %v3518 = vld [vmem:[%s39] sm:$0x1]
  %v3519 = vld [vmem:[%s41] sm:$0x1]
  %3520 = vadd.xlane.f32.xlu0 %v3509
  %v3521 = vpop.xlane.xlu0 %3520
  %3522 = vadd.xlane.f32.xlu0 %v3510
  %v3523 = vpop.xlane.xlu0 %3522
  %3524 = vadd.xlane.f32.xlu0 %v3511
  %v3525 = vpop.xlane.xlu0 %3524
  %3526 = vadd.xlane.f32.xlu0 %v3512
  %v3527 = vpop.xlane.xlu0 %3526
  %3528 = vadd.xlane.f32.xlu0 %v3513
  %v3529 = vpop.xlane.xlu0 %3528
  %3530 = vadd.xlane.f32.xlu0 %v3514
  %v3531 = vpop.xlane.xlu0 %3530
  %3532 = vadd.xlane.f32.xlu0 %v3515
  %v3533 = vpop.xlane.xlu0 %3532
  %3534 = vadd.xlane.f32.xlu0 %v3516
  %v3535 = vpop.xlane.xlu0 %3534
  %3536 = vadd.xlane.f32.xlu0 %v3517
  %v3537 = vpop.xlane.xlu0 %3536
  %v3538 = vrcp.pop 128.0
  %v3539 = vmul.f32 %v3521, %v3538
  %v3540 = vmul.f32 %v3523, %v3538
  %v3541 = vmul.f32 %v3525, %v3538
  %v3542 = vmul.f32 %v3527, %v3538
  %v3543 = vmul.f32 %v3529, %v3538
  %v3544 = vmul.f32 %v3531, %v3538
  %v3545 = vmul.f32 %v3533, %v3538
  %v3546 = vmul.f32 %v3535, %v3538
  %v3547 = vmul.f32 %v3537, %v3538
  %v3548 = vsub.f32 %v3509, %v3539
  %v3549 = vsub.f32 %v3510, %v3540
  %v3550 = vsub.f32 %v3511, %v3541
  %v3551 = vsub.f32 %v3512, %v3542
  %v3552 = vsub.f32 %v3513, %v3543
  %v3553 = vsub.f32 %v3514, %v3544
  %v3554 = vsub.f32 %v3515, %v3545
  %v3555 = vsub.f32 %v3516, %v3546
  %v3556 = vsub.f32 %v3517, %v3547
  %v3557 = vmul.f32 %v3548, %v3548
  %v3558 = vmul.f32 %v3549, %v3549
  %v3559 = vmul.f32 %v3550, %v3550
  %v3560 = vmul.f32 %v3551, %v3551
  %v3561 = vmul.f32 %v3552, %v3552
  %v3562 = vmul.f32 %v3553, %v3553
  %v3563 = vmul.f32 %v3554, %v3554
  %v3564 = vmul.f32 %v3555, %v3555
  %v3565 = vmul.f32 %v3556, %v3556
  %3566 = vadd.xlane.f32.xlu0 %v3557
  %v3567 = vpop.xlane.xlu0 %3566
  %3568 = vadd.xlane.f32.xlu0 %v3558
  %v3569 = vpop.xlane.xlu0 %3568
  %3570 = vadd.xlane.f32.xlu0 %v3559
  %v3571 = vpop.xlane.xlu0 %3570
  %3572 = vadd.xlane.f32.xlu0 %v3560
  %v3573 = vpop.xlane.xlu0 %3572
  %3574 = vadd.xlane.f32.xlu0 %v3561
  %v3575 = vpop.xlane.xlu0 %3574
  %3576 = vadd.xlane.f32.xlu0 %v3562
  %v3577 = vpop.xlane.xlu0 %3576
  %3578 = vadd.xlane.f32.xlu0 %v3563
  %v3579 = vpop.xlane.xlu0 %3578
  %3580 = vadd.xlane.f32.xlu0 %v3564
  %v3581 = vpop.xlane.xlu0 %3580
  %3582 = vadd.xlane.f32.xlu0 %v3565
  %v3583 = vpop.xlane.xlu0 %3582
  %v3584 = vmul.f32 %v3567, %v3538
  %v3585 = vmul.f32 %v3569, %v3538
  %v3586 = vmul.f32 %v3571, %v3538
  %v3587 = vmul.f32 %v3573, %v3538
  %v3588 = vmul.f32 %v3575, %v3538
  %v3589 = vmul.f32 %v3577, %v3538
  %v3590 = vmul.f32 %v3579, %v3538
  %v3591 = vmul.f32 %v3581, %v3538
  %v3592 = vmul.f32 %v3583, %v3538
  %v3593 = vadd.f32 %v3584, 1e-05
  %v3594 = vadd.f32 %v3585, 1e-05
  %v3595 = vadd.f32 %v3586, 1e-05
  %v3596 = vadd.f32 %v3587, 1e-05
  %v3597 = vadd.f32 %v3588, 1e-05
  %v3598 = vadd.f32 %v3589, 1e-05
  %v3599 = vadd.f32 %v3590, 1e-05
  %v3600 = vadd.f32 %v3591, 1e-05
  %v3601 = vadd.f32 %v3592, 1e-05
  %v3602 = vrsqrt.pop %v3593
  %v3603 = vrsqrt.pop %v3594
  %v3604 = vrsqrt.pop %v3595
  %v3605 = vrsqrt.pop %v3596
  %v3606 = vrsqrt.pop %v3597
  %v3607 = vrsqrt.pop %v3598
  %v3608 = vrsqrt.pop %v3599
  %v3609 = vrsqrt.pop %v3600
  %v3610 = vrsqrt.pop %v3601
  %v3611 = vmul.f32 %v3548, %v3602
  %v3612 = vmul.f32 %v3549, %v3603
  %v3613 = vmul.f32 %v3550, %v3604
  %v3614 = vmul.f32 %v3551, %v3605
  %v3615 = vmul.f32 %v3552, %v3606
  %v3616 = vmul.f32 %v3553, %v3607
  %v3617 = vmul.f32 %v3554, %v3608
  %v3618 = vmul.f32 %v3555, %v3609
  %v3619 = vmul.f32 %v3556, %v3610
  %v3621 = vlaneseq
  %v3622 = vshrl.u32 %v3621, 7
  %v3623 = vsub.s32 0, %v3622
  %v3624 = vrot.slane %v3518, %v3623
  %v3626 = vmul.f32 %v3611, %v3624
  %v3627 = vmul.f32 %v3612, %v3624
  %v3628 = vmul.f32 %v3613, %v3624
  %v3629 = vmul.f32 %v3614, %v3624
  %v3630 = vmul.f32 %v3615, %v3624
  %v3631 = vmul.f32 %v3616, %v3624
  %v3632 = vmul.f32 %v3617, %v3624
  %v3633 = vmul.f32 %v3618, %v3624
  %v3634 = vmul.f32 %v3619, %v3624
  %v3636 = vlaneseq
  %v3637 = vshrl.u32 %v3636, 7
  %v3638 = vsub.s32 0, %v3637
  %v3639 = vrot.slane %v3519, %v3638
  %v3641 = vadd.f32 %v3626, %v3639
  %v3642 = vadd.f32 %v3627, %v3639
  %v3643 = vadd.f32 %v3628, %v3639
  %v3644 = vadd.f32 %v3629, %v3639
  %v3645 = vadd.f32 %v3630, %v3639
  %v3646 = vadd.f32 %v3631, %v3639
  %v3647 = vadd.f32 %v3632, %v3639
  %v3648 = vadd.f32 %v3633, %v3639
  %v3649 = vadd.f32 %v3634, %v3639
  %v3650 = vpack.c.bf16 %v3642, %v3641
  %v3651 = vpack.c.bf16 %v3644, %v3643
  %v3652 = vpack.c.bf16 %v3646, %v3645
  %v3653 = vpack.c.bf16 %v3648, %v3647
  %v3654 = vpack.c.bf16 %v3649, %v3649
  %v3655 = vld [vmem:[%s43] sm:$0xff]
  %v3656 = vld [vmem:[%s43 + $0x8] sm:$0xff]
  %v3657 = vld [vmem:[%s43 + $0x40] sm:$0xff]
  %v3658 = vld [vmem:[%s43 + $0x48] sm:$0xff]
  %v3659 = vld [vmem:[%s43 + $0x80] sm:$0xff]
  %v3660 = vld [vmem:[%s43 + $0x88] sm:$0xff]
  %v3661 = vld [vmem:[%s43 + $0xc0] sm:$0xff]
  %v3662 = vld [vmem:[%s43 + $0xc8] sm:$0xff]
  %v3663 = vld [vmem:[%s43 + $0x100] sm:$0xff]
  %v3664 = vld [vmem:[%s43 + $0x108] sm:$0xff]
  %v3665 = vld [vmem:[%s43 + $0x140] sm:$0xff]
  %v3666 = vld [vmem:[%s43 + $0x148] sm:$0xff]
  %v3667 = vld [vmem:[%s43 + $0x180] sm:$0xff]
  %v3668 = vld [vmem:[%s43 + $0x188] sm:$0xff]
  %v3669 = vld [vmem:[%s43 + $0x1c0] sm:$0xff]
  %v3670 = vld [vmem:[%s43 + $0x1c8] sm:$0xff]
  %v3671 = vld [vmem:[%s43 + $0x200] sm:$0xff]
  %v3672 = vld [vmem:[%s43 + $0x208] sm:$0xff]
  %v3673 = vld [vmem:[%s43 + $0x240] sm:$0xff]
  %v3674 = vld [vmem:[%s43 + $0x248] sm:$0xff]
  %v3675 = vld [vmem:[%s43 + $0x280] sm:$0xff]
  %v3676 = vld [vmem:[%s43 + $0x288] sm:$0xff]
  %v3677 = vld [vmem:[%s43 + $0x2c0] sm:$0xff]
  %v3678 = vld [vmem:[%s43 + $0x2c8] sm:$0xff]
  %v3679 = vld [vmem:[%s43 + $0x300] sm:$0xff]
  %v3680 = vld [vmem:[%s43 + $0x308] sm:$0xff]
  %v3681 = vld [vmem:[%s43 + $0x340] sm:$0xff]
  %v3682 = vld [vmem:[%s43 + $0x348] sm:$0xff]
  %v3683 = vld [vmem:[%s43 + $0x380] sm:$0xff]
  %v3684 = vld [vmem:[%s43 + $0x388] sm:$0xff]
  %v3685 = vld [vmem:[%s43 + $0x3c0] sm:$0xff]
  %v3686 = vld [vmem:[%s43 + $0x3c8] sm:$0xff]
  %v3687 = vld [vmem:[%s45] sm:$0xf]
  %v3689 = vlaneseq
  %v3690 = vshrl.u32 %v3689, 7
  %v3691 = vsub.s32 0, %v3690
  %v3692 = vrot.slane %v3687, %v3691
  %v3693 = vlaneseq
  %v3694 = vshrl.u32 %v3693, 7
  %v3695 = vsub.s32 1, %v3694
  %v3696 = vrot.slane %v3687, %v3695
  %v3697 = vlaneseq
  %v3698 = vshrl.u32 %v3697, 7
  %v3699 = vsub.s32 2, %v3698
  %v3700 = vrot.slane %v3687, %v3699
  %v3701 = vlaneseq
  %v3702 = vshrl.u32 %v3701, 7
  %v3703 = vsub.s32 3, %v3702
  %v3704 = vrot.slane %v3687, %v3703
  %v3741 = vunpack.c.l.b16 %v3655
  %v3742 = vunpack.c.h.b16 %v3655
  %v3743 = vunpack.c.l.b16 %v3656
  %v3744 = vunpack.c.h.b16 %v3656
  %v3745 = vunpack.c.l.b16 %v3657
  %v3746 = vunpack.c.h.b16 %v3657
  %v3747 = vunpack.c.l.b16 %v3658
  %v3748 = vunpack.c.h.b16 %v3658
  %v3749 = vunpack.c.l.b16 %v3659
  %v3750 = vunpack.c.h.b16 %v3659
  %v3751 = vunpack.c.l.b16 %v3660
  %v3752 = vunpack.c.h.b16 %v3660
  %v3753 = vunpack.c.l.b16 %v3661
  %v3754 = vunpack.c.h.b16 %v3661
  %v3755 = vunpack.c.l.b16 %v3662
  %v3756 = vunpack.c.h.b16 %v3662
  %v3757 = vunpack.c.l.b16 %v3663
  %v3758 = vunpack.c.h.b16 %v3663
  %v3759 = vunpack.c.l.b16 %v3664
  %v3760 = vunpack.c.h.b16 %v3664
  %v3761 = vunpack.c.l.b16 %v3665
  %v3762 = vunpack.c.h.b16 %v3665
  %v3763 = vunpack.c.l.b16 %v3666
  %v3764 = vunpack.c.h.b16 %v3666
  %v3765 = vunpack.c.l.b16 %v3667
  %v3766 = vunpack.c.h.b16 %v3667
  %v3767 = vunpack.c.l.b16 %v3668
  %v3768 = vunpack.c.h.b16 %v3668
  %v3769 = vunpack.c.l.b16 %v3669
  %v3770 = vunpack.c.h.b16 %v3669
  %v3771 = vunpack.c.l.b16 %v3670
  %v3772 = vunpack.c.h.b16 %v3670
  %v3773 = vunpack.c.l.b16 %v3671
  %v3774 = vunpack.c.h.b16 %v3671
  %v3775 = vunpack.c.l.b16 %v3672
  %v3776 = vunpack.c.h.b16 %v3672
  %v3777 = vunpack.c.l.b16 %v3673
  %v3778 = vunpack.c.h.b16 %v3673
  %v3779 = vunpack.c.l.b16 %v3674
  %v3780 = vunpack.c.h.b16 %v3674
  %v3781 = vunpack.c.l.b16 %v3675
  %v3782 = vunpack.c.h.b16 %v3675
  %v3783 = vunpack.c.l.b16 %v3676
  %v3784 = vunpack.c.h.b16 %v3676
  %v3785 = vunpack.c.l.b16 %v3677
  %v3786 = vunpack.c.h.b16 %v3677
  %v3787 = vunpack.c.l.b16 %v3678
  %v3788 = vunpack.c.h.b16 %v3678
  %v3789 = vunpack.c.l.b16 %v3679
  %v3790 = vunpack.c.h.b16 %v3679
  %v3791 = vunpack.c.l.b16 %v3680
  %v3792 = vunpack.c.h.b16 %v3680
  %v3793 = vunpack.c.l.b16 %v3681
  %v3794 = vunpack.c.h.b16 %v3681
  %v3795 = vunpack.c.l.b16 %v3682
  %v3796 = vunpack.c.h.b16 %v3682
  %v3797 = vunpack.c.l.b16 %v3683
  %v3798 = vunpack.c.h.b16 %v3683
  %v3799 = vunpack.c.l.b16 %v3684
  %v3800 = vunpack.c.h.b16 %v3684
  %v3801 = vunpack.c.l.b16 %v3685
  %v3802 = vunpack.c.h.b16 %v3685
  %v3803 = vunpack.c.l.b16 %v3686
  %v3804 = vunpack.c.h.b16 %v3686
  %v3805 = vpack.c.b16 %v3745, %v3741
  %v3806 = vpack.c.b16 %v3746, %v3742
  %v3807 = vpack.c.b16 %v3747, %v3743
  %v3808 = vpack.c.b16 %v3748, %v3744
  %v3809 = vpack.c.b16 %v3753, %v3749
  %v3810 = vpack.c.b16 %v3754, %v3750
  %v3811 = vpack.c.b16 %v3755, %v3751
  %v3812 = vpack.c.b16 %v3756, %v3752
  %v3813 = vpack.c.b16 %v3761, %v3757
  %v3814 = vpack.c.b16 %v3762, %v3758
  %v3815 = vpack.c.b16 %v3763, %v3759
  %v3816 = vpack.c.b16 %v3764, %v3760
  %v3817 = vpack.c.b16 %v3769, %v3765
  %v3818 = vpack.c.b16 %v3770, %v3766
  %v3819 = vpack.c.b16 %v3771, %v3767
  %v3820 = vpack.c.b16 %v3772, %v3768
  %v3821 = vpack.c.b16 %v3777, %v3773
  %v3822 = vpack.c.b16 %v3778, %v3774
  %v3823 = vpack.c.b16 %v3779, %v3775
  %v3824 = vpack.c.b16 %v3780, %v3776
  %v3825 = vpack.c.b16 %v3785, %v3781
  %v3826 = vpack.c.b16 %v3786, %v3782
  %v3827 = vpack.c.b16 %v3787, %v3783
  %v3828 = vpack.c.b16 %v3788, %v3784
  %v3829 = vpack.c.b16 %v3793, %v3789
  %v3830 = vpack.c.b16 %v3794, %v3790
  %v3831 = vpack.c.b16 %v3795, %v3791
  %v3832 = vpack.c.b16 %v3796, %v3792
  %v3833 = vpack.c.b16 %v3801, %v3797
  %v3834 = vpack.c.b16 %v3802, %v3798
  %v3835 = vpack.c.b16 %v3803, %v3799
  %v3836 = vpack.c.b16 %v3804, %v3800
  %3869 = vmatprep.subr.bf16.mxu0 %v3834
  %3870 = vmatpush1.bf16.msra.mxu0 %v3833
  %3871 = vmatprep.subr.bf16.mxu0 %v3830
  %3872 = vmatpush1.bf16.msra.mxu0 %v3829
  %3873 = vmatprep.subr.bf16.mxu0 %v3826
  %3874 = vmatpush1.bf16.msra.mxu0 %v3825
  %3875 = vmatprep.subr.bf16.mxu0 %v3822
  %3876 = vmatpush1.bf16.msra.mxu0 %v3821
  %3877 = vmatprep.subr.bf16.mxu0 %v3818
  %3878 = vmatpush1.bf16.msra.mxu0 %v3817
  %3879 = vmatprep.subr.bf16.mxu0 %v3814
  %3880 = vmatpush1.bf16.msra.mxu0 %v3813
  %3881 = vmatprep.subr.bf16.mxu0 %v3810
  %3882 = vmatpush1.bf16.msra.mxu0 %v3809
  %3883 = vmatprep.subr.bf16.mxu0 %v3806
  %3884 = vmatpush1.bf16.msra.mxu0 %v3805
  %3885 = vmatprep.subr.bf16.mxu0 0
  %3886 = vmatpush2.bf16.msra.mxu0 0
  %3887 = vmatprep.subr.bf16.mxu0 0
  %3888 = vmatpush2.bf16.msra.mxu0 0
  %3889 = vmatprep.subr.bf16.mxu0 0
  %3890 = vmatpush2.bf16.msra.mxu0 0
  %3891 = vmatprep.subr.bf16.mxu0 0
  %3892 = vmatpush2.bf16.msra.mxu0 0
  %3893 = vmatprep.subr.bf16.mxu0 0
  %3894 = vmatpush2.bf16.msra.mxu0 0
  %3895 = vmatprep.subr.bf16.mxu0 0
  %3896 = vmatpush2.bf16.msra.mxu0 0
  %3897 = vmatprep.subr.bf16.mxu0 0
  %3898 = vmatpush2.bf16.msra.mxu0 0
  %3899 = vmatprep.subr.bf16.mxu0 0
  %3900 = vmatpush2.bf16.msra.mxu0 0
  %3901 = vmatprep.mubr.bf16.mxu0 0
  %3902 = vmatmul.mubr.bf16.gmra.mxu0 %v3650
  %v3903 = vpop.f32.mrf.mxu0
  %v3904 = vadd.f32 %v3692, %v3903
  %v3905 = vpop.f32.mrf.mxu0
  %v3906 = vadd.f32 %v3696, %v3905
  %v3907 = vpop.f32.mrf.mxu0
  %v3908 = vadd.f32 %v3692, %v3907
  %v3909 = vpop.f32.mrf.mxu0
  %v3910 = vadd.f32 %v3696, %v3909
  %3911 = vmatprep.mubr.bf16.mxu0 0
  %3912 = vmatmul.mubr.bf16.gmra.mxu0 %v3651
  %v3913 = vpop.f32.mrf.mxu0
  %v3914 = vadd.f32 %v3692, %v3913
  %v3915 = vpop.f32.mrf.mxu0
  %v3916 = vadd.f32 %v3696, %v3915
  %v3917 = vpop.f32.mrf.mxu0
  %v3918 = vadd.f32 %v3692, %v3917
  %v3919 = vpop.f32.mrf.mxu0
  %v3920 = vadd.f32 %v3696, %v3919
  %3921 = vmatprep.mubr.bf16.mxu0 0
  %3922 = vmatmul.mubr.bf16.gmra.mxu0 %v3652
  %v3923 = vpop.f32.mrf.mxu0
  %v3924 = vadd.f32 %v3692, %v3923
  %v3925 = vpop.f32.mrf.mxu0
  %v3926 = vadd.f32 %v3696, %v3925
  %v3927 = vpop.f32.mrf.mxu0
  %v3928 = vadd.f32 %v3692, %v3927
  %v3929 = vpop.f32.mrf.mxu0
  %v3930 = vadd.f32 %v3696, %v3929
  %3931 = vmatprep.mubr.bf16.mxu0 0
  %3932 = vmatmul.mubr.bf16.gmra.mxu0 %v3653
  %v3933 = vpop.f32.mrf.mxu0
  %v3934 = vadd.f32 %v3692, %v3933
  %v3935 = vpop.f32.mrf.mxu0
  %v3936 = vadd.f32 %v3696, %v3935
  %v3937 = vpop.f32.mrf.mxu0
  %v3938 = vadd.f32 %v3692, %v3937
  %v3939 = vpop.f32.mrf.mxu0
  %v3940 = vadd.f32 %v3696, %v3939
  %3941 = vmatprep.mubr.bf16.mxu0 0
  %3942 = vmatmul.mubr.bf16.gmra.mxu0 %v3654
  %v3943 = vpop.f32.mrf.mxu0
  %v3944 = vadd.f32 %v3692, %v3943
  %v3945 = vpop.f32.mrf.mxu0
  %v3946 = vadd.f32 %v3696, %v3945
  %v3947 = vpop.f32.mrf.mxu0
  %v3948 = vpop.f32.mrf.mxu0
  %3949 = vdwg.mxu0
  %3950 = vmatprep.subr.bf16.mxu0 %v3836
  %3951 = vmatpush1.bf16.msra.mxu0 %v3835
  %3952 = vmatprep.subr.bf16.mxu0 %v3832
  %3953 = vmatpush1.bf16.msra.mxu0 %v3831
  %3954 = vmatprep.subr.bf16.mxu0 %v3828
  %3955 = vmatpush1.bf16.msra.mxu0 %v3827
  %3956 = vmatprep.subr.bf16.mxu0 %v3824
  %3957 = vmatpush1.bf16.msra.mxu0 %v3823
  %3958 = vmatprep.subr.bf16.mxu0 %v3820
  %3959 = vmatpush1.bf16.msra.mxu0 %v3819
  %3960 = vmatprep.subr.bf16.mxu0 %v3816
  %3961 = vmatpush1.bf16.msra.mxu0 %v3815
  %3962 = vmatprep.subr.bf16.mxu0 %v3812
  %3963 = vmatpush1.bf16.msra.mxu0 %v3811
  %3964 = vmatprep.subr.bf16.mxu0 %v3808
  %3965 = vmatpush1.bf16.msra.mxu0 %v3807
  %3966 = vmatprep.subr.bf16.mxu0 0
  %3967 = vmatpush2.bf16.msra.mxu0 0
  %3968 = vmatprep.subr.bf16.mxu0 0
  %3969 = vmatpush2.bf16.msra.mxu0 0
  %3970 = vmatprep.subr.bf16.mxu0 0
  %3971 = vmatpush2.bf16.msra.mxu0 0
  %3972 = vmatprep.subr.bf16.mxu0 0
  %3973 = vmatpush2.bf16.msra.mxu0 0
  %3974 = vmatprep.subr.bf16.mxu0 0
  %3975 = vmatpush2.bf16.msra.mxu0 0
  %3976 = vmatprep.subr.bf16.mxu0 0
  %3977 = vmatpush2.bf16.msra.mxu0 0
  %3978 = vmatprep.subr.bf16.mxu0 0
  %3979 = vmatpush2.bf16.msra.mxu0 0
  %3980 = vmatprep.subr.bf16.mxu0 0
  %3981 = vmatpush2.bf16.msra.mxu0 0
  %3982 = vmatprep.mubr.bf16.mxu0 0
  %3983 = vmatmul.mubr.bf16.gmra.mxu0 %v3650
  %v3984 = vpop.f32.mrf.mxu0
  %v3985 = vadd.f32 %v3700, %v3984
  %v3986 = vpop.f32.mrf.mxu0
  %v3987 = vadd.f32 %v3704, %v3986
  %v3988 = vpop.f32.mrf.mxu0
  %v3989 = vadd.f32 %v3700, %v3988
  %v3990 = vpop.f32.mrf.mxu0
  %v3991 = vadd.f32 %v3704, %v3990
  %3992 = vmatprep.mubr.bf16.mxu0 0
  %3993 = vmatmul.mubr.bf16.gmra.mxu0 %v3651
  %v3994 = vpop.f32.mrf.mxu0
  %v3995 = vadd.f32 %v3700, %v3994
  %v3996 = vpop.f32.mrf.mxu0
  %v3997 = vadd.f32 %v3704, %v3996
  %v3998 = vpop.f32.mrf.mxu0
  %v3999 = vadd.f32 %v3700, %v3998
  %v4000 = vpop.f32.mrf.mxu0
  %v4001 = vadd.f32 %v3704, %v4000
  %4002 = vmatprep.mubr.bf16.mxu0 0
  %4003 = vmatmul.mubr.bf16.gmra.mxu0 %v3652
  %v4004 = vpop.f32.mrf.mxu0
  %v4005 = vadd.f32 %v3700, %v4004
  %v4006 = vpop.f32.mrf.mxu0
  %v4007 = vadd.f32 %v3704, %v4006
  %v4008 = vpop.f32.mrf.mxu0
  %v4009 = vadd.f32 %v3700, %v4008
  %v4010 = vpop.f32.mrf.mxu0
  %v4011 = vadd.f32 %v3704, %v4010
  %4012 = vmatprep.mubr.bf16.mxu0 0
  %4013 = vmatmul.mubr.bf16.gmra.mxu0 %v3653
  %v4014 = vpop.f32.mrf.mxu0
  %v4015 = vadd.f32 %v3700, %v4014
  %v4016 = vpop.f32.mrf.mxu0
  %v4017 = vadd.f32 %v3704, %v4016
  %v4018 = vpop.f32.mrf.mxu0
  %v4019 = vadd.f32 %v3700, %v4018
  %v4020 = vpop.f32.mrf.mxu0
  %v4021 = vadd.f32 %v3704, %v4020
  %4022 = vmatprep.mubr.bf16.mxu0 0
  %4023 = vmatmul.mubr.bf16.gmra.mxu0 %v3654
  %v4024 = vpop.f32.mrf.mxu0
  %v4025 = vadd.f32 %v3700, %v4024
  %v4026 = vpop.f32.mrf.mxu0
  %v4027 = vadd.f32 %v3704, %v4026
  %v4028 = vpop.f32.mrf.mxu0
  %v4029 = vpop.f32.mrf.mxu0
  %4030 = vdwg.mxu0
  %v4031 = vmax.f32 %v3904, 0.0
  %v4032 = vmax.f32 %v3906, 0.0
  %v4033 = vmax.f32 %v3985, 0.0
  %v4034 = vmax.f32 %v3987, 0.0
  %v4035 = vmax.f32 %v3908, 0.0
  %v4036 = vmax.f32 %v3910, 0.0
  %v4037 = vmax.f32 %v3989, 0.0
  %v4038 = vmax.f32 %v3991, 0.0
  %v4039 = vmax.f32 %v3914, 0.0
  %v4040 = vmax.f32 %v3916, 0.0
  %v4041 = vmax.f32 %v3995, 0.0
  %v4042 = vmax.f32 %v3997, 0.0
  %v4043 = vmax.f32 %v3918, 0.0
  %v4044 = vmax.f32 %v3920, 0.0
  %v4045 = vmax.f32 %v3999, 0.0
  %v4046 = vmax.f32 %v4001, 0.0
  %v4047 = vmax.f32 %v3924, 0.0
  %v4048 = vmax.f32 %v3926, 0.0
  %v4049 = vmax.f32 %v4005, 0.0
  %v4050 = vmax.f32 %v4007, 0.0
  %v4051 = vmax.f32 %v3928, 0.0
  %v4052 = vmax.f32 %v3930, 0.0
  %v4053 = vmax.f32 %v4009, 0.0
  %v4054 = vmax.f32 %v4011, 0.0
  %v4055 = vmax.f32 %v3934, 0.0
  %v4056 = vmax.f32 %v3936, 0.0
  %v4057 = vmax.f32 %v4015, 0.0
  %v4058 = vmax.f32 %v4017, 0.0
  %v4059 = vmax.f32 %v3938, 0.0
  %v4060 = vmax.f32 %v3940, 0.0
  %v4061 = vmax.f32 %v4019, 0.0
  %v4062 = vmax.f32 %v4021, 0.0
  %v4063 = vmax.f32 %v3944, 0.0
  %v4064 = vmax.f32 %v3946, 0.0
  %v4065 = vmax.f32 %v4025, 0.0
  %v4066 = vmax.f32 %v4027, 0.0
  %v4067 = vpack.c.bf16 %v4035, %v4031
  %v4068 = vpack.c.bf16 %v4036, %v4032
  %v4069 = vpack.c.bf16 %v4037, %v4033
  %v4070 = vpack.c.bf16 %v4038, %v4034
  %v4071 = vpack.c.bf16 %v4043, %v4039
  %v4072 = vpack.c.bf16 %v4044, %v4040
  %v4073 = vpack.c.bf16 %v4045, %v4041
  %v4074 = vpack.c.bf16 %v4046, %v4042
  %v4075 = vpack.c.bf16 %v4051, %v4047
  %v4076 = vpack.c.bf16 %v4052, %v4048
  %v4077 = vpack.c.bf16 %v4053, %v4049
  %v4078 = vpack.c.bf16 %v4054, %v4050
  %v4079 = vpack.c.bf16 %v4059, %v4055
  %v4080 = vpack.c.bf16 %v4060, %v4056
  %v4081 = vpack.c.bf16 %v4061, %v4057
  %v4082 = vpack.c.bf16 %v4062, %v4058
  %v4083 = vpack.c.bf16 %v4063, %v4063
  %v4084 = vpack.c.bf16 %v4064, %v4064
  %v4085 = vpack.c.bf16 %v4065, %v4065
  %v4086 = vpack.c.bf16 %v4066, %v4066
  %v4087 = vld [vmem:[%s47] sm:$0xf]
  %v4088 = vld [vmem:[%s47 + $0x4] sm:$0xf]
  %v4089 = vld [vmem:[%s47 + $0x8] sm:$0xf]
  %v4090 = vld [vmem:[%s47 + $0xc] sm:$0xf]
  %v4091 = vld [vmem:[%s47 + $0x10] sm:$0xf]
  %v4092 = vld [vmem:[%s47 + $0x14] sm:$0xf]
  %v4093 = vld [vmem:[%s47 + $0x18] sm:$0xf]
  %v4094 = vld [vmem:[%s47 + $0x1c] sm:$0xf]
  %v4095 = vld [vmem:[%s47 + $0x20] sm:$0xf]
  %v4096 = vld [vmem:[%s47 + $0x24] sm:$0xf]
  %v4097 = vld [vmem:[%s47 + $0x28] sm:$0xf]
  %v4098 = vld [vmem:[%s47 + $0x2c] sm:$0xf]
  %v4099 = vld [vmem:[%s47 + $0x30] sm:$0xf]
  %v4100 = vld [vmem:[%s47 + $0x34] sm:$0xf]
  %v4101 = vld [vmem:[%s47 + $0x38] sm:$0xf]
  %v4102 = vld [vmem:[%s47 + $0x3c] sm:$0xf]
  %v4103 = vld [vmem:[%s47 + $0x40] sm:$0xf]
  %v4104 = vld [vmem:[%s47 + $0x44] sm:$0xf]
  %v4105 = vld [vmem:[%s47 + $0x48] sm:$0xf]
  %v4106 = vld [vmem:[%s47 + $0x4c] sm:$0xf]
  %v4107 = vld [vmem:[%s47 + $0x50] sm:$0xf]
  %v4108 = vld [vmem:[%s47 + $0x54] sm:$0xf]
  %v4109 = vld [vmem:[%s47 + $0x58] sm:$0xf]
  %v4110 = vld [vmem:[%s47 + $0x5c] sm:$0xf]
  %v4111 = vld [vmem:[%s47 + $0x60] sm:$0xf]
  %v4112 = vld [vmem:[%s47 + $0x64] sm:$0xf]
  %v4113 = vld [vmem:[%s47 + $0x68] sm:$0xf]
  %v4114 = vld [vmem:[%s47 + $0x6c] sm:$0xf]
  %v4115 = vld [vmem:[%s47 + $0x70] sm:$0xf]
  %v4116 = vld [vmem:[%s47 + $0x74] sm:$0xf]
  %v4117 = vld [vmem:[%s47 + $0x78] sm:$0xf]
  %v4118 = vld [vmem:[%s47 + $0x7c] sm:$0xf]
  %v4119 = vld [vmem:[%s47 + $0x80] sm:$0xf]
  %v4120 = vld [vmem:[%s47 + $0x84] sm:$0xf]
  %v4121 = vld [vmem:[%s47 + $0x88] sm:$0xf]
  %v4122 = vld [vmem:[%s47 + $0x8c] sm:$0xf]
  %v4123 = vld [vmem:[%s47 + $0x90] sm:$0xf]
  %v4124 = vld [vmem:[%s47 + $0x94] sm:$0xf]
  %v4125 = vld [vmem:[%s47 + $0x98] sm:$0xf]
  %v4126 = vld [vmem:[%s47 + $0x9c] sm:$0xf]
  %v4127 = vld [vmem:[%s47 + $0xa0] sm:$0xf]
  %v4128 = vld [vmem:[%s47 + $0xa4] sm:$0xf]
  %v4129 = vld [vmem:[%s47 + $0xa8] sm:$0xf]
  %v4130 = vld [vmem:[%s47 + $0xac] sm:$0xf]
  %v4131 = vld [vmem:[%s47 + $0xb0] sm:$0xf]
  %v4132 = vld [vmem:[%s47 + $0xb4] sm:$0xf]
  %v4133 = vld [vmem:[%s47 + $0xb8] sm:$0xf]
  %v4134 = vld [vmem:[%s47 + $0xbc] sm:$0xf]
  %v4135 = vld [vmem:[%s47 + $0xc0] sm:$0xf]
  %v4136 = vld [vmem:[%s47 + $0xc4] sm:$0xf]
  %v4137 = vld [vmem:[%s47 + $0xc8] sm:$0xf]
  %v4138 = vld [vmem:[%s47 + $0xcc] sm:$0xf]
  %v4139 = vld [vmem:[%s47 + $0xd0] sm:$0xf]
  %v4140 = vld [vmem:[%s47 + $0xd4] sm:$0xf]
  %v4141 = vld [vmem:[%s47 + $0xd8] sm:$0xf]
  %v4142 = vld [vmem:[%s47 + $0xdc] sm:$0xf]
  %v4143 = vld [vmem:[%s47 + $0xe0] sm:$0xf]
  %v4144 = vld [vmem:[%s47 + $0xe4] sm:$0xf]
  %v4145 = vld [vmem:[%s47 + $0xe8] sm:$0xf]
  %v4146 = vld [vmem:[%s47 + $0xec] sm:$0xf]
  %v4147 = vld [vmem:[%s47 + $0xf0] sm:$0xf]
  %v4148 = vld [vmem:[%s47 + $0xf4] sm:$0xf]
  %v4149 = vld [vmem:[%s47 + $0xf8] sm:$0xf]
  %v4150 = vld [vmem:[%s47 + $0xfc] sm:$0xf]
  %v4151 = vld [vmem:[%s43 + $0x10] sm:$0xff]
  %v4152 = vld [vmem:[%s43 + $0x18] sm:$0xff]
  %v4153 = vld [vmem:[%s43 + $0x50] sm:$0xff]
  %v4154 = vld [vmem:[%s43 + $0x58] sm:$0xff]
  %v4155 = vld [vmem:[%s43 + $0x90] sm:$0xff]
  %v4156 = vld [vmem:[%s43 + $0x98] sm:$0xff]
  %v4157 = vld [vmem:[%s43 + $0xd0] sm:$0xff]
  %v4158 = vld [vmem:[%s43 + $0xd8] sm:$0xff]
  %v4159 = vld [vmem:[%s43 + $0x110] sm:$0xff]
  %v4160 = vld [vmem:[%s43 + $0x118] sm:$0xff]
  %v4161 = vld [vmem:[%s43 + $0x150] sm:$0xff]
  %v4162 = vld [vmem:[%s43 + $0x158] sm:$0xff]
  %v4163 = vld [vmem:[%s43 + $0x190] sm:$0xff]
  %v4164 = vld [vmem:[%s43 + $0x198] sm:$0xff]
  %v4165 = vld [vmem:[%s43 + $0x1d0] sm:$0xff]
  %v4166 = vld [vmem:[%s43 + $0x1d8] sm:$0xff]
  %v4167 = vld [vmem:[%s43 + $0x210] sm:$0xff]
  %v4168 = vld [vmem:[%s43 + $0x218] sm:$0xff]
  %v4169 = vld [vmem:[%s43 + $0x250] sm:$0xff]
  %v4170 = vld [vmem:[%s43 + $0x258] sm:$0xff]
  %v4171 = vld [vmem:[%s43 + $0x290] sm:$0xff]
  %v4172 = vld [vmem:[%s43 + $0x298] sm:$0xff]
  %v4173 = vld [vmem:[%s43 + $0x2d0] sm:$0xff]
  %v4174 = vld [vmem:[%s43 + $0x2d8] sm:$0xff]
  %v4175 = vld [vmem:[%s43 + $0x310] sm:$0xff]
  %v4176 = vld [vmem:[%s43 + $0x318] sm:$0xff]
  %v4177 = vld [vmem:[%s43 + $0x350] sm:$0xff]
  %v4178 = vld [vmem:[%s43 + $0x358] sm:$0xff]
  %v4179 = vld [vmem:[%s43 + $0x390] sm:$0xff]
  %v4180 = vld [vmem:[%s43 + $0x398] sm:$0xff]
  %v4181 = vld [vmem:[%s43 + $0x3d0] sm:$0xff]
  %v4182 = vld [vmem:[%s43 + $0x3d8] sm:$0xff]
  %v4183 = vld [vmem:[%s45 + $0x4] sm:$0xf]
  %v4185 = vlaneseq
  %v4186 = vshrl.u32 %v4185, 7
  %v4187 = vsub.s32 0, %v4186
  %v4188 = vrot.slane %v4183, %v4187
  %v4189 = vlaneseq
  %v4190 = vshrl.u32 %v4189, 7
  %v4191 = vsub.s32 1, %v4190
  %v4192 = vrot.slane %v4183, %v4191
  %v4193 = vlaneseq
  %v4194 = vshrl.u32 %v4193, 7
  %v4195 = vsub.s32 2, %v4194
  %v4196 = vrot.slane %v4183, %v4195
  %v4197 = vlaneseq
  %v4198 = vshrl.u32 %v4197, 7
  %v4199 = vsub.s32 3, %v4198
  %v4200 = vrot.slane %v4183, %v4199
  %v4237 = vunpack.c.l.b16 %v4151
  %v4238 = vunpack.c.h.b16 %v4151
  %v4239 = vunpack.c.l.b16 %v4152
  %v4240 = vunpack.c.h.b16 %v4152
  %v4241 = vunpack.c.l.b16 %v4153
  %v4242 = vunpack.c.h.b16 %v4153
  %v4243 = vunpack.c.l.b16 %v4154
  %v4244 = vunpack.c.h.b16 %v4154
  %v4245 = vunpack.c.l.b16 %v4155
  %v4246 = vunpack.c.h.b16 %v4155
  %v4247 = vunpack.c.l.b16 %v4156
  %v4248 = vunpack.c.h.b16 %v4156
  %v4249 = vunpack.c.l.b16 %v4157
  %v4250 = vunpack.c.h.b16 %v4157
  %v4251 = vunpack.c.l.b16 %v4158
  %v4252 = vunpack.c.h.b16 %v4158
  %v4253 = vunpack.c.l.b16 %v4159
  %v4254 = vunpack.c.h.b16 %v4159
  %v4255 = vunpack.c.l.b16 %v4160
  %v4256 = vunpack.c.h.b16 %v4160
  %v4257 = vunpack.c.l.b16 %v4161
  %v4258 = vunpack.c.h.b16 %v4161
  %v4259 = vunpack.c.l.b16 %v4162
  %v4260 = vunpack.c.h.b16 %v4162
  %v4261 = vunpack.c.l.b16 %v4163
  %v4262 = vunpack.c.h.b16 %v4163
  %v4263 = vunpack.c.l.b16 %v4164
  %v4264 = vunpack.c.h.b16 %v4164
  %v4265 = vunpack.c.l.b16 %v4165
  %v4266 = vunpack.c.h.b16 %v4165
  %v4267 = vunpack.c.l.b16 %v4166
  %v4268 = vunpack.c.h.b16 %v4166
  %v4269 = vunpack.c.l.b16 %v4167
  %v4270 = vunpack.c.h.b16 %v4167
  %v4271 = vunpack.c.l.b16 %v4168
  %v4272 = vunpack.c.h.b16 %v4168
  %v4273 = vunpack.c.l.b16 %v4169
  %v4274 = vunpack.c.h.b16 %v4169
  %v4275 = vunpack.c.l.b16 %v4170
  %v4276 = vunpack.c.h.b16 %v4170
  %v4277 = vunpack.c.l.b16 %v4171
  %v4278 = vunpack.c.h.b16 %v4171
  %v4279 = vunpack.c.l.b16 %v4172
  %v4280 = vunpack.c.h.b16 %v4172
  %v4281 = vunpack.c.l.b16 %v4173
  %v4282 = vunpack.c.h.b16 %v4173
  %v4283 = vunpack.c.l.b16 %v4174
  %v4284 = vunpack.c.h.b16 %v4174
  %v4285 = vunpack.c.l.b16 %v4175
  %v4286 = vunpack.c.h.b16 %v4175
  %v4287 = vunpack.c.l.b16 %v4176
  %v4288 = vunpack.c.h.b16 %v4176
  %v4289 = vunpack.c.l.b16 %v4177
  %v4290 = vunpack.c.h.b16 %v4177
  %v4291 = vunpack.c.l.b16 %v4178
  %v4292 = vunpack.c.h.b16 %v4178
  %v4293 = vunpack.c.l.b16 %v4179
  %v4294 = vunpack.c.h.b16 %v4179
  %v4295 = vunpack.c.l.b16 %v4180
  %v4296 = vunpack.c.h.b16 %v4180
  %v4297 = vunpack.c.l.b16 %v4181
  %v4298 = vunpack.c.h.b16 %v4181
  %v4299 = vunpack.c.l.b16 %v4182
  %v4300 = vunpack.c.h.b16 %v4182
  %v4301 = vpack.c.b16 %v4241, %v4237
  %v4302 = vpack.c.b16 %v4242, %v4238
  %v4303 = vpack.c.b16 %v4243, %v4239
  %v4304 = vpack.c.b16 %v4244, %v4240
  %v4305 = vpack.c.b16 %v4249, %v4245
  %v4306 = vpack.c.b16 %v4250, %v4246
  %v4307 = vpack.c.b16 %v4251, %v4247
  %v4308 = vpack.c.b16 %v4252, %v4248
  %v4309 = vpack.c.b16 %v4257, %v4253
  %v4310 = vpack.c.b16 %v4258, %v4254
  %v4311 = vpack.c.b16 %v4259, %v4255
  %v4312 = vpack.c.b16 %v4260, %v4256
  %v4313 = vpack.c.b16 %v4265, %v4261
  %v4314 = vpack.c.b16 %v4266, %v4262
  %v4315 = vpack.c.b16 %v4267, %v4263
  %v4316 = vpack.c.b16 %v4268, %v4264
  %v4317 = vpack.c.b16 %v4273, %v4269
  %v4318 = vpack.c.b16 %v4274, %v4270
  %v4319 = vpack.c.b16 %v4275, %v4271
  %v4320 = vpack.c.b16 %v4276, %v4272
  %v4321 = vpack.c.b16 %v4281, %v4277
  %v4322 = vpack.c.b16 %v4282, %v4278
  %v4323 = vpack.c.b16 %v4283, %v4279
  %v4324 = vpack.c.b16 %v4284, %v4280
  %v4325 = vpack.c.b16 %v4289, %v4285
  %v4326 = vpack.c.b16 %v4290, %v4286
  %v4327 = vpack.c.b16 %v4291, %v4287
  %v4328 = vpack.c.b16 %v4292, %v4288
  %v4329 = vpack.c.b16 %v4297, %v4293
  %v4330 = vpack.c.b16 %v4298, %v4294
  %v4331 = vpack.c.b16 %v4299, %v4295
  %v4332 = vpack.c.b16 %v4300, %v4296
  %4365 = vmatprep.subr.bf16.mxu0 %v4330
  %4366 = vmatpush1.bf16.msra.mxu0 %v4329
  %4367 = vmatprep.subr.bf16.mxu0 %v4326
  %4368 = vmatpush1.bf16.msra.mxu0 %v4325
  %4369 = vmatprep.subr.bf16.mxu0 %v4322
  %4370 = vmatpush1.bf16.msra.mxu0 %v4321
  %4371 = vmatprep.subr.bf16.mxu0 %v4318
  %4372 = vmatpush1.bf16.msra.mxu0 %v4317
  %4373 = vmatprep.subr.bf16.mxu0 %v4314
  %4374 = vmatpush1.bf16.msra.mxu0 %v4313
  %4375 = vmatprep.subr.bf16.mxu0 %v4310
  %4376 = vmatpush1.bf16.msra.mxu0 %v4309
  %4377 = vmatprep.subr.bf16.mxu0 %v4306
  %4378 = vmatpush1.bf16.msra.mxu0 %v4305
  %4379 = vmatprep.subr.bf16.mxu0 %v4302
  %4380 = vmatpush1.bf16.msra.mxu0 %v4301
  %4381 = vmatprep.subr.bf16.mxu0 0
  %4382 = vmatpush2.bf16.msra.mxu0 0
  %4383 = vmatprep.subr.bf16.mxu0 0
  %4384 = vmatpush2.bf16.msra.mxu0 0
  %4385 = vmatprep.subr.bf16.mxu0 0
  %4386 = vmatpush2.bf16.msra.mxu0 0
  %4387 = vmatprep.subr.bf16.mxu0 0
  %4388 = vmatpush2.bf16.msra.mxu0 0
  %4389 = vmatprep.subr.bf16.mxu0 0
  %4390 = vmatpush2.bf16.msra.mxu0 0
  %4391 = vmatprep.subr.bf16.mxu0 0
  %4392 = vmatpush2.bf16.msra.mxu0 0
  %4393 = vmatprep.subr.bf16.mxu0 0
  %4394 = vmatpush2.bf16.msra.mxu0 0
  %4395 = vmatprep.subr.bf16.mxu0 0
  %4396 = vmatpush2.bf16.msra.mxu0 0
  %4397 = vmatprep.mubr.bf16.mxu0 0
  %4398 = vmatmul.mubr.bf16.gmra.mxu0 %v3650
  %v4399 = vpop.f32.mrf.mxu0
  %v4400 = vadd.f32 %v4188, %v4399
  %v4401 = vpop.f32.mrf.mxu0
  %v4402 = vadd.f32 %v4192, %v4401
  %v4403 = vpop.f32.mrf.mxu0
  %v4404 = vadd.f32 %v4188, %v4403
  %v4405 = vpop.f32.mrf.mxu0
  %v4406 = vadd.f32 %v4192, %v4405
  %4407 = vmatprep.mubr.bf16.mxu0 0
  %4408 = vmatmul.mubr.bf16.gmra.mxu0 %v3651
  %v4409 = vpop.f32.mrf.mxu0
  %v4410 = vadd.f32 %v4188, %v4409
  %v4411 = vpop.f32.mrf.mxu0
  %v4412 = vadd.f32 %v4192, %v4411
  %v4413 = vpop.f32.mrf.mxu0
  %v4414 = vadd.f32 %v4188, %v4413
  %v4415 = vpop.f32.mrf.mxu0
  %v4416 = vadd.f32 %v4192, %v4415
  %4417 = vmatprep.mubr.bf16.mxu0 0
  %4418 = vmatmul.mubr.bf16.gmra.mxu0 %v3652
  %v4419 = vpop.f32.mrf.mxu0
  %v4420 = vadd.f32 %v4188, %v4419
  %v4421 = vpop.f32.mrf.mxu0
  %v4422 = vadd.f32 %v4192, %v4421
  %v4423 = vpop.f32.mrf.mxu0
  %v4424 = vadd.f32 %v4188, %v4423
  %v4425 = vpop.f32.mrf.mxu0
  %v4426 = vadd.f32 %v4192, %v4425
  %4427 = vmatprep.mubr.bf16.mxu0 0
  %4428 = vmatmul.mubr.bf16.gmra.mxu0 %v3653
  %v4429 = vpop.f32.mrf.mxu0
  %v4430 = vadd.f32 %v4188, %v4429
  %v4431 = vpop.f32.mrf.mxu0
  %v4432 = vadd.f32 %v4192, %v4431
  %v4433 = vpop.f32.mrf.mxu0
  %v4434 = vadd.f32 %v4188, %v4433
  %v4435 = vpop.f32.mrf.mxu0
  %v4436 = vadd.f32 %v4192, %v4435
  %4437 = vmatprep.mubr.bf16.mxu0 0
  %4438 = vmatmul.mubr.bf16.gmra.mxu0 %v3654
  %v4439 = vpop.f32.mrf.mxu0
  %v4440 = vadd.f32 %v4188, %v4439
  %v4441 = vpop.f32.mrf.mxu0
  %v4442 = vadd.f32 %v4192, %v4441
  %v4443 = vpop.f32.mrf.mxu0
  %v4444 = vpop.f32.mrf.mxu0
  %4445 = vdwg.mxu0
  %4446 = vmatprep.subr.bf16.mxu0 %v4332
  %4447 = vmatpush1.bf16.msra.mxu0 %v4331
  %4448 = vmatprep.subr.bf16.mxu0 %v4328
  %4449 = vmatpush1.bf16.msra.mxu0 %v4327
  %4450 = vmatprep.subr.bf16.mxu0 %v4324
  %4451 = vmatpush1.bf16.msra.mxu0 %v4323
  %4452 = vmatprep.subr.bf16.mxu0 %v4320
  %4453 = vmatpush1.bf16.msra.mxu0 %v4319
  %4454 = vmatprep.subr.bf16.mxu0 %v4316
  %4455 = vmatpush1.bf16.msra.mxu0 %v4315
  %4456 = vmatprep.subr.bf16.mxu0 %v4312
  %4457 = vmatpush1.bf16.msra.mxu0 %v4311
  %4458 = vmatprep.subr.bf16.mxu0 %v4308
  %4459 = vmatpush1.bf16.msra.mxu0 %v4307
  %4460 = vmatprep.subr.bf16.mxu0 %v4304
  %4461 = vmatpush1.bf16.msra.mxu0 %v4303
  %4462 = vmatprep.subr.bf16.mxu0 0
  %4463 = vmatpush2.bf16.msra.mxu0 0
  %4464 = vmatprep.subr.bf16.mxu0 0
  %4465 = vmatpush2.bf16.msra.mxu0 0
  %4466 = vmatprep.subr.bf16.mxu0 0
  %4467 = vmatpush2.bf16.msra.mxu0 0
  %4468 = vmatprep.subr.bf16.mxu0 0
  %4469 = vmatpush2.bf16.msra.mxu0 0
  %4470 = vmatprep.subr.bf16.mxu0 0
  %4471 = vmatpush2.bf16.msra.mxu0 0
  %4472 = vmatprep.subr.bf16.mxu0 0
  %4473 = vmatpush2.bf16.msra.mxu0 0
  %4474 = vmatprep.subr.bf16.mxu0 0
  %4475 = vmatpush2.bf16.msra.mxu0 0
  %4476 = vmatprep.subr.bf16.mxu0 0
  %4477 = vmatpush2.bf16.msra.mxu0 0
  %4478 = vmatprep.mubr.bf16.mxu0 0
  %4479 = vmatmul.mubr.bf16.gmra.mxu0 %v3650
  %v4480 = vpop.f32.mrf.mxu0
  %v4481 = vadd.f32 %v4196, %v4480
  %v4482 = vpop.f32.mrf.mxu0
  %v4483 = vadd.f32 %v4200, %v4482
  %v4484 = vpop.f32.mrf.mxu0
  %v4485 = vadd.f32 %v4196, %v4484
  %v4486 = vpop.f32.mrf.mxu0
  %v4487 = vadd.f32 %v4200, %v4486
  %4488 = vmatprep.mubr.bf16.mxu0 0
  %4489 = vmatmul.mubr.bf16.gmra.mxu0 %v3651
  %v4490 = vpop.f32.mrf.mxu0
  %v4491 = vadd.f32 %v4196, %v4490
  %v4492 = vpop.f32.mrf.mxu0
  %v4493 = vadd.f32 %v4200, %v4492
  %v4494 = vpop.f32.mrf.mxu0
  %v4495 = vadd.f32 %v4196, %v4494
  %v4496 = vpop.f32.mrf.mxu0
  %v4497 = vadd.f32 %v4200, %v4496
  %4498 = vmatprep.mubr.bf16.mxu0 0
  %4499 = vmatmul.mubr.bf16.gmra.mxu0 %v3652
  %v4500 = vpop.f32.mrf.mxu0
  %v4501 = vadd.f32 %v4196, %v4500
  %v4502 = vpop.f32.mrf.mxu0
  %v4503 = vadd.f32 %v4200, %v4502
  %v4504 = vpop.f32.mrf.mxu0
  %v4505 = vadd.f32 %v4196, %v4504
  %v4506 = vpop.f32.mrf.mxu0
  %v4507 = vadd.f32 %v4200, %v4506
  %4508 = vmatprep.mubr.bf16.mxu0 0
  %4509 = vmatmul.mubr.bf16.gmra.mxu0 %v3653
  %v4510 = vpop.f32.mrf.mxu0
  %v4511 = vadd.f32 %v4196, %v4510
  %v4512 = vpop.f32.mrf.mxu0
  %v4513 = vadd.f32 %v4200, %v4512
  %v4514 = vpop.f32.mrf.mxu0
  %v4515 = vadd.f32 %v4196, %v4514
  %v4516 = vpop.f32.mrf.mxu0
  %v4517 = vadd.f32 %v4200, %v4516
  %4518 = vmatprep.mubr.bf16.mxu0 0
  %4519 = vmatmul.mubr.bf16.gmra.mxu0 %v3654
  %v4520 = vpop.f32.mrf.mxu0
  %v4521 = vadd.f32 %v4196, %v4520
  %v4522 = vpop.f32.mrf.mxu0
  %v4523 = vadd.f32 %v4200, %v4522
  %v4524 = vpop.f32.mrf.mxu0
  %v4525 = vpop.f32.mrf.mxu0
  %4526 = vdwg.mxu0
  %v4527 = vmax.f32 %v4400, 0.0
  %v4528 = vmax.f32 %v4402, 0.0
  %v4529 = vmax.f32 %v4481, 0.0
  %v4530 = vmax.f32 %v4483, 0.0
  %v4531 = vmax.f32 %v4404, 0.0
  %v4532 = vmax.f32 %v4406, 0.0
  %v4533 = vmax.f32 %v4485, 0.0
  %v4534 = vmax.f32 %v4487, 0.0
  %v4535 = vmax.f32 %v4410, 0.0
  %v4536 = vmax.f32 %v4412, 0.0
  %v4537 = vmax.f32 %v4491, 0.0
  %v4538 = vmax.f32 %v4493, 0.0
  %v4539 = vmax.f32 %v4414, 0.0
  %v4540 = vmax.f32 %v4416, 0.0
  %v4541 = vmax.f32 %v4495, 0.0
  %v4542 = vmax.f32 %v4497, 0.0
  %v4543 = vmax.f32 %v4420, 0.0
  %v4544 = vmax.f32 %v4422, 0.0
  %v4545 = vmax.f32 %v4501, 0.0
  %v4546 = vmax.f32 %v4503, 0.0
  %v4547 = vmax.f32 %v4424, 0.0
  %v4548 = vmax.f32 %v4426, 0.0
  %v4549 = vmax.f32 %v4505, 0.0
  %v4550 = vmax.f32 %v4507, 0.0
  %v4551 = vmax.f32 %v4430, 0.0
  %v4552 = vmax.f32 %v4432, 0.0
  %v4553 = vmax.f32 %v4511, 0.0
  %v4554 = vmax.f32 %v4513, 0.0
  %v4555 = vmax.f32 %v4434, 0.0
  %v4556 = vmax.f32 %v4436, 0.0
  %v4557 = vmax.f32 %v4515, 0.0
  %v4558 = vmax.f32 %v4517, 0.0
  %v4559 = vmax.f32 %v4440, 0.0
  %v4560 = vmax.f32 %v4442, 0.0
  %v4561 = vmax.f32 %v4521, 0.0
  %v4562 = vmax.f32 %v4523, 0.0
  %v4563 = vpack.c.bf16 %v4531, %v4527
  %v4564 = vpack.c.bf16 %v4532, %v4528
  %v4565 = vpack.c.bf16 %v4533, %v4529
  %v4566 = vpack.c.bf16 %v4534, %v4530
  %v4567 = vpack.c.bf16 %v4539, %v4535
  %v4568 = vpack.c.bf16 %v4540, %v4536
  %v4569 = vpack.c.bf16 %v4541, %v4537
  %v4570 = vpack.c.bf16 %v4542, %v4538
  %v4571 = vpack.c.bf16 %v4547, %v4543
  %v4572 = vpack.c.bf16 %v4548, %v4544
  %v4573 = vpack.c.bf16 %v4549, %v4545
  %v4574 = vpack.c.bf16 %v4550, %v4546
  %v4575 = vpack.c.bf16 %v4555, %v4551
  %v4576 = vpack.c.bf16 %v4556, %v4552
  %v4577 = vpack.c.bf16 %v4557, %v4553
  %v4578 = vpack.c.bf16 %v4558, %v4554
  %v4579 = vpack.c.bf16 %v4559, %v4559
  %v4580 = vpack.c.bf16 %v4560, %v4560
  %v4581 = vpack.c.bf16 %v4561, %v4561
  %v4582 = vpack.c.bf16 %v4562, %v4562
  %v4583 = vld [vmem:[%s47 + $0x100] sm:$0xf]
  %v4584 = vld [vmem:[%s47 + $0x104] sm:$0xf]
  %v4585 = vld [vmem:[%s47 + $0x108] sm:$0xf]
  %v4586 = vld [vmem:[%s47 + $0x10c] sm:$0xf]
  %v4587 = vld [vmem:[%s47 + $0x110] sm:$0xf]
  %v4588 = vld [vmem:[%s47 + $0x114] sm:$0xf]
  %v4589 = vld [vmem:[%s47 + $0x118] sm:$0xf]
  %v4590 = vld [vmem:[%s47 + $0x11c] sm:$0xf]
  %v4591 = vld [vmem:[%s47 + $0x120] sm:$0xf]
  %v4592 = vld [vmem:[%s47 + $0x124] sm:$0xf]
  %v4593 = vld [vmem:[%s47 + $0x128] sm:$0xf]
  %v4594 = vld [vmem:[%s47 + $0x12c] sm:$0xf]
  %v4595 = vld [vmem:[%s47 + $0x130] sm:$0xf]
  %v4596 = vld [vmem:[%s47 + $0x134] sm:$0xf]
  %v4597 = vld [vmem:[%s47 + $0x138] sm:$0xf]
  %v4598 = vld [vmem:[%s47 + $0x13c] sm:$0xf]
  %v4599 = vld [vmem:[%s47 + $0x140] sm:$0xf]
  %v4600 = vld [vmem:[%s47 + $0x144] sm:$0xf]
  %v4601 = vld [vmem:[%s47 + $0x148] sm:$0xf]
  %v4602 = vld [vmem:[%s47 + $0x14c] sm:$0xf]
  %v4603 = vld [vmem:[%s47 + $0x150] sm:$0xf]
  %v4604 = vld [vmem:[%s47 + $0x154] sm:$0xf]
  %v4605 = vld [vmem:[%s47 + $0x158] sm:$0xf]
  %v4606 = vld [vmem:[%s47 + $0x15c] sm:$0xf]
  %v4607 = vld [vmem:[%s47 + $0x160] sm:$0xf]
  %v4608 = vld [vmem:[%s47 + $0x164] sm:$0xf]
  %v4609 = vld [vmem:[%s47 + $0x168] sm:$0xf]
  %v4610 = vld [vmem:[%s47 + $0x16c] sm:$0xf]
  %v4611 = vld [vmem:[%s47 + $0x170] sm:$0xf]
  %v4612 = vld [vmem:[%s47 + $0x174] sm:$0xf]
  %v4613 = vld [vmem:[%s47 + $0x178] sm:$0xf]
  %v4614 = vld [vmem:[%s47 + $0x17c] sm:$0xf]
  %v4615 = vld [vmem:[%s47 + $0x180] sm:$0xf]
  %v4616 = vld [vmem:[%s47 + $0x184] sm:$0xf]
  %v4617 = vld [vmem:[%s47 + $0x188] sm:$0xf]
  %v4618 = vld [vmem:[%s47 + $0x18c] sm:$0xf]
  %v4619 = vld [vmem:[%s47 + $0x190] sm:$0xf]
  %v4620 = vld [vmem:[%s47 + $0x194] sm:$0xf]
  %v4621 = vld [vmem:[%s47 + $0x198] sm:$0xf]
  %v4622 = vld [vmem:[%s47 + $0x19c] sm:$0xf]
  %v4623 = vld [vmem:[%s47 + $0x1a0] sm:$0xf]
  %v4624 = vld [vmem:[%s47 + $0x1a4] sm:$0xf]
  %v4625 = vld [vmem:[%s47 + $0x1a8] sm:$0xf]
  %v4626 = vld [vmem:[%s47 + $0x1ac] sm:$0xf]
  %v4627 = vld [vmem:[%s47 + $0x1b0] sm:$0xf]
  %v4628 = vld [vmem:[%s47 + $0x1b4] sm:$0xf]
  %v4629 = vld [vmem:[%s47 + $0x1b8] sm:$0xf]
  %v4630 = vld [vmem:[%s47 + $0x1bc] sm:$0xf]
  %v4631 = vld [vmem:[%s47 + $0x1c0] sm:$0xf]
  %v4632 = vld [vmem:[%s47 + $0x1c4] sm:$0xf]
  %v4633 = vld [vmem:[%s47 + $0x1c8] sm:$0xf]
  %v4634 = vld [vmem:[%s47 + $0x1cc] sm:$0xf]
  %v4635 = vld [vmem:[%s47 + $0x1d0] sm:$0xf]
  %v4636 = vld [vmem:[%s47 + $0x1d4] sm:$0xf]
  %v4637 = vld [vmem:[%s47 + $0x1d8] sm:$0xf]
  %v4638 = vld [vmem:[%s47 + $0x1dc] sm:$0xf]
  %v4639 = vld [vmem:[%s47 + $0x1e0] sm:$0xf]
  %v4640 = vld [vmem:[%s47 + $0x1e4] sm:$0xf]
  %v4641 = vld [vmem:[%s47 + $0x1e8] sm:$0xf]
  %v4642 = vld [vmem:[%s47 + $0x1ec] sm:$0xf]
  %v4643 = vld [vmem:[%s47 + $0x1f0] sm:$0xf]
  %v4644 = vld [vmem:[%s47 + $0x1f4] sm:$0xf]
  %v4645 = vld [vmem:[%s47 + $0x1f8] sm:$0xf]
  %v4646 = vld [vmem:[%s47 + $0x1fc] sm:$0xf]
  %v4711 = vunpack.c.l.b16 %v4583
  %v4712 = vunpack.c.l.b16 %v4584
  %v4713 = vunpack.c.l.b16 %v4585
  %v4714 = vunpack.c.l.b16 %v4586
  %v4715 = vunpack.c.l.b16 %v4587
  %v4716 = vunpack.c.l.b16 %v4588
  %v4717 = vunpack.c.l.b16 %v4589
  %v4718 = vunpack.c.l.b16 %v4590
  %v4719 = vunpack.c.l.b16 %v4591
  %v4720 = vunpack.c.l.b16 %v4592
  %v4721 = vunpack.c.l.b16 %v4593
  %v4722 = vunpack.c.l.b16 %v4594
  %v4723 = vunpack.c.l.b16 %v4595
  %v4724 = vunpack.c.l.b16 %v4596
  %v4725 = vunpack.c.l.b16 %v4597
  %v4726 = vunpack.c.l.b16 %v4598
  %v4727 = vunpack.c.l.b16 %v4599
  %v4728 = vunpack.c.l.b16 %v4600
  %v4729 = vunpack.c.l.b16 %v4601
  %v4730 = vunpack.c.l.b16 %v4602
  %v4731 = vunpack.c.l.b16 %v4603
  %v4732 = vunpack.c.l.b16 %v4604
  %v4733 = vunpack.c.l.b16 %v4605
  %v4734 = vunpack.c.l.b16 %v4606
  %v4735 = vunpack.c.l.b16 %v4607
  %v4736 = vunpack.c.l.b16 %v4608
  %v4737 = vunpack.c.l.b16 %v4609
  %v4738 = vunpack.c.l.b16 %v4610
  %v4739 = vunpack.c.l.b16 %v4611
  %v4740 = vunpack.c.l.b16 %v4612
  %v4741 = vunpack.c.l.b16 %v4613
  %v4742 = vunpack.c.l.b16 %v4614
  %v4743 = vunpack.c.l.b16 %v4615
  %v4744 = vunpack.c.l.b16 %v4616
  %v4745 = vunpack.c.l.b16 %v4617
  %v4746 = vunpack.c.l.b16 %v4618
  %v4747 = vunpack.c.l.b16 %v4619
  %v4748 = vunpack.c.l.b16 %v4620
  %v4749 = vunpack.c.l.b16 %v4621
  %v4750 = vunpack.c.l.b16 %v4622
  %v4751 = vunpack.c.l.b16 %v4623
  %v4752 = vunpack.c.l.b16 %v4624
  %v4753 = vunpack.c.l.b16 %v4625
  %v4754 = vunpack.c.l.b16 %v4626
  %v4755 = vunpack.c.l.b16 %v4627
  %v4756 = vunpack.c.l.b16 %v4628
  %v4757 = vunpack.c.l.b16 %v4629
  %v4758 = vunpack.c.l.b16 %v4630
  %v4759 = vunpack.c.l.b16 %v4631
  %v4760 = vunpack.c.l.b16 %v4632
  %v4761 = vunpack.c.l.b16 %v4633
  %v4762 = vunpack.c.l.b16 %v4634
  %v4763 = vunpack.c.l.b16 %v4635
  %v4764 = vunpack.c.l.b16 %v4636
  %v4765 = vunpack.c.l.b16 %v4637
  %v4766 = vunpack.c.l.b16 %v4638
  %v4767 = vunpack.c.l.b16 %v4639
  %v4768 = vunpack.c.l.b16 %v4640
  %v4769 = vunpack.c.l.b16 %v4641
  %v4770 = vunpack.c.l.b16 %v4642
  %v4771 = vunpack.c.l.b16 %v4643
  %v4772 = vunpack.c.l.b16 %v4644
  %v4773 = vunpack.c.l.b16 %v4645
  %v4774 = vunpack.c.l.b16 %v4646
  %v4775 = vpack.c.b16 %v4712, %v4711
  %v4776 = vpack.c.b16 %v4714, %v4713
  %v4777 = vpack.c.b16 %v4716, %v4715
  %v4778 = vpack.c.b16 %v4718, %v4717
  %v4779 = vpack.c.b16 %v4720, %v4719
  %v4780 = vpack.c.b16 %v4722, %v4721
  %v4781 = vpack.c.b16 %v4724, %v4723
  %v4782 = vpack.c.b16 %v4726, %v4725
  %v4783 = vpack.c.b16 %v4728, %v4727
  %v4784 = vpack.c.b16 %v4730, %v4729
  %v4785 = vpack.c.b16 %v4732, %v4731
  %v4786 = vpack.c.b16 %v4734, %v4733
  %v4787 = vpack.c.b16 %v4736, %v4735
  %v4788 = vpack.c.b16 %v4738, %v4737
  %v4789 = vpack.c.b16 %v4740, %v4739
  %v4790 = vpack.c.b16 %v4742, %v4741
  %v4791 = vpack.c.b16 %v4744, %v4743
  %v4792 = vpack.c.b16 %v4746, %v4745
  %v4793 = vpack.c.b16 %v4748, %v4747
  %v4794 = vpack.c.b16 %v4750, %v4749
  %v4795 = vpack.c.b16 %v4752, %v4751
  %v4796 = vpack.c.b16 %v4754, %v4753
  %v4797 = vpack.c.b16 %v4756, %v4755
  %v4798 = vpack.c.b16 %v4758, %v4757
  %v4799 = vpack.c.b16 %v4760, %v4759
  %v4800 = vpack.c.b16 %v4762, %v4761
  %v4801 = vpack.c.b16 %v4764, %v4763
  %v4802 = vpack.c.b16 %v4766, %v4765
  %v4803 = vpack.c.b16 %v4768, %v4767
  %v4804 = vpack.c.b16 %v4770, %v4769
  %v4805 = vpack.c.b16 %v4772, %v4771
  %v4806 = vpack.c.b16 %v4774, %v4773
  %4839 = vmatprep.subr.bf16.mxu0 0
  %4840 = vmatpush1.bf16.msra.mxu0 %v4782
  %4841 = vmatprep.subr.bf16.mxu0 0
  %4842 = vmatpush1.bf16.msra.mxu0 %v4781
  %4843 = vmatprep.subr.bf16.mxu0 0
  %4844 = vmatpush1.bf16.msra.mxu0 %v4780
  %4845 = vmatprep.subr.bf16.mxu0 0
  %4846 = vmatpush1.bf16.msra.mxu0 %v4779
  %4847 = vmatprep.subr.bf16.mxu0 0
  %4848 = vmatpush1.bf16.msra.mxu0 %v4778
  %4849 = vmatprep.subr.bf16.mxu0 0
  %4850 = vmatpush1.bf16.msra.mxu0 %v4777
  %4851 = vmatprep.subr.bf16.mxu0 0
  %4852 = vmatpush1.bf16.msra.mxu0 %v4776
  %4853 = vmatprep.subr.bf16.mxu0 0
  %4854 = vmatpush1.bf16.msra.mxu0 %v4775
  %4855 = vmatprep.subr.bf16.mxu0 0
  %4856 = vmatpush2.bf16.msra.mxu0 %v4790
  %4857 = vmatprep.subr.bf16.mxu0 0
  %4858 = vmatpush2.bf16.msra.mxu0 %v4789
  %4859 = vmatprep.subr.bf16.mxu0 0
  %4860 = vmatpush2.bf16.msra.mxu0 %v4788
  %4861 = vmatprep.subr.bf16.mxu0 0
  %4862 = vmatpush2.bf16.msra.mxu0 %v4787
  %4863 = vmatprep.subr.bf16.mxu0 0
  %4864 = vmatpush2.bf16.msra.mxu0 %v4786
  %4865 = vmatprep.subr.bf16.mxu0 0
  %4866 = vmatpush2.bf16.msra.mxu0 %v4785
  %4867 = vmatprep.subr.bf16.mxu0 0
  %4868 = vmatpush2.bf16.msra.mxu0 %v4784
  %4869 = vmatprep.subr.bf16.mxu0 0
  %4870 = vmatpush2.bf16.msra.mxu0 %v4783
  %4871 = vmatprep.mubr.bf16.mxu0 %v4564
  %4872 = vmatmul.mubr.bf16.gmra.mxu0 %v4563
  %v4873 = vpop.f32.mrf.mxu0
  %v4874 = vadd.f32 0.0, %v4873
  %v4875 = vpop.f32.mrf.mxu0
  %v4876 = vpop.f32.mrf.mxu0
  %v4877 = vadd.f32 0.0, %v4876
  %v4878 = vpop.f32.mrf.mxu0
  %4879 = vmatprep.mubr.bf16.mxu0 %v4568
  %4880 = vmatmul.mubr.bf16.gmra.mxu0 %v4567
  %v4881 = vpop.f32.mrf.mxu0
  %v4882 = vadd.f32 0.0, %v4881
  %v4883 = vpop.f32.mrf.mxu0
  %v4884 = vpop.f32.mrf.mxu0
  %v4885 = vadd.f32 0.0, %v4884
  %v4886 = vpop.f32.mrf.mxu0
  %4887 = vmatprep.mubr.bf16.mxu0 %v4572
  %4888 = vmatmul.mubr.bf16.gmra.mxu0 %v4571
  %v4889 = vpop.f32.mrf.mxu0
  %v4890 = vadd.f32 0.0, %v4889
  %v4891 = vpop.f32.mrf.mxu0
  %v4892 = vpop.f32.mrf.mxu0
  %v4893 = vadd.f32 0.0, %v4892
  %v4894 = vpop.f32.mrf.mxu0
  %4895 = vmatprep.mubr.bf16.mxu0 %v4576
  %4896 = vmatmul.mubr.bf16.gmra.mxu0 %v4575
  %v4897 = vpop.f32.mrf.mxu0
  %v4898 = vadd.f32 0.0, %v4897
  %v4899 = vpop.f32.mrf.mxu0
  %v4900 = vpop.f32.mrf.mxu0
  %v4901 = vadd.f32 0.0, %v4900
  %v4902 = vpop.f32.mrf.mxu0
  %4903 = vmatprep.mubr.bf16.mxu0 %v4580
  %4904 = vmatmul.mubr.bf16.gmra.mxu0 %v4579
  %v4905 = vpop.f32.mrf.mxu0
  %v4906 = vadd.f32 0.0, %v4905
  %v4907 = vpop.f32.mrf.mxu0
  %v4908 = vpop.f32.mrf.mxu0
  %v4909 = vpop.f32.mrf.mxu0
  %4910 = vdwg.mxu0
  %4911 = vmatprep.subr.bf16.mxu0 0
  %4912 = vmatpush1.bf16.msra.mxu0 %v4798
  %4913 = vmatprep.subr.bf16.mxu0 0
  %4914 = vmatpush1.bf16.msra.mxu0 %v4797
  %4915 = vmatprep.subr.bf16.mxu0 0
  %4916 = vmatpush1.bf16.msra.mxu0 %v4796
  %4917 = vmatprep.subr.bf16.mxu0 0
  %4918 = vmatpush1.bf16.msra.mxu0 %v4795
  %4919 = vmatprep.subr.bf16.mxu0 0
  %4920 = vmatpush1.bf16.msra.mxu0 %v4794
  %4921 = vmatprep.subr.bf16.mxu0 0
  %4922 = vmatpush1.bf16.msra.mxu0 %v4793
  %4923 = vmatprep.subr.bf16.mxu0 0
  %4924 = vmatpush1.bf16.msra.mxu0 %v4792
  %4925 = vmatprep.subr.bf16.mxu0 0
  %4926 = vmatpush1.bf16.msra.mxu0 %v4791
  %4927 = vmatprep.subr.bf16.mxu0 0
  %4928 = vmatpush2.bf16.msra.mxu0 %v4806
  %4929 = vmatprep.subr.bf16.mxu0 0
  %4930 = vmatpush2.bf16.msra.mxu0 %v4805
  %4931 = vmatprep.subr.bf16.mxu0 0
  %4932 = vmatpush2.bf16.msra.mxu0 %v4804
  %4933 = vmatprep.subr.bf16.mxu0 0
  %4934 = vmatpush2.bf16.msra.mxu0 %v4803
  %4935 = vmatprep.subr.bf16.mxu0 0
  %4936 = vmatpush2.bf16.msra.mxu0 %v4802
  %4937 = vmatprep.subr.bf16.mxu0 0
  %4938 = vmatpush2.bf16.msra.mxu0 %v4801
  %4939 = vmatprep.subr.bf16.mxu0 0
  %4940 = vmatpush2.bf16.msra.mxu0 %v4800
  %4941 = vmatprep.subr.bf16.mxu0 0
  %4942 = vmatpush2.bf16.msra.mxu0 %v4799
  %4943 = vmatprep.mubr.bf16.mxu0 %v4566
  %4944 = vmatmul.mubr.bf16.gmra.mxu0 %v4565
  %v4945 = vpop.f32.mrf.mxu0
  %v4946 = vadd.f32 %v4874, %v4945
  %v4947 = vpop.f32.mrf.mxu0
  %v4948 = vpop.f32.mrf.mxu0
  %v4949 = vadd.f32 %v4877, %v4948
  %v4950 = vpop.f32.mrf.mxu0
  %4951 = vmatprep.mubr.bf16.mxu0 %v4570
  %4952 = vmatmul.mubr.bf16.gmra.mxu0 %v4569
  %v4953 = vpop.f32.mrf.mxu0
  %v4954 = vadd.f32 %v4882, %v4953
  %v4955 = vpop.f32.mrf.mxu0
  %v4956 = vpop.f32.mrf.mxu0
  %v4957 = vadd.f32 %v4885, %v4956
  %v4958 = vpop.f32.mrf.mxu0
  %4959 = vmatprep.mubr.bf16.mxu0 %v4574
  %4960 = vmatmul.mubr.bf16.gmra.mxu0 %v4573
  %v4961 = vpop.f32.mrf.mxu0
  %v4962 = vadd.f32 %v4890, %v4961
  %v4963 = vpop.f32.mrf.mxu0
  %v4964 = vpop.f32.mrf.mxu0
  %v4965 = vadd.f32 %v4893, %v4964
  %v4966 = vpop.f32.mrf.mxu0
  %4967 = vmatprep.mubr.bf16.mxu0 %v4578
  %4968 = vmatmul.mubr.bf16.gmra.mxu0 %v4577
  %v4969 = vpop.f32.mrf.mxu0
  %v4970 = vadd.f32 %v4898, %v4969
  %v4971 = vpop.f32.mrf.mxu0
  %v4972 = vpop.f32.mrf.mxu0
  %v4973 = vadd.f32 %v4901, %v4972
  %v4974 = vpop.f32.mrf.mxu0
  %4975 = vmatprep.mubr.bf16.mxu0 %v4582
  %4976 = vmatmul.mubr.bf16.gmra.mxu0 %v4581
  %v4977 = vpop.f32.mrf.mxu0
  %v4978 = vadd.f32 %v4906, %v4977
  %v4979 = vpop.f32.mrf.mxu0
  %v4980 = vpop.f32.mrf.mxu0
  %v4981 = vpop.f32.mrf.mxu0
  %4982 = vdwg.mxu0
  %v5047 = vunpack.c.l.b16 %v4087
  %v5048 = vunpack.c.l.b16 %v4088
  %v5049 = vunpack.c.l.b16 %v4089
  %v5050 = vunpack.c.l.b16 %v4090
  %v5051 = vunpack.c.l.b16 %v4091
  %v5052 = vunpack.c.l.b16 %v4092
  %v5053 = vunpack.c.l.b16 %v4093
  %v5054 = vunpack.c.l.b16 %v4094
  %v5055 = vunpack.c.l.b16 %v4095
  %v5056 = vunpack.c.l.b16 %v4096
  %v5057 = vunpack.c.l.b16 %v4097
  %v5058 = vunpack.c.l.b16 %v4098
  %v5059 = vunpack.c.l.b16 %v4099
  %v5060 = vunpack.c.l.b16 %v4100
  %v5061 = vunpack.c.l.b16 %v4101
  %v5062 = vunpack.c.l.b16 %v4102
  %v5063 = vunpack.c.l.b16 %v4103
  %v5064 = vunpack.c.l.b16 %v4104
  %v5065 = vunpack.c.l.b16 %v4105
  %v5066 = vunpack.c.l.b16 %v4106
  %v5067 = vunpack.c.l.b16 %v4107
  %v5068 = vunpack.c.l.b16 %v4108
  %v5069 = vunpack.c.l.b16 %v4109
  %v5070 = vunpack.c.l.b16 %v4110
  %v5071 = vunpack.c.l.b16 %v4111
  %v5072 = vunpack.c.l.b16 %v4112
  %v5073 = vunpack.c.l.b16 %v4113
  %v5074 = vunpack.c.l.b16 %v4114
  %v5075 = vunpack.c.l.b16 %v4115
  %v5076 = vunpack.c.l.b16 %v4116
  %v5077 = vunpack.c.l.b16 %v4117
  %v5078 = vunpack.c.l.b16 %v4118
  %v5079 = vunpack.c.l.b16 %v4119
  %v5080 = vunpack.c.l.b16 %v4120
  %v5081 = vunpack.c.l.b16 %v4121
  %v5082 = vunpack.c.l.b16 %v4122
  %v5083 = vunpack.c.l.b16 %v4123
  %v5084 = vunpack.c.l.b16 %v4124
  %v5085 = vunpack.c.l.b16 %v4125
  %v5086 = vunpack.c.l.b16 %v4126
  %v5087 = vunpack.c.l.b16 %v4127
  %v5088 = vunpack.c.l.b16 %v4128
  %v5089 = vunpack.c.l.b16 %v4129
  %v5090 = vunpack.c.l.b16 %v4130
  %v5091 = vunpack.c.l.b16 %v4131
  %v5092 = vunpack.c.l.b16 %v4132
  %v5093 = vunpack.c.l.b16 %v4133
  %v5094 = vunpack.c.l.b16 %v4134
  %v5095 = vunpack.c.l.b16 %v4135
  %v5096 = vunpack.c.l.b16 %v4136
  %v5097 = vunpack.c.l.b16 %v4137
  %v5098 = vunpack.c.l.b16 %v4138
  %v5099 = vunpack.c.l.b16 %v4139
  %v5100 = vunpack.c.l.b16 %v4140
  %v5101 = vunpack.c.l.b16 %v4141
  %v5102 = vunpack.c.l.b16 %v4142
  %v5103 = vunpack.c.l.b16 %v4143
  %v5104 = vunpack.c.l.b16 %v4144
  %v5105 = vunpack.c.l.b16 %v4145
  %v5106 = vunpack.c.l.b16 %v4146
  %v5107 = vunpack.c.l.b16 %v4147
  %v5108 = vunpack.c.l.b16 %v4148
  %v5109 = vunpack.c.l.b16 %v4149
  %v5110 = vunpack.c.l.b16 %v4150
  %v5111 = vpack.c.b16 %v5048, %v5047
  %v5112 = vpack.c.b16 %v5050, %v5049
  %v5113 = vpack.c.b16 %v5052, %v5051
  %v5114 = vpack.c.b16 %v5054, %v5053
  %v5115 = vpack.c.b16 %v5056, %v5055
  %v5116 = vpack.c.b16 %v5058, %v5057
  %v5117 = vpack.c.b16 %v5060, %v5059
  %v5118 = vpack.c.b16 %v5062, %v5061
  %v5119 = vpack.c.b16 %v5064, %v5063
  %v5120 = vpack.c.b16 %v5066, %v5065
  %v5121 = vpack.c.b16 %v5068, %v5067
  %v5122 = vpack.c.b16 %v5070, %v5069
  %v5123 = vpack.c.b16 %v5072, %v5071
  %v5124 = vpack.c.b16 %v5074, %v5073
  %v5125 = vpack.c.b16 %v5076, %v5075
  %v5126 = vpack.c.b16 %v5078, %v5077
  %v5127 = vpack.c.b16 %v5080, %v5079
  %v5128 = vpack.c.b16 %v5082, %v5081
  %v5129 = vpack.c.b16 %v5084, %v5083
  %v5130 = vpack.c.b16 %v5086, %v5085
  %v5131 = vpack.c.b16 %v5088, %v5087
  %v5132 = vpack.c.b16 %v5090, %v5089
  %v5133 = vpack.c.b16 %v5092, %v5091
  %v5134 = vpack.c.b16 %v5094, %v5093
  %v5135 = vpack.c.b16 %v5096, %v5095
  %v5136 = vpack.c.b16 %v5098, %v5097
  %v5137 = vpack.c.b16 %v5100, %v5099
  %v5138 = vpack.c.b16 %v5102, %v5101
  %v5139 = vpack.c.b16 %v5104, %v5103
  %v5140 = vpack.c.b16 %v5106, %v5105
  %v5141 = vpack.c.b16 %v5108, %v5107
  %v5142 = vpack.c.b16 %v5110, %v5109
  %5175 = vmatprep.subr.bf16.mxu0 0
  %5176 = vmatpush1.bf16.msra.mxu0 %v5118
  %5177 = vmatprep.subr.bf16.mxu0 0
  %5178 = vmatpush1.bf16.msra.mxu0 %v5117
  %5179 = vmatprep.subr.bf16.mxu0 0
  %5180 = vmatpush1.bf16.msra.mxu0 %v5116
  %5181 = vmatprep.subr.bf16.mxu0 0
  %5182 = vmatpush1.bf16.msra.mxu0 %v5115
  %5183 = vmatprep.subr.bf16.mxu0 0
  %5184 = vmatpush1.bf16.msra.mxu0 %v5114
  %5185 = vmatprep.subr.bf16.mxu0 0
  %5186 = vmatpush1.bf16.msra.mxu0 %v5113
  %5187 = vmatprep.subr.bf16.mxu0 0
  %5188 = vmatpush1.bf16.msra.mxu0 %v5112
  %5189 = vmatprep.subr.bf16.mxu0 0
  %5190 = vmatpush1.bf16.msra.mxu0 %v5111
  %5191 = vmatprep.subr.bf16.mxu0 0
  %5192 = vmatpush2.bf16.msra.mxu0 %v5126
  %5193 = vmatprep.subr.bf16.mxu0 0
  %5194 = vmatpush2.bf16.msra.mxu0 %v5125
  %5195 = vmatprep.subr.bf16.mxu0 0
  %5196 = vmatpush2.bf16.msra.mxu0 %v5124
  %5197 = vmatprep.subr.bf16.mxu0 0
  %5198 = vmatpush2.bf16.msra.mxu0 %v5123
  %5199 = vmatprep.subr.bf16.mxu0 0
  %5200 = vmatpush2.bf16.msra.mxu0 %v5122
  %5201 = vmatprep.subr.bf16.mxu0 0
  %5202 = vmatpush2.bf16.msra.mxu0 %v5121
  %5203 = vmatprep.subr.bf16.mxu0 0
  %5204 = vmatpush2.bf16.msra.mxu0 %v5120
  %5205 = vmatprep.subr.bf16.mxu0 0
  %5206 = vmatpush2.bf16.msra.mxu0 %v5119
  %5207 = vmatprep.mubr.bf16.mxu0 %v4068
  %5208 = vmatmul.mubr.bf16.gmra.mxu0 %v4067
  %v5209 = vpop.f32.mrf.mxu0
  %v5210 = vadd.f32 %v4946, %v5209
  %v5211 = vpop.f32.mrf.mxu0
  %v5212 = vpop.f32.mrf.mxu0
  %v5213 = vadd.f32 %v4949, %v5212
  %v5214 = vpop.f32.mrf.mxu0
  %5215 = vmatprep.mubr.bf16.mxu0 %v4072
  %5216 = vmatmul.mubr.bf16.gmra.mxu0 %v4071
  %v5217 = vpop.f32.mrf.mxu0
  %v5218 = vadd.f32 %v4954, %v5217
  %v5219 = vpop.f32.mrf.mxu0
  %v5220 = vpop.f32.mrf.mxu0
  %v5221 = vadd.f32 %v4957, %v5220
  %v5222 = vpop.f32.mrf.mxu0
  %5223 = vmatprep.mubr.bf16.mxu0 %v4076
  %5224 = vmatmul.mubr.bf16.gmra.mxu0 %v4075
  %v5225 = vpop.f32.mrf.mxu0
  %v5226 = vadd.f32 %v4962, %v5225
  %v5227 = vpop.f32.mrf.mxu0
  %v5228 = vpop.f32.mrf.mxu0
  %v5229 = vadd.f32 %v4965, %v5228
  %v5230 = vpop.f32.mrf.mxu0
  %5231 = vmatprep.mubr.bf16.mxu0 %v4080
  %5232 = vmatmul.mubr.bf16.gmra.mxu0 %v4079
  %v5233 = vpop.f32.mrf.mxu0
  %v5234 = vadd.f32 %v4970, %v5233
  %v5235 = vpop.f32.mrf.mxu0
  %v5236 = vpop.f32.mrf.mxu0
  %v5237 = vadd.f32 %v4973, %v5236
  %v5238 = vpop.f32.mrf.mxu0
  %5239 = vmatprep.mubr.bf16.mxu0 %v4084
  %5240 = vmatmul.mubr.bf16.gmra.mxu0 %v4083
  %v5241 = vpop.f32.mrf.mxu0
  %v5242 = vadd.f32 %v4978, %v5241
  %v5243 = vpop.f32.mrf.mxu0
  %v5244 = vpop.f32.mrf.mxu0
  %v5245 = vpop.f32.mrf.mxu0
  %5246 = vdwg.mxu0
  %5247 = vmatprep.subr.bf16.mxu0 0
  %5248 = vmatpush1.bf16.msra.mxu0 %v5134
  %5249 = vmatprep.subr.bf16.mxu0 0
  %5250 = vmatpush1.bf16.msra.mxu0 %v5133
  %5251 = vmatprep.subr.bf16.mxu0 0
  %5252 = vmatpush1.bf16.msra.mxu0 %v5132
  %5253 = vmatprep.subr.bf16.mxu0 0
  %5254 = vmatpush1.bf16.msra.mxu0 %v5131
  %5255 = vmatprep.subr.bf16.mxu0 0
  %5256 = vmatpush1.bf16.msra.mxu0 %v5130
  %5257 = vmatprep.subr.bf16.mxu0 0
  %5258 = vmatpush1.bf16.msra.mxu0 %v5129
  %5259 = vmatprep.subr.bf16.mxu0 0
  %5260 = vmatpush1.bf16.msra.mxu0 %v5128
  %5261 = vmatprep.subr.bf16.mxu0 0
  %5262 = vmatpush1.bf16.msra.mxu0 %v5127
  %5263 = vmatprep.subr.bf16.mxu0 0
  %5264 = vmatpush2.bf16.msra.mxu0 %v5142
  %5265 = vmatprep.subr.bf16.mxu0 0
  %5266 = vmatpush2.bf16.msra.mxu0 %v5141
  %5267 = vmatprep.subr.bf16.mxu0 0
  %5268 = vmatpush2.bf16.msra.mxu0 %v5140
  %5269 = vmatprep.subr.bf16.mxu0 0
  %5270 = vmatpush2.bf16.msra.mxu0 %v5139
  %5271 = vmatprep.subr.bf16.mxu0 0
  %5272 = vmatpush2.bf16.msra.mxu0 %v5138
  %5273 = vmatprep.subr.bf16.mxu0 0
  %5274 = vmatpush2.bf16.msra.mxu0 %v5137
  %5275 = vmatprep.subr.bf16.mxu0 0
  %5276 = vmatpush2.bf16.msra.mxu0 %v5136
  %5277 = vmatprep.subr.bf16.mxu0 0
  %5278 = vmatpush2.bf16.msra.mxu0 %v5135
  %5279 = vmatprep.mubr.bf16.mxu0 %v4070
  %5280 = vmatmul.mubr.bf16.gmra.mxu0 %v4069
  %v5281 = vpop.f32.mrf.mxu0
  %v5282 = vadd.f32 %v5210, %v5281
  %v5283 = vpop.f32.mrf.mxu0
  %v5284 = vpop.f32.mrf.mxu0
  %v5285 = vadd.f32 %v5213, %v5284
  %v5286 = vpop.f32.mrf.mxu0
  %5287 = vmatprep.mubr.bf16.mxu0 %v4074
  %5288 = vmatmul.mubr.bf16.gmra.mxu0 %v4073
  %v5289 = vpop.f32.mrf.mxu0
  %v5290 = vadd.f32 %v5218, %v5289
  %v5291 = vpop.f32.mrf.mxu0
  %v5292 = vpop.f32.mrf.mxu0
  %v5293 = vadd.f32 %v5221, %v5292
  %v5294 = vpop.f32.mrf.mxu0
  %5295 = vmatprep.mubr.bf16.mxu0 %v4078
  %5296 = vmatmul.mubr.bf16.gmra.mxu0 %v4077
  %v5297 = vpop.f32.mrf.mxu0
  %v5298 = vadd.f32 %v5226, %v5297
  %v5299 = vpop.f32.mrf.mxu0
  %v5300 = vpop.f32.mrf.mxu0
  %v5301 = vadd.f32 %v5229, %v5300
  %v5302 = vpop.f32.mrf.mxu0
  %5303 = vmatprep.mubr.bf16.mxu0 %v4082
  %5304 = vmatmul.mubr.bf16.gmra.mxu0 %v4081
  %v5305 = vpop.f32.mrf.mxu0
  %v5306 = vadd.f32 %v5234, %v5305
  %v5307 = vpop.f32.mrf.mxu0
  %v5308 = vpop.f32.mrf.mxu0
  %v5309 = vadd.f32 %v5237, %v5308
  %v5310 = vpop.f32.mrf.mxu0
  %5311 = vmatprep.mubr.bf16.mxu0 %v4086
  %5312 = vmatmul.mubr.bf16.gmra.mxu0 %v4085
  %v5313 = vpop.f32.mrf.mxu0
  %v5314 = vadd.f32 %v5242, %v5313
  %v5315 = vpop.f32.mrf.mxu0
  %v5316 = vpop.f32.mrf.mxu0
  %v5317 = vpop.f32.mrf.mxu0
  %5318 = vdwg.mxu0
  %v5319 = vld [vmem:[%s43 + $0x20] sm:$0xff]
  %v5320 = vld [vmem:[%s43 + $0x28] sm:$0xff]
  %v5321 = vld [vmem:[%s43 + $0x60] sm:$0xff]
  %v5322 = vld [vmem:[%s43 + $0x68] sm:$0xff]
  %v5323 = vld [vmem:[%s43 + $0xa0] sm:$0xff]
  %v5324 = vld [vmem:[%s43 + $0xa8] sm:$0xff]
  %v5325 = vld [vmem:[%s43 + $0xe0] sm:$0xff]
  %v5326 = vld [vmem:[%s43 + $0xe8] sm:$0xff]
  %v5327 = vld [vmem:[%s43 + $0x120] sm:$0xff]
  %v5328 = vld [vmem:[%s43 + $0x128] sm:$0xff]
  %v5329 = vld [vmem:[%s43 + $0x160] sm:$0xff]
  %v5330 = vld [vmem:[%s43 + $0x168] sm:$0xff]
  %v5331 = vld [vmem:[%s43 + $0x1a0] sm:$0xff]
  %v5332 = vld [vmem:[%s43 + $0x1a8] sm:$0xff]
  %v5333 = vld [vmem:[%s43 + $0x1e0] sm:$0xff]
  %v5334 = vld [vmem:[%s43 + $0x1e8] sm:$0xff]
  %v5335 = vld [vmem:[%s43 + $0x220] sm:$0xff]
  %v5336 = vld [vmem:[%s43 + $0x228] sm:$0xff]
  %v5337 = vld [vmem:[%s43 + $0x260] sm:$0xff]
  %v5338 = vld [vmem:[%s43 + $0x268] sm:$0xff]
  %v5339 = vld [vmem:[%s43 + $0x2a0] sm:$0xff]
  %v5340 = vld [vmem:[%s43 + $0x2a8] sm:$0xff]
  %v5341 = vld [vmem:[%s43 + $0x2e0] sm:$0xff]
  %v5342 = vld [vmem:[%s43 + $0x2e8] sm:$0xff]
  %v5343 = vld [vmem:[%s43 + $0x320] sm:$0xff]
  %v5344 = vld [vmem:[%s43 + $0x328] sm:$0xff]
  %v5345 = vld [vmem:[%s43 + $0x360] sm:$0xff]
  %v5346 = vld [vmem:[%s43 + $0x368] sm:$0xff]
  %v5347 = vld [vmem:[%s43 + $0x3a0] sm:$0xff]
  %v5348 = vld [vmem:[%s43 + $0x3a8] sm:$0xff]
  %v5349 = vld [vmem:[%s43 + $0x3e0] sm:$0xff]
  %v5350 = vld [vmem:[%s43 + $0x3e8] sm:$0xff]
  %v5351 = vld [vmem:[%s45 + $0x8] sm:$0xf]
  %v5353 = vlaneseq
  %v5354 = vshrl.u32 %v5353, 7
  %v5355 = vsub.s32 0, %v5354
  %v5356 = vrot.slane %v5351, %v5355
  %v5357 = vlaneseq
  %v5358 = vshrl.u32 %v5357, 7
  %v5359 = vsub.s32 1, %v5358
  %v5360 = vrot.slane %v5351, %v5359
  %v5361 = vlaneseq
  %v5362 = vshrl.u32 %v5361, 7
  %v5363 = vsub.s32 2, %v5362
  %v5364 = vrot.slane %v5351, %v5363
  %v5365 = vlaneseq
  %v5366 = vshrl.u32 %v5365, 7
  %v5367 = vsub.s32 3, %v5366
  %v5368 = vrot.slane %v5351, %v5367
  %v5405 = vunpack.c.l.b16 %v5319
  %v5406 = vunpack.c.h.b16 %v5319
  %v5407 = vunpack.c.l.b16 %v5320
  %v5408 = vunpack.c.h.b16 %v5320
  %v5409 = vunpack.c.l.b16 %v5321
  %v5410 = vunpack.c.h.b16 %v5321
  %v5411 = vunpack.c.l.b16 %v5322
  %v5412 = vunpack.c.h.b16 %v5322
  %v5413 = vunpack.c.l.b16 %v5323
  %v5414 = vunpack.c.h.b16 %v5323
  %v5415 = vunpack.c.l.b16 %v5324
  %v5416 = vunpack.c.h.b16 %v5324
  %v5417 = vunpack.c.l.b16 %v5325
  %v5418 = vunpack.c.h.b16 %v5325
  %v5419 = vunpack.c.l.b16 %v5326
  %v5420 = vunpack.c.h.b16 %v5326
  %v5421 = vunpack.c.l.b16 %v5327
  %v5422 = vunpack.c.h.b16 %v5327
  %v5423 = vunpack.c.l.b16 %v5328
  %v5424 = vunpack.c.h.b16 %v5328
  %v5425 = vunpack.c.l.b16 %v5329
  %v5426 = vunpack.c.h.b16 %v5329
  %v5427 = vunpack.c.l.b16 %v5330
  %v5428 = vunpack.c.h.b16 %v5330
  %v5429 = vunpack.c.l.b16 %v5331
  %v5430 = vunpack.c.h.b16 %v5331
  %v5431 = vunpack.c.l.b16 %v5332
  %v5432 = vunpack.c.h.b16 %v5332
  %v5433 = vunpack.c.l.b16 %v5333
  %v5434 = vunpack.c.h.b16 %v5333
  %v5435 = vunpack.c.l.b16 %v5334
  %v5436 = vunpack.c.h.b16 %v5334
  %v5437 = vunpack.c.l.b16 %v5335
  %v5438 = vunpack.c.h.b16 %v5335
  %v5439 = vunpack.c.l.b16 %v5336
  %v5440 = vunpack.c.h.b16 %v5336
  %v5441 = vunpack.c.l.b16 %v5337
  %v5442 = vunpack.c.h.b16 %v5337
  %v5443 = vunpack.c.l.b16 %v5338
  %v5444 = vunpack.c.h.b16 %v5338
  %v5445 = vunpack.c.l.b16 %v5339
  %v5446 = vunpack.c.h.b16 %v5339
  %v5447 = vunpack.c.l.b16 %v5340
  %v5448 = vunpack.c.h.b16 %v5340
  %v5449 = vunpack.c.l.b16 %v5341
  %v5450 = vunpack.c.h.b16 %v5341
  %v5451 = vunpack.c.l.b16 %v5342
  %v5452 = vunpack.c.h.b16 %v5342
  %v5453 = vunpack.c.l.b16 %v5343
  %v5454 = vunpack.c.h.b16 %v5343
  %v5455 = vunpack.c.l.b16 %v5344
  %v5456 = vunpack.c.h.b16 %v5344
  %v5457 = vunpack.c.l.b16 %v5345
  %v5458 = vunpack.c.h.b16 %v5345
  %v5459 = vunpack.c.l.b16 %v5346
  %v5460 = vunpack.c.h.b16 %v5346
  %v5461 = vunpack.c.l.b16 %v5347
  %v5462 = vunpack.c.h.b16 %v5347
  %v5463 = vunpack.c.l.b16 %v5348
  %v5464 = vunpack.c.h.b16 %v5348
  %v5465 = vunpack.c.l.b16 %v5349
  %v5466 = vunpack.c.h.b16 %v5349
  %v5467 = vunpack.c.l.b16 %v5350
  %v5468 = vunpack.c.h.b16 %v5350
  %v5469 = vpack.c.b16 %v5409, %v5405
  %v5470 = vpack.c.b16 %v5410, %v5406
  %v5471 = vpack.c.b16 %v5411, %v5407
  %v5472 = vpack.c.b16 %v5412, %v5408
  %v5473 = vpack.c.b16 %v5417, %v5413
  %v5474 = vpack.c.b16 %v5418, %v5414
  %v5475 = vpack.c.b16 %v5419, %v5415
  %v5476 = vpack.c.b16 %v5420, %v5416
  %v5477 = vpack.c.b16 %v5425, %v5421
  %v5478 = vpack.c.b16 %v5426, %v5422
  %v5479 = vpack.c.b16 %v5427, %v5423
  %v5480 = vpack.c.b16 %v5428, %v5424
  %v5481 = vpack.c.b16 %v5433, %v5429
  %v5482 = vpack.c.b16 %v5434, %v5430
  %v5483 = vpack.c.b16 %v5435, %v5431
  %v5484 = vpack.c.b16 %v5436, %v5432
  %v5485 = vpack.c.b16 %v5441, %v5437
  %v5486 = vpack.c.b16 %v5442, %v5438
  %v5487 = vpack.c.b16 %v5443, %v5439
  %v5488 = vpack.c.b16 %v5444, %v5440
  %v5489 = vpack.c.b16 %v5449, %v5445
  %v5490 = vpack.c.b16 %v5450, %v5446
  %v5491 = vpack.c.b16 %v5451, %v5447
  %v5492 = vpack.c.b16 %v5452, %v5448
  %v5493 = vpack.c.b16 %v5457, %v5453
  %v5494 = vpack.c.b16 %v5458, %v5454
  %v5495 = vpack.c.b16 %v5459, %v5455
  %v5496 = vpack.c.b16 %v5460, %v5456
  %v5497 = vpack.c.b16 %v5465, %v5461
  %v5498 = vpack.c.b16 %v5466, %v5462
  %v5499 = vpack.c.b16 %v5467, %v5463
  %v5500 = vpack.c.b16 %v5468, %v5464
  %5533 = vmatprep.subr.bf16.mxu0 %v5498
  %5534 = vmatpush1.bf16.msra.mxu0 %v5497
  %5535 = vmatprep.subr.bf16.mxu0 %v5494
  %5536 = vmatpush1.bf16.msra.mxu0 %v5493
  %5537 = vmatprep.subr.bf16.mxu0 %v5490
  %5538 = vmatpush1.bf16.msra.mxu0 %v5489
  %5539 = vmatprep.subr.bf16.mxu0 %v5486
  %5540 = vmatpush1.bf16.msra.mxu0 %v5485
  %5541 = vmatprep.subr.bf16.mxu0 %v5482
  %5542 = vmatpush1.bf16.msra.mxu0 %v5481
  %5543 = vmatprep.subr.bf16.mxu0 %v5478
  %5544 = vmatpush1.bf16.msra.mxu0 %v5477
  %5545 = vmatprep.subr.bf16.mxu0 %v5474
  %5546 = vmatpush1.bf16.msra.mxu0 %v5473
  %5547 = vmatprep.subr.bf16.mxu0 %v5470
  %5548 = vmatpush1.bf16.msra.mxu0 %v5469
  %5549 = vmatprep.subr.bf16.mxu0 0
  %5550 = vmatpush2.bf16.msra.mxu0 0
  %5551 = vmatprep.subr.bf16.mxu0 0
  %5552 = vmatpush2.bf16.msra.mxu0 0
  %5553 = vmatprep.subr.bf16.mxu0 0
  %5554 = vmatpush2.bf16.msra.mxu0 0
  %5555 = vmatprep.subr.bf16.mxu0 0
  %5556 = vmatpush2.bf16.msra.mxu0 0
  %5557 = vmatprep.subr.bf16.mxu0 0
  %5558 = vmatpush2.bf16.msra.mxu0 0
  %5559 = vmatprep.subr.bf16.mxu0 0
  %5560 = vmatpush2.bf16.msra.mxu0 0
  %5561 = vmatprep.subr.bf16.mxu0 0
  %5562 = vmatpush2.bf16.msra.mxu0 0
  %5563 = vmatprep.subr.bf16.mxu0 0
  %5564 = vmatpush2.bf16.msra.mxu0 0
  %5565 = vmatprep.mubr.bf16.mxu0 0
  %5566 = vmatmul.mubr.bf16.gmra.mxu0 %v3650
  %v5567 = vpop.f32.mrf.mxu0
  %v5568 = vadd.f32 %v5356, %v5567
  %v5569 = vpop.f32.mrf.mxu0
  %v5570 = vadd.f32 %v5360, %v5569
  %v5571 = vpop.f32.mrf.mxu0
  %v5572 = vadd.f32 %v5356, %v5571
  %v5573 = vpop.f32.mrf.mxu0
  %v5574 = vadd.f32 %v5360, %v5573
  %5575 = vmatprep.mubr.bf16.mxu0 0
  %5576 = vmatmul.mubr.bf16.gmra.mxu0 %v3651
  %v5577 = vpop.f32.mrf.mxu0
  %v5578 = vadd.f32 %v5356, %v5577
  %v5579 = vpop.f32.mrf.mxu0
  %v5580 = vadd.f32 %v5360, %v5579
  %v5581 = vpop.f32.mrf.mxu0
  %v5582 = vadd.f32 %v5356, %v5581
  %v5583 = vpop.f32.mrf.mxu0
  %v5584 = vadd.f32 %v5360, %v5583
  %5585 = vmatprep.mubr.bf16.mxu0 0
  %5586 = vmatmul.mubr.bf16.gmra.mxu0 %v3652
  %v5587 = vpop.f32.mrf.mxu0
  %v5588 = vadd.f32 %v5356, %v5587
  %v5589 = vpop.f32.mrf.mxu0
  %v5590 = vadd.f32 %v5360, %v5589
  %v5591 = vpop.f32.mrf.mxu0
  %v5592 = vadd.f32 %v5356, %v5591
  %v5593 = vpop.f32.mrf.mxu0
  %v5594 = vadd.f32 %v5360, %v5593
  %5595 = vmatprep.mubr.bf16.mxu0 0
  %5596 = vmatmul.mubr.bf16.gmra.mxu0 %v3653
  %v5597 = vpop.f32.mrf.mxu0
  %v5598 = vadd.f32 %v5356, %v5597
  %v5599 = vpop.f32.mrf.mxu0
  %v5600 = vadd.f32 %v5360, %v5599
  %v5601 = vpop.f32.mrf.mxu0
  %v5602 = vadd.f32 %v5356, %v5601
  %v5603 = vpop.f32.mrf.mxu0
  %v5604 = vadd.f32 %v5360, %v5603
  %5605 = vmatprep.mubr.bf16.mxu0 0
  %5606 = vmatmul.mubr.bf16.gmra.mxu0 %v3654
  %v5607 = vpop.f32.mrf.mxu0
  %v5608 = vadd.f32 %v5356, %v5607
  %v5609 = vpop.f32.mrf.mxu0
  %v5610 = vadd.f32 %v5360, %v5609
  %v5611 = vpop.f32.mrf.mxu0
  %v5612 = vpop.f32.mrf.mxu0
  %5613 = vdwg.mxu0
  %5614 = vmatprep.subr.bf16.mxu0 %v5500
  %5615 = vmatpush1.bf16.msra.mxu0 %v5499
  %5616 = vmatprep.subr.bf16.mxu0 %v5496
  %5617 = vmatpush1.bf16.msra.mxu0 %v5495
  %5618 = vmatprep.subr.bf16.mxu0 %v5492
  %5619 = vmatpush1.bf16.msra.mxu0 %v5491
  %5620 = vmatprep.subr.bf16.mxu0 %v5488
  %5621 = vmatpush1.bf16.msra.mxu0 %v5487
  %5622 = vmatprep.subr.bf16.mxu0 %v5484
  %5623 = vmatpush1.bf16.msra.mxu0 %v5483
  %5624 = vmatprep.subr.bf16.mxu0 %v5480
  %5625 = vmatpush1.bf16.msra.mxu0 %v5479
  %5626 = vmatprep.subr.bf16.mxu0 %v5476
  %5627 = vmatpush1.bf16.msra.mxu0 %v5475
  %5628 = vmatprep.subr.bf16.mxu0 %v5472
  %5629 = vmatpush1.bf16.msra.mxu0 %v5471
  %5630 = vmatprep.subr.bf16.mxu0 0
  %5631 = vmatpush2.bf16.msra.mxu0 0
  %5632 = vmatprep.subr.bf16.mxu0 0
  %5633 = vmatpush2.bf16.msra.mxu0 0
  %5634 = vmatprep.subr.bf16.mxu0 0
  %5635 = vmatpush2.bf16.msra.mxu0 0
  %5636 = vmatprep.subr.bf16.mxu0 0
  %5637 = vmatpush2.bf16.msra.mxu0 0
  %5638 = vmatprep.subr.bf16.mxu0 0
  %5639 = vmatpush2.bf16.msra.mxu0 0
  %5640 = vmatprep.subr.bf16.mxu0 0
  %5641 = vmatpush2.bf16.msra.mxu0 0
  %5642 = vmatprep.subr.bf16.mxu0 0
  %5643 = vmatpush2.bf16.msra.mxu0 0
  %5644 = vmatprep.subr.bf16.mxu0 0
  %5645 = vmatpush2.bf16.msra.mxu0 0
  %5646 = vmatprep.mubr.bf16.mxu0 0
  %5647 = vmatmul.mubr.bf16.gmra.mxu0 %v3650
  %v5648 = vpop.f32.mrf.mxu0
  %v5649 = vadd.f32 %v5364, %v5648
  %v5650 = vpop.f32.mrf.mxu0
  %v5651 = vadd.f32 %v5368, %v5650
  %v5652 = vpop.f32.mrf.mxu0
  %v5653 = vadd.f32 %v5364, %v5652
  %v5654 = vpop.f32.mrf.mxu0
  %v5655 = vadd.f32 %v5368, %v5654
  %5656 = vmatprep.mubr.bf16.mxu0 0
  %5657 = vmatmul.mubr.bf16.gmra.mxu0 %v3651
  %v5658 = vpop.f32.mrf.mxu0
  %v5659 = vadd.f32 %v5364, %v5658
  %v5660 = vpop.f32.mrf.mxu0
  %v5661 = vadd.f32 %v5368, %v5660
  %v5662 = vpop.f32.mrf.mxu0
  %v5663 = vadd.f32 %v5364, %v5662
  %v5664 = vpop.f32.mrf.mxu0
  %v5665 = vadd.f32 %v5368, %v5664
  %5666 = vmatprep.mubr.bf16.mxu0 0
  %5667 = vmatmul.mubr.bf16.gmra.mxu0 %v3652
  %v5668 = vpop.f32.mrf.mxu0
  %v5669 = vadd.f32 %v5364, %v5668
  %v5670 = vpop.f32.mrf.mxu0
  %v5671 = vadd.f32 %v5368, %v5670
  %v5672 = vpop.f32.mrf.mxu0
  %v5673 = vadd.f32 %v5364, %v5672
  %v5674 = vpop.f32.mrf.mxu0
  %v5675 = vadd.f32 %v5368, %v5674
  %5676 = vmatprep.mubr.bf16.mxu0 0
  %5677 = vmatmul.mubr.bf16.gmra.mxu0 %v3653
  %v5678 = vpop.f32.mrf.mxu0
  %v5679 = vadd.f32 %v5364, %v5678
  %v5680 = vpop.f32.mrf.mxu0
  %v5681 = vadd.f32 %v5368, %v5680
  %v5682 = vpop.f32.mrf.mxu0
  %v5683 = vadd.f32 %v5364, %v5682
  %v5684 = vpop.f32.mrf.mxu0
  %v5685 = vadd.f32 %v5368, %v5684
  %5686 = vmatprep.mubr.bf16.mxu0 0
  %5687 = vmatmul.mubr.bf16.gmra.mxu0 %v3654
  %v5688 = vpop.f32.mrf.mxu0
  %v5689 = vadd.f32 %v5364, %v5688
  %v5690 = vpop.f32.mrf.mxu0
  %v5691 = vadd.f32 %v5368, %v5690
  %v5692 = vpop.f32.mrf.mxu0
  %v5693 = vpop.f32.mrf.mxu0
  %5694 = vdwg.mxu0
  %v5695 = vmax.f32 %v5568, 0.0
  %v5696 = vmax.f32 %v5570, 0.0
  %v5697 = vmax.f32 %v5649, 0.0
  %v5698 = vmax.f32 %v5651, 0.0
  %v5699 = vmax.f32 %v5572, 0.0
  %v5700 = vmax.f32 %v5574, 0.0
  %v5701 = vmax.f32 %v5653, 0.0
  %v5702 = vmax.f32 %v5655, 0.0
  %v5703 = vmax.f32 %v5578, 0.0
  %v5704 = vmax.f32 %v5580, 0.0
  %v5705 = vmax.f32 %v5659, 0.0
  %v5706 = vmax.f32 %v5661, 0.0
  %v5707 = vmax.f32 %v5582, 0.0
  %v5708 = vmax.f32 %v5584, 0.0
  %v5709 = vmax.f32 %v5663, 0.0
  %v5710 = vmax.f32 %v5665, 0.0
  %v5711 = vmax.f32 %v5588, 0.0
  %v5712 = vmax.f32 %v5590, 0.0
  %v5713 = vmax.f32 %v5669, 0.0
  %v5714 = vmax.f32 %v5671, 0.0
  %v5715 = vmax.f32 %v5592, 0.0
  %v5716 = vmax.f32 %v5594, 0.0
  %v5717 = vmax.f32 %v5673, 0.0
  %v5718 = vmax.f32 %v5675, 0.0
  %v5719 = vmax.f32 %v5598, 0.0
  %v5720 = vmax.f32 %v5600, 0.0
  %v5721 = vmax.f32 %v5679, 0.0
  %v5722 = vmax.f32 %v5681, 0.0
  %v5723 = vmax.f32 %v5602, 0.0
  %v5724 = vmax.f32 %v5604, 0.0
  %v5725 = vmax.f32 %v5683, 0.0
  %v5726 = vmax.f32 %v5685, 0.0
  %v5727 = vmax.f32 %v5608, 0.0
  %v5728 = vmax.f32 %v5610, 0.0
  %v5729 = vmax.f32 %v5689, 0.0
  %v5730 = vmax.f32 %v5691, 0.0
  %v5731 = vpack.c.bf16 %v5699, %v5695
  %v5732 = vpack.c.bf16 %v5700, %v5696
  %v5733 = vpack.c.bf16 %v5701, %v5697
  %v5734 = vpack.c.bf16 %v5702, %v5698
  %v5735 = vpack.c.bf16 %v5707, %v5703
  %v5736 = vpack.c.bf16 %v5708, %v5704
  %v5737 = vpack.c.bf16 %v5709, %v5705
  %v5738 = vpack.c.bf16 %v5710, %v5706
  %v5739 = vpack.c.bf16 %v5715, %v5711
  %v5740 = vpack.c.bf16 %v5716, %v5712
  %v5741 = vpack.c.bf16 %v5717, %v5713
  %v5742 = vpack.c.bf16 %v5718, %v5714
  %v5743 = vpack.c.bf16 %v5723, %v5719
  %v5744 = vpack.c.bf16 %v5724, %v5720
  %v5745 = vpack.c.bf16 %v5725, %v5721
  %v5746 = vpack.c.bf16 %v5726, %v5722
  %v5747 = vpack.c.bf16 %v5727, %v5727
  %v5748 = vpack.c.bf16 %v5728, %v5728
  %v5749 = vpack.c.bf16 %v5729, %v5729
  %v5750 = vpack.c.bf16 %v5730, %v5730
  %v5751 = vld [vmem:[%s47 + $0x200] sm:$0xf]
  %v5752 = vld [vmem:[%s47 + $0x204] sm:$0xf]
  %v5753 = vld [vmem:[%s47 + $0x208] sm:$0xf]
  %v5754 = vld [vmem:[%s47 + $0x20c] sm:$0xf]
  %v5755 = vld [vmem:[%s47 + $0x210] sm:$0xf]
  %v5756 = vld [vmem:[%s47 + $0x214] sm:$0xf]
  %v5757 = vld [vmem:[%s47 + $0x218] sm:$0xf]
  %v5758 = vld [vmem:[%s47 + $0x21c] sm:$0xf]
  %v5759 = vld [vmem:[%s47 + $0x220] sm:$0xf]
  %v5760 = vld [vmem:[%s47 + $0x224] sm:$0xf]
  %v5761 = vld [vmem:[%s47 + $0x228] sm:$0xf]
  %v5762 = vld [vmem:[%s47 + $0x22c] sm:$0xf]
  %v5763 = vld [vmem:[%s47 + $0x230] sm:$0xf]
  %v5764 = vld [vmem:[%s47 + $0x234] sm:$0xf]
  %v5765 = vld [vmem:[%s47 + $0x238] sm:$0xf]
  %v5766 = vld [vmem:[%s47 + $0x23c] sm:$0xf]
  %v5767 = vld [vmem:[%s47 + $0x240] sm:$0xf]
  %v5768 = vld [vmem:[%s47 + $0x244] sm:$0xf]
  %v5769 = vld [vmem:[%s47 + $0x248] sm:$0xf]
  %v5770 = vld [vmem:[%s47 + $0x24c] sm:$0xf]
  %v5771 = vld [vmem:[%s47 + $0x250] sm:$0xf]
  %v5772 = vld [vmem:[%s47 + $0x254] sm:$0xf]
  %v5773 = vld [vmem:[%s47 + $0x258] sm:$0xf]
  %v5774 = vld [vmem:[%s47 + $0x25c] sm:$0xf]
  %v5775 = vld [vmem:[%s47 + $0x260] sm:$0xf]
  %v5776 = vld [vmem:[%s47 + $0x264] sm:$0xf]
  %v5777 = vld [vmem:[%s47 + $0x268] sm:$0xf]
  %v5778 = vld [vmem:[%s47 + $0x26c] sm:$0xf]
  %v5779 = vld [vmem:[%s47 + $0x270] sm:$0xf]
  %v5780 = vld [vmem:[%s47 + $0x274] sm:$0xf]
  %v5781 = vld [vmem:[%s47 + $0x278] sm:$0xf]
  %v5782 = vld [vmem:[%s47 + $0x27c] sm:$0xf]
  %v5783 = vld [vmem:[%s47 + $0x280] sm:$0xf]
  %v5784 = vld [vmem:[%s47 + $0x284] sm:$0xf]
  %v5785 = vld [vmem:[%s47 + $0x288] sm:$0xf]
  %v5786 = vld [vmem:[%s47 + $0x28c] sm:$0xf]
  %v5787 = vld [vmem:[%s47 + $0x290] sm:$0xf]
  %v5788 = vld [vmem:[%s47 + $0x294] sm:$0xf]
  %v5789 = vld [vmem:[%s47 + $0x298] sm:$0xf]
  %v5790 = vld [vmem:[%s47 + $0x29c] sm:$0xf]
  %v5791 = vld [vmem:[%s47 + $0x2a0] sm:$0xf]
  %v5792 = vld [vmem:[%s47 + $0x2a4] sm:$0xf]
  %v5793 = vld [vmem:[%s47 + $0x2a8] sm:$0xf]
  %v5794 = vld [vmem:[%s47 + $0x2ac] sm:$0xf]
  %v5795 = vld [vmem:[%s47 + $0x2b0] sm:$0xf]
  %v5796 = vld [vmem:[%s47 + $0x2b4] sm:$0xf]
  %v5797 = vld [vmem:[%s47 + $0x2b8] sm:$0xf]
  %v5798 = vld [vmem:[%s47 + $0x2bc] sm:$0xf]
  %v5799 = vld [vmem:[%s47 + $0x2c0] sm:$0xf]
  %v5800 = vld [vmem:[%s47 + $0x2c4] sm:$0xf]
  %v5801 = vld [vmem:[%s47 + $0x2c8] sm:$0xf]
  %v5802 = vld [vmem:[%s47 + $0x2cc] sm:$0xf]
  %v5803 = vld [vmem:[%s47 + $0x2d0] sm:$0xf]
  %v5804 = vld [vmem:[%s47 + $0x2d4] sm:$0xf]
  %v5805 = vld [vmem:[%s47 + $0x2d8] sm:$0xf]
  %v5806 = vld [vmem:[%s47 + $0x2dc] sm:$0xf]
  %v5807 = vld [vmem:[%s47 + $0x2e0] sm:$0xf]
  %v5808 = vld [vmem:[%s47 + $0x2e4] sm:$0xf]
  %v5809 = vld [vmem:[%s47 + $0x2e8] sm:$0xf]
  %v5810 = vld [vmem:[%s47 + $0x2ec] sm:$0xf]
  %v5811 = vld [vmem:[%s47 + $0x2f0] sm:$0xf]
  %v5812 = vld [vmem:[%s47 + $0x2f4] sm:$0xf]
  %v5813 = vld [vmem:[%s47 + $0x2f8] sm:$0xf]
  %v5814 = vld [vmem:[%s47 + $0x2fc] sm:$0xf]
  %v5879 = vunpack.c.l.b16 %v5751
  %v5880 = vunpack.c.l.b16 %v5752
  %v5881 = vunpack.c.l.b16 %v5753
  %v5882 = vunpack.c.l.b16 %v5754
  %v5883 = vunpack.c.l.b16 %v5755
  %v5884 = vunpack.c.l.b16 %v5756
  %v5885 = vunpack.c.l.b16 %v5757
  %v5886 = vunpack.c.l.b16 %v5758
  %v5887 = vunpack.c.l.b16 %v5759
  %v5888 = vunpack.c.l.b16 %v5760
  %v5889 = vunpack.c.l.b16 %v5761
  %v5890 = vunpack.c.l.b16 %v5762
  %v5891 = vunpack.c.l.b16 %v5763
  %v5892 = vunpack.c.l.b16 %v5764
  %v5893 = vunpack.c.l.b16 %v5765
  %v5894 = vunpack.c.l.b16 %v5766
  %v5895 = vunpack.c.l.b16 %v5767
  %v5896 = vunpack.c.l.b16 %v5768
  %v5897 = vunpack.c.l.b16 %v5769
  %v5898 = vunpack.c.l.b16 %v5770
  %v5899 = vunpack.c.l.b16 %v5771
  %v5900 = vunpack.c.l.b16 %v5772
  %v5901 = vunpack.c.l.b16 %v5773
  %v5902 = vunpack.c.l.b16 %v5774
  %v5903 = vunpack.c.l.b16 %v5775
  %v5904 = vunpack.c.l.b16 %v5776
  %v5905 = vunpack.c.l.b16 %v5777
  %v5906 = vunpack.c.l.b16 %v5778
  %v5907 = vunpack.c.l.b16 %v5779
  %v5908 = vunpack.c.l.b16 %v5780
  %v5909 = vunpack.c.l.b16 %v5781
  %v5910 = vunpack.c.l.b16 %v5782
  %v5911 = vunpack.c.l.b16 %v5783
  %v5912 = vunpack.c.l.b16 %v5784
  %v5913 = vunpack.c.l.b16 %v5785
  %v5914 = vunpack.c.l.b16 %v5786
  %v5915 = vunpack.c.l.b16 %v5787
  %v5916 = vunpack.c.l.b16 %v5788
  %v5917 = vunpack.c.l.b16 %v5789
  %v5918 = vunpack.c.l.b16 %v5790
  %v5919 = vunpack.c.l.b16 %v5791
  %v5920 = vunpack.c.l.b16 %v5792
  %v5921 = vunpack.c.l.b16 %v5793
  %v5922 = vunpack.c.l.b16 %v5794
  %v5923 = vunpack.c.l.b16 %v5795
  %v5924 = vunpack.c.l.b16 %v5796
  %v5925 = vunpack.c.l.b16 %v5797
  %v5926 = vunpack.c.l.b16 %v5798
  %v5927 = vunpack.c.l.b16 %v5799
  %v5928 = vunpack.c.l.b16 %v5800
  %v5929 = vunpack.c.l.b16 %v5801
  %v5930 = vunpack.c.l.b16 %v5802
  %v5931 = vunpack.c.l.b16 %v5803
  %v5932 = vunpack.c.l.b16 %v5804
  %v5933 = vunpack.c.l.b16 %v5805
  %v5934 = vunpack.c.l.b16 %v5806
  %v5935 = vunpack.c.l.b16 %v5807
  %v5936 = vunpack.c.l.b16 %v5808
  %v5937 = vunpack.c.l.b16 %v5809
  %v5938 = vunpack.c.l.b16 %v5810
  %v5939 = vunpack.c.l.b16 %v5811
  %v5940 = vunpack.c.l.b16 %v5812
  %v5941 = vunpack.c.l.b16 %v5813
  %v5942 = vunpack.c.l.b16 %v5814
  %v5943 = vpack.c.b16 %v5880, %v5879
  %v5944 = vpack.c.b16 %v5882, %v5881
  %v5945 = vpack.c.b16 %v5884, %v5883
  %v5946 = vpack.c.b16 %v5886, %v5885
  %v5947 = vpack.c.b16 %v5888, %v5887
  %v5948 = vpack.c.b16 %v5890, %v5889
  %v5949 = vpack.c.b16 %v5892, %v5891
  %v5950 = vpack.c.b16 %v5894, %v5893
  %v5951 = vpack.c.b16 %v5896, %v5895
  %v5952 = vpack.c.b16 %v5898, %v5897
  %v5953 = vpack.c.b16 %v5900, %v5899
  %v5954 = vpack.c.b16 %v5902, %v5901
  %v5955 = vpack.c.b16 %v5904, %v5903
  %v5956 = vpack.c.b16 %v5906, %v5905
  %v5957 = vpack.c.b16 %v5908, %v5907
  %v5958 = vpack.c.b16 %v5910, %v5909
  %v5959 = vpack.c.b16 %v5912, %v5911
  %v5960 = vpack.c.b16 %v5914, %v5913
  %v5961 = vpack.c.b16 %v5916, %v5915
  %v5962 = vpack.c.b16 %v5918, %v5917
  %v5963 = vpack.c.b16 %v5920, %v5919
  %v5964 = vpack.c.b16 %v5922, %v5921
  %v5965 = vpack.c.b16 %v5924, %v5923
  %v5966 = vpack.c.b16 %v5926, %v5925
  %v5967 = vpack.c.b16 %v5928, %v5927
  %v5968 = vpack.c.b16 %v5930, %v5929
  %v5969 = vpack.c.b16 %v5932, %v5931
  %v5970 = vpack.c.b16 %v5934, %v5933
  %v5971 = vpack.c.b16 %v5936, %v5935
  %v5972 = vpack.c.b16 %v5938, %v5937
  %v5973 = vpack.c.b16 %v5940, %v5939
  %v5974 = vpack.c.b16 %v5942, %v5941
  %6007 = vmatprep.subr.bf16.mxu0 0
  %6008 = vmatpush1.bf16.msra.mxu0 %v5950
  %6009 = vmatprep.subr.bf16.mxu0 0
  %6010 = vmatpush1.bf16.msra.mxu0 %v5949
  %6011 = vmatprep.subr.bf16.mxu0 0
  %6012 = vmatpush1.bf16.msra.mxu0 %v5948
  %6013 = vmatprep.subr.bf16.mxu0 0
  %6014 = vmatpush1.bf16.msra.mxu0 %v5947
  %6015 = vmatprep.subr.bf16.mxu0 0
  %6016 = vmatpush1.bf16.msra.mxu0 %v5946
  %6017 = vmatprep.subr.bf16.mxu0 0
  %6018 = vmatpush1.bf16.msra.mxu0 %v5945
  %6019 = vmatprep.subr.bf16.mxu0 0
  %6020 = vmatpush1.bf16.msra.mxu0 %v5944
  %6021 = vmatprep.subr.bf16.mxu0 0
  %6022 = vmatpush1.bf16.msra.mxu0 %v5943
  %6023 = vmatprep.subr.bf16.mxu0 0
  %6024 = vmatpush2.bf16.msra.mxu0 %v5958
  %6025 = vmatprep.subr.bf16.mxu0 0
  %6026 = vmatpush2.bf16.msra.mxu0 %v5957
  %6027 = vmatprep.subr.bf16.mxu0 0
  %6028 = vmatpush2.bf16.msra.mxu0 %v5956
  %6029 = vmatprep.subr.bf16.mxu0 0
  %6030 = vmatpush2.bf16.msra.mxu0 %v5955
  %6031 = vmatprep.subr.bf16.mxu0 0
  %6032 = vmatpush2.bf16.msra.mxu0 %v5954
  %6033 = vmatprep.subr.bf16.mxu0 0
  %6034 = vmatpush2.bf16.msra.mxu0 %v5953
  %6035 = vmatprep.subr.bf16.mxu0 0
  %6036 = vmatpush2.bf16.msra.mxu0 %v5952
  %6037 = vmatprep.subr.bf16.mxu0 0
  %6038 = vmatpush2.bf16.msra.mxu0 %v5951
  %6039 = vmatprep.mubr.bf16.mxu0 %v5732
  %6040 = vmatmul.mubr.bf16.gmra.mxu0 %v5731
  %v6041 = vpop.f32.mrf.mxu0
  %v6042 = vadd.f32 0.0, %v6041
  %v6043 = vpop.f32.mrf.mxu0
  %v6044 = vpop.f32.mrf.mxu0
  %v6045 = vadd.f32 0.0, %v6044
  %v6046 = vpop.f32.mrf.mxu0
  %6047 = vmatprep.mubr.bf16.mxu0 %v5736
  %6048 = vmatmul.mubr.bf16.gmra.mxu0 %v5735
  %v6049 = vpop.f32.mrf.mxu0
  %v6050 = vadd.f32 0.0, %v6049
  %v6051 = vpop.f32.mrf.mxu0
  %v6052 = vpop.f32.mrf.mxu0
  %v6053 = vadd.f32 0.0, %v6052
  %v6054 = vpop.f32.mrf.mxu0
  %6055 = vmatprep.mubr.bf16.mxu0 %v5740
  %6056 = vmatmul.mubr.bf16.gmra.mxu0 %v5739
  %v6057 = vpop.f32.mrf.mxu0
  %v6058 = vadd.f32 0.0, %v6057
  %v6059 = vpop.f32.mrf.mxu0
  %v6060 = vpop.f32.mrf.mxu0
  %v6061 = vadd.f32 0.0, %v6060
  %v6062 = vpop.f32.mrf.mxu0
  %6063 = vmatprep.mubr.bf16.mxu0 %v5744
  %6064 = vmatmul.mubr.bf16.gmra.mxu0 %v5743
  %v6065 = vpop.f32.mrf.mxu0
  %v6066 = vadd.f32 0.0, %v6065
  %v6067 = vpop.f32.mrf.mxu0
  %v6068 = vpop.f32.mrf.mxu0
  %v6069 = vadd.f32 0.0, %v6068
  %v6070 = vpop.f32.mrf.mxu0
  %6071 = vmatprep.mubr.bf16.mxu0 %v5748
  %6072 = vmatmul.mubr.bf16.gmra.mxu0 %v5747
  %v6073 = vpop.f32.mrf.mxu0
  %v6074 = vadd.f32 0.0, %v6073
  %v6075 = vpop.f32.mrf.mxu0
  %v6076 = vpop.f32.mrf.mxu0
  %v6077 = vpop.f32.mrf.mxu0
  %6078 = vdwg.mxu0
  %6079 = vmatprep.subr.bf16.mxu0 0
  %6080 = vmatpush1.bf16.msra.mxu0 %v5966
  %6081 = vmatprep.subr.bf16.mxu0 0
  %6082 = vmatpush1.bf16.msra.mxu0 %v5965
  %6083 = vmatprep.subr.bf16.mxu0 0
  %6084 = vmatpush1.bf16.msra.mxu0 %v5964
  %6085 = vmatprep.subr.bf16.mxu0 0
  %6086 = vmatpush1.bf16.msra.mxu0 %v5963
  %6087 = vmatprep.subr.bf16.mxu0 0
  %6088 = vmatpush1.bf16.msra.mxu0 %v5962
  %6089 = vmatprep.subr.bf16.mxu0 0
  %6090 = vmatpush1.bf16.msra.mxu0 %v5961
  %6091 = vmatprep.subr.bf16.mxu0 0
  %6092 = vmatpush1.bf16.msra.mxu0 %v5960
  %6093 = vmatprep.subr.bf16.mxu0 0
  %6094 = vmatpush1.bf16.msra.mxu0 %v5959
  %6095 = vmatprep.subr.bf16.mxu0 0
  %6096 = vmatpush2.bf16.msra.mxu0 %v5974
  %6097 = vmatprep.subr.bf16.mxu0 0
  %6098 = vmatpush2.bf16.msra.mxu0 %v5973
  %6099 = vmatprep.subr.bf16.mxu0 0
  %6100 = vmatpush2.bf16.msra.mxu0 %v5972
  %6101 = vmatprep.subr.bf16.mxu0 0
  %6102 = vmatpush2.bf16.msra.mxu0 %v5971
  %6103 = vmatprep.subr.bf16.mxu0 0
  %6104 = vmatpush2.bf16.msra.mxu0 %v5970
  %6105 = vmatprep.subr.bf16.mxu0 0
  %6106 = vmatpush2.bf16.msra.mxu0 %v5969
  %6107 = vmatprep.subr.bf16.mxu0 0
  %6108 = vmatpush2.bf16.msra.mxu0 %v5968
  %6109 = vmatprep.subr.bf16.mxu0 0
  %6110 = vmatpush2.bf16.msra.mxu0 %v5967
  %6111 = vmatprep.mubr.bf16.mxu0 %v5734
  %6112 = vmatmul.mubr.bf16.gmra.mxu0 %v5733
  %v6113 = vpop.f32.mrf.mxu0
  %v6114 = vadd.f32 %v6042, %v6113
  %v6115 = vpop.f32.mrf.mxu0
  %v6116 = vpop.f32.mrf.mxu0
  %v6117 = vadd.f32 %v6045, %v6116
  %v6118 = vpop.f32.mrf.mxu0
  %6119 = vmatprep.mubr.bf16.mxu0 %v5738
  %6120 = vmatmul.mubr.bf16.gmra.mxu0 %v5737
  %v6121 = vpop.f32.mrf.mxu0
  %v6122 = vadd.f32 %v6050, %v6121
  %v6123 = vpop.f32.mrf.mxu0
  %v6124 = vpop.f32.mrf.mxu0
  %v6125 = vadd.f32 %v6053, %v6124
  %v6126 = vpop.f32.mrf.mxu0
  %6127 = vmatprep.mubr.bf16.mxu0 %v5742
  %6128 = vmatmul.mubr.bf16.gmra.mxu0 %v5741
  %v6129 = vpop.f32.mrf.mxu0
  %v6130 = vadd.f32 %v6058, %v6129
  %v6131 = vpop.f32.mrf.mxu0
  %v6132 = vpop.f32.mrf.mxu0
  %v6133 = vadd.f32 %v6061, %v6132
  %v6134 = vpop.f32.mrf.mxu0
  %6135 = vmatprep.mubr.bf16.mxu0 %v5746
  %6136 = vmatmul.mubr.bf16.gmra.mxu0 %v5745
  %v6137 = vpop.f32.mrf.mxu0
  %v6138 = vadd.f32 %v6066, %v6137
  %v6139 = vpop.f32.mrf.mxu0
  %v6140 = vpop.f32.mrf.mxu0
  %v6141 = vadd.f32 %v6069, %v6140
  %v6142 = vpop.f32.mrf.mxu0
  %6143 = vmatprep.mubr.bf16.mxu0 %v5750
  %6144 = vmatmul.mubr.bf16.gmra.mxu0 %v5749
  %v6145 = vpop.f32.mrf.mxu0
  %v6146 = vadd.f32 %v6074, %v6145
  %v6147 = vpop.f32.mrf.mxu0
  %v6148 = vpop.f32.mrf.mxu0
  %v6149 = vpop.f32.mrf.mxu0
  %6150 = vdwg.mxu0
  %v6151 = vadd.f32 %v5282, %v6114
  %v6152 = vadd.f32 %v5285, %v6117
  %v6153 = vadd.f32 %v5290, %v6122
  %v6154 = vadd.f32 %v5293, %v6125
  %v6155 = vadd.f32 %v5298, %v6130
  %v6156 = vadd.f32 %v5301, %v6133
  %v6157 = vadd.f32 %v5306, %v6138
  %v6158 = vadd.f32 %v5309, %v6141
  %v6159 = vadd.f32 %v5314, %v6146
  %v6160 = vld [vmem:[%s43 + $0x30] sm:$0xff]
  %v6161 = vld [vmem:[%s43 + $0x38] sm:$0xff]
  %v6162 = vld [vmem:[%s43 + $0x70] sm:$0xff]
  %v6163 = vld [vmem:[%s43 + $0x78] sm:$0xff]
  %v6164 = vld [vmem:[%s43 + $0xb0] sm:$0xff]
  %v6165 = vld [vmem:[%s43 + $0xb8] sm:$0xff]
  %v6166 = vld [vmem:[%s43 + $0xf0] sm:$0xff]
  %v6167 = vld [vmem:[%s43 + $0xf8] sm:$0xff]
  %v6168 = vld [vmem:[%s43 + $0x130] sm:$0xff]
  %v6169 = vld [vmem:[%s43 + $0x138] sm:$0xff]
  %v6170 = vld [vmem:[%s43 + $0x170] sm:$0xff]
  %v6171 = vld [vmem:[%s43 + $0x178] sm:$0xff]
  %v6172 = vld [vmem:[%s43 + $0x1b0] sm:$0xff]
  %v6173 = vld [vmem:[%s43 + $0x1b8] sm:$0xff]
  %v6174 = vld [vmem:[%s43 + $0x1f0] sm:$0xff]
  %v6175 = vld [vmem:[%s43 + $0x1f8] sm:$0xff]
  %v6176 = vld [vmem:[%s43 + $0x230] sm:$0xff]
  %v6177 = vld [vmem:[%s43 + $0x238] sm:$0xff]
  %v6178 = vld [vmem:[%s43 + $0x270] sm:$0xff]
  %v6179 = vld [vmem:[%s43 + $0x278] sm:$0xff]
  %v6180 = vld [vmem:[%s43 + $0x2b0] sm:$0xff]
  %v6181 = vld [vmem:[%s43 + $0x2b8] sm:$0xff]
  %v6182 = vld [vmem:[%s43 + $0x2f0] sm:$0xff]
  %v6183 = vld [vmem:[%s43 + $0x2f8] sm:$0xff]
  %v6184 = vld [vmem:[%s43 + $0x330] sm:$0xff]
  %v6185 = vld [vmem:[%s43 + $0x338] sm:$0xff]
  %v6186 = vld [vmem:[%s43 + $0x370] sm:$0xff]
  %v6187 = vld [vmem:[%s43 + $0x378] sm:$0xff]
  %v6188 = vld [vmem:[%s43 + $0x3b0] sm:$0xff]
  %v6189 = vld [vmem:[%s43 + $0x3b8] sm:$0xff]
  %v6190 = vld [vmem:[%s43 + $0x3f0] sm:$0xff]
  %v6191 = vld [vmem:[%s43 + $0x3f8] sm:$0xff]
  %v6192 = vld [vmem:[%s45 + $0xc] sm:$0xf]
  %v6194 = vlaneseq
  %v6195 = vshrl.u32 %v6194, 7
  %v6196 = vsub.s32 0, %v6195
  %v6197 = vrot.slane %v6192, %v6196
  %v6198 = vlaneseq
  %v6199 = vshrl.u32 %v6198, 7
  %v6200 = vsub.s32 1, %v6199
  %v6201 = vrot.slane %v6192, %v6200
  %v6202 = vlaneseq
  %v6203 = vshrl.u32 %v6202, 7
  %v6204 = vsub.s32 2, %v6203
  %v6205 = vrot.slane %v6192, %v6204
  %v6206 = vlaneseq
  %v6207 = vshrl.u32 %v6206, 7
  %v6208 = vsub.s32 3, %v6207
  %v6209 = vrot.slane %v6192, %v6208
  %v6246 = vunpack.c.l.b16 %v6160
  %v6247 = vunpack.c.h.b16 %v6160
  %v6248 = vunpack.c.l.b16 %v6161
  %v6249 = vunpack.c.h.b16 %v6161
  %v6250 = vunpack.c.l.b16 %v6162
  %v6251 = vunpack.c.h.b16 %v6162
  %v6252 = vunpack.c.l.b16 %v6163
  %v6253 = vunpack.c.h.b16 %v6163
  %v6254 = vunpack.c.l.b16 %v6164
  %v6255 = vunpack.c.h.b16 %v6164
  %v6256 = vunpack.c.l.b16 %v6165
  %v6257 = vunpack.c.h.b16 %v6165
  %v6258 = vunpack.c.l.b16 %v6166
  %v6259 = vunpack.c.h.b16 %v6166
  %v6260 = vunpack.c.l.b16 %v6167
  %v6261 = vunpack.c.h.b16 %v6167
  %v6262 = vunpack.c.l.b16 %v6168
  %v6263 = vunpack.c.h.b16 %v6168
  %v6264 = vunpack.c.l.b16 %v6169
  %v6265 = vunpack.c.h.b16 %v6169
  %v6266 = vunpack.c.l.b16 %v6170
  %v6267 = vunpack.c.h.b16 %v6170
  %v6268 = vunpack.c.l.b16 %v6171
  %v6269 = vunpack.c.h.b16 %v6171
  %v6270 = vunpack.c.l.b16 %v6172
  %v6271 = vunpack.c.h.b16 %v6172
  %v6272 = vunpack.c.l.b16 %v6173
  %v6273 = vunpack.c.h.b16 %v6173
  %v6274 = vunpack.c.l.b16 %v6174
  %v6275 = vunpack.c.h.b16 %v6174
  %v6276 = vunpack.c.l.b16 %v6175
  %v6277 = vunpack.c.h.b16 %v6175
  %v6278 = vunpack.c.l.b16 %v6176
  %v6279 = vunpack.c.h.b16 %v6176
  %v6280 = vunpack.c.l.b16 %v6177
  %v6281 = vunpack.c.h.b16 %v6177
  %v6282 = vunpack.c.l.b16 %v6178
  %v6283 = vunpack.c.h.b16 %v6178
  %v6284 = vunpack.c.l.b16 %v6179
  %v6285 = vunpack.c.h.b16 %v6179
  %v6286 = vunpack.c.l.b16 %v6180
  %v6287 = vunpack.c.h.b16 %v6180
  %v6288 = vunpack.c.l.b16 %v6181
  %v6289 = vunpack.c.h.b16 %v6181
  %v6290 = vunpack.c.l.b16 %v6182
  %v6291 = vunpack.c.h.b16 %v6182
  %v6292 = vunpack.c.l.b16 %v6183
  %v6293 = vunpack.c.h.b16 %v6183
  %v6294 = vunpack.c.l.b16 %v6184
  %v6295 = vunpack.c.h.b16 %v6184
  %v6296 = vunpack.c.l.b16 %v6185
  %v6297 = vunpack.c.h.b16 %v6185
  %v6298 = vunpack.c.l.b16 %v6186
  %v6299 = vunpack.c.h.b16 %v6186
  %v6300 = vunpack.c.l.b16 %v6187
  %v6301 = vunpack.c.h.b16 %v6187
  %v6302 = vunpack.c.l.b16 %v6188
  %v6303 = vunpack.c.h.b16 %v6188
  %v6304 = vunpack.c.l.b16 %v6189
  %v6305 = vunpack.c.h.b16 %v6189
  %v6306 = vunpack.c.l.b16 %v6190
  %v6307 = vunpack.c.h.b16 %v6190
  %v6308 = vunpack.c.l.b16 %v6191
  %v6309 = vunpack.c.h.b16 %v6191
  %v6310 = vpack.c.b16 %v6250, %v6246
  %v6311 = vpack.c.b16 %v6251, %v6247
  %v6312 = vpack.c.b16 %v6252, %v6248
  %v6313 = vpack.c.b16 %v6253, %v6249
  %v6314 = vpack.c.b16 %v6258, %v6254
  %v6315 = vpack.c.b16 %v6259, %v6255
  %v6316 = vpack.c.b16 %v6260, %v6256
  %v6317 = vpack.c.b16 %v6261, %v6257
  %v6318 = vpack.c.b16 %v6266, %v6262
  %v6319 = vpack.c.b16 %v6267, %v6263
  %v6320 = vpack.c.b16 %v6268, %v6264
  %v6321 = vpack.c.b16 %v6269, %v6265
  %v6322 = vpack.c.b16 %v6274, %v6270
  %v6323 = vpack.c.b16 %v6275, %v6271
  %v6324 = vpack.c.b16 %v6276, %v6272
  %v6325 = vpack.c.b16 %v6277, %v6273
  %v6326 = vpack.c.b16 %v6282, %v6278
  %v6327 = vpack.c.b16 %v6283, %v6279
  %v6328 = vpack.c.b16 %v6284, %v6280
  %v6329 = vpack.c.b16 %v6285, %v6281
  %v6330 = vpack.c.b16 %v6290, %v6286
  %v6331 = vpack.c.b16 %v6291, %v6287
  %v6332 = vpack.c.b16 %v6292, %v6288
  %v6333 = vpack.c.b16 %v6293, %v6289
  %v6334 = vpack.c.b16 %v6298, %v6294
  %v6335 = vpack.c.b16 %v6299, %v6295
  %v6336 = vpack.c.b16 %v6300, %v6296
  %v6337 = vpack.c.b16 %v6301, %v6297
  %v6338 = vpack.c.b16 %v6306, %v6302
  %v6339 = vpack.c.b16 %v6307, %v6303
  %v6340 = vpack.c.b16 %v6308, %v6304
  %v6341 = vpack.c.b16 %v6309, %v6305
  %6374 = vmatprep.subr.bf16.mxu0 %v6339
  %6375 = vmatpush1.bf16.msra.mxu0 %v6338
  %6376 = vmatprep.subr.bf16.mxu0 %v6335
  %6377 = vmatpush1.bf16.msra.mxu0 %v6334
  %6378 = vmatprep.subr.bf16.mxu0 %v6331
  %6379 = vmatpush1.bf16.msra.mxu0 %v6330
  %6380 = vmatprep.subr.bf16.mxu0 %v6327
  %6381 = vmatpush1.bf16.msra.mxu0 %v6326
  %6382 = vmatprep.subr.bf16.mxu0 %v6323
  %6383 = vmatpush1.bf16.msra.mxu0 %v6322
  %6384 = vmatprep.subr.bf16.mxu0 %v6319
  %6385 = vmatpush1.bf16.msra.mxu0 %v6318
  %6386 = vmatprep.subr.bf16.mxu0 %v6315
  %6387 = vmatpush1.bf16.msra.mxu0 %v6314
  %6388 = vmatprep.subr.bf16.mxu0 %v6311
  %6389 = vmatpush1.bf16.msra.mxu0 %v6310
  %6390 = vmatprep.subr.bf16.mxu0 0
  %6391 = vmatpush2.bf16.msra.mxu0 0
  %6392 = vmatprep.subr.bf16.mxu0 0
  %6393 = vmatpush2.bf16.msra.mxu0 0
  %6394 = vmatprep.subr.bf16.mxu0 0
  %6395 = vmatpush2.bf16.msra.mxu0 0
  %6396 = vmatprep.subr.bf16.mxu0 0
  %6397 = vmatpush2.bf16.msra.mxu0 0
  %6398 = vmatprep.subr.bf16.mxu0 0
  %6399 = vmatpush2.bf16.msra.mxu0 0
  %6400 = vmatprep.subr.bf16.mxu0 0
  %6401 = vmatpush2.bf16.msra.mxu0 0
  %6402 = vmatprep.subr.bf16.mxu0 0
  %6403 = vmatpush2.bf16.msra.mxu0 0
  %6404 = vmatprep.subr.bf16.mxu0 0
  %6405 = vmatpush2.bf16.msra.mxu0 0
  %6406 = vmatprep.mubr.bf16.mxu0 0
  %6407 = vmatmul.mubr.bf16.gmra.mxu0 %v3650
  %v6408 = vpop.f32.mrf.mxu0
  %v6409 = vadd.f32 %v6197, %v6408
  %v6410 = vpop.f32.mrf.mxu0
  %v6411 = vadd.f32 %v6201, %v6410
  %v6412 = vpop.f32.mrf.mxu0
  %v6413 = vadd.f32 %v6197, %v6412
  %v6414 = vpop.f32.mrf.mxu0
  %v6415 = vadd.f32 %v6201, %v6414
  %6416 = vmatprep.mubr.bf16.mxu0 0
  %6417 = vmatmul.mubr.bf16.gmra.mxu0 %v3651
  %v6418 = vpop.f32.mrf.mxu0
  %v6419 = vadd.f32 %v6197, %v6418
  %v6420 = vpop.f32.mrf.mxu0
  %v6421 = vadd.f32 %v6201, %v6420
  %v6422 = vpop.f32.mrf.mxu0
  %v6423 = vadd.f32 %v6197, %v6422
  %v6424 = vpop.f32.mrf.mxu0
  %v6425 = vadd.f32 %v6201, %v6424
  %6426 = vmatprep.mubr.bf16.mxu0 0
  %6427 = vmatmul.mubr.bf16.gmra.mxu0 %v3652
  %v6428 = vpop.f32.mrf.mxu0
  %v6429 = vadd.f32 %v6197, %v6428
  %v6430 = vpop.f32.mrf.mxu0
  %v6431 = vadd.f32 %v6201, %v6430
  %v6432 = vpop.f32.mrf.mxu0
  %v6433 = vadd.f32 %v6197, %v6432
  %v6434 = vpop.f32.mrf.mxu0
  %v6435 = vadd.f32 %v6201, %v6434
  %6436 = vmatprep.mubr.bf16.mxu0 0
  %6437 = vmatmul.mubr.bf16.gmra.mxu0 %v3653
  %v6438 = vpop.f32.mrf.mxu0
  %v6439 = vadd.f32 %v6197, %v6438
  %v6440 = vpop.f32.mrf.mxu0
  %v6441 = vadd.f32 %v6201, %v6440
  %v6442 = vpop.f32.mrf.mxu0
  %v6443 = vadd.f32 %v6197, %v6442
  %v6444 = vpop.f32.mrf.mxu0
  %v6445 = vadd.f32 %v6201, %v6444
  %6446 = vmatprep.mubr.bf16.mxu0 0
  %6447 = vmatmul.mubr.bf16.gmra.mxu0 %v3654
  %v6448 = vpop.f32.mrf.mxu0
  %v6449 = vadd.f32 %v6197, %v6448
  %v6450 = vpop.f32.mrf.mxu0
  %v6451 = vadd.f32 %v6201, %v6450
  %v6452 = vpop.f32.mrf.mxu0
  %v6453 = vpop.f32.mrf.mxu0
  %6454 = vdwg.mxu0
  %6455 = vmatprep.subr.bf16.mxu0 %v6341
  %6456 = vmatpush1.bf16.msra.mxu0 %v6340
  %6457 = vmatprep.subr.bf16.mxu0 %v6337
  %6458 = vmatpush1.bf16.msra.mxu0 %v6336
  %6459 = vmatprep.subr.bf16.mxu0 %v6333
  %6460 = vmatpush1.bf16.msra.mxu0 %v6332
  %6461 = vmatprep.subr.bf16.mxu0 %v6329
  %6462 = vmatpush1.bf16.msra.mxu0 %v6328
  %6463 = vmatprep.subr.bf16.mxu0 %v6325
  %6464 = vmatpush1.bf16.msra.mxu0 %v6324
  %6465 = vmatprep.subr.bf16.mxu0 %v6321
  %6466 = vmatpush1.bf16.msra.mxu0 %v6320
  %6467 = vmatprep.subr.bf16.mxu0 %v6317
  %6468 = vmatpush1.bf16.msra.mxu0 %v6316
  %6469 = vmatprep.subr.bf16.mxu0 %v6313
  %6470 = vmatpush1.bf16.msra.mxu0 %v6312
  %6471 = vmatprep.subr.bf16.mxu0 0
  %6472 = vmatpush2.bf16.msra.mxu0 0
  %6473 = vmatprep.subr.bf16.mxu0 0
  %6474 = vmatpush2.bf16.msra.mxu0 0
  %6475 = vmatprep.subr.bf16.mxu0 0
  %6476 = vmatpush2.bf16.msra.mxu0 0
  %6477 = vmatprep.subr.bf16.mxu0 0
  %6478 = vmatpush2.bf16.msra.mxu0 0
  %6479 = vmatprep.subr.bf16.mxu0 0
  %6480 = vmatpush2.bf16.msra.mxu0 0
  %6481 = vmatprep.subr.bf16.mxu0 0
  %6482 = vmatpush2.bf16.msra.mxu0 0
  %6483 = vmatprep.subr.bf16.mxu0 0
  %6484 = vmatpush2.bf16.msra.mxu0 0
  %6485 = vmatprep.subr.bf16.mxu0 0
  %6486 = vmatpush2.bf16.msra.mxu0 0
  %6487 = vmatprep.mubr.bf16.mxu0 0
  %6488 = vmatmul.mubr.bf16.gmra.mxu0 %v3650
  %v6489 = vpop.f32.mrf.mxu0
  %v6490 = vadd.f32 %v6205, %v6489
  %v6491 = vpop.f32.mrf.mxu0
  %v6492 = vadd.f32 %v6209, %v6491
  %v6493 = vpop.f32.mrf.mxu0
  %v6494 = vadd.f32 %v6205, %v6493
  %v6495 = vpop.f32.mrf.mxu0
  %v6496 = vadd.f32 %v6209, %v6495
  %6497 = vmatprep.mubr.bf16.mxu0 0
  %6498 = vmatmul.mubr.bf16.gmra.mxu0 %v3651
  %v6499 = vpop.f32.mrf.mxu0
  %v6500 = vadd.f32 %v6205, %v6499
  %v6501 = vpop.f32.mrf.mxu0
  %v6502 = vadd.f32 %v6209, %v6501
  %v6503 = vpop.f32.mrf.mxu0
  %v6504 = vadd.f32 %v6205, %v6503
  %v6505 = vpop.f32.mrf.mxu0
  %v6506 = vadd.f32 %v6209, %v6505
  %6507 = vmatprep.mubr.bf16.mxu0 0
  %6508 = vmatmul.mubr.bf16.gmra.mxu0 %v3652
  %v6509 = vpop.f32.mrf.mxu0
  %v6510 = vadd.f32 %v6205, %v6509
  %v6511 = vpop.f32.mrf.mxu0
  %v6512 = vadd.f32 %v6209, %v6511
  %v6513 = vpop.f32.mrf.mxu0
  %v6514 = vadd.f32 %v6205, %v6513
  %v6515 = vpop.f32.mrf.mxu0
  %v6516 = vadd.f32 %v6209, %v6515
  %6517 = vmatprep.mubr.bf16.mxu0 0
  %6518 = vmatmul.mubr.bf16.gmra.mxu0 %v3653
  %v6519 = vpop.f32.mrf.mxu0
  %v6520 = vadd.f32 %v6205, %v6519
  %v6521 = vpop.f32.mrf.mxu0
  %v6522 = vadd.f32 %v6209, %v6521
  %v6523 = vpop.f32.mrf.mxu0
  %v6524 = vadd.f32 %v6205, %v6523
  %v6525 = vpop.f32.mrf.mxu0
  %v6526 = vadd.f32 %v6209, %v6525
  %6527 = vmatprep.mubr.bf16.mxu0 0
  %6528 = vmatmul.mubr.bf16.gmra.mxu0 %v3654
  %v6529 = vpop.f32.mrf.mxu0
  %v6530 = vadd.f32 %v6205, %v6529
  %v6531 = vpop.f32.mrf.mxu0
  %v6532 = vadd.f32 %v6209, %v6531
  %v6533 = vpop.f32.mrf.mxu0
  %v6534 = vpop.f32.mrf.mxu0
  %6535 = vdwg.mxu0
  %v6536 = vmax.f32 %v6409, 0.0
  %v6537 = vmax.f32 %v6411, 0.0
  %v6538 = vmax.f32 %v6490, 0.0
  %v6539 = vmax.f32 %v6492, 0.0
  %v6540 = vmax.f32 %v6413, 0.0
  %v6541 = vmax.f32 %v6415, 0.0
  %v6542 = vmax.f32 %v6494, 0.0
  %v6543 = vmax.f32 %v6496, 0.0
  %v6544 = vmax.f32 %v6419, 0.0
  %v6545 = vmax.f32 %v6421, 0.0
  %v6546 = vmax.f32 %v6500, 0.0
  %v6547 = vmax.f32 %v6502, 0.0
  %v6548 = vmax.f32 %v6423, 0.0
  %v6549 = vmax.f32 %v6425, 0.0
  %v6550 = vmax.f32 %v6504, 0.0
  %v6551 = vmax.f32 %v6506, 0.0
  %v6552 = vmax.f32 %v6429, 0.0
  %v6553 = vmax.f32 %v6431, 0.0
  %v6554 = vmax.f32 %v6510, 0.0
  %v6555 = vmax.f32 %v6512, 0.0
  %v6556 = vmax.f32 %v6433, 0.0
  %v6557 = vmax.f32 %v6435, 0.0
  %v6558 = vmax.f32 %v6514, 0.0
  %v6559 = vmax.f32 %v6516, 0.0
  %v6560 = vmax.f32 %v6439, 0.0
  %v6561 = vmax.f32 %v6441, 0.0
  %v6562 = vmax.f32 %v6520, 0.0
  %v6563 = vmax.f32 %v6522, 0.0
  %v6564 = vmax.f32 %v6443, 0.0
  %v6565 = vmax.f32 %v6445, 0.0
  %v6566 = vmax.f32 %v6524, 0.0
  %v6567 = vmax.f32 %v6526, 0.0
  %v6568 = vmax.f32 %v6449, 0.0
  %v6569 = vmax.f32 %v6451, 0.0
  %v6570 = vmax.f32 %v6530, 0.0
  %v6571 = vmax.f32 %v6532, 0.0
  %v6572 = vpack.c.bf16 %v6540, %v6536
  %v6573 = vpack.c.bf16 %v6541, %v6537
  %v6574 = vpack.c.bf16 %v6542, %v6538
  %v6575 = vpack.c.bf16 %v6543, %v6539
  %v6576 = vpack.c.bf16 %v6548, %v6544
  %v6577 = vpack.c.bf16 %v6549, %v6545
  %v6578 = vpack.c.bf16 %v6550, %v6546
  %v6579 = vpack.c.bf16 %v6551, %v6547
  %v6580 = vpack.c.bf16 %v6556, %v6552
  %v6581 = vpack.c.bf16 %v6557, %v6553
  %v6582 = vpack.c.bf16 %v6558, %v6554
  %v6583 = vpack.c.bf16 %v6559, %v6555
  %v6584 = vpack.c.bf16 %v6564, %v6560
  %v6585 = vpack.c.bf16 %v6565, %v6561
  %v6586 = vpack.c.bf16 %v6566, %v6562
  %v6587 = vpack.c.bf16 %v6567, %v6563
  %v6588 = vpack.c.bf16 %v6568, %v6568
  %v6589 = vpack.c.bf16 %v6569, %v6569
  %v6590 = vpack.c.bf16 %v6570, %v6570
  %v6591 = vpack.c.bf16 %v6571, %v6571
  %v6592 = vld [vmem:[%s47 + $0x300] sm:$0xf]
  %v6593 = vld [vmem:[%s47 + $0x304] sm:$0xf]
  %v6594 = vld [vmem:[%s47 + $0x308] sm:$0xf]
  %v6595 = vld [vmem:[%s47 + $0x30c] sm:$0xf]
  %v6596 = vld [vmem:[%s47 + $0x310] sm:$0xf]
  %v6597 = vld [vmem:[%s47 + $0x314] sm:$0xf]
  %v6598 = vld [vmem:[%s47 + $0x318] sm:$0xf]
  %v6599 = vld [vmem:[%s47 + $0x31c] sm:$0xf]
  %v6600 = vld [vmem:[%s47 + $0x320] sm:$0xf]
  %v6601 = vld [vmem:[%s47 + $0x324] sm:$0xf]
  %v6602 = vld [vmem:[%s47 + $0x328] sm:$0xf]
  %v6603 = vld [vmem:[%s47 + $0x32c] sm:$0xf]
  %v6604 = vld [vmem:[%s47 + $0x330] sm:$0xf]
  %v6605 = vld [vmem:[%s47 + $0x334] sm:$0xf]
  %v6606 = vld [vmem:[%s47 + $0x338] sm:$0xf]
  %v6607 = vld [vmem:[%s47 + $0x33c] sm:$0xf]
  %v6608 = vld [vmem:[%s47 + $0x340] sm:$0xf]
  %v6609 = vld [vmem:[%s47 + $0x344] sm:$0xf]
  %v6610 = vld [vmem:[%s47 + $0x348] sm:$0xf]
  %v6611 = vld [vmem:[%s47 + $0x34c] sm:$0xf]
  %v6612 = vld [vmem:[%s47 + $0x350] sm:$0xf]
  %v6613 = vld [vmem:[%s47 + $0x354] sm:$0xf]
  %v6614 = vld [vmem:[%s47 + $0x358] sm:$0xf]
  %v6615 = vld [vmem:[%s47 + $0x35c] sm:$0xf]
  %v6616 = vld [vmem:[%s47 + $0x360] sm:$0xf]
  %v6617 = vld [vmem:[%s47 + $0x364] sm:$0xf]
  %v6618 = vld [vmem:[%s47 + $0x368] sm:$0xf]
  %v6619 = vld [vmem:[%s47 + $0x36c] sm:$0xf]
  %v6620 = vld [vmem:[%s47 + $0x370] sm:$0xf]
  %v6621 = vld [vmem:[%s47 + $0x374] sm:$0xf]
  %v6622 = vld [vmem:[%s47 + $0x378] sm:$0xf]
  %v6623 = vld [vmem:[%s47 + $0x37c] sm:$0xf]
  %v6624 = vld [vmem:[%s47 + $0x380] sm:$0xf]
  %v6625 = vld [vmem:[%s47 + $0x384] sm:$0xf]
  %v6626 = vld [vmem:[%s47 + $0x388] sm:$0xf]
  %v6627 = vld [vmem:[%s47 + $0x38c] sm:$0xf]
  %v6628 = vld [vmem:[%s47 + $0x390] sm:$0xf]
  %v6629 = vld [vmem:[%s47 + $0x394] sm:$0xf]
  %v6630 = vld [vmem:[%s47 + $0x398] sm:$0xf]
  %v6631 = vld [vmem:[%s47 + $0x39c] sm:$0xf]
  %v6632 = vld [vmem:[%s47 + $0x3a0] sm:$0xf]
  %v6633 = vld [vmem:[%s47 + $0x3a4] sm:$0xf]
  %v6634 = vld [vmem:[%s47 + $0x3a8] sm:$0xf]
  %v6635 = vld [vmem:[%s47 + $0x3ac] sm:$0xf]
  %v6636 = vld [vmem:[%s47 + $0x3b0] sm:$0xf]
  %v6637 = vld [vmem:[%s47 + $0x3b4] sm:$0xf]
  %v6638 = vld [vmem:[%s47 + $0x3b8] sm:$0xf]
  %v6639 = vld [vmem:[%s47 + $0x3bc] sm:$0xf]
  %v6640 = vld [vmem:[%s47 + $0x3c0] sm:$0xf]
  %v6641 = vld [vmem:[%s47 + $0x3c4] sm:$0xf]
  %v6642 = vld [vmem:[%s47 + $0x3c8] sm:$0xf]
  %v6643 = vld [vmem:[%s47 + $0x3cc] sm:$0xf]
  %v6644 = vld [vmem:[%s47 + $0x3d0] sm:$0xf]
  %v6645 = vld [vmem:[%s47 + $0x3d4] sm:$0xf]
  %v6646 = vld [vmem:[%s47 + $0x3d8] sm:$0xf]
  %v6647 = vld [vmem:[%s47 + $0x3dc] sm:$0xf]
  %v6648 = vld [vmem:[%s47 + $0x3e0] sm:$0xf]
  %v6649 = vld [vmem:[%s47 + $0x3e4] sm:$0xf]
  %v6650 = vld [vmem:[%s47 + $0x3e8] sm:$0xf]
  %v6651 = vld [vmem:[%s47 + $0x3ec] sm:$0xf]
  %v6652 = vld [vmem:[%s47 + $0x3f0] sm:$0xf]
  %v6653 = vld [vmem:[%s47 + $0x3f4] sm:$0xf]
  %v6654 = vld [vmem:[%s47 + $0x3f8] sm:$0xf]
  %v6655 = vld [vmem:[%s47 + $0x3fc] sm:$0xf]
  %v6720 = vunpack.c.l.b16 %v6592
  %v6721 = vunpack.c.l.b16 %v6593
  %v6722 = vunpack.c.l.b16 %v6594
  %v6723 = vunpack.c.l.b16 %v6595
  %v6724 = vunpack.c.l.b16 %v6596
  %v6725 = vunpack.c.l.b16 %v6597
  %v6726 = vunpack.c.l.b16 %v6598
  %v6727 = vunpack.c.l.b16 %v6599
  %v6728 = vunpack.c.l.b16 %v6600
  %v6729 = vunpack.c.l.b16 %v6601
  %v6730 = vunpack.c.l.b16 %v6602
  %v6731 = vunpack.c.l.b16 %v6603
  %v6732 = vunpack.c.l.b16 %v6604
  %v6733 = vunpack.c.l.b16 %v6605
  %v6734 = vunpack.c.l.b16 %v6606
  %v6735 = vunpack.c.l.b16 %v6607
  %v6736 = vunpack.c.l.b16 %v6608
  %v6737 = vunpack.c.l.b16 %v6609
  %v6738 = vunpack.c.l.b16 %v6610
  %v6739 = vunpack.c.l.b16 %v6611
  %v6740 = vunpack.c.l.b16 %v6612
  %v6741 = vunpack.c.l.b16 %v6613
  %v6742 = vunpack.c.l.b16 %v6614
  %v6743 = vunpack.c.l.b16 %v6615
  %v6744 = vunpack.c.l.b16 %v6616
  %v6745 = vunpack.c.l.b16 %v6617
  %v6746 = vunpack.c.l.b16 %v6618
  %v6747 = vunpack.c.l.b16 %v6619
  %v6748 = vunpack.c.l.b16 %v6620
  %v6749 = vunpack.c.l.b16 %v6621
  %v6750 = vunpack.c.l.b16 %v6622
  %v6751 = vunpack.c.l.b16 %v6623
  %v6752 = vunpack.c.l.b16 %v6624
  %v6753 = vunpack.c.l.b16 %v6625
  %v6754 = vunpack.c.l.b16 %v6626
  %v6755 = vunpack.c.l.b16 %v6627
  %v6756 = vunpack.c.l.b16 %v6628
  %v6757 = vunpack.c.l.b16 %v6629
  %v6758 = vunpack.c.l.b16 %v6630
  %v6759 = vunpack.c.l.b16 %v6631
  %v6760 = vunpack.c.l.b16 %v6632
  %v6761 = vunpack.c.l.b16 %v6633
  %v6762 = vunpack.c.l.b16 %v6634
  %v6763 = vunpack.c.l.b16 %v6635
  %v6764 = vunpack.c.l.b16 %v6636
  %v6765 = vunpack.c.l.b16 %v6637
  %v6766 = vunpack.c.l.b16 %v6638
  %v6767 = vunpack.c.l.b16 %v6639
  %v6768 = vunpack.c.l.b16 %v6640
  %v6769 = vunpack.c.l.b16 %v6641
  %v6770 = vunpack.c.l.b16 %v6642
  %v6771 = vunpack.c.l.b16 %v6643
  %v6772 = vunpack.c.l.b16 %v6644
  %v6773 = vunpack.c.l.b16 %v6645
  %v6774 = vunpack.c.l.b16 %v6646
  %v6775 = vunpack.c.l.b16 %v6647
  %v6776 = vunpack.c.l.b16 %v6648
  %v6777 = vunpack.c.l.b16 %v6649
  %v6778 = vunpack.c.l.b16 %v6650
  %v6779 = vunpack.c.l.b16 %v6651
  %v6780 = vunpack.c.l.b16 %v6652
  %v6781 = vunpack.c.l.b16 %v6653
  %v6782 = vunpack.c.l.b16 %v6654
  %v6783 = vunpack.c.l.b16 %v6655
  %v6784 = vpack.c.b16 %v6721, %v6720
  %v6785 = vpack.c.b16 %v6723, %v6722
  %v6786 = vpack.c.b16 %v6725, %v6724
  %v6787 = vpack.c.b16 %v6727, %v6726
  %v6788 = vpack.c.b16 %v6729, %v6728
  %v6789 = vpack.c.b16 %v6731, %v6730
  %v6790 = vpack.c.b16 %v6733, %v6732
  %v6791 = vpack.c.b16 %v6735, %v6734
  %v6792 = vpack.c.b16 %v6737, %v6736
  %v6793 = vpack.c.b16 %v6739, %v6738
  %v6794 = vpack.c.b16 %v6741, %v6740
  %v6795 = vpack.c.b16 %v6743, %v6742
  %v6796 = vpack.c.b16 %v6745, %v6744
  %v6797 = vpack.c.b16 %v6747, %v6746
  %v6798 = vpack.c.b16 %v6749, %v6748
  %v6799 = vpack.c.b16 %v6751, %v6750
  %v6800 = vpack.c.b16 %v6753, %v6752
  %v6801 = vpack.c.b16 %v6755, %v6754
  %v6802 = vpack.c.b16 %v6757, %v6756
  %v6803 = vpack.c.b16 %v6759, %v6758
  %v6804 = vpack.c.b16 %v6761, %v6760
  %v6805 = vpack.c.b16 %v6763, %v6762
  %v6806 = vpack.c.b16 %v6765, %v6764
  %v6807 = vpack.c.b16 %v6767, %v6766
  %v6808 = vpack.c.b16 %v6769, %v6768
  %v6809 = vpack.c.b16 %v6771, %v6770
  %v6810 = vpack.c.b16 %v6773, %v6772
  %v6811 = vpack.c.b16 %v6775, %v6774
  %v6812 = vpack.c.b16 %v6777, %v6776
  %v6813 = vpack.c.b16 %v6779, %v6778
  %v6814 = vpack.c.b16 %v6781, %v6780
  %v6815 = vpack.c.b16 %v6783, %v6782
  %6848 = vmatprep.subr.bf16.mxu0 0
  %6849 = vmatpush1.bf16.msra.mxu0 %v6791
  %6850 = vmatprep.subr.bf16.mxu0 0
  %6851 = vmatpush1.bf16.msra.mxu0 %v6790
  %6852 = vmatprep.subr.bf16.mxu0 0
  %6853 = vmatpush1.bf16.msra.mxu0 %v6789
  %6854 = vmatprep.subr.bf16.mxu0 0
  %6855 = vmatpush1.bf16.msra.mxu0 %v6788
  %6856 = vmatprep.subr.bf16.mxu0 0
  %6857 = vmatpush1.bf16.msra.mxu0 %v6787
  %6858 = vmatprep.subr.bf16.mxu0 0
  %6859 = vmatpush1.bf16.msra.mxu0 %v6786
  %6860 = vmatprep.subr.bf16.mxu0 0
  %6861 = vmatpush1.bf16.msra.mxu0 %v6785
  %6862 = vmatprep.subr.bf16.mxu0 0
  %6863 = vmatpush1.bf16.msra.mxu0 %v6784
  %6864 = vmatprep.subr.bf16.mxu0 0
  %6865 = vmatpush2.bf16.msra.mxu0 %v6799
  %6866 = vmatprep.subr.bf16.mxu0 0
  %6867 = vmatpush2.bf16.msra.mxu0 %v6798
  %6868 = vmatprep.subr.bf16.mxu0 0
  %6869 = vmatpush2.bf16.msra.mxu0 %v6797
  %6870 = vmatprep.subr.bf16.mxu0 0
  %6871 = vmatpush2.bf16.msra.mxu0 %v6796
  %6872 = vmatprep.subr.bf16.mxu0 0
  %6873 = vmatpush2.bf16.msra.mxu0 %v6795
  %6874 = vmatprep.subr.bf16.mxu0 0
  %6875 = vmatpush2.bf16.msra.mxu0 %v6794
  %6876 = vmatprep.subr.bf16.mxu0 0
  %6877 = vmatpush2.bf16.msra.mxu0 %v6793
  %6878 = vmatprep.subr.bf16.mxu0 0
  %6879 = vmatpush2.bf16.msra.mxu0 %v6792
  %6880 = vmatprep.mubr.bf16.mxu0 %v6573
  %6881 = vmatmul.mubr.bf16.gmra.mxu0 %v6572
  %v6882 = vpop.f32.mrf.mxu0
  %v6883 = vadd.f32 0.0, %v6882
  %v6884 = vpop.f32.mrf.mxu0
  %v6885 = vpop.f32.mrf.mxu0
  %v6886 = vadd.f32 0.0, %v6885
  %v6887 = vpop.f32.mrf.mxu0
  %6888 = vmatprep.mubr.bf16.mxu0 %v6577
  %6889 = vmatmul.mubr.bf16.gmra.mxu0 %v6576
  %v6890 = vpop.f32.mrf.mxu0
  %v6891 = vadd.f32 0.0, %v6890
  %v6892 = vpop.f32.mrf.mxu0
  %v6893 = vpop.f32.mrf.mxu0
  %v6894 = vadd.f32 0.0, %v6893
  %v6895 = vpop.f32.mrf.mxu0
  %6896 = vmatprep.mubr.bf16.mxu0 %v6581
  %6897 = vmatmul.mubr.bf16.gmra.mxu0 %v6580
  %v6898 = vpop.f32.mrf.mxu0
  %v6899 = vadd.f32 0.0, %v6898
  %v6900 = vpop.f32.mrf.mxu0
  %v6901 = vpop.f32.mrf.mxu0
  %v6902 = vadd.f32 0.0, %v6901
  %v6903 = vpop.f32.mrf.mxu0
  %6904 = vmatprep.mubr.bf16.mxu0 %v6585
  %6905 = vmatmul.mubr.bf16.gmra.mxu0 %v6584
  %v6906 = vpop.f32.mrf.mxu0
  %v6907 = vadd.f32 0.0, %v6906
  %v6908 = vpop.f32.mrf.mxu0
  %v6909 = vpop.f32.mrf.mxu0
  %v6910 = vadd.f32 0.0, %v6909
  %v6911 = vpop.f32.mrf.mxu0
  %6912 = vmatprep.mubr.bf16.mxu0 %v6589
  %6913 = vmatmul.mubr.bf16.gmra.mxu0 %v6588
  %v6914 = vpop.f32.mrf.mxu0
  %v6915 = vadd.f32 0.0, %v6914
  %v6916 = vpop.f32.mrf.mxu0
  %v6917 = vpop.f32.mrf.mxu0
  %v6918 = vpop.f32.mrf.mxu0
  %6919 = vdwg.mxu0
  %6920 = vmatprep.subr.bf16.mxu0 0
  %6921 = vmatpush1.bf16.msra.mxu0 %v6807
  %6922 = vmatprep.subr.bf16.mxu0 0
  %6923 = vmatpush1.bf16.msra.mxu0 %v6806
  %6924 = vmatprep.subr.bf16.mxu0 0
  %6925 = vmatpush1.bf16.msra.mxu0 %v6805
  %6926 = vmatprep.subr.bf16.mxu0 0
  %6927 = vmatpush1.bf16.msra.mxu0 %v6804
  %6928 = vmatprep.subr.bf16.mxu0 0
  %6929 = vmatpush1.bf16.msra.mxu0 %v6803
  %6930 = vmatprep.subr.bf16.mxu0 0
  %6931 = vmatpush1.bf16.msra.mxu0 %v6802
  %6932 = vmatprep.subr.bf16.mxu0 0
  %6933 = vmatpush1.bf16.msra.mxu0 %v6801
  %6934 = vmatprep.subr.bf16.mxu0 0
  %6935 = vmatpush1.bf16.msra.mxu0 %v6800
  %6936 = vmatprep.subr.bf16.mxu0 0
  %6937 = vmatpush2.bf16.msra.mxu0 %v6815
  %6938 = vmatprep.subr.bf16.mxu0 0
  %6939 = vmatpush2.bf16.msra.mxu0 %v6814
  %6940 = vmatprep.subr.bf16.mxu0 0
  %6941 = vmatpush2.bf16.msra.mxu0 %v6813
  %6942 = vmatprep.subr.bf16.mxu0 0
  %6943 = vmatpush2.bf16.msra.mxu0 %v6812
  %6944 = vmatprep.subr.bf16.mxu0 0
  %6945 = vmatpush2.bf16.msra.mxu0 %v6811
  %6946 = vmatprep.subr.bf16.mxu0 0
  %6947 = vmatpush2.bf16.msra.mxu0 %v6810
  %6948 = vmatprep.subr.bf16.mxu0 0
  %6949 = vmatpush2.bf16.msra.mxu0 %v6809
  %6950 = vmatprep.subr.bf16.mxu0 0
  %6951 = vmatpush2.bf16.msra.mxu0 %v6808
  %6952 = vmatprep.mubr.bf16.mxu0 %v6575
  %6953 = vmatmul.mubr.bf16.gmra.mxu0 %v6574
  %v6954 = vpop.f32.mrf.mxu0
  %v6955 = vadd.f32 %v6883, %v6954
  %v6956 = vpop.f32.mrf.mxu0
  %v6957 = vpop.f32.mrf.mxu0
  %v6958 = vadd.f32 %v6886, %v6957
  %v6959 = vpop.f32.mrf.mxu0
  %6960 = vmatprep.mubr.bf16.mxu0 %v6579
  %6961 = vmatmul.mubr.bf16.gmra.mxu0 %v6578
  %v6962 = vpop.f32.mrf.mxu0
  %v6963 = vadd.f32 %v6891, %v6962
  %v6964 = vpop.f32.mrf.mxu0
  %v6965 = vpop.f32.mrf.mxu0
  %v6966 = vadd.f32 %v6894, %v6965
  %v6967 = vpop.f32.mrf.mxu0
  %6968 = vmatprep.mubr.bf16.mxu0 %v6583
  %6969 = vmatmul.mubr.bf16.gmra.mxu0 %v6582
  %v6970 = vpop.f32.mrf.mxu0
  %v6971 = vadd.f32 %v6899, %v6970
  %v6972 = vpop.f32.mrf.mxu0
  %v6973 = vpop.f32.mrf.mxu0
  %v6974 = vadd.f32 %v6902, %v6973
  %v6975 = vpop.f32.mrf.mxu0
  %6976 = vmatprep.mubr.bf16.mxu0 %v6587
  %6977 = vmatmul.mubr.bf16.gmra.mxu0 %v6586
  %v6978 = vpop.f32.mrf.mxu0
  %v6979 = vadd.f32 %v6907, %v6978
  %v6980 = vpop.f32.mrf.mxu0
  %v6981 = vpop.f32.mrf.mxu0
  %v6982 = vadd.f32 %v6910, %v6981
  %v6983 = vpop.f32.mrf.mxu0
  %6984 = vmatprep.mubr.bf16.mxu0 %v6591
  %6985 = vmatmul.mubr.bf16.gmra.mxu0 %v6590
  %v6986 = vpop.f32.mrf.mxu0
  %v6987 = vadd.f32 %v6915, %v6986
  %v6988 = vpop.f32.mrf.mxu0
  %v6989 = vpop.f32.mrf.mxu0
  %v6990 = vpop.f32.mrf.mxu0
  %6991 = vdwg.mxu0
  %v6992 = vadd.f32 %v6151, %v6955
  %v6993 = vadd.f32 %v6152, %v6958
  %v6994 = vadd.f32 %v6153, %v6963
  %v6995 = vadd.f32 %v6154, %v6966
  %v6996 = vadd.f32 %v6155, %v6971
  %v6997 = vadd.f32 %v6156, %v6974
  %v6998 = vadd.f32 %v6157, %v6979
  %v6999 = vadd.f32 %v6158, %v6982
  %v7000 = vadd.f32 %v6159, %v6987
  %v7001 = vadd.f32 %v3641, %v6992
  %v7002 = vadd.f32 %v3642, %v6993
  %v7003 = vadd.f32 %v3643, %v6994
  %v7004 = vadd.f32 %v3644, %v6995
  %v7005 = vadd.f32 %v3645, %v6996
  %v7006 = vadd.f32 %v3646, %v6997
  %v7007 = vadd.f32 %v3647, %v6998
  %v7008 = vadd.f32 %v3648, %v6999
  %v7009 = vadd.f32 %v3649, %v7000
  %v7010 = vld [vmem:[%s49] sm:$0x1]
  %v7012 = vlaneseq
  %v7013 = vshrl.u32 %v7012, 7
  %v7014 = vsub.s32 0, %v7013
  %v7015 = vrot.slane %v7010, %v7014
  %v7017 = vadd.f32 %v7001, %v7015
  %v7018 = vadd.f32 %v7002, %v7015
  %v7019 = vadd.f32 %v7003, %v7015
  %v7020 = vadd.f32 %v7004, %v7015
  %v7021 = vadd.f32 %v7005, %v7015
  %v7022 = vadd.f32 %v7006, %v7015
  %v7023 = vadd.f32 %v7007, %v7015
  %v7024 = vadd.f32 %v7008, %v7015
  %v7025 = vadd.f32 %v7009, %v7015
  %v7026 = vld [vmem:[%s51] sm:$0x1]
  %v7027 = vld [vmem:[%s53] sm:$0x1]
  %7028 = vadd.xlane.f32.xlu0 %v7017
  %v7029 = vpop.xlane.xlu0 %7028
  %7030 = vadd.xlane.f32.xlu0 %v7018
  %v7031 = vpop.xlane.xlu0 %7030
  %7032 = vadd.xlane.f32.xlu0 %v7019
  %v7033 = vpop.xlane.xlu0 %7032
  %7034 = vadd.xlane.f32.xlu0 %v7020
  %v7035 = vpop.xlane.xlu0 %7034
  %7036 = vadd.xlane.f32.xlu0 %v7021
  %v7037 = vpop.xlane.xlu0 %7036
  %7038 = vadd.xlane.f32.xlu0 %v7022
  %v7039 = vpop.xlane.xlu0 %7038
  %7040 = vadd.xlane.f32.xlu0 %v7023
  %v7041 = vpop.xlane.xlu0 %7040
  %7042 = vadd.xlane.f32.xlu0 %v7024
  %v7043 = vpop.xlane.xlu0 %7042
  %7044 = vadd.xlane.f32.xlu0 %v7025
  %v7045 = vpop.xlane.xlu0 %7044
  %v7046 = vmul.f32 %v7029, %v3538
  %v7047 = vmul.f32 %v7031, %v3538
  %v7048 = vmul.f32 %v7033, %v3538
  %v7049 = vmul.f32 %v7035, %v3538
  %v7050 = vmul.f32 %v7037, %v3538
  %v7051 = vmul.f32 %v7039, %v3538
  %v7052 = vmul.f32 %v7041, %v3538
  %v7053 = vmul.f32 %v7043, %v3538
  %v7054 = vmul.f32 %v7045, %v3538
  %v7055 = vsub.f32 %v7017, %v7046
  %v7056 = vsub.f32 %v7018, %v7047
  %v7057 = vsub.f32 %v7019, %v7048
  %v7058 = vsub.f32 %v7020, %v7049
  %v7059 = vsub.f32 %v7021, %v7050
  %v7060 = vsub.f32 %v7022, %v7051
  %v7061 = vsub.f32 %v7023, %v7052
  %v7062 = vsub.f32 %v7024, %v7053
  %v7063 = vsub.f32 %v7025, %v7054
  %v7064 = vmul.f32 %v7055, %v7055
  %v7065 = vmul.f32 %v7056, %v7056
  %v7066 = vmul.f32 %v7057, %v7057
  %v7067 = vmul.f32 %v7058, %v7058
  %v7068 = vmul.f32 %v7059, %v7059
  %v7069 = vmul.f32 %v7060, %v7060
  %v7070 = vmul.f32 %v7061, %v7061
  %v7071 = vmul.f32 %v7062, %v7062
  %v7072 = vmul.f32 %v7063, %v7063
  %7073 = vadd.xlane.f32.xlu0 %v7064
  %v7074 = vpop.xlane.xlu0 %7073
  %7075 = vadd.xlane.f32.xlu0 %v7065
  %v7076 = vpop.xlane.xlu0 %7075
  %7077 = vadd.xlane.f32.xlu0 %v7066
  %v7078 = vpop.xlane.xlu0 %7077
  %7079 = vadd.xlane.f32.xlu0 %v7067
  %v7080 = vpop.xlane.xlu0 %7079
  %7081 = vadd.xlane.f32.xlu0 %v7068
  %v7082 = vpop.xlane.xlu0 %7081
  %7083 = vadd.xlane.f32.xlu0 %v7069
  %v7084 = vpop.xlane.xlu0 %7083
  %7085 = vadd.xlane.f32.xlu0 %v7070
  %v7086 = vpop.xlane.xlu0 %7085
  %7087 = vadd.xlane.f32.xlu0 %v7071
  %v7088 = vpop.xlane.xlu0 %7087
  %7089 = vadd.xlane.f32.xlu0 %v7072
  %v7090 = vpop.xlane.xlu0 %7089
  %v7091 = vmul.f32 %v7074, %v3538
  %v7092 = vmul.f32 %v7076, %v3538
  %v7093 = vmul.f32 %v7078, %v3538
  %v7094 = vmul.f32 %v7080, %v3538
  %v7095 = vmul.f32 %v7082, %v3538
  %v7096 = vmul.f32 %v7084, %v3538
  %v7097 = vmul.f32 %v7086, %v3538
  %v7098 = vmul.f32 %v7088, %v3538
  %v7099 = vmul.f32 %v7090, %v3538
  %v7100 = vadd.f32 %v7091, 1e-05
  %v7101 = vadd.f32 %v7092, 1e-05
  %v7102 = vadd.f32 %v7093, 1e-05
  %v7103 = vadd.f32 %v7094, 1e-05
  %v7104 = vadd.f32 %v7095, 1e-05
  %v7105 = vadd.f32 %v7096, 1e-05
  %v7106 = vadd.f32 %v7097, 1e-05
  %v7107 = vadd.f32 %v7098, 1e-05
  %v7108 = vadd.f32 %v7099, 1e-05
  %v7109 = vrsqrt.pop %v7100
  %v7110 = vrsqrt.pop %v7101
  %v7111 = vrsqrt.pop %v7102
  %v7112 = vrsqrt.pop %v7103
  %v7113 = vrsqrt.pop %v7104
  %v7114 = vrsqrt.pop %v7105
  %v7115 = vrsqrt.pop %v7106
  %v7116 = vrsqrt.pop %v7107
  %v7117 = vrsqrt.pop %v7108
  %v7118 = vmul.f32 %v7055, %v7109
  %v7119 = vmul.f32 %v7056, %v7110
  %v7120 = vmul.f32 %v7057, %v7111
  %v7121 = vmul.f32 %v7058, %v7112
  %v7122 = vmul.f32 %v7059, %v7113
  %v7123 = vmul.f32 %v7060, %v7114
  %v7124 = vmul.f32 %v7061, %v7115
  %v7125 = vmul.f32 %v7062, %v7116
  %v7126 = vmul.f32 %v7063, %v7117
  %v7128 = vlaneseq
  %v7129 = vshrl.u32 %v7128, 7
  %v7130 = vsub.s32 0, %v7129
  %v7131 = vrot.slane %v7026, %v7130
  %v7133 = vmul.f32 %v7118, %v7131
  %v7134 = vmul.f32 %v7119, %v7131
  %v7135 = vmul.f32 %v7120, %v7131
  %v7136 = vmul.f32 %v7121, %v7131
  %v7137 = vmul.f32 %v7122, %v7131
  %v7138 = vmul.f32 %v7123, %v7131
  %v7139 = vmul.f32 %v7124, %v7131
  %v7140 = vmul.f32 %v7125, %v7131
  %v7141 = vmul.f32 %v7126, %v7131
  %v7143 = vlaneseq
  %v7144 = vshrl.u32 %v7143, 7
  %v7145 = vsub.s32 0, %v7144
  %v7146 = vrot.slane %v7027, %v7145
  %v7148 = vadd.f32 %v7133, %v7146
  %v7149 = vadd.f32 %v7134, %v7146
  %v7150 = vadd.f32 %v7135, %v7146
  %v7151 = vadd.f32 %v7136, %v7146
  %v7152 = vadd.f32 %v7137, %v7146
  %v7153 = vadd.f32 %v7138, %v7146
  %v7154 = vadd.f32 %v7139, %v7146
  %v7155 = vadd.f32 %v7140, %v7146
  %v7156 = vadd.f32 %v7141, %v7146
  %v7157 = vpack.c.bf16 %v7149, %v7148
  %v7158 = vpack.c.bf16 %v7151, %v7150
  %v7159 = vpack.c.bf16 %v7153, %v7152
  %v7160 = vpack.c.bf16 %v7155, %v7154
  %v7161 = vpack.c.bf16 %v7156, %v7156
  %s7162 = scalar_lea.vmem %s31, 192
  %v7163 = vld [vmem:[%s7162] sm:$0xff]
  %v7164 = vld [vmem:[%s7162 + $0x8] sm:$0xf]
  %v7165 = vld [vmem:[%s7162 + $0xc] sm:$0xff]
  %v7166 = vld [vmem:[%s7162 + $0x14] sm:$0xf]
  %v7167 = vld [vmem:[%s7162 + $0x18] sm:$0xff]
  %v7168 = vld [vmem:[%s7162 + $0x20] sm:$0xf]
  %v7169 = vld [vmem:[%s7162 + $0x24] sm:$0xff]
  %v7170 = vld [vmem:[%s7162 + $0x2c] sm:$0xf]
  %v7171 = vld [vmem:[%s7162 + $0x30] sm:$0xff]
  %v7172 = vld [vmem:[%s7162 + $0x38] sm:$0xf]
  %v7173 = vld [vmem:[%s7162 + $0x3c] sm:$0xff]
  %v7174 = vld [vmem:[%s7162 + $0x44] sm:$0xf]
  %v7175 = vld [vmem:[%s7162 + $0x48] sm:$0xff]
  %v7176 = vld [vmem:[%s7162 + $0x50] sm:$0xf]
  %v7177 = vld [vmem:[%s7162 + $0x54] sm:$0xff]
  %v7178 = vld [vmem:[%s7162 + $0x5c] sm:$0xf]
  %v7179 = vld [vmem:[%s7162 + $0x60] sm:$0xff]
  %v7180 = vld [vmem:[%s7162 + $0x68] sm:$0xf]
  %v7181 = vld [vmem:[%s7162 + $0x6c] sm:$0xff]
  %v7182 = vld [vmem:[%s7162 + $0x74] sm:$0xf]
  %v7183 = vld [vmem:[%s7162 + $0x78] sm:$0xff]
  %v7184 = vld [vmem:[%s7162 + $0x80] sm:$0xf]
  %v7185 = vld [vmem:[%s7162 + $0x84] sm:$0xff]
  %v7186 = vld [vmem:[%s7162 + $0x8c] sm:$0xf]
  %v7187 = vld [vmem:[%s7162 + $0x90] sm:$0xff]
  %v7188 = vld [vmem:[%s7162 + $0x98] sm:$0xf]
  %v7189 = vld [vmem:[%s7162 + $0x9c] sm:$0xff]
  %v7190 = vld [vmem:[%s7162 + $0xa4] sm:$0xf]
  %v7191 = vld [vmem:[%s7162 + $0xa8] sm:$0xff]
  %v7192 = vld [vmem:[%s7162 + $0xb0] sm:$0xf]
  %v7193 = vld [vmem:[%s7162 + $0xb4] sm:$0xff]
  %v7194 = vld [vmem:[%s7162 + $0xbc] sm:$0xf]
  %s7195 = scalar_lea.vmem %s33, 3
  %v7196 = vld [vmem:[%s7195] sm:$0x7]
  %v7198 = vlaneseq
  %v7199 = vshrl.u32 %v7198, 7
  %v7200 = vsub.s32 0, %v7199
  %v7201 = vrot.slane %v7196, %v7200
  %v7202 = vlaneseq
  %v7203 = vshrl.u32 %v7202, 7
  %v7204 = vsub.s32 1, %v7203
  %v7205 = vrot.slane %v7196, %v7204
  %v7206 = vlaneseq
  %v7207 = vshrl.u32 %v7206, 7
  %v7208 = vsub.s32 2, %v7207
  %v7209 = vrot.slane %v7196, %v7208
  %v7245 = vunpack.c.l.b16 %v7163
  %v7246 = vunpack.c.h.b16 %v7163
  %v7247 = vunpack.c.l.b16 %v7164
  %v7248 = vunpack.c.l.b16 %v7165
  %v7249 = vunpack.c.h.b16 %v7165
  %v7250 = vunpack.c.l.b16 %v7166
  %v7251 = vunpack.c.l.b16 %v7167
  %v7252 = vunpack.c.h.b16 %v7167
  %v7253 = vunpack.c.l.b16 %v7168
  %v7254 = vunpack.c.l.b16 %v7169
  %v7255 = vunpack.c.h.b16 %v7169
  %v7256 = vunpack.c.l.b16 %v7170
  %v7257 = vunpack.c.l.b16 %v7171
  %v7258 = vunpack.c.h.b16 %v7171
  %v7259 = vunpack.c.l.b16 %v7172
  %v7260 = vunpack.c.l.b16 %v7173
  %v7261 = vunpack.c.h.b16 %v7173
  %v7262 = vunpack.c.l.b16 %v7174
  %v7263 = vunpack.c.l.b16 %v7175
  %v7264 = vunpack.c.h.b16 %v7175
  %v7265 = vunpack.c.l.b16 %v7176
  %v7266 = vunpack.c.l.b16 %v7177
  %v7267 = vunpack.c.h.b16 %v7177
  %v7268 = vunpack.c.l.b16 %v7178
  %v7269 = vunpack.c.l.b16 %v7179
  %v7270 = vunpack.c.h.b16 %v7179
  %v7271 = vunpack.c.l.b16 %v7180
  %v7272 = vunpack.c.l.b16 %v7181
  %v7273 = vunpack.c.h.b16 %v7181
  %v7274 = vunpack.c.l.b16 %v7182
  %v7275 = vunpack.c.l.b16 %v7183
  %v7276 = vunpack.c.h.b16 %v7183
  %v7277 = vunpack.c.l.b16 %v7184
  %v7278 = vunpack.c.l.b16 %v7185
  %v7279 = vunpack.c.h.b16 %v7185
  %v7280 = vunpack.c.l.b16 %v7186
  %v7281 = vunpack.c.l.b16 %v7187
  %v7282 = vunpack.c.h.b16 %v7187
  %v7283 = vunpack.c.l.b16 %v7188
  %v7284 = vunpack.c.l.b16 %v7189
  %v7285 = vunpack.c.h.b16 %v7189
  %v7286 = vunpack.c.l.b16 %v7190
  %v7287 = vunpack.c.l.b16 %v7191
  %v7288 = vunpack.c.h.b16 %v7191
  %v7289 = vunpack.c.l.b16 %v7192
  %v7290 = vunpack.c.l.b16 %v7193
  %v7291 = vunpack.c.h.b16 %v7193
  %v7292 = vunpack.c.l.b16 %v7194
  %v7293 = vpack.c.b16 %v7248, %v7245
  %v7294 = vpack.c.b16 %v7249, %v7246
  %v7295 = vpack.c.b16 %v7250, %v7247
  %v7296 = vpack.c.b16 %v7254, %v7251
  %v7297 = vpack.c.b16 %v7255, %v7252
  %v7298 = vpack.c.b16 %v7256, %v7253
  %v7299 = vpack.c.b16 %v7260, %v7257
  %v7300 = vpack.c.b16 %v7261, %v7258
  %v7301 = vpack.c.b16 %v7262, %v7259
  %v7302 = vpack.c.b16 %v7266, %v7263
  %v7303 = vpack.c.b16 %v7267, %v7264
  %v7304 = vpack.c.b16 %v7268, %v7265
  %v7305 = vpack.c.b16 %v7272, %v7269
  %v7306 = vpack.c.b16 %v7273, %v7270
  %v7307 = vpack.c.b16 %v7274, %v7271
  %v7308 = vpack.c.b16 %v7278, %v7275
  %v7309 = vpack.c.b16 %v7279, %v7276
  %v7310 = vpack.c.b16 %v7280, %v7277
  %v7311 = vpack.c.b16 %v7284, %v7281
  %v7312 = vpack.c.b16 %v7285, %v7282
  %v7313 = vpack.c.b16 %v7286, %v7283
  %v7314 = vpack.c.b16 %v7290, %v7287
  %v7315 = vpack.c.b16 %v7291, %v7288
  %v7316 = vpack.c.b16 %v7292, %v7289
  %7341 = vmatprep.subr.bf16.mxu0 %v7315
  %7342 = vmatpush1.bf16.msra.mxu0 %v7314
  %7343 = vmatprep.subr.bf16.mxu0 %v7312
  %7344 = vmatpush1.bf16.msra.mxu0 %v7311
  %7345 = vmatprep.subr.bf16.mxu0 %v7309
  %7346 = vmatpush1.bf16.msra.mxu0 %v7308
  %7347 = vmatprep.subr.bf16.mxu0 %v7306
  %7348 = vmatpush1.bf16.msra.mxu0 %v7305
  %7349 = vmatprep.subr.bf16.mxu0 %v7303
  %7350 = vmatpush1.bf16.msra.mxu0 %v7302
  %7351 = vmatprep.subr.bf16.mxu0 %v7300
  %7352 = vmatpush1.bf16.msra.mxu0 %v7299
  %7353 = vmatprep.subr.bf16.mxu0 %v7297
  %7354 = vmatpush1.bf16.msra.mxu0 %v7296
  %7355 = vmatprep.subr.bf16.mxu0 %v7294
  %7356 = vmatpush1.bf16.msra.mxu0 %v7293
  %7357 = vmatprep.subr.bf16.mxu0 0
  %7358 = vmatpush2.bf16.msra.mxu0 0
  %7359 = vmatprep.subr.bf16.mxu0 0
  %7360 = vmatpush2.bf16.msra.mxu0 0
  %7361 = vmatprep.subr.bf16.mxu0 0
  %7362 = vmatpush2.bf16.msra.mxu0 0
  %7363 = vmatprep.subr.bf16.mxu0 0
  %7364 = vmatpush2.bf16.msra.mxu0 0
  %7365 = vmatprep.subr.bf16.mxu0 0
  %7366 = vmatpush2.bf16.msra.mxu0 0
  %7367 = vmatprep.subr.bf16.mxu0 0
  %7368 = vmatpush2.bf16.msra.mxu0 0
  %7369 = vmatprep.subr.bf16.mxu0 0
  %7370 = vmatpush2.bf16.msra.mxu0 0
  %7371 = vmatprep.subr.bf16.mxu0 0
  %7372 = vmatpush2.bf16.msra.mxu0 0
  %7373 = vmatprep.mubr.bf16.mxu0 0
  %7374 = vmatmul.mubr.bf16.gmra.mxu0 %v7157
  %v7375 = vpop.f32.mrf.mxu0
  %v7376 = vadd.f32 %v7201, %v7375
  %v7377 = vpop.f32.mrf.mxu0
  %v7378 = vadd.f32 %v7205, %v7377
  %v7379 = vpop.f32.mrf.mxu0
  %v7380 = vadd.f32 %v7201, %v7379
  %v7381 = vpop.f32.mrf.mxu0
  %v7382 = vadd.f32 %v7205, %v7381
  %7383 = vmatprep.mubr.bf16.mxu0 0
  %7384 = vmatmul.mubr.bf16.gmra.mxu0 %v7158
  %v7385 = vpop.f32.mrf.mxu0
  %v7386 = vadd.f32 %v7201, %v7385
  %v7387 = vpop.f32.mrf.mxu0
  %v7388 = vadd.f32 %v7205, %v7387
  %v7389 = vpop.f32.mrf.mxu0
  %v7390 = vadd.f32 %v7201, %v7389
  %v7391 = vpop.f32.mrf.mxu0
  %v7392 = vadd.f32 %v7205, %v7391
  %7393 = vmatprep.mubr.bf16.mxu0 0
  %7394 = vmatmul.mubr.bf16.gmra.mxu0 %v7159
  %v7395 = vpop.f32.mrf.mxu0
  %v7396 = vadd.f32 %v7201, %v7395
  %v7397 = vpop.f32.mrf.mxu0
  %v7398 = vadd.f32 %v7205, %v7397
  %v7399 = vpop.f32.mrf.mxu0
  %v7400 = vadd.f32 %v7201, %v7399
  %v7401 = vpop.f32.mrf.mxu0
  %v7402 = vadd.f32 %v7205, %v7401
  %7403 = vmatprep.mubr.bf16.mxu0 0
  %7404 = vmatmul.mubr.bf16.gmra.mxu0 %v7160
  %v7405 = vpop.f32.mrf.mxu0
  %v7406 = vadd.f32 %v7201, %v7405
  %v7407 = vpop.f32.mrf.mxu0
  %v7408 = vadd.f32 %v7205, %v7407
  %v7409 = vpop.f32.mrf.mxu0
  %v7410 = vadd.f32 %v7201, %v7409
  %v7411 = vpop.f32.mrf.mxu0
  %v7412 = vadd.f32 %v7205, %v7411
  %7413 = vmatprep.mubr.bf16.mxu0 0
  %7414 = vmatmul.mubr.bf16.gmra.mxu0 %v7161
  %v7415 = vpop.f32.mrf.mxu0
  %v7416 = vadd.f32 %v7201, %v7415
  %v7417 = vpop.f32.mrf.mxu0
  %v7418 = vadd.f32 %v7205, %v7417
  %v7419 = vpop.f32.mrf.mxu0
  %v7420 = vpop.f32.mrf.mxu0
  %7421 = vdwg.mxu0
  %7422 = vmatprep.subr.bf16.mxu0 0
  %7423 = vmatpush1.bf16.msra.mxu0 %v7316
  %7424 = vmatprep.subr.bf16.mxu0 0
  %7425 = vmatpush1.bf16.msra.mxu0 %v7313
  %7426 = vmatprep.subr.bf16.mxu0 0
  %7427 = vmatpush1.bf16.msra.mxu0 %v7310
  %7428 = vmatprep.subr.bf16.mxu0 0
  %7429 = vmatpush1.bf16.msra.mxu0 %v7307
  %7430 = vmatprep.subr.bf16.mxu0 0
  %7431 = vmatpush1.bf16.msra.mxu0 %v7304
  %7432 = vmatprep.subr.bf16.mxu0 0
  %7433 = vmatpush1.bf16.msra.mxu0 %v7301
  %7434 = vmatprep.subr.bf16.mxu0 0
  %7435 = vmatpush1.bf16.msra.mxu0 %v7298
  %7436 = vmatprep.subr.bf16.mxu0 0
  %7437 = vmatpush1.bf16.msra.mxu0 %v7295
  %7438 = vmatprep.subr.bf16.mxu0 0
  %7439 = vmatpush2.bf16.msra.mxu0 0
  %7440 = vmatprep.subr.bf16.mxu0 0
  %7441 = vmatpush2.bf16.msra.mxu0 0
  %7442 = vmatprep.subr.bf16.mxu0 0
  %7443 = vmatpush2.bf16.msra.mxu0 0
  %7444 = vmatprep.subr.bf16.mxu0 0
  %7445 = vmatpush2.bf16.msra.mxu0 0
  %7446 = vmatprep.subr.bf16.mxu0 0
  %7447 = vmatpush2.bf16.msra.mxu0 0
  %7448 = vmatprep.subr.bf16.mxu0 0
  %7449 = vmatpush2.bf16.msra.mxu0 0
  %7450 = vmatprep.subr.bf16.mxu0 0
  %7451 = vmatpush2.bf16.msra.mxu0 0
  %7452 = vmatprep.subr.bf16.mxu0 0
  %7453 = vmatpush2.bf16.msra.mxu0 0
  %7454 = vmatprep.mubr.bf16.mxu0 0
  %7455 = vmatmul.mubr.bf16.gmra.mxu0 %v7157
  %v7456 = vpop.f32.mrf.mxu0
  %v7457 = vadd.f32 %v7209, %v7456
  %v7458 = vpop.f32.mrf.mxu0
  %v7459 = vpop.f32.mrf.mxu0
  %v7460 = vadd.f32 %v7209, %v7459
  %v7461 = vpop.f32.mrf.mxu0
  %7462 = vmatprep.mubr.bf16.mxu0 0
  %7463 = vmatmul.mubr.bf16.gmra.mxu0 %v7158
  %v7464 = vpop.f32.mrf.mxu0
  %v7465 = vadd.f32 %v7209, %v7464
  %v7466 = vpop.f32.mrf.mxu0
  %v7467 = vpop.f32.mrf.mxu0
  %v7468 = vadd.f32 %v7209, %v7467
  %v7469 = vpop.f32.mrf.mxu0
  %7470 = vmatprep.mubr.bf16.mxu0 0
  %7471 = vmatmul.mubr.bf16.gmra.mxu0 %v7159
  %v7472 = vpop.f32.mrf.mxu0
  %v7473 = vadd.f32 %v7209, %v7472
  %v7474 = vpop.f32.mrf.mxu0
  %v7475 = vpop.f32.mrf.mxu0
  %v7476 = vadd.f32 %v7209, %v7475
  %v7477 = vpop.f32.mrf.mxu0
  %7478 = vmatprep.mubr.bf16.mxu0 0
  %7479 = vmatmul.mubr.bf16.gmra.mxu0 %v7160
  %v7480 = vpop.f32.mrf.mxu0
  %v7481 = vadd.f32 %v7209, %v7480
  %v7482 = vpop.f32.mrf.mxu0
  %v7483 = vpop.f32.mrf.mxu0
  %v7484 = vadd.f32 %v7209, %v7483
  %v7485 = vpop.f32.mrf.mxu0
  %7486 = vmatprep.mubr.bf16.mxu0 0
  %7487 = vmatmul.mubr.bf16.gmra.mxu0 %v7161
  %v7488 = vpop.f32.mrf.mxu0
  %v7489 = vadd.f32 %v7209, %v7488
  %v7490 = vpop.f32.mrf.mxu0
  %v7491 = vpop.f32.mrf.mxu0
  %v7492 = vpop.f32.mrf.mxu0
  %7493 = vdwg.mxu0
  %v7494 = vmul.f32 %v7376, 0.125
  %v7495 = vmul.f32 %v7380, 0.125
  %v7496 = vmul.f32 %v7386, 0.125
  %v7497 = vmul.f32 %v7390, 0.125
  %v7498 = vmul.f32 %v7396, 0.125
  %v7499 = vmul.f32 %v7400, 0.125
  %v7500 = vmul.f32 %v7406, 0.125
  %v7501 = vmul.f32 %v7410, 0.125
  %v7502 = vmul.f32 %v7416, 0.125
  %v7503 = vpack.c.bf16 %v7495, %v7494
  %v7504 = vpack.c.bf16 %v7497, %v7496
  %v7505 = vpack.c.bf16 %v7499, %v7498
  %v7506 = vpack.c.bf16 %v7501, %v7500
  %v7507 = vpack.c.bf16 %v7502, %v7502
  %v7508 = vpack.c.bf16 %v7460, %v7457
  %v7509 = vpack.c.bf16 %v7468, %v7465
  %v7510 = vpack.c.bf16 %v7476, %v7473
  %v7511 = vpack.c.bf16 %v7484, %v7481
  %v7512 = vpack.c.bf16 %v7489, %v7489
  %7513 = vxpose.xlu0.b32.start [1/16] %v7378, 128
  %7514 = vxpose.xlu0.b32.cont [2/16] %v7382, 128
  %7515 = vxpose.xlu0.b32.cont [3/16] %v7388, 128
  %7516 = vxpose.xlu0.b32.cont [4/16] %v7392, 128
  %7517 = vxpose.xlu0.b32.cont [5/16] %v7398, 128
  %7518 = vxpose.xlu0.b32.cont [6/16] %v7402, 128
  %7519 = vxpose.xlu0.b32.cont [7/16] %v7408, 128
  %7520 = vxpose.xlu0.b32.cont [8/16] %v7412, 128
  %7521 = vxpose.xlu0.b32.cont [9/16] %v7418, 128
  %7522 = vxpose.xlu0.b32.cont [10/16] 0.0, 128
  %7523 = vxpose.xlu0.b32.cont [11/16] 0.0, 128
  %7524 = vxpose.xlu0.b32.cont [12/16] 0.0, 128
  %7525 = vxpose.xlu0.b32.cont [13/16] 0.0, 128
  %7526 = vxpose.xlu0.b32.cont [14/16] 0.0, 128
  %7527 = vxpose.xlu0.b32.cont [15/16] 0.0, 128
  %7528 = vxpose.xlu0.b32.end [16/16] 0.0, 128
  %v7529 = vpop.trf.xlu0
  %v7530 = vpop.trf.xlu0
  %v7531 = vpop.trf.xlu0
  %v7532 = vpop.trf.xlu0
  %v7533 = vpop.trf.xlu0
  %v7534 = vpop.trf.xlu0
  %v7535 = vpop.trf.xlu0
  %v7536 = vpop.trf.xlu0
  %v7537 = vpop.trf.xlu0
  %v7538 = vpop.trf.xlu0
  %v7539 = vpop.trf.xlu0
  %v7540 = vpop.trf.xlu0
  %v7541 = vpop.trf.xlu0
  %v7542 = vpop.trf.xlu0
  %v7543 = vpop.trf.xlu0
  %v7544 = vpop.trf.xlu0
  %v7545 = vpack.c.bf16 %v7530, %v7529
  %v7546 = vpack.c.bf16 %v7532, %v7531
  %v7547 = vpack.c.bf16 %v7534, %v7533
  %v7548 = vpack.c.bf16 %v7536, %v7535
  %v7550 = vsel %vm314, %v7503, 0
  %v7553 = vsel %vm314, %v7504, 0
  %v7556 = vsel %vm314, %v7505, 0
  %v7559 = vsel %vm314, %v7506, 0
  %v7562 = vsel %vm314, %v7507, 0
  %7564 = vmatprep.subr.bf16.mxu0 0
  %7565 = vmatpush1.bf16.msra.mxu0 0
  %7566 = vmatprep.subr.bf16.mxu0 0
  %7567 = vmatpush1.bf16.msra.mxu0 0
  %7568 = vmatprep.subr.bf16.mxu0 0
  %7569 = vmatpush1.bf16.msra.mxu0 0
  %7570 = vmatprep.subr.bf16.mxu0 0
  %7571 = vmatpush1.bf16.msra.mxu0 0
  %7572 = vmatprep.subr.bf16.mxu0 0
  %7573 = vmatpush1.bf16.msra.mxu0 %v7548
  %7574 = vmatprep.subr.bf16.mxu0 0
  %7575 = vmatpush1.bf16.msra.mxu0 %v7547
  %7576 = vmatprep.subr.bf16.mxu0 0
  %7577 = vmatpush1.bf16.msra.mxu0 %v7546
  %7578 = vmatprep.subr.bf16.mxu0 0
  %7579 = vmatpush1.bf16.msra.mxu0 %v7545
  %7580 = vmatprep.subr.bf16.mxu0 0
  %7581 = vmatpush2.bf16.msra.mxu0 0
  %7582 = vmatprep.subr.bf16.mxu0 0
  %7583 = vmatpush2.bf16.msra.mxu0 0
  %7584 = vmatprep.subr.bf16.mxu0 0
  %7585 = vmatpush2.bf16.msra.mxu0 0
  %7586 = vmatprep.subr.bf16.mxu0 0
  %7587 = vmatpush2.bf16.msra.mxu0 0
  %7588 = vmatprep.subr.bf16.mxu0 0
  %7589 = vmatpush2.bf16.msra.mxu0 0
  %7590 = vmatprep.subr.bf16.mxu0 0
  %7591 = vmatpush2.bf16.msra.mxu0 0
  %7592 = vmatprep.subr.bf16.mxu0 0
  %7593 = vmatpush2.bf16.msra.mxu0 0
  %7594 = vmatprep.subr.bf16.mxu0 0
  %7595 = vmatpush2.bf16.msra.mxu0 0
  %7596 = vmatprep.mubr.bf16.mxu0 0
  %7597 = vmatmul.mubr.bf16.gmra.mxu0 %v7550
  %v7598 = vpop.f32.mrf.mxu0
  %v7599 = vadd.f32 %v2177, %v7598
  %v7600 = vpop.f32.mrf.mxu0
  %v7601 = vpop.f32.mrf.mxu0
  %v7602 = vadd.f32 %v2178, %v7601
  %v7603 = vpop.f32.mrf.mxu0
  %7604 = vmatprep.mubr.bf16.mxu0 0
  %7605 = vmatmul.mubr.bf16.gmra.mxu0 %v7553
  %v7606 = vpop.f32.mrf.mxu0
  %v7607 = vadd.f32 %v2179, %v7606
  %v7608 = vpop.f32.mrf.mxu0
  %v7609 = vpop.f32.mrf.mxu0
  %v7610 = vadd.f32 %v2180, %v7609
  %v7611 = vpop.f32.mrf.mxu0
  %7612 = vmatprep.mubr.bf16.mxu0 0
  %7613 = vmatmul.mubr.bf16.gmra.mxu0 %v7556
  %v7614 = vpop.f32.mrf.mxu0
  %v7615 = vadd.f32 %v2181, %v7614
  %v7616 = vpop.f32.mrf.mxu0
  %v7617 = vpop.f32.mrf.mxu0
  %v7618 = vadd.f32 %v2182, %v7617
  %v7619 = vpop.f32.mrf.mxu0
  %7620 = vmatprep.mubr.bf16.mxu0 0
  %7621 = vmatmul.mubr.bf16.gmra.mxu0 %v7559
  %v7622 = vpop.f32.mrf.mxu0
  %v7623 = vadd.f32 %v2183, %v7622
  %v7624 = vpop.f32.mrf.mxu0
  %v7625 = vpop.f32.mrf.mxu0
  %v7626 = vadd.f32 %v2184, %v7625
  %v7627 = vpop.f32.mrf.mxu0
  %7628 = vmatprep.mubr.bf16.mxu0 0
  %7629 = vmatmul.mubr.bf16.gmra.mxu0 %v7562
  %v7630 = vpop.f32.mrf.mxu0
  %v7631 = vadd.f32 %v2185, %v7630
  %v7632 = vpop.f32.mrf.mxu0
  %v7633 = vpop.f32.mrf.mxu0
  %v7634 = vpop.f32.mrf.mxu0
  %7635 = vdwg.mxu0
  %v7636 = vsel %vm2663, %v7599, -inf
  %7637 = vmax.xlane.f32.xlu0 %v7636
  %v7638 = vpop.xlane.xlu0 %7637
  %v7639 = vsel %vm2663, %v7602, -inf
  %7640 = vmax.xlane.f32.xlu0 %v7639
  %v7641 = vpop.xlane.xlu0 %7640
  %v7642 = vsel %vm2663, %v7607, -inf
  %7643 = vmax.xlane.f32.xlu0 %v7642
  %v7644 = vpop.xlane.xlu0 %7643
  %v7645 = vsel %vm2663, %v7610, -inf
  %7646 = vmax.xlane.f32.xlu0 %v7645
  %v7647 = vpop.xlane.xlu0 %7646
  %v7648 = vsel %vm2663, %v7615, -inf
  %7649 = vmax.xlane.f32.xlu0 %v7648
  %v7650 = vpop.xlane.xlu0 %7649
  %v7651 = vsel %vm2663, %v7618, -inf
  %7652 = vmax.xlane.f32.xlu0 %v7651
  %v7653 = vpop.xlane.xlu0 %7652
  %v7654 = vsel %vm2663, %v7623, -inf
  %7655 = vmax.xlane.f32.xlu0 %v7654
  %v7656 = vpop.xlane.xlu0 %7655
  %v7657 = vsel %vm2663, %v7626, -inf
  %7658 = vmax.xlane.f32.xlu0 %v7657
  %v7659 = vpop.xlane.xlu0 %7658
  %v7660 = vsel %vm2663, %v7631, -inf
  %7661 = vmax.xlane.f32.xlu0 %v7660
  %v7662 = vpop.xlane.xlu0 %7661
  %v7663 = vsub.f32 %v7599, %v7638
  %v7664 = vsub.f32 %v7602, %v7641
  %v7665 = vsub.f32 %v7607, %v7644
  %v7666 = vsub.f32 %v7610, %v7647
  %v7667 = vsub.f32 %v7615, %v7650
  %v7668 = vsub.f32 %v7618, %v7653
  %v7669 = vsub.f32 %v7623, %v7656
  %v7670 = vsub.f32 %v7626, %v7659
  %v7671 = vsub.f32 %v7631, %v7662
  %v7672 = vmul.f32 %v7663, 1.442695
  %v7673 = vpow.pop %v7672
  %v7674 = vmul.f32 %v7664, 1.442695
  %v7675 = vpow.pop %v7674
  %v7676 = vmul.f32 %v7665, 1.442695
  %v7677 = vpow.pop %v7676
  %v7678 = vmul.f32 %v7666, 1.442695
  %v7679 = vpow.pop %v7678
  %v7680 = vmul.f32 %v7667, 1.442695
  %v7681 = vpow.pop %v7680
  %v7682 = vmul.f32 %v7668, 1.442695
  %v7683 = vpow.pop %v7682
  %v7684 = vmul.f32 %v7669, 1.442695
  %v7685 = vpow.pop %v7684
  %v7686 = vmul.f32 %v7670, 1.442695
  %v7687 = vpow.pop %v7686
  %v7688 = vmul.f32 %v7671, 1.442695
  %v7689 = vpow.pop %v7688
  %v7690 = vsel %vm2663, %v7673, 0.0
  %7691 = vadd.xlane.f32.xlu0 %v7690
  %v7692 = vpop.xlane.xlu0 %7691
  %v7693 = vsel %vm2663, %v7675, 0.0
  %7694 = vadd.xlane.f32.xlu0 %v7693
  %v7695 = vpop.xlane.xlu0 %7694
  %v7696 = vsel %vm2663, %v7677, 0.0
  %7697 = vadd.xlane.f32.xlu0 %v7696
  %v7698 = vpop.xlane.xlu0 %7697
  %v7699 = vsel %vm2663, %v7679, 0.0
  %7700 = vadd.xlane.f32.xlu0 %v7699
  %v7701 = vpop.xlane.xlu0 %7700
  %v7702 = vsel %vm2663, %v7681, 0.0
  %7703 = vadd.xlane.f32.xlu0 %v7702
  %v7704 = vpop.xlane.xlu0 %7703
  %v7705 = vsel %vm2663, %v7683, 0.0
  %7706 = vadd.xlane.f32.xlu0 %v7705
  %v7707 = vpop.xlane.xlu0 %7706
  %v7708 = vsel %vm2663, %v7685, 0.0
  %7709 = vadd.xlane.f32.xlu0 %v7708
  %v7710 = vpop.xlane.xlu0 %7709
  %v7711 = vsel %vm2663, %v7687, 0.0
  %7712 = vadd.xlane.f32.xlu0 %v7711
  %v7713 = vpop.xlane.xlu0 %7712
  %v7714 = vsel %vm2663, %v7689, 0.0
  %7715 = vadd.xlane.f32.xlu0 %v7714
  %v7716 = vpop.xlane.xlu0 %7715
  %v7717 = vrcp.pop %v7692
  %v7718 = vrcp.pop %v7695
  %v7719 = vrcp.pop %v7698
  %v7720 = vrcp.pop %v7701
  %v7721 = vrcp.pop %v7704
  %v7722 = vrcp.pop %v7707
  %v7723 = vrcp.pop %v7710
  %v7724 = vrcp.pop %v7713
  %v7725 = vrcp.pop %v7716
  %v7726 = vmul.f32 %v7673, %v7717
  %v7727 = vmul.f32 %v7675, %v7718
  %v7728 = vmul.f32 %v7677, %v7719
  %v7729 = vmul.f32 %v7679, %v7720
  %v7730 = vmul.f32 %v7681, %v7721
  %v7731 = vmul.f32 %v7683, %v7722
  %v7732 = vmul.f32 %v7685, %v7723
  %v7733 = vmul.f32 %v7687, %v7724
  %v7734 = vmul.f32 %v7689, %v7725
  %v7735 = vpack.c.bf16 %v7727, %v7726
  %v7736 = vpack.c.bf16 %v7729, %v7728
  %v7737 = vpack.c.bf16 %v7731, %v7730
  %v7738 = vpack.c.bf16 %v7733, %v7732
  %v7739 = vpack.c.bf16 %v7734, %v7734
  %v7741 = vsel %vm2663, %v7735, 0
  %v7744 = vsel %vm2663, %v7736, 0
  %v7747 = vsel %vm2663, %v7737, 0
  %v7750 = vsel %vm2663, %v7738, 0
  %v7753 = vsel %vm2663, %v7739, 0
  %v7756 = vsel %vm181, %v7512, 0
  %7758 = vmatprep.subr.bf16.mxu0 0
  %7759 = vmatpush1.bf16.msra.mxu0 0
  %7760 = vmatprep.subr.bf16.mxu0 0
  %7761 = vmatpush1.bf16.msra.mxu0 0
  %7762 = vmatprep.subr.bf16.mxu0 0
  %7763 = vmatpush1.bf16.msra.mxu0 0
  %7764 = vmatprep.subr.bf16.mxu0 0
  %7765 = vmatpush1.bf16.msra.mxu0 %v7756
  %7766 = vmatprep.subr.bf16.mxu0 0
  %7767 = vmatpush1.bf16.msra.mxu0 %v7511
  %7768 = vmatprep.subr.bf16.mxu0 0
  %7769 = vmatpush1.bf16.msra.mxu0 %v7510
  %7770 = vmatprep.subr.bf16.mxu0 0
  %7771 = vmatpush1.bf16.msra.mxu0 %v7509
  %7772 = vmatprep.subr.bf16.mxu0 0
  %7773 = vmatpush1.bf16.msra.mxu0 %v7508
  %7774 = vmatprep.subr.bf16.mxu0 0
  %7775 = vmatpush2.bf16.msra.mxu0 0
  %7776 = vmatprep.subr.bf16.mxu0 0
  %7777 = vmatpush2.bf16.msra.mxu0 0
  %7778 = vmatprep.subr.bf16.mxu0 0
  %7779 = vmatpush2.bf16.msra.mxu0 0
  %7780 = vmatprep.subr.bf16.mxu0 0
  %7781 = vmatpush2.bf16.msra.mxu0 0
  %7782 = vmatprep.subr.bf16.mxu0 0
  %7783 = vmatpush2.bf16.msra.mxu0 0
  %7784 = vmatprep.subr.bf16.mxu0 0
  %7785 = vmatpush2.bf16.msra.mxu0 0
  %7786 = vmatprep.subr.bf16.mxu0 0
  %7787 = vmatpush2.bf16.msra.mxu0 0
  %7788 = vmatprep.subr.bf16.mxu0 0
  %7789 = vmatpush2.bf16.msra.mxu0 0
  %7790 = vmatprep.mubr.bf16.mxu0 0
  %7791 = vmatmul.mubr.bf16.gmra.mxu0 %v7741
  %v7792 = vpop.f32.mrf.mxu0
  %v7793 = vadd.f32 0.0, %v7792
  %v7794 = vpop.f32.mrf.mxu0
  %v7795 = vpop.f32.mrf.mxu0
  %v7796 = vadd.f32 0.0, %v7795
  %v7797 = vpop.f32.mrf.mxu0
  %7798 = vmatprep.mubr.bf16.mxu0 0
  %7799 = vmatmul.mubr.bf16.gmra.mxu0 %v7744
  %v7800 = vpop.f32.mrf.mxu0
  %v7801 = vadd.f32 0.0, %v7800
  %v7802 = vpop.f32.mrf.mxu0
  %v7803 = vpop.f32.mrf.mxu0
  %v7804 = vadd.f32 0.0, %v7803
  %v7805 = vpop.f32.mrf.mxu0
  %7806 = vmatprep.mubr.bf16.mxu0 0
  %7807 = vmatmul.mubr.bf16.gmra.mxu0 %v7747
  %v7808 = vpop.f32.mrf.mxu0
  %v7809 = vadd.f32 0.0, %v7808
  %v7810 = vpop.f32.mrf.mxu0
  %v7811 = vpop.f32.mrf.mxu0
  %v7812 = vadd.f32 0.0, %v7811
  %v7813 = vpop.f32.mrf.mxu0
  %7814 = vmatprep.mubr.bf16.mxu0 0
  %7815 = vmatmul.mubr.bf16.gmra.mxu0 %v7750
  %v7816 = vpop.f32.mrf.mxu0
  %v7817 = vadd.f32 0.0, %v7816
  %v7818 = vpop.f32.mrf.mxu0
  %v7819 = vpop.f32.mrf.mxu0
  %v7820 = vadd.f32 0.0, %v7819
  %v7821 = vpop.f32.mrf.mxu0
  %7822 = vmatprep.mubr.bf16.mxu0 0
  %7823 = vmatmul.mubr.bf16.gmra.mxu0 %v7753
  %v7824 = vpop.f32.mrf.mxu0
  %v7825 = vadd.f32 0.0, %v7824
  %v7826 = vpop.f32.mrf.mxu0
  %v7827 = vpop.f32.mrf.mxu0
  %v7828 = vpop.f32.mrf.mxu0
  %7829 = vdwg.mxu0
  %v7830 = vpack.c.bf16 %v7796, %v7793
  %v7831 = vpack.c.bf16 %v7804, %v7801
  %v7832 = vpack.c.bf16 %v7812, %v7809
  %v7833 = vpack.c.bf16 %v7820, %v7817
  %v7834 = vpack.c.bf16 %v7825, %v7825
  %s7835 = scalar_lea.vmem %s35, 64
  %v7836 = vld [vmem:[%s7835] sm:$0xf]
  %v7837 = vld [vmem:[%s7835 + $0x4] sm:$0xf]
  %v7838 = vld [vmem:[%s7835 + $0x8] sm:$0xf]
  %v7839 = vld [vmem:[%s7835 + $0xc] sm:$0xf]
  %v7840 = vld [vmem:[%s7835 + $0x10] sm:$0xf]
  %v7841 = vld [vmem:[%s7835 + $0x14] sm:$0xf]
  %v7842 = vld [vmem:[%s7835 + $0x18] sm:$0xf]
  %v7843 = vld [vmem:[%s7835 + $0x1c] sm:$0xf]
  %7853 = vrot.lane.b32.xlu0 %v7378, 64
  %v7854 = vpop.permute.xlu0 %7853
  %7855 = vrot.lane.b32.xlu0 %v7382, 64
  %v7856 = vpop.permute.xlu0 %7855
  %7857 = vrot.lane.b32.xlu0 %v7388, 64
  %v7858 = vpop.permute.xlu0 %7857
  %7859 = vrot.lane.b32.xlu0 %v7392, 64
  %v7860 = vpop.permute.xlu0 %7859
  %7861 = vrot.lane.b32.xlu0 %v7398, 64
  %v7862 = vpop.permute.xlu0 %7861
  %7863 = vrot.lane.b32.xlu0 %v7402, 64
  %v7864 = vpop.permute.xlu0 %7863
  %7865 = vrot.lane.b32.xlu0 %v7408, 64
  %v7866 = vpop.permute.xlu0 %7865
  %7867 = vrot.lane.b32.xlu0 %v7412, 64
  %v7868 = vpop.permute.xlu0 %7867
  %7869 = vrot.lane.b32.xlu0 %v7418, 64
  %v7870 = vpop.permute.xlu0 %7869
  %7880 = vxpose.xlu0.b32.start [1/16] %v7854, 128
  %7881 = vxpose.xlu0.b32.cont [2/16] %v7856, 128
  %7882 = vxpose.xlu0.b32.cont [3/16] %v7858, 128
  %7883 = vxpose.xlu0.b32.cont [4/16] %v7860, 128
  %7884 = vxpose.xlu0.b32.cont [5/16] %v7862, 128
  %7885 = vxpose.xlu0.b32.cont [6/16] %v7864, 128
  %7886 = vxpose.xlu0.b32.cont [7/16] %v7866, 128
  %7887 = vxpose.xlu0.b32.cont [8/16] %v7868, 128
  %7888 = vxpose.xlu0.b32.cont [9/16] %v7870, 128
  %7889 = vxpose.xlu0.b32.cont [10/16] 0.0, 128
  %7890 = vxpose.xlu0.b32.cont [11/16] 0.0, 128
  %7891 = vxpose.xlu0.b32.cont [12/16] 0.0, 128
  %7892 = vxpose.xlu0.b32.cont [13/16] 0.0, 128
  %7893 = vxpose.xlu0.b32.cont [14/16] 0.0, 128
  %7894 = vxpose.xlu0.b32.cont [15/16] 0.0, 128
  %7895 = vxpose.xlu0.b32.end [16/16] 0.0, 128
  %v7896 = vpop.trf.xlu0
  %v7897 = vpop.trf.xlu0
  %v7898 = vpop.trf.xlu0
  %v7899 = vpop.trf.xlu0
  %v7900 = vpop.trf.xlu0
  %v7901 = vpop.trf.xlu0
  %v7902 = vpop.trf.xlu0
  %v7903 = vpop.trf.xlu0
  %v7904 = vpop.trf.xlu0
  %v7905 = vpop.trf.xlu0
  %v7906 = vpop.trf.xlu0
  %v7907 = vpop.trf.xlu0
  %v7908 = vpop.trf.xlu0
  %v7909 = vpop.trf.xlu0
  %v7910 = vpop.trf.xlu0
  %v7911 = vpop.trf.xlu0
  %v7912 = vpack.c.bf16 %v7897, %v7896
  %v7913 = vpack.c.bf16 %v7899, %v7898
  %v7914 = vpack.c.bf16 %v7901, %v7900
  %v7915 = vpack.c.bf16 %v7903, %v7902
  %7921 = vrot.lane.b32.xlu0 %v7503, 64
  %v7922 = vpop.permute.xlu0 %7921
  %7923 = vrot.lane.b32.xlu0 %v7504, 64
  %v7924 = vpop.permute.xlu0 %7923
  %7925 = vrot.lane.b32.xlu0 %v7505, 64
  %v7926 = vpop.permute.xlu0 %7925
  %7927 = vrot.lane.b32.xlu0 %v7506, 64
  %v7928 = vpop.permute.xlu0 %7927
  %7929 = vrot.lane.b32.xlu0 %v7507, 64
  %v7930 = vpop.permute.xlu0 %7929
  %v7932 = vsel %vm314, %v7922, 0
  %v7935 = vsel %vm314, %v7924, 0
  %v7938 = vsel %vm314, %v7926, 0
  %v7941 = vsel %vm314, %v7928, 0
  %v7944 = vsel %vm314, %v7930, 0
  %7946 = vmatprep.subr.bf16.mxu0 0
  %7947 = vmatpush1.bf16.msra.mxu0 0
  %7948 = vmatprep.subr.bf16.mxu0 0
  %7949 = vmatpush1.bf16.msra.mxu0 0
  %7950 = vmatprep.subr.bf16.mxu0 0
  %7951 = vmatpush1.bf16.msra.mxu0 0
  %7952 = vmatprep.subr.bf16.mxu0 0
  %7953 = vmatpush1.bf16.msra.mxu0 0
  %7954 = vmatprep.subr.bf16.mxu0 0
  %7955 = vmatpush1.bf16.msra.mxu0 %v7915
  %7956 = vmatprep.subr.bf16.mxu0 0
  %7957 = vmatpush1.bf16.msra.mxu0 %v7914
  %7958 = vmatprep.subr.bf16.mxu0 0
  %7959 = vmatpush1.bf16.msra.mxu0 %v7913
  %7960 = vmatprep.subr.bf16.mxu0 0
  %7961 = vmatpush1.bf16.msra.mxu0 %v7912
  %7962 = vmatprep.subr.bf16.mxu0 0
  %7963 = vmatpush2.bf16.msra.mxu0 0
  %7964 = vmatprep.subr.bf16.mxu0 0
  %7965 = vmatpush2.bf16.msra.mxu0 0
  %7966 = vmatprep.subr.bf16.mxu0 0
  %7967 = vmatpush2.bf16.msra.mxu0 0
  %7968 = vmatprep.subr.bf16.mxu0 0
  %7969 = vmatpush2.bf16.msra.mxu0 0
  %7970 = vmatprep.subr.bf16.mxu0 0
  %7971 = vmatpush2.bf16.msra.mxu0 0
  %7972 = vmatprep.subr.bf16.mxu0 0
  %7973 = vmatpush2.bf16.msra.mxu0 0
  %7974 = vmatprep.subr.bf16.mxu0 0
  %7975 = vmatpush2.bf16.msra.mxu0 0
  %7976 = vmatprep.subr.bf16.mxu0 0
  %7977 = vmatpush2.bf16.msra.mxu0 0
  %7978 = vmatprep.mubr.bf16.mxu0 0
  %7979 = vmatmul.mubr.bf16.gmra.mxu0 %v7932
  %v7980 = vpop.f32.mrf.mxu0
  %v7981 = vadd.f32 %v2177, %v7980
  %v7982 = vpop.f32.mrf.mxu0
  %v7983 = vpop.f32.mrf.mxu0
  %v7984 = vadd.f32 %v2178, %v7983
  %v7985 = vpop.f32.mrf.mxu0
  %7986 = vmatprep.mubr.bf16.mxu0 0
  %7987 = vmatmul.mubr.bf16.gmra.mxu0 %v7935
  %v7988 = vpop.f32.mrf.mxu0
  %v7989 = vadd.f32 %v2179, %v7988
  %v7990 = vpop.f32.mrf.mxu0
  %v7991 = vpop.f32.mrf.mxu0
  %v7992 = vadd.f32 %v2180, %v7991
  %v7993 = vpop.f32.mrf.mxu0
  %7994 = vmatprep.mubr.bf16.mxu0 0
  %7995 = vmatmul.mubr.bf16.gmra.mxu0 %v7938
  %v7996 = vpop.f32.mrf.mxu0
  %v7997 = vadd.f32 %v2181, %v7996
  %v7998 = vpop.f32.mrf.mxu0
  %v7999 = vpop.f32.mrf.mxu0
  %v8000 = vadd.f32 %v2182, %v7999
  %v8001 = vpop.f32.mrf.mxu0
  %8002 = vmatprep.mubr.bf16.mxu0 0
  %8003 = vmatmul.mubr.bf16.gmra.mxu0 %v7941
  %v8004 = vpop.f32.mrf.mxu0
  %v8005 = vadd.f32 %v2183, %v8004
  %v8006 = vpop.f32.mrf.mxu0
  %v8007 = vpop.f32.mrf.mxu0
  %v8008 = vadd.f32 %v2184, %v8007
  %v8009 = vpop.f32.mrf.mxu0
  %8010 = vmatprep.mubr.bf16.mxu0 0
  %8011 = vmatmul.mubr.bf16.gmra.mxu0 %v7944
  %v8012 = vpop.f32.mrf.mxu0
  %v8013 = vadd.f32 %v2185, %v8012
  %v8014 = vpop.f32.mrf.mxu0
  %v8015 = vpop.f32.mrf.mxu0
  %v8016 = vpop.f32.mrf.mxu0
  %8017 = vdwg.mxu0
  %v8018 = vsel %vm2663, %v7981, -inf
  %8019 = vmax.xlane.f32.xlu0 %v8018
  %v8020 = vpop.xlane.xlu0 %8019
  %v8021 = vsel %vm2663, %v7984, -inf
  %8022 = vmax.xlane.f32.xlu0 %v8021
  %v8023 = vpop.xlane.xlu0 %8022
  %v8024 = vsel %vm2663, %v7989, -inf
  %8025 = vmax.xlane.f32.xlu0 %v8024
  %v8026 = vpop.xlane.xlu0 %8025
  %v8027 = vsel %vm2663, %v7992, -inf
  %8028 = vmax.xlane.f32.xlu0 %v8027
  %v8029 = vpop.xlane.xlu0 %8028
  %v8030 = vsel %vm2663, %v7997, -inf
  %8031 = vmax.xlane.f32.xlu0 %v8030
  %v8032 = vpop.xlane.xlu0 %8031
  %v8033 = vsel %vm2663, %v8000, -inf
  %8034 = vmax.xlane.f32.xlu0 %v8033
  %v8035 = vpop.xlane.xlu0 %8034
  %v8036 = vsel %vm2663, %v8005, -inf
  %8037 = vmax.xlane.f32.xlu0 %v8036
  %v8038 = vpop.xlane.xlu0 %8037
  %v8039 = vsel %vm2663, %v8008, -inf
  %8040 = vmax.xlane.f32.xlu0 %v8039
  %v8041 = vpop.xlane.xlu0 %8040
  %v8042 = vsel %vm2663, %v8013, -inf
  %8043 = vmax.xlane.f32.xlu0 %v8042
  %v8044 = vpop.xlane.xlu0 %8043
  %v8045 = vsub.f32 %v7981, %v8020
  %v8046 = vsub.f32 %v7984, %v8023
  %v8047 = vsub.f32 %v7989, %v8026
  %v8048 = vsub.f32 %v7992, %v8029
  %v8049 = vsub.f32 %v7997, %v8032
  %v8050 = vsub.f32 %v8000, %v8035
  %v8051 = vsub.f32 %v8005, %v8038
  %v8052 = vsub.f32 %v8008, %v8041
  %v8053 = vsub.f32 %v8013, %v8044
  %v8054 = vmul.f32 %v8045, 1.442695
  %v8055 = vpow.pop %v8054
  %v8056 = vmul.f32 %v8046, 1.442695
  %v8057 = vpow.pop %v8056
  %v8058 = vmul.f32 %v8047, 1.442695
  %v8059 = vpow.pop %v8058
  %v8060 = vmul.f32 %v8048, 1.442695
  %v8061 = vpow.pop %v8060
  %v8062 = vmul.f32 %v8049, 1.442695
  %v8063 = vpow.pop %v8062
  %v8064 = vmul.f32 %v8050, 1.442695
  %v8065 = vpow.pop %v8064
  %v8066 = vmul.f32 %v8051, 1.442695
  %v8067 = vpow.pop %v8066
  %v8068 = vmul.f32 %v8052, 1.442695
  %v8069 = vpow.pop %v8068
  %v8070 = vmul.f32 %v8053, 1.442695
  %v8071 = vpow.pop %v8070
  %v8072 = vsel %vm2663, %v8055, 0.0
  %8073 = vadd.xlane.f32.xlu0 %v8072
  %v8074 = vpop.xlane.xlu0 %8073
  %v8075 = vsel %vm2663, %v8057, 0.0
  %8076 = vadd.xlane.f32.xlu0 %v8075
  %v8077 = vpop.xlane.xlu0 %8076
  %v8078 = vsel %vm2663, %v8059, 0.0
  %8079 = vadd.xlane.f32.xlu0 %v8078
  %v8080 = vpop.xlane.xlu0 %8079
  %v8081 = vsel %vm2663, %v8061, 0.0
  %8082 = vadd.xlane.f32.xlu0 %v8081
  %v8083 = vpop.xlane.xlu0 %8082
  %v8084 = vsel %vm2663, %v8063, 0.0
  %8085 = vadd.xlane.f32.xlu0 %v8084
  %v8086 = vpop.xlane.xlu0 %8085
  %v8087 = vsel %vm2663, %v8065, 0.0
  %8088 = vadd.xlane.f32.xlu0 %v8087
  %v8089 = vpop.xlane.xlu0 %8088
  %v8090 = vsel %vm2663, %v8067, 0.0
  %8091 = vadd.xlane.f32.xlu0 %v8090
  %v8092 = vpop.xlane.xlu0 %8091
  %v8093 = vsel %vm2663, %v8069, 0.0
  %8094 = vadd.xlane.f32.xlu0 %v8093
  %v8095 = vpop.xlane.xlu0 %8094
  %v8096 = vsel %vm2663, %v8071, 0.0
  %8097 = vadd.xlane.f32.xlu0 %v8096
  %v8098 = vpop.xlane.xlu0 %8097
  %v8099 = vrcp.pop %v8074
  %v8100 = vrcp.pop %v8077
  %v8101 = vrcp.pop %v8080
  %v8102 = vrcp.pop %v8083
  %v8103 = vrcp.pop %v8086
  %v8104 = vrcp.pop %v8089
  %v8105 = vrcp.pop %v8092
  %v8106 = vrcp.pop %v8095
  %v8107 = vrcp.pop %v8098
  %v8108 = vmul.f32 %v8055, %v8099
  %v8109 = vmul.f32 %v8057, %v8100
  %v8110 = vmul.f32 %v8059, %v8101
  %v8111 = vmul.f32 %v8061, %v8102
  %v8112 = vmul.f32 %v8063, %v8103
  %v8113 = vmul.f32 %v8065, %v8104
  %v8114 = vmul.f32 %v8067, %v8105
  %v8115 = vmul.f32 %v8069, %v8106
  %v8116 = vmul.f32 %v8071, %v8107
  %v8117 = vpack.c.bf16 %v8109, %v8108
  %v8118 = vpack.c.bf16 %v8111, %v8110
  %v8119 = vpack.c.bf16 %v8113, %v8112
  %v8120 = vpack.c.bf16 %v8115, %v8114
  %v8121 = vpack.c.bf16 %v8116, %v8116
  %8127 = vrot.lane.b32.xlu0 %v7508, 64
  %v8128 = vpop.permute.xlu0 %8127
  %8129 = vrot.lane.b32.xlu0 %v7509, 64
  %v8130 = vpop.permute.xlu0 %8129
  %8131 = vrot.lane.b32.xlu0 %v7510, 64
  %v8132 = vpop.permute.xlu0 %8131
  %8133 = vrot.lane.b32.xlu0 %v7511, 64
  %v8134 = vpop.permute.xlu0 %8133
  %8135 = vrot.lane.b32.xlu0 %v7512, 64
  %v8136 = vpop.permute.xlu0 %8135
  %v8142 = vsel %vm2663, %v8117, 0
  %v8145 = vsel %vm2663, %v8118, 0
  %v8148 = vsel %vm2663, %v8119, 0
  %v8151 = vsel %vm2663, %v8120, 0
  %v8154 = vsel %vm2663, %v8121, 0
  %v8157 = vsel %vm181, %v8136, 0
  %8159 = vmatprep.subr.bf16.mxu0 0
  %8160 = vmatpush1.bf16.msra.mxu0 0
  %8161 = vmatprep.subr.bf16.mxu0 0
  %8162 = vmatpush1.bf16.msra.mxu0 0
  %8163 = vmatprep.subr.bf16.mxu0 0
  %8164 = vmatpush1.bf16.msra.mxu0 0
  %8165 = vmatprep.subr.bf16.mxu0 0
  %8166 = vmatpush1.bf16.msra.mxu0 %v8157
  %8167 = vmatprep.subr.bf16.mxu0 0
  %8168 = vmatpush1.bf16.msra.mxu0 %v8134
  %8169 = vmatprep.subr.bf16.mxu0 0
  %8170 = vmatpush1.bf16.msra.mxu0 %v8132
  %8171 = vmatprep.subr.bf16.mxu0 0
  %8172 = vmatpush1.bf16.msra.mxu0 %v8130
  %8173 = vmatprep.subr.bf16.mxu0 0
  %8174 = vmatpush1.bf16.msra.mxu0 %v8128
  %8175 = vmatprep.subr.bf16.mxu0 0
  %8176 = vmatpush2.bf16.msra.mxu0 0
  %8177 = vmatprep.subr.bf16.mxu0 0
  %8178 = vmatpush2.bf16.msra.mxu0 0
  %8179 = vmatprep.subr.bf16.mxu0 0
  %8180 = vmatpush2.bf16.msra.mxu0 0
  %8181 = vmatprep.subr.bf16.mxu0 0
  %8182 = vmatpush2.bf16.msra.mxu0 0
  %8183 = vmatprep.subr.bf16.mxu0 0
  %8184 = vmatpush2.bf16.msra.mxu0 0
  %8185 = vmatprep.subr.bf16.mxu0 0
  %8186 = vmatpush2.bf16.msra.mxu0 0
  %8187 = vmatprep.subr.bf16.mxu0 0
  %8188 = vmatpush2.bf16.msra.mxu0 0
  %8189 = vmatprep.subr.bf16.mxu0 0
  %8190 = vmatpush2.bf16.msra.mxu0 0
  %8191 = vmatprep.mubr.bf16.mxu0 0
  %8192 = vmatmul.mubr.bf16.gmra.mxu0 %v8142
  %v8193 = vpop.f32.mrf.mxu0
  %v8194 = vadd.f32 0.0, %v8193
  %v8195 = vpop.f32.mrf.mxu0
  %v8196 = vpop.f32.mrf.mxu0
  %v8197 = vadd.f32 0.0, %v8196
  %v8198 = vpop.f32.mrf.mxu0
  %8199 = vmatprep.mubr.bf16.mxu0 0
  %8200 = vmatmul.mubr.bf16.gmra.mxu0 %v8145
  %v8201 = vpop.f32.mrf.mxu0
  %v8202 = vadd.f32 0.0, %v8201
  %v8203 = vpop.f32.mrf.mxu0
  %v8204 = vpop.f32.mrf.mxu0
  %v8205 = vadd.f32 0.0, %v8204
  %v8206 = vpop.f32.mrf.mxu0
  %8207 = vmatprep.mubr.bf16.mxu0 0
  %8208 = vmatmul.mubr.bf16.gmra.mxu0 %v8148
  %v8209 = vpop.f32.mrf.mxu0
  %v8210 = vadd.f32 0.0, %v8209
  %v8211 = vpop.f32.mrf.mxu0
  %v8212 = vpop.f32.mrf.mxu0
  %v8213 = vadd.f32 0.0, %v8212
  %v8214 = vpop.f32.mrf.mxu0
  %8215 = vmatprep.mubr.bf16.mxu0 0
  %8216 = vmatmul.mubr.bf16.gmra.mxu0 %v8151
  %v8217 = vpop.f32.mrf.mxu0
  %v8218 = vadd.f32 0.0, %v8217
  %v8219 = vpop.f32.mrf.mxu0
  %v8220 = vpop.f32.mrf.mxu0
  %v8221 = vadd.f32 0.0, %v8220
  %v8222 = vpop.f32.mrf.mxu0
  %8223 = vmatprep.mubr.bf16.mxu0 0
  %8224 = vmatmul.mubr.bf16.gmra.mxu0 %v8154
  %v8225 = vpop.f32.mrf.mxu0
  %v8226 = vadd.f32 0.0, %v8225
  %v8227 = vpop.f32.mrf.mxu0
  %v8228 = vpop.f32.mrf.mxu0
  %v8229 = vpop.f32.mrf.mxu0
  %8230 = vdwg.mxu0
  %v8231 = vpack.c.bf16 %v8197, %v8194
  %v8232 = vpack.c.bf16 %v8205, %v8202
  %v8233 = vpack.c.bf16 %v8213, %v8210
  %v8234 = vpack.c.bf16 %v8221, %v8218
  %v8235 = vpack.c.bf16 %v8226, %v8226
  %v8236 = vld [vmem:[%s7835 + $0x20] sm:$0xf]
  %v8237 = vld [vmem:[%s7835 + $0x24] sm:$0xf]
  %v8238 = vld [vmem:[%s7835 + $0x28] sm:$0xf]
  %v8239 = vld [vmem:[%s7835 + $0x2c] sm:$0xf]
  %v8240 = vld [vmem:[%s7835 + $0x30] sm:$0xf]
  %v8241 = vld [vmem:[%s7835 + $0x34] sm:$0xf]
  %v8242 = vld [vmem:[%s7835 + $0x38] sm:$0xf]
  %v8243 = vld [vmem:[%s7835 + $0x3c] sm:$0xf]
  %v8252 = vunpack.c.l.b16 %v8236
  %v8253 = vunpack.c.l.b16 %v8237
  %v8254 = vunpack.c.l.b16 %v8238
  %v8255 = vunpack.c.l.b16 %v8239
  %v8256 = vunpack.c.l.b16 %v8240
  %v8257 = vunpack.c.l.b16 %v8241
  %v8258 = vunpack.c.l.b16 %v8242
  %v8259 = vunpack.c.l.b16 %v8243
  %v8260 = vpack.c.b16 %v8253, %v8252
  %v8261 = vpack.c.b16 %v8255, %v8254
  %v8262 = vpack.c.b16 %v8257, %v8256
  %v8263 = vpack.c.b16 %v8259, %v8258
  %v8269 = vsel %vm314, %v8231, 0
  %v8272 = vsel %vm314, %v8232, 0
  %v8275 = vsel %vm314, %v8233, 0
  %v8278 = vsel %vm314, %v8234, 0
  %v8281 = vsel %vm314, %v8235, 0
  %8283 = vmatprep.subr.bf16.mxu0 0
  %8284 = vmatpush1.bf16.msra.mxu0 0
  %8285 = vmatprep.subr.bf16.mxu0 0
  %8286 = vmatpush1.bf16.msra.mxu0 0
  %8287 = vmatprep.subr.bf16.mxu0 0
  %8288 = vmatpush1.bf16.msra.mxu0 0
  %8289 = vmatprep.subr.bf16.mxu0 0
  %8290 = vmatpush1.bf16.msra.mxu0 0
  %8291 = vmatprep.subr.bf16.mxu0 0
  %8292 = vmatpush1.bf16.msra.mxu0 %v8263
  %8293 = vmatprep.subr.bf16.mxu0 0
  %8294 = vmatpush1.bf16.msra.mxu0 %v8262
  %8295 = vmatprep.subr.bf16.mxu0 0
  %8296 = vmatpush1.bf16.msra.mxu0 %v8261
  %8297 = vmatprep.subr.bf16.mxu0 0
  %8298 = vmatpush1.bf16.msra.mxu0 %v8260
  %8299 = vmatprep.subr.bf16.mxu0 0
  %8300 = vmatpush2.bf16.msra.mxu0 0
  %8301 = vmatprep.subr.bf16.mxu0 0
  %8302 = vmatpush2.bf16.msra.mxu0 0
  %8303 = vmatprep.subr.bf16.mxu0 0
  %8304 = vmatpush2.bf16.msra.mxu0 0
  %8305 = vmatprep.subr.bf16.mxu0 0
  %8306 = vmatpush2.bf16.msra.mxu0 0
  %8307 = vmatprep.subr.bf16.mxu0 0
  %8308 = vmatpush2.bf16.msra.mxu0 0
  %8309 = vmatprep.subr.bf16.mxu0 0
  %8310 = vmatpush2.bf16.msra.mxu0 0
  %8311 = vmatprep.subr.bf16.mxu0 0
  %8312 = vmatpush2.bf16.msra.mxu0 0
  %8313 = vmatprep.subr.bf16.mxu0 0
  %8314 = vmatpush2.bf16.msra.mxu0 0
  %8315 = vmatprep.mubr.bf16.mxu0 0
  %8316 = vmatmul.mubr.bf16.gmra.mxu0 %v8269
  %v8317 = vpop.f32.mrf.mxu0
  %v8318 = vadd.f32 0.0, %v8317
  %v8319 = vpop.f32.mrf.mxu0
  %v8320 = vpop.f32.mrf.mxu0
  %v8321 = vadd.f32 0.0, %v8320
  %v8322 = vpop.f32.mrf.mxu0
  %8323 = vmatprep.mubr.bf16.mxu0 0
  %8324 = vmatmul.mubr.bf16.gmra.mxu0 %v8272
  %v8325 = vpop.f32.mrf.mxu0
  %v8326 = vadd.f32 0.0, %v8325
  %v8327 = vpop.f32.mrf.mxu0
  %v8328 = vpop.f32.mrf.mxu0
  %v8329 = vadd.f32 0.0, %v8328
  %v8330 = vpop.f32.mrf.mxu0
  %8331 = vmatprep.mubr.bf16.mxu0 0
  %8332 = vmatmul.mubr.bf16.gmra.mxu0 %v8275
  %v8333 = vpop.f32.mrf.mxu0
  %v8334 = vadd.f32 0.0, %v8333
  %v8335 = vpop.f32.mrf.mxu0
  %v8336 = vpop.f32.mrf.mxu0
  %v8337 = vadd.f32 0.0, %v8336
  %v8338 = vpop.f32.mrf.mxu0
  %8339 = vmatprep.mubr.bf16.mxu0 0
  %8340 = vmatmul.mubr.bf16.gmra.mxu0 %v8278
  %v8341 = vpop.f32.mrf.mxu0
  %v8342 = vadd.f32 0.0, %v8341
  %v8343 = vpop.f32.mrf.mxu0
  %v8344 = vpop.f32.mrf.mxu0
  %v8345 = vadd.f32 0.0, %v8344
  %v8346 = vpop.f32.mrf.mxu0
  %8347 = vmatprep.mubr.bf16.mxu0 0
  %8348 = vmatmul.mubr.bf16.gmra.mxu0 %v8281
  %v8349 = vpop.f32.mrf.mxu0
  %v8350 = vadd.f32 0.0, %v8349
  %v8351 = vpop.f32.mrf.mxu0
  %v8352 = vpop.f32.mrf.mxu0
  %v8353 = vpop.f32.mrf.mxu0
  %8354 = vdwg.mxu0
  %v8363 = vunpack.c.l.b16 %v7836
  %v8364 = vunpack.c.l.b16 %v7837
  %v8365 = vunpack.c.l.b16 %v7838
  %v8366 = vunpack.c.l.b16 %v7839
  %v8367 = vunpack.c.l.b16 %v7840
  %v8368 = vunpack.c.l.b16 %v7841
  %v8369 = vunpack.c.l.b16 %v7842
  %v8370 = vunpack.c.l.b16 %v7843
  %v8371 = vpack.c.b16 %v8364, %v8363
  %v8372 = vpack.c.b16 %v8366, %v8365
  %v8373 = vpack.c.b16 %v8368, %v8367
  %v8374 = vpack.c.b16 %v8370, %v8369
  %v8380 = vsel %vm314, %v7830, 0
  %v8383 = vsel %vm314, %v7831, 0
  %v8386 = vsel %vm314, %v7832, 0
  %v8389 = vsel %vm314, %v7833, 0
  %v8392 = vsel %vm314, %v7834, 0
  %8394 = vmatprep.subr.bf16.mxu0 0
  %8395 = vmatpush1.bf16.msra.mxu0 0
  %8396 = vmatprep.subr.bf16.mxu0 0
  %8397 = vmatpush1.bf16.msra.mxu0 0
  %8398 = vmatprep.subr.bf16.mxu0 0
  %8399 = vmatpush1.bf16.msra.mxu0 0
  %8400 = vmatprep.subr.bf16.mxu0 0
  %8401 = vmatpush1.bf16.msra.mxu0 0
  %8402 = vmatprep.subr.bf16.mxu0 0
  %8403 = vmatpush1.bf16.msra.mxu0 %v8374
  %8404 = vmatprep.subr.bf16.mxu0 0
  %8405 = vmatpush1.bf16.msra.mxu0 %v8373
  %8406 = vmatprep.subr.bf16.mxu0 0
  %8407 = vmatpush1.bf16.msra.mxu0 %v8372
  %8408 = vmatprep.subr.bf16.mxu0 0
  %8409 = vmatpush1.bf16.msra.mxu0 %v8371
  %8410 = vmatprep.subr.bf16.mxu0 0
  %8411 = vmatpush2.bf16.msra.mxu0 0
  %8412 = vmatprep.subr.bf16.mxu0 0
  %8413 = vmatpush2.bf16.msra.mxu0 0
  %8414 = vmatprep.subr.bf16.mxu0 0
  %8415 = vmatpush2.bf16.msra.mxu0 0
  %8416 = vmatprep.subr.bf16.mxu0 0
  %8417 = vmatpush2.bf16.msra.mxu0 0
  %8418 = vmatprep.subr.bf16.mxu0 0
  %8419 = vmatpush2.bf16.msra.mxu0 0
  %8420 = vmatprep.subr.bf16.mxu0 0
  %8421 = vmatpush2.bf16.msra.mxu0 0
  %8422 = vmatprep.subr.bf16.mxu0 0
  %8423 = vmatpush2.bf16.msra.mxu0 0
  %8424 = vmatprep.subr.bf16.mxu0 0
  %8425 = vmatpush2.bf16.msra.mxu0 0
  %8426 = vmatprep.mubr.bf16.mxu0 0
  %8427 = vmatmul.mubr.bf16.gmra.mxu0 %v8380
  %v8428 = vpop.f32.mrf.mxu0
  %v8429 = vadd.f32 %v8318, %v8428
  %v8430 = vpop.f32.mrf.mxu0
  %v8431 = vpop.f32.mrf.mxu0
  %v8432 = vadd.f32 %v8321, %v8431
  %v8433 = vpop.f32.mrf.mxu0
  %8434 = vmatprep.mubr.bf16.mxu0 0
  %8435 = vmatmul.mubr.bf16.gmra.mxu0 %v8383
  %v8436 = vpop.f32.mrf.mxu0
  %v8437 = vadd.f32 %v8326, %v8436
  %v8438 = vpop.f32.mrf.mxu0
  %v8439 = vpop.f32.mrf.mxu0
  %v8440 = vadd.f32 %v8329, %v8439
  %v8441 = vpop.f32.mrf.mxu0
  %8442 = vmatprep.mubr.bf16.mxu0 0
  %8443 = vmatmul.mubr.bf16.gmra.mxu0 %v8386
  %v8444 = vpop.f32.mrf.mxu0
  %v8445 = vadd.f32 %v8334, %v8444
  %v8446 = vpop.f32.mrf.mxu0
  %v8447 = vpop.f32.mrf.mxu0
  %v8448 = vadd.f32 %v8337, %v8447
  %v8449 = vpop.f32.mrf.mxu0
  %8450 = vmatprep.mubr.bf16.mxu0 0
  %8451 = vmatmul.mubr.bf16.gmra.mxu0 %v8389
  %v8452 = vpop.f32.mrf.mxu0
  %v8453 = vadd.f32 %v8342, %v8452
  %v8454 = vpop.f32.mrf.mxu0
  %v8455 = vpop.f32.mrf.mxu0
  %v8456 = vadd.f32 %v8345, %v8455
  %v8457 = vpop.f32.mrf.mxu0
  %8458 = vmatprep.mubr.bf16.mxu0 0
  %8459 = vmatmul.mubr.bf16.gmra.mxu0 %v8392
  %v8460 = vpop.f32.mrf.mxu0
  %v8461 = vadd.f32 %v8350, %v8460
  %v8462 = vpop.f32.mrf.mxu0
  %v8463 = vpop.f32.mrf.mxu0
  %v8464 = vpop.f32.mrf.mxu0
  %8465 = vdwg.mxu0
  %v8466 = vadd.f32 %v7148, %v8429
  %v8467 = vadd.f32 %v7149, %v8432
  %v8468 = vadd.f32 %v7150, %v8437
  %v8469 = vadd.f32 %v7151, %v8440
  %v8470 = vadd.f32 %v7152, %v8445
  %v8471 = vadd.f32 %v7153, %v8448
  %v8472 = vadd.f32 %v7154, %v8453
  %v8473 = vadd.f32 %v7155, %v8456
  %v8474 = vadd.f32 %v7156, %v8461
  %s8475 = scalar_lea.vmem %s37, 1
  %v8476 = vld [vmem:[%s8475] sm:$0x1]
  %v8478 = vlaneseq
  %v8479 = vshrl.u32 %v8478, 7
  %v8480 = vsub.s32 0, %v8479
  %v8481 = vrot.slane %v8476, %v8480
  %v8483 = vadd.f32 %v8466, %v8481
  %v8484 = vadd.f32 %v8467, %v8481
  %v8485 = vadd.f32 %v8468, %v8481
  %v8486 = vadd.f32 %v8469, %v8481
  %v8487 = vadd.f32 %v8470, %v8481
  %v8488 = vadd.f32 %v8471, %v8481
  %v8489 = vadd.f32 %v8472, %v8481
  %v8490 = vadd.f32 %v8473, %v8481
  %v8491 = vadd.f32 %v8474, %v8481
  %s8492 = scalar_lea.vmem %s39, 1
  %v8493 = vld [vmem:[%s8492] sm:$0x1]
  %s8494 = scalar_lea.vmem %s41, 1
  %v8495 = vld [vmem:[%s8494] sm:$0x1]
  %8496 = vadd.xlane.f32.xlu0 %v8483
  %v8497 = vpop.xlane.xlu0 %8496
  %8498 = vadd.xlane.f32.xlu0 %v8484
  %v8499 = vpop.xlane.xlu0 %8498
  %8500 = vadd.xlane.f32.xlu0 %v8485
  %v8501 = vpop.xlane.xlu0 %8500
  %8502 = vadd.xlane.f32.xlu0 %v8486
  %v8503 = vpop.xlane.xlu0 %8502
  %8504 = vadd.xlane.f32.xlu0 %v8487
  %v8505 = vpop.xlane.xlu0 %8504
  %8506 = vadd.xlane.f32.xlu0 %v8488
  %v8507 = vpop.xlane.xlu0 %8506
  %8508 = vadd.xlane.f32.xlu0 %v8489
  %v8509 = vpop.xlane.xlu0 %8508
  %8510 = vadd.xlane.f32.xlu0 %v8490
  %v8511 = vpop.xlane.xlu0 %8510
  %8512 = vadd.xlane.f32.xlu0 %v8491
  %v8513 = vpop.xlane.xlu0 %8512
  %v8514 = vmul.f32 %v8497, %v3538
  %v8515 = vmul.f32 %v8499, %v3538
  %v8516 = vmul.f32 %v8501, %v3538
  %v8517 = vmul.f32 %v8503, %v3538
  %v8518 = vmul.f32 %v8505, %v3538
  %v8519 = vmul.f32 %v8507, %v3538
  %v8520 = vmul.f32 %v8509, %v3538
  %v8521 = vmul.f32 %v8511, %v3538
  %v8522 = vmul.f32 %v8513, %v3538
  %v8523 = vsub.f32 %v8483, %v8514
  %v8524 = vsub.f32 %v8484, %v8515
  %v8525 = vsub.f32 %v8485, %v8516
  %v8526 = vsub.f32 %v8486, %v8517
  %v8527 = vsub.f32 %v8487, %v8518
  %v8528 = vsub.f32 %v8488, %v8519
  %v8529 = vsub.f32 %v8489, %v8520
  %v8530 = vsub.f32 %v8490, %v8521
  %v8531 = vsub.f32 %v8491, %v8522
  %v8532 = vmul.f32 %v8523, %v8523
  %v8533 = vmul.f32 %v8524, %v8524
  %v8534 = vmul.f32 %v8525, %v8525
  %v8535 = vmul.f32 %v8526, %v8526
  %v8536 = vmul.f32 %v8527, %v8527
  %v8537 = vmul.f32 %v8528, %v8528
  %v8538 = vmul.f32 %v8529, %v8529
  %v8539 = vmul.f32 %v8530, %v8530
  %v8540 = vmul.f32 %v8531, %v8531
  %8541 = vadd.xlane.f32.xlu0 %v8532
  %v8542 = vpop.xlane.xlu0 %8541
  %8543 = vadd.xlane.f32.xlu0 %v8533
  %v8544 = vpop.xlane.xlu0 %8543
  %8545 = vadd.xlane.f32.xlu0 %v8534
  %v8546 = vpop.xlane.xlu0 %8545
  %8547 = vadd.xlane.f32.xlu0 %v8535
  %v8548 = vpop.xlane.xlu0 %8547
  %8549 = vadd.xlane.f32.xlu0 %v8536
  %v8550 = vpop.xlane.xlu0 %8549
  %8551 = vadd.xlane.f32.xlu0 %v8537
  %v8552 = vpop.xlane.xlu0 %8551
  %8553 = vadd.xlane.f32.xlu0 %v8538
  %v8554 = vpop.xlane.xlu0 %8553
  %8555 = vadd.xlane.f32.xlu0 %v8539
  %v8556 = vpop.xlane.xlu0 %8555
  %8557 = vadd.xlane.f32.xlu0 %v8540
  %v8558 = vpop.xlane.xlu0 %8557
  %v8559 = vmul.f32 %v8542, %v3538
  %v8560 = vmul.f32 %v8544, %v3538
  %v8561 = vmul.f32 %v8546, %v3538
  %v8562 = vmul.f32 %v8548, %v3538
  %v8563 = vmul.f32 %v8550, %v3538
  %v8564 = vmul.f32 %v8552, %v3538
  %v8565 = vmul.f32 %v8554, %v3538
  %v8566 = vmul.f32 %v8556, %v3538
  %v8567 = vmul.f32 %v8558, %v3538
  %v8568 = vadd.f32 %v8559, 1e-05
  %v8569 = vadd.f32 %v8560, 1e-05
  %v8570 = vadd.f32 %v8561, 1e-05
  %v8571 = vadd.f32 %v8562, 1e-05
  %v8572 = vadd.f32 %v8563, 1e-05
  %v8573 = vadd.f32 %v8564, 1e-05
  %v8574 = vadd.f32 %v8565, 1e-05
  %v8575 = vadd.f32 %v8566, 1e-05
  %v8576 = vadd.f32 %v8567, 1e-05
  %v8577 = vrsqrt.pop %v8568
  %v8578 = vrsqrt.pop %v8569
  %v8579 = vrsqrt.pop %v8570
  %v8580 = vrsqrt.pop %v8571
  %v8581 = vrsqrt.pop %v8572
  %v8582 = vrsqrt.pop %v8573
  %v8583 = vrsqrt.pop %v8574
  %v8584 = vrsqrt.pop %v8575
  %v8585 = vrsqrt.pop %v8576
  %v8586 = vmul.f32 %v8523, %v8577
  %v8587 = vmul.f32 %v8524, %v8578
  %v8588 = vmul.f32 %v8525, %v8579
  %v8589 = vmul.f32 %v8526, %v8580
  %v8590 = vmul.f32 %v8527, %v8581
  %v8591 = vmul.f32 %v8528, %v8582
  %v8592 = vmul.f32 %v8529, %v8583
  %v8593 = vmul.f32 %v8530, %v8584
  %v8594 = vmul.f32 %v8531, %v8585
  %v8596 = vlaneseq
  %v8597 = vshrl.u32 %v8596, 7
  %v8598 = vsub.s32 0, %v8597
  %v8599 = vrot.slane %v8493, %v8598
  %v8601 = vmul.f32 %v8586, %v8599
  %v8602 = vmul.f32 %v8587, %v8599
  %v8603 = vmul.f32 %v8588, %v8599
  %v8604 = vmul.f32 %v8589, %v8599
  %v8605 = vmul.f32 %v8590, %v8599
  %v8606 = vmul.f32 %v8591, %v8599
  %v8607 = vmul.f32 %v8592, %v8599
  %v8608 = vmul.f32 %v8593, %v8599
  %v8609 = vmul.f32 %v8594, %v8599
  %v8611 = vlaneseq
  %v8612 = vshrl.u32 %v8611, 7
  %v8613 = vsub.s32 0, %v8612
  %v8614 = vrot.slane %v8495, %v8613
  %v8616 = vadd.f32 %v8601, %v8614
  %v8617 = vadd.f32 %v8602, %v8614
  %v8618 = vadd.f32 %v8603, %v8614
  %v8619 = vadd.f32 %v8604, %v8614
  %v8620 = vadd.f32 %v8605, %v8614
  %v8621 = vadd.f32 %v8606, %v8614
  %v8622 = vadd.f32 %v8607, %v8614
  %v8623 = vadd.f32 %v8608, %v8614
  %v8624 = vadd.f32 %v8609, %v8614
  %v8625 = vpack.c.bf16 %v8617, %v8616
  %v8626 = vpack.c.bf16 %v8619, %v8618
  %v8627 = vpack.c.bf16 %v8621, %v8620
  %v8628 = vpack.c.bf16 %v8623, %v8622
  %v8629 = vpack.c.bf16 %v8624, %v8624
  %s8630 = scalar_lea.vmem %s43, 1024
  %v8631 = vld [vmem:[%s8630] sm:$0xff]
  %v8632 = vld [vmem:[%s8630 + $0x8] sm:$0xff]
  %v8633 = vld [vmem:[%s8630 + $0x40] sm:$0xff]
  %v8634 = vld [vmem:[%s8630 + $0x48] sm:$0xff]
  %v8635 = vld [vmem:[%s8630 + $0x80] sm:$0xff]
  %v8636 = vld [vmem:[%s8630 + $0x88] sm:$0xff]
  %v8637 = vld [vmem:[%s8630 + $0xc0] sm:$0xff]
  %v8638 = vld [vmem:[%s8630 + $0xc8] sm:$0xff]
  %v8639 = vld [vmem:[%s8630 + $0x100] sm:$0xff]
  %v8640 = vld [vmem:[%s8630 + $0x108] sm:$0xff]
  %v8641 = vld [vmem:[%s8630 + $0x140] sm:$0xff]
  %v8642 = vld [vmem:[%s8630 + $0x148] sm:$0xff]
  %v8643 = vld [vmem:[%s8630 + $0x180] sm:$0xff]
  %v8644 = vld [vmem:[%s8630 + $0x188] sm:$0xff]
  %v8645 = vld [vmem:[%s8630 + $0x1c0] sm:$0xff]
  %v8646 = vld [vmem:[%s8630 + $0x1c8] sm:$0xff]
  %v8647 = vld [vmem:[%s8630 + $0x200] sm:$0xff]
  %v8648 = vld [vmem:[%s8630 + $0x208] sm:$0xff]
  %v8649 = vld [vmem:[%s8630 + $0x240] sm:$0xff]
  %v8650 = vld [vmem:[%s8630 + $0x248] sm:$0xff]
  %v8651 = vld [vmem:[%s8630 + $0x280] sm:$0xff]
  %v8652 = vld [vmem:[%s8630 + $0x288] sm:$0xff]
  %v8653 = vld [vmem:[%s8630 + $0x2c0] sm:$0xff]
  %v8654 = vld [vmem:[%s8630 + $0x2c8] sm:$0xff]
  %v8655 = vld [vmem:[%s8630 + $0x300] sm:$0xff]
  %v8656 = vld [vmem:[%s8630 + $0x308] sm:$0xff]
  %v8657 = vld [vmem:[%s8630 + $0x340] sm:$0xff]
  %v8658 = vld [vmem:[%s8630 + $0x348] sm:$0xff]
  %v8659 = vld [vmem:[%s8630 + $0x380] sm:$0xff]
  %v8660 = vld [vmem:[%s8630 + $0x388] sm:$0xff]
  %v8661 = vld [vmem:[%s8630 + $0x3c0] sm:$0xff]
  %v8662 = vld [vmem:[%s8630 + $0x3c8] sm:$0xff]
  %s8663 = scalar_lea.vmem %s45, 16
  %v8664 = vld [vmem:[%s8663] sm:$0xf]
  %v8666 = vlaneseq
  %v8667 = vshrl.u32 %v8666, 7
  %v8668 = vsub.s32 0, %v8667
  %v8669 = vrot.slane %v8664, %v8668
  %v8670 = vlaneseq
  %v8671 = vshrl.u32 %v8670, 7
  %v8672 = vsub.s32 1, %v8671
  %v8673 = vrot.slane %v8664, %v8672
  %v8674 = vlaneseq
  %v8675 = vshrl.u32 %v8674, 7
  %v8676 = vsub.s32 2, %v8675
  %v8677 = vrot.slane %v8664, %v8676
  %v8678 = vlaneseq
  %v8679 = vshrl.u32 %v8678, 7
  %v8680 = vsub.s32 3, %v8679
  %v8681 = vrot.slane %v8664, %v8680
  %v8718 = vunpack.c.l.b16 %v8631
  %v8719 = vunpack.c.h.b16 %v8631
  %v8720 = vunpack.c.l.b16 %v8632
  %v8721 = vunpack.c.h.b16 %v8632
  %v8722 = vunpack.c.l.b16 %v8633
  %v8723 = vunpack.c.h.b16 %v8633
  %v8724 = vunpack.c.l.b16 %v8634
  %v8725 = vunpack.c.h.b16 %v8634
  %v8726 = vunpack.c.l.b16 %v8635
  %v8727 = vunpack.c.h.b16 %v8635
  %v8728 = vunpack.c.l.b16 %v8636
  %v8729 = vunpack.c.h.b16 %v8636
  %v8730 = vunpack.c.l.b16 %v8637
  %v8731 = vunpack.c.h.b16 %v8637
  %v8732 = vunpack.c.l.b16 %v8638
  %v8733 = vunpack.c.h.b16 %v8638
  %v8734 = vunpack.c.l.b16 %v8639
  %v8735 = vunpack.c.h.b16 %v8639
  %v8736 = vunpack.c.l.b16 %v8640
  %v8737 = vunpack.c.h.b16 %v8640
  %v8738 = vunpack.c.l.b16 %v8641
  %v8739 = vunpack.c.h.b16 %v8641
  %v8740 = vunpack.c.l.b16 %v8642
  %v8741 = vunpack.c.h.b16 %v8642
  %v8742 = vunpack.c.l.b16 %v8643
  %v8743 = vunpack.c.h.b16 %v8643
  %v8744 = vunpack.c.l.b16 %v8644
  %v8745 = vunpack.c.h.b16 %v8644
  %v8746 = vunpack.c.l.b16 %v8645
  %v8747 = vunpack.c.h.b16 %v8645
  %v8748 = vunpack.c.l.b16 %v8646
  %v8749 = vunpack.c.h.b16 %v8646
  %v8750 = vunpack.c.l.b16 %v8647
  %v8751 = vunpack.c.h.b16 %v8647
  %v8752 = vunpack.c.l.b16 %v8648
  %v8753 = vunpack.c.h.b16 %v8648
  %v8754 = vunpack.c.l.b16 %v8649
  %v8755 = vunpack.c.h.b16 %v8649
  %v8756 = vunpack.c.l.b16 %v8650
  %v8757 = vunpack.c.h.b16 %v8650
  %v8758 = vunpack.c.l.b16 %v8651
  %v8759 = vunpack.c.h.b16 %v8651
  %v8760 = vunpack.c.l.b16 %v8652
  %v8761 = vunpack.c.h.b16 %v8652
  %v8762 = vunpack.c.l.b16 %v8653
  %v8763 = vunpack.c.h.b16 %v8653
  %v8764 = vunpack.c.l.b16 %v8654
  %v8765 = vunpack.c.h.b16 %v8654
  %v8766 = vunpack.c.l.b16 %v8655
  %v8767 = vunpack.c.h.b16 %v8655
  %v8768 = vunpack.c.l.b16 %v8656
  %v8769 = vunpack.c.h.b16 %v8656
  %v8770 = vunpack.c.l.b16 %v8657
  %v8771 = vunpack.c.h.b16 %v8657
  %v8772 = vunpack.c.l.b16 %v8658
  %v8773 = vunpack.c.h.b16 %v8658
  %v8774 = vunpack.c.l.b16 %v8659
  %v8775 = vunpack.c.h.b16 %v8659
  %v8776 = vunpack.c.l.b16 %v8660
  %v8777 = vunpack.c.h.b16 %v8660
  %v8778 = vunpack.c.l.b16 %v8661
  %v8779 = vunpack.c.h.b16 %v8661
  %v8780 = vunpack.c.l.b16 %v8662
  %v8781 = vunpack.c.h.b16 %v8662
  %v8782 = vpack.c.b16 %v8722, %v8718
  %v8783 = vpack.c.b16 %v8723, %v8719
  %v8784 = vpack.c.b16 %v8724, %v8720
  %v8785 = vpack.c.b16 %v8725, %v8721
  %v8786 = vpack.c.b16 %v8730, %v8726
  %v8787 = vpack.c.b16 %v8731, %v8727
  %v8788 = vpack.c.b16 %v8732, %v8728
  %v8789 = vpack.c.b16 %v8733, %v8729
  %v8790 = vpack.c.b16 %v8738, %v8734
  %v8791 = vpack.c.b16 %v8739, %v8735
  %v8792 = vpack.c.b16 %v8740, %v8736
  %v8793 = vpack.c.b16 %v8741, %v8737
  %v8794 = vpack.c.b16 %v8746, %v8742
  %v8795 = vpack.c.b16 %v8747, %v8743
  %v8796 = vpack.c.b16 %v8748, %v8744
  %v8797 = vpack.c.b16 %v8749, %v8745
  %v8798 = vpack.c.b16 %v8754, %v8750
  %v8799 = vpack.c.b16 %v8755, %v8751
  %v8800 = vpack.c.b16 %v8756, %v8752
  %v8801 = vpack.c.b16 %v8757, %v8753
  %v8802 = vpack.c.b16 %v8762, %v8758
  %v8803 = vpack.c.b16 %v8763, %v8759
  %v8804 = vpack.c.b16 %v8764, %v8760
  %v8805 = vpack.c.b16 %v8765, %v8761
  %v8806 = vpack.c.b16 %v8770, %v8766
  %v8807 = vpack.c.b16 %v8771, %v8767
  %v8808 = vpack.c.b16 %v8772, %v8768
  %v8809 = vpack.c.b16 %v8773, %v8769
  %v8810 = vpack.c.b16 %v8778, %v8774
  %v8811 = vpack.c.b16 %v8779, %v8775
  %v8812 = vpack.c.b16 %v8780, %v8776
  %v8813 = vpack.c.b16 %v8781, %v8777
  %8846 = vmatprep.subr.bf16.mxu0 %v8811
  %8847 = vmatpush1.bf16.msra.mxu0 %v8810
  %8848 = vmatprep.subr.bf16.mxu0 %v8807
  %8849 = vmatpush1.bf16.msra.mxu0 %v8806
  %8850 = vmatprep.subr.bf16.mxu0 %v8803
  %8851 = vmatpush1.bf16.msra.mxu0 %v8802
  %8852 = vmatprep.subr.bf16.mxu0 %v8799
  %8853 = vmatpush1.bf16.msra.mxu0 %v8798
  %8854 = vmatprep.subr.bf16.mxu0 %v8795
  %8855 = vmatpush1.bf16.msra.mxu0 %v8794
  %8856 = vmatprep.subr.bf16.mxu0 %v8791
  %8857 = vmatpush1.bf16.msra.mxu0 %v8790
  %8858 = vmatprep.subr.bf16.mxu0 %v8787
  %8859 = vmatpush1.bf16.msra.mxu0 %v8786
  %8860 = vmatprep.subr.bf16.mxu0 %v8783
  %8861 = vmatpush1.bf16.msra.mxu0 %v8782
  %8862 = vmatprep.subr.bf16.mxu0 0
  %8863 = vmatpush2.bf16.msra.mxu0 0
  %8864 = vmatprep.subr.bf16.mxu0 0
  %8865 = vmatpush2.bf16.msra.mxu0 0
  %8866 = vmatprep.subr.bf16.mxu0 0
  %8867 = vmatpush2.bf16.msra.mxu0 0
  %8868 = vmatprep.subr.bf16.mxu0 0
  %8869 = vmatpush2.bf16.msra.mxu0 0
  %8870 = vmatprep.subr.bf16.mxu0 0
  %8871 = vmatpush2.bf16.msra.mxu0 0
  %8872 = vmatprep.subr.bf16.mxu0 0
  %8873 = vmatpush2.bf16.msra.mxu0 0
  %8874 = vmatprep.subr.bf16.mxu0 0
  %8875 = vmatpush2.bf16.msra.mxu0 0
  %8876 = vmatprep.subr.bf16.mxu0 0
  %8877 = vmatpush2.bf16.msra.mxu0 0
  %8878 = vmatprep.mubr.bf16.mxu0 0
  %8879 = vmatmul.mubr.bf16.gmra.mxu0 %v8625
  %v8880 = vpop.f32.mrf.mxu0
  %v8881 = vadd.f32 %v8669, %v8880
  %v8882 = vpop.f32.mrf.mxu0
  %v8883 = vadd.f32 %v8673, %v8882
  %v8884 = vpop.f32.mrf.mxu0
  %v8885 = vadd.f32 %v8669, %v8884
  %v8886 = vpop.f32.mrf.mxu0
  %v8887 = vadd.f32 %v8673, %v8886
  %8888 = vmatprep.mubr.bf16.mxu0 0
  %8889 = vmatmul.mubr.bf16.gmra.mxu0 %v8626
  %v8890 = vpop.f32.mrf.mxu0
  %v8891 = vadd.f32 %v8669, %v8890
  %v8892 = vpop.f32.mrf.mxu0
  %v8893 = vadd.f32 %v8673, %v8892
  %v8894 = vpop.f32.mrf.mxu0
  %v8895 = vadd.f32 %v8669, %v8894
  %v8896 = vpop.f32.mrf.mxu0
  %v8897 = vadd.f32 %v8673, %v8896
  %8898 = vmatprep.mubr.bf16.mxu0 0
  %8899 = vmatmul.mubr.bf16.gmra.mxu0 %v8627
  %v8900 = vpop.f32.mrf.mxu0
  %v8901 = vadd.f32 %v8669, %v8900
  %v8902 = vpop.f32.mrf.mxu0
  %v8903 = vadd.f32 %v8673, %v8902
  %v8904 = vpop.f32.mrf.mxu0
  %v8905 = vadd.f32 %v8669, %v8904
  %v8906 = vpop.f32.mrf.mxu0
  %v8907 = vadd.f32 %v8673, %v8906
  %8908 = vmatprep.mubr.bf16.mxu0 0
  %8909 = vmatmul.mubr.bf16.gmra.mxu0 %v8628
  %v8910 = vpop.f32.mrf.mxu0
  %v8911 = vadd.f32 %v8669, %v8910
  %v8912 = vpop.f32.mrf.mxu0
  %v8913 = vadd.f32 %v8673, %v8912
  %v8914 = vpop.f32.mrf.mxu0
  %v8915 = vadd.f32 %v8669, %v8914
  %v8916 = vpop.f32.mrf.mxu0
  %v8917 = vadd.f32 %v8673, %v8916
  %8918 = vmatprep.mubr.bf16.mxu0 0
  %8919 = vmatmul.mubr.bf16.gmra.mxu0 %v8629
  %v8920 = vpop.f32.mrf.mxu0
  %v8921 = vadd.f32 %v8669, %v8920
  %v8922 = vpop.f32.mrf.mxu0
  %v8923 = vadd.f32 %v8673, %v8922
  %v8924 = vpop.f32.mrf.mxu0
  %v8925 = vpop.f32.mrf.mxu0
  %8926 = vdwg.mxu0
  %8927 = vmatprep.subr.bf16.mxu0 %v8813
  %8928 = vmatpush1.bf16.msra.mxu0 %v8812
  %8929 = vmatprep.subr.bf16.mxu0 %v8809
  %8930 = vmatpush1.bf16.msra.mxu0 %v8808
  %8931 = vmatprep.subr.bf16.mxu0 %v8805
  %8932 = vmatpush1.bf16.msra.mxu0 %v8804
  %8933 = vmatprep.subr.bf16.mxu0 %v8801
  %8934 = vmatpush1.bf16.msra.mxu0 %v8800
  %8935 = vmatprep.subr.bf16.mxu0 %v8797
  %8936 = vmatpush1.bf16.msra.mxu0 %v8796
  %8937 = vmatprep.subr.bf16.mxu0 %v8793
  %8938 = vmatpush1.bf16.msra.mxu0 %v8792
  %8939 = vmatprep.subr.bf16.mxu0 %v8789
  %8940 = vmatpush1.bf16.msra.mxu0 %v8788
  %8941 = vmatprep.subr.bf16.mxu0 %v8785
  %8942 = vmatpush1.bf16.msra.mxu0 %v8784
  %8943 = vmatprep.subr.bf16.mxu0 0
  %8944 = vmatpush2.bf16.msra.mxu0 0
  %8945 = vmatprep.subr.bf16.mxu0 0
  %8946 = vmatpush2.bf16.msra.mxu0 0
  %8947 = vmatprep.subr.bf16.mxu0 0
  %8948 = vmatpush2.bf16.msra.mxu0 0
  %8949 = vmatprep.subr.bf16.mxu0 0
  %8950 = vmatpush2.bf16.msra.mxu0 0
  %8951 = vmatprep.subr.bf16.mxu0 0
  %8952 = vmatpush2.bf16.msra.mxu0 0
  %8953 = vmatprep.subr.bf16.mxu0 0
  %8954 = vmatpush2.bf16.msra.mxu0 0
  %8955 = vmatprep.subr.bf16.mxu0 0
  %8956 = vmatpush2.bf16.msra.mxu0 0
  %8957 = vmatprep.subr.bf16.mxu0 0
  %8958 = vmatpush2.bf16.msra.mxu0 0
  %8959 = vmatprep.mubr.bf16.mxu0 0
  %8960 = vmatmul.mubr.bf16.gmra.mxu0 %v8625
  %v8961 = vpop.f32.mrf.mxu0
  %v8962 = vadd.f32 %v8677, %v8961
  %v8963 = vpop.f32.mrf.mxu0
  %v8964 = vadd.f32 %v8681, %v8963
  %v8965 = vpop.f32.mrf.mxu0
  %v8966 = vadd.f32 %v8677, %v8965
  %v8967 = vpop.f32.mrf.mxu0
  %v8968 = vadd.f32 %v8681, %v8967
  %8969 = vmatprep.mubr.bf16.mxu0 0
  %8970 = vmatmul.mubr.bf16.gmra.mxu0 %v8626
  %v8971 = vpop.f32.mrf.mxu0
  %v8972 = vadd.f32 %v8677, %v8971
  %v8973 = vpop.f32.mrf.mxu0
  %v8974 = vadd.f32 %v8681, %v8973
  %v8975 = vpop.f32.mrf.mxu0
  %v8976 = vadd.f32 %v8677, %v8975
  %v8977 = vpop.f32.mrf.mxu0
  %v8978 = vadd.f32 %v8681, %v8977
  %8979 = vmatprep.mubr.bf16.mxu0 0
  %8980 = vmatmul.mubr.bf16.gmra.mxu0 %v8627
  %v8981 = vpop.f32.mrf.mxu0
  %v8982 = vadd.f32 %v8677, %v8981
  %v8983 = vpop.f32.mrf.mxu0
  %v8984 = vadd.f32 %v8681, %v8983
  %v8985 = vpop.f32.mrf.mxu0
  %v8986 = vadd.f32 %v8677, %v8985
  %v8987 = vpop.f32.mrf.mxu0
  %v8988 = vadd.f32 %v8681, %v8987
  %8989 = vmatprep.mubr.bf16.mxu0 0
  %8990 = vmatmul.mubr.bf16.gmra.mxu0 %v8628
  %v8991 = vpop.f32.mrf.mxu0
  %v8992 = vadd.f32 %v8677, %v8991
  %v8993 = vpop.f32.mrf.mxu0
  %v8994 = vadd.f32 %v8681, %v8993
  %v8995 = vpop.f32.mrf.mxu0
  %v8996 = vadd.f32 %v8677, %v8995
  %v8997 = vpop.f32.mrf.mxu0
  %v8998 = vadd.f32 %v8681, %v8997
  %8999 = vmatprep.mubr.bf16.mxu0 0
  %9000 = vmatmul.mubr.bf16.gmra.mxu0 %v8629
  %v9001 = vpop.f32.mrf.mxu0
  %v9002 = vadd.f32 %v8677, %v9001
  %v9003 = vpop.f32.mrf.mxu0
  %v9004 = vadd.f32 %v8681, %v9003
  %v9005 = vpop.f32.mrf.mxu0
  %v9006 = vpop.f32.mrf.mxu0
  %9007 = vdwg.mxu0
  %v9008 = vmax.f32 %v8881, 0.0
  %v9009 = vmax.f32 %v8883, 0.0
  %v9010 = vmax.f32 %v8962, 0.0
  %v9011 = vmax.f32 %v8964, 0.0
  %v9012 = vmax.f32 %v8885, 0.0
  %v9013 = vmax.f32 %v8887, 0.0
  %v9014 = vmax.f32 %v8966, 0.0
  %v9015 = vmax.f32 %v8968, 0.0
  %v9016 = vmax.f32 %v8891, 0.0
  %v9017 = vmax.f32 %v8893, 0.0
  %v9018 = vmax.f32 %v8972, 0.0
  %v9019 = vmax.f32 %v8974, 0.0
  %v9020 = vmax.f32 %v8895, 0.0
  %v9021 = vmax.f32 %v8897, 0.0
  %v9022 = vmax.f32 %v8976, 0.0
  %v9023 = vmax.f32 %v8978, 0.0
  %v9024 = vmax.f32 %v8901, 0.0
  %v9025 = vmax.f32 %v8903, 0.0
  %v9026 = vmax.f32 %v8982, 0.0
  %v9027 = vmax.f32 %v8984, 0.0
  %v9028 = vmax.f32 %v8905, 0.0
  %v9029 = vmax.f32 %v8907, 0.0
  %v9030 = vmax.f32 %v8986, 0.0
  %v9031 = vmax.f32 %v8988, 0.0
  %v9032 = vmax.f32 %v8911, 0.0
  %v9033 = vmax.f32 %v8913, 0.0
  %v9034 = vmax.f32 %v8992, 0.0
  %v9035 = vmax.f32 %v8994, 0.0
  %v9036 = vmax.f32 %v8915, 0.0
  %v9037 = vmax.f32 %v8917, 0.0
  %v9038 = vmax.f32 %v8996, 0.0
  %v9039 = vmax.f32 %v8998, 0.0
  %v9040 = vmax.f32 %v8921, 0.0
  %v9041 = vmax.f32 %v8923, 0.0
  %v9042 = vmax.f32 %v9002, 0.0
  %v9043 = vmax.f32 %v9004, 0.0
  %v9044 = vpack.c.bf16 %v9012, %v9008
  %v9045 = vpack.c.bf16 %v9013, %v9009
  %v9046 = vpack.c.bf16 %v9014, %v9010
  %v9047 = vpack.c.bf16 %v9015, %v9011
  %v9048 = vpack.c.bf16 %v9020, %v9016
  %v9049 = vpack.c.bf16 %v9021, %v9017
  %v9050 = vpack.c.bf16 %v9022, %v9018
  %v9051 = vpack.c.bf16 %v9023, %v9019
  %v9052 = vpack.c.bf16 %v9028, %v9024
  %v9053 = vpack.c.bf16 %v9029, %v9025
  %v9054 = vpack.c.bf16 %v9030, %v9026
  %v9055 = vpack.c.bf16 %v9031, %v9027
  %v9056 = vpack.c.bf16 %v9036, %v9032
  %v9057 = vpack.c.bf16 %v9037, %v9033
  %v9058 = vpack.c.bf16 %v9038, %v9034
  %v9059 = vpack.c.bf16 %v9039, %v9035
  %v9060 = vpack.c.bf16 %v9040, %v9040
  %v9061 = vpack.c.bf16 %v9041, %v9041
  %v9062 = vpack.c.bf16 %v9042, %v9042
  %v9063 = vpack.c.bf16 %v9043, %v9043
  %s9064 = scalar_lea.vmem %s47, 1024
  %v9065 = vld [vmem:[%s9064] sm:$0xf]
  %v9066 = vld [vmem:[%s9064 + $0x4] sm:$0xf]
  %v9067 = vld [vmem:[%s9064 + $0x8] sm:$0xf]
  %v9068 = vld [vmem:[%s9064 + $0xc] sm:$0xf]
  %v9069 = vld [vmem:[%s9064 + $0x10] sm:$0xf]
  %v9070 = vld [vmem:[%s9064 + $0x14] sm:$0xf]
  %v9071 = vld [vmem:[%s9064 + $0x18] sm:$0xf]
  %v9072 = vld [vmem:[%s9064 + $0x1c] sm:$0xf]
  %v9073 = vld [vmem:[%s9064 + $0x20] sm:$0xf]
  %v9074 = vld [vmem:[%s9064 + $0x24] sm:$0xf]
  %v9075 = vld [vmem:[%s9064 + $0x28] sm:$0xf]
  %v9076 = vld [vmem:[%s9064 + $0x2c] sm:$0xf]
  %v9077 = vld [vmem:[%s9064 + $0x30] sm:$0xf]
  %v9078 = vld [vmem:[%s9064 + $0x34] sm:$0xf]
  %v9079 = vld [vmem:[%s9064 + $0x38] sm:$0xf]
  %v9080 = vld [vmem:[%s9064 + $0x3c] sm:$0xf]
  %v9081 = vld [vmem:[%s9064 + $0x40] sm:$0xf]
  %v9082 = vld [vmem:[%s9064 + $0x44] sm:$0xf]
  %v9083 = vld [vmem:[%s9064 + $0x48] sm:$0xf]
  %v9084 = vld [vmem:[%s9064 + $0x4c] sm:$0xf]
  %v9085 = vld [vmem:[%s9064 + $0x50] sm:$0xf]
  %v9086 = vld [vmem:[%s9064 + $0x54] sm:$0xf]
  %v9087 = vld [vmem:[%s9064 + $0x58] sm:$0xf]
  %v9088 = vld [vmem:[%s9064 + $0x5c] sm:$0xf]
  %v9089 = vld [vmem:[%s9064 + $0x60] sm:$0xf]
  %v9090 = vld [vmem:[%s9064 + $0x64] sm:$0xf]
  %v9091 = vld [vmem:[%s9064 + $0x68] sm:$0xf]
  %v9092 = vld [vmem:[%s9064 + $0x6c] sm:$0xf]
  %v9093 = vld [vmem:[%s9064 + $0x70] sm:$0xf]
  %v9094 = vld [vmem:[%s9064 + $0x74] sm:$0xf]
  %v9095 = vld [vmem:[%s9064 + $0x78] sm:$0xf]
  %v9096 = vld [vmem:[%s9064 + $0x7c] sm:$0xf]
  %v9097 = vld [vmem:[%s9064 + $0x80] sm:$0xf]
  %v9098 = vld [vmem:[%s9064 + $0x84] sm:$0xf]
  %v9099 = vld [vmem:[%s9064 + $0x88] sm:$0xf]
  %v9100 = vld [vmem:[%s9064 + $0x8c] sm:$0xf]
  %v9101 = vld [vmem:[%s9064 + $0x90] sm:$0xf]
  %v9102 = vld [vmem:[%s9064 + $0x94] sm:$0xf]
  %v9103 = vld [vmem:[%s9064 + $0x98] sm:$0xf]
  %v9104 = vld [vmem:[%s9064 + $0x9c] sm:$0xf]
  %v9105 = vld [vmem:[%s9064 + $0xa0] sm:$0xf]
  %v9106 = vld [vmem:[%s9064 + $0xa4] sm:$0xf]
  %v9107 = vld [vmem:[%s9064 + $0xa8] sm:$0xf]
  %v9108 = vld [vmem:[%s9064 + $0xac] sm:$0xf]
  %v9109 = vld [vmem:[%s9064 + $0xb0] sm:$0xf]
  %v9110 = vld [vmem:[%s9064 + $0xb4] sm:$0xf]
  %v9111 = vld [vmem:[%s9064 + $0xb8] sm:$0xf]
  %v9112 = vld [vmem:[%s9064 + $0xbc] sm:$0xf]
  %v9113 = vld [vmem:[%s9064 + $0xc0] sm:$0xf]
  %v9114 = vld [vmem:[%s9064 + $0xc4] sm:$0xf]
  %v9115 = vld [vmem:[%s9064 + $0xc8] sm:$0xf]
  %v9116 = vld [vmem:[%s9064 + $0xcc] sm:$0xf]
  %v9117 = vld [vmem:[%s9064 + $0xd0] sm:$0xf]
  %v9118 = vld [vmem:[%s9064 + $0xd4] sm:$0xf]
  %v9119 = vld [vmem:[%s9064 + $0xd8] sm:$0xf]
  %v9120 = vld [vmem:[%s9064 + $0xdc] sm:$0xf]
  %v9121 = vld [vmem:[%s9064 + $0xe0] sm:$0xf]
  %v9122 = vld [vmem:[%s9064 + $0xe4] sm:$0xf]
  %v9123 = vld [vmem:[%s9064 + $0xe8] sm:$0xf]
  %v9124 = vld [vmem:[%s9064 + $0xec] sm:$0xf]
  %v9125 = vld [vmem:[%s9064 + $0xf0] sm:$0xf]
  %v9126 = vld [vmem:[%s9064 + $0xf4] sm:$0xf]
  %v9127 = vld [vmem:[%s9064 + $0xf8] sm:$0xf]
  %v9128 = vld [vmem:[%s9064 + $0xfc] sm:$0xf]
  %v9129 = vld [vmem:[%s8630 + $0x10] sm:$0xff]
  %v9130 = vld [vmem:[%s8630 + $0x18] sm:$0xff]
  %v9131 = vld [vmem:[%s8630 + $0x50] sm:$0xff]
  %v9132 = vld [vmem:[%s8630 + $0x58] sm:$0xff]
  %v9133 = vld [vmem:[%s8630 + $0x90] sm:$0xff]
  %v9134 = vld [vmem:[%s8630 + $0x98] sm:$0xff]
  %v9135 = vld [vmem:[%s8630 + $0xd0] sm:$0xff]
  %v9136 = vld [vmem:[%s8630 + $0xd8] sm:$0xff]
  %v9137 = vld [vmem:[%s8630 + $0x110] sm:$0xff]
  %v9138 = vld [vmem:[%s8630 + $0x118] sm:$0xff]
  %v9139 = vld [vmem:[%s8630 + $0x150] sm:$0xff]
  %v9140 = vld [vmem:[%s8630 + $0x158] sm:$0xff]
  %v9141 = vld [vmem:[%s8630 + $0x190] sm:$0xff]
  %v9142 = vld [vmem:[%s8630 + $0x198] sm:$0xff]
  %v9143 = vld [vmem:[%s8630 + $0x1d0] sm:$0xff]
  %v9144 = vld [vmem:[%s8630 + $0x1d8] sm:$0xff]
  %v9145 = vld [vmem:[%s8630 + $0x210] sm:$0xff]
  %v9146 = vld [vmem:[%s8630 + $0x218] sm:$0xff]
  %v9147 = vld [vmem:[%s8630 + $0x250] sm:$0xff]
  %v9148 = vld [vmem:[%s8630 + $0x258] sm:$0xff]
  %v9149 = vld [vmem:[%s8630 + $0x290] sm:$0xff]
  %v9150 = vld [vmem:[%s8630 + $0x298] sm:$0xff]
  %v9151 = vld [vmem:[%s8630 + $0x2d0] sm:$0xff]
  %v9152 = vld [vmem:[%s8630 + $0x2d8] sm:$0xff]
  %v9153 = vld [vmem:[%s8630 + $0x310] sm:$0xff]
  %v9154 = vld [vmem:[%s8630 + $0x318] sm:$0xff]
  %v9155 = vld [vmem:[%s8630 + $0x350] sm:$0xff]
  %v9156 = vld [vmem:[%s8630 + $0x358] sm:$0xff]
  %v9157 = vld [vmem:[%s8630 + $0x390] sm:$0xff]
  %v9158 = vld [vmem:[%s8630 + $0x398] sm:$0xff]
  %v9159 = vld [vmem:[%s8630 + $0x3d0] sm:$0xff]
  %v9160 = vld [vmem:[%s8630 + $0x3d8] sm:$0xff]
  %v9161 = vld [vmem:[%s8663 + $0x4] sm:$0xf]
  %v9163 = vlaneseq
  %v9164 = vshrl.u32 %v9163, 7
  %v9165 = vsub.s32 0, %v9164
  %v9166 = vrot.slane %v9161, %v9165
  %v9167 = vlaneseq
  %v9168 = vshrl.u32 %v9167, 7
  %v9169 = vsub.s32 1, %v9168
  %v9170 = vrot.slane %v9161, %v9169
  %v9171 = vlaneseq
  %v9172 = vshrl.u32 %v9171, 7
  %v9173 = vsub.s32 2, %v9172
  %v9174 = vrot.slane %v9161, %v9173
  %v9175 = vlaneseq
  %v9176 = vshrl.u32 %v9175, 7
  %v9177 = vsub.s32 3, %v9176
  %v9178 = vrot.slane %v9161, %v9177
  %v9215 = vunpack.c.l.b16 %v9129
  %v9216 = vunpack.c.h.b16 %v9129
  %v9217 = vunpack.c.l.b16 %v9130
  %v9218 = vunpack.c.h.b16 %v9130
  %v9219 = vunpack.c.l.b16 %v9131
  %v9220 = vunpack.c.h.b16 %v9131
  %v9221 = vunpack.c.l.b16 %v9132
  %v9222 = vunpack.c.h.b16 %v9132
  %v9223 = vunpack.c.l.b16 %v9133
  %v9224 = vunpack.c.h.b16 %v9133
  %v9225 = vunpack.c.l.b16 %v9134
  %v9226 = vunpack.c.h.b16 %v9134
  %v9227 = vunpack.c.l.b16 %v9135
  %v9228 = vunpack.c.h.b16 %v9135
  %v9229 = vunpack.c.l.b16 %v9136
  %v9230 = vunpack.c.h.b16 %v9136
  %v9231 = vunpack.c.l.b16 %v9137
  %v9232 = vunpack.c.h.b16 %v9137
  %v9233 = vunpack.c.l.b16 %v9138
  %v9234 = vunpack.c.h.b16 %v9138
  %v9235 = vunpack.c.l.b16 %v9139
  %v9236 = vunpack.c.h.b16 %v9139
  %v9237 = vunpack.c.l.b16 %v9140
  %v9238 = vunpack.c.h.b16 %v9140
  %v9239 = vunpack.c.l.b16 %v9141
  %v9240 = vunpack.c.h.b16 %v9141
  %v9241 = vunpack.c.l.b16 %v9142
  %v9242 = vunpack.c.h.b16 %v9142
  %v9243 = vunpack.c.l.b16 %v9143
  %v9244 = vunpack.c.h.b16 %v9143
  %v9245 = vunpack.c.l.b16 %v9144
  %v9246 = vunpack.c.h.b16 %v9144
  %v9247 = vunpack.c.l.b16 %v9145
  %v9248 = vunpack.c.h.b16 %v9145
  %v9249 = vunpack.c.l.b16 %v9146
  %v9250 = vunpack.c.h.b16 %v9146
  %v9251 = vunpack.c.l.b16 %v9147
  %v9252 = vunpack.c.h.b16 %v9147
  %v9253 = vunpack.c.l.b16 %v9148
  %v9254 = vunpack.c.h.b16 %v9148
  %v9255 = vunpack.c.l.b16 %v9149
  %v9256 = vunpack.c.h.b16 %v9149
  %v9257 = vunpack.c.l.b16 %v9150
  %v9258 = vunpack.c.h.b16 %v9150
  %v9259 = vunpack.c.l.b16 %v9151
  %v9260 = vunpack.c.h.b16 %v9151
  %v9261 = vunpack.c.l.b16 %v9152
  %v9262 = vunpack.c.h.b16 %v9152
  %v9263 = vunpack.c.l.b16 %v9153
  %v9264 = vunpack.c.h.b16 %v9153
  %v9265 = vunpack.c.l.b16 %v9154
  %v9266 = vunpack.c.h.b16 %v9154
  %v9267 = vunpack.c.l.b16 %v9155
  %v9268 = vunpack.c.h.b16 %v9155
  %v9269 = vunpack.c.l.b16 %v9156
  %v9270 = vunpack.c.h.b16 %v9156
  %v9271 = vunpack.c.l.b16 %v9157
  %v9272 = vunpack.c.h.b16 %v9157
  %v9273 = vunpack.c.l.b16 %v9158
  %v9274 = vunpack.c.h.b16 %v9158
  %v9275 = vunpack.c.l.b16 %v9159
  %v9276 = vunpack.c.h.b16 %v9159
  %v9277 = vunpack.c.l.b16 %v9160
  %v9278 = vunpack.c.h.b16 %v9160
  %v9279 = vpack.c.b16 %v9219, %v9215
  %v9280 = vpack.c.b16 %v9220, %v9216
  %v9281 = vpack.c.b16 %v9221, %v9217
  %v9282 = vpack.c.b16 %v9222, %v9218
  %v9283 = vpack.c.b16 %v9227, %v9223
  %v9284 = vpack.c.b16 %v9228, %v9224
  %v9285 = vpack.c.b16 %v9229, %v9225
  %v9286 = vpack.c.b16 %v9230, %v9226
  %v9287 = vpack.c.b16 %v9235, %v9231
  %v9288 = vpack.c.b16 %v9236, %v9232
  %v9289 = vpack.c.b16 %v9237, %v9233
  %v9290 = vpack.c.b16 %v9238, %v9234
  %v9291 = vpack.c.b16 %v9243, %v9239
  %v9292 = vpack.c.b16 %v9244, %v9240
  %v9293 = vpack.c.b16 %v9245, %v9241
  %v9294 = vpack.c.b16 %v9246, %v9242
  %v9295 = vpack.c.b16 %v9251, %v9247
  %v9296 = vpack.c.b16 %v9252, %v9248
  %v9297 = vpack.c.b16 %v9253, %v9249
  %v9298 = vpack.c.b16 %v9254, %v9250
  %v9299 = vpack.c.b16 %v9259, %v9255
  %v9300 = vpack.c.b16 %v9260, %v9256
  %v9301 = vpack.c.b16 %v9261, %v9257
  %v9302 = vpack.c.b16 %v9262, %v9258
  %v9303 = vpack.c.b16 %v9267, %v9263
  %v9304 = vpack.c.b16 %v9268, %v9264
  %v9305 = vpack.c.b16 %v9269, %v9265
  %v9306 = vpack.c.b16 %v9270, %v9266
  %v9307 = vpack.c.b16 %v9275, %v9271
  %v9308 = vpack.c.b16 %v9276, %v9272
  %v9309 = vpack.c.b16 %v9277, %v9273
  %v9310 = vpack.c.b16 %v9278, %v9274
  %9343 = vmatprep.subr.bf16.mxu0 %v9308
  %9344 = vmatpush1.bf16.msra.mxu0 %v9307
  %9345 = vmatprep.subr.bf16.mxu0 %v9304
  %9346 = vmatpush1.bf16.msra.mxu0 %v9303
  %9347 = vmatprep.subr.bf16.mxu0 %v9300
  %9348 = vmatpush1.bf16.msra.mxu0 %v9299
  %9349 = vmatprep.subr.bf16.mxu0 %v9296
  %9350 = vmatpush1.bf16.msra.mxu0 %v9295
  %9351 = vmatprep.subr.bf16.mxu0 %v9292
  %9352 = vmatpush1.bf16.msra.mxu0 %v9291
  %9353 = vmatprep.subr.bf16.mxu0 %v9288
  %9354 = vmatpush1.bf16.msra.mxu0 %v9287
  %9355 = vmatprep.subr.bf16.mxu0 %v9284
  %9356 = vmatpush1.bf16.msra.mxu0 %v9283
  %9357 = vmatprep.subr.bf16.mxu0 %v9280
  %9358 = vmatpush1.bf16.msra.mxu0 %v9279
  %9359 = vmatprep.subr.bf16.mxu0 0
  %9360 = vmatpush2.bf16.msra.mxu0 0
  %9361 = vmatprep.subr.bf16.mxu0 0
  %9362 = vmatpush2.bf16.msra.mxu0 0
  %9363 = vmatprep.subr.bf16.mxu0 0
  %9364 = vmatpush2.bf16.msra.mxu0 0
  %9365 = vmatprep.subr.bf16.mxu0 0
  %9366 = vmatpush2.bf16.msra.mxu0 0
  %9367 = vmatprep.subr.bf16.mxu0 0
  %9368 = vmatpush2.bf16.msra.mxu0 0
  %9369 = vmatprep.subr.bf16.mxu0 0
  %9370 = vmatpush2.bf16.msra.mxu0 0
  %9371 = vmatprep.subr.bf16.mxu0 0
  %9372 = vmatpush2.bf16.msra.mxu0 0
  %9373 = vmatprep.subr.bf16.mxu0 0
  %9374 = vmatpush2.bf16.msra.mxu0 0
  %9375 = vmatprep.mubr.bf16.mxu0 0
  %9376 = vmatmul.mubr.bf16.gmra.mxu0 %v8625
  %v9377 = vpop.f32.mrf.mxu0
  %v9378 = vadd.f32 %v9166, %v9377
  %v9379 = vpop.f32.mrf.mxu0
  %v9380 = vadd.f32 %v9170, %v9379
  %v9381 = vpop.f32.mrf.mxu0
  %v9382 = vadd.f32 %v9166, %v9381
  %v9383 = vpop.f32.mrf.mxu0
  %v9384 = vadd.f32 %v9170, %v9383
  %9385 = vmatprep.mubr.bf16.mxu0 0
  %9386 = vmatmul.mubr.bf16.gmra.mxu0 %v8626
  %v9387 = vpop.f32.mrf.mxu0
  %v9388 = vadd.f32 %v9166, %v9387
  %v9389 = vpop.f32.mrf.mxu0
  %v9390 = vadd.f32 %v9170, %v9389
  %v9391 = vpop.f32.mrf.mxu0
  %v9392 = vadd.f32 %v9166, %v9391
  %v9393 = vpop.f32.mrf.mxu0
  %v9394 = vadd.f32 %v9170, %v9393
  %9395 = vmatprep.mubr.bf16.mxu0 0
  %9396 = vmatmul.mubr.bf16.gmra.mxu0 %v8627
  %v9397 = vpop.f32.mrf.mxu0
  %v9398 = vadd.f32 %v9166, %v9397
  %v9399 = vpop.f32.mrf.mxu0
  %v9400 = vadd.f32 %v9170, %v9399
  %v9401 = vpop.f32.mrf.mxu0
  %v9402 = vadd.f32 %v9166, %v9401
  %v9403 = vpop.f32.mrf.mxu0
  %v9404 = vadd.f32 %v9170, %v9403
  %9405 = vmatprep.mubr.bf16.mxu0 0
  %9406 = vmatmul.mubr.bf16.gmra.mxu0 %v8628
  %v9407 = vpop.f32.mrf.mxu0
  %v9408 = vadd.f32 %v9166, %v9407
  %v9409 = vpop.f32.mrf.mxu0
  %v9410 = vadd.f32 %v9170, %v9409
  %v9411 = vpop.f32.mrf.mxu0
  %v9412 = vadd.f32 %v9166, %v9411
  %v9413 = vpop.f32.mrf.mxu0
  %v9414 = vadd.f32 %v9170, %v9413
  %9415 = vmatprep.mubr.bf16.mxu0 0
  %9416 = vmatmul.mubr.bf16.gmra.mxu0 %v8629
  %v9417 = vpop.f32.mrf.mxu0
  %v9418 = vadd.f32 %v9166, %v9417
  %v9419 = vpop.f32.mrf.mxu0
  %v9420 = vadd.f32 %v9170, %v9419
  %v9421 = vpop.f32.mrf.mxu0
  %v9422 = vpop.f32.mrf.mxu0
  %9423 = vdwg.mxu0
  %9424 = vmatprep.subr.bf16.mxu0 %v9310
  %9425 = vmatpush1.bf16.msra.mxu0 %v9309
  %9426 = vmatprep.subr.bf16.mxu0 %v9306
  %9427 = vmatpush1.bf16.msra.mxu0 %v9305
  %9428 = vmatprep.subr.bf16.mxu0 %v9302
  %9429 = vmatpush1.bf16.msra.mxu0 %v9301
  %9430 = vmatprep.subr.bf16.mxu0 %v9298
  %9431 = vmatpush1.bf16.msra.mxu0 %v9297
  %9432 = vmatprep.subr.bf16.mxu0 %v9294
  %9433 = vmatpush1.bf16.msra.mxu0 %v9293
  %9434 = vmatprep.subr.bf16.mxu0 %v9290
  %9435 = vmatpush1.bf16.msra.mxu0 %v9289
  %9436 = vmatprep.subr.bf16.mxu0 %v9286
  %9437 = vmatpush1.bf16.msra.mxu0 %v9285
  %9438 = vmatprep.subr.bf16.mxu0 %v9282
  %9439 = vmatpush1.bf16.msra.mxu0 %v9281
  %9440 = vmatprep.subr.bf16.mxu0 0
  %9441 = vmatpush2.bf16.msra.mxu0 0
  %9442 = vmatprep.subr.bf16.mxu0 0
  %9443 = vmatpush2.bf16.msra.mxu0 0
  %9444 = vmatprep.subr.bf16.mxu0 0
  %9445 = vmatpush2.bf16.msra.mxu0 0
  %9446 = vmatprep.subr.bf16.mxu0 0
  %9447 = vmatpush2.bf16.msra.mxu0 0
  %9448 = vmatprep.subr.bf16.mxu0 0
  %9449 = vmatpush2.bf16.msra.mxu0 0
  %9450 = vmatprep.subr.bf16.mxu0 0
  %9451 = vmatpush2.bf16.msra.mxu0 0
  %9452 = vmatprep.subr.bf16.mxu0 0
  %9453 = vmatpush2.bf16.msra.mxu0 0
  %9454 = vmatprep.subr.bf16.mxu0 0
  %9455 = vmatpush2.bf16.msra.mxu0 0
  %9456 = vmatprep.mubr.bf16.mxu0 0
  %9457 = vmatmul.mubr.bf16.gmra.mxu0 %v8625
  %v9458 = vpop.f32.mrf.mxu0
  %v9459 = vadd.f32 %v9174, %v9458
  %v9460 = vpop.f32.mrf.mxu0
  %v9461 = vadd.f32 %v9178, %v9460
  %v9462 = vpop.f32.mrf.mxu0
  %v9463 = vadd.f32 %v9174, %v9462
  %v9464 = vpop.f32.mrf.mxu0
  %v9465 = vadd.f32 %v9178, %v9464
  %9466 = vmatprep.mubr.bf16.mxu0 0
  %9467 = vmatmul.mubr.bf16.gmra.mxu0 %v8626
  %v9468 = vpop.f32.mrf.mxu0
  %v9469 = vadd.f32 %v9174, %v9468
  %v9470 = vpop.f32.mrf.mxu0
  %v9471 = vadd.f32 %v9178, %v9470
  %v9472 = vpop.f32.mrf.mxu0
  %v9473 = vadd.f32 %v9174, %v9472
  %v9474 = vpop.f32.mrf.mxu0
  %v9475 = vadd.f32 %v9178, %v9474
  %9476 = vmatprep.mubr.bf16.mxu0 0
  %9477 = vmatmul.mubr.bf16.gmra.mxu0 %v8627
  %v9478 = vpop.f32.mrf.mxu0
  %v9479 = vadd.f32 %v9174, %v9478
  %v9480 = vpop.f32.mrf.mxu0
  %v9481 = vadd.f32 %v9178, %v9480
  %v9482 = vpop.f32.mrf.mxu0
  %v9483 = vadd.f32 %v9174, %v9482
  %v9484 = vpop.f32.mrf.mxu0
  %v9485 = vadd.f32 %v9178, %v9484
  %9486 = vmatprep.mubr.bf16.mxu0 0
  %9487 = vmatmul.mubr.bf16.gmra.mxu0 %v8628
  %v9488 = vpop.f32.mrf.mxu0
  %v9489 = vadd.f32 %v9174, %v9488
  %v9490 = vpop.f32.mrf.mxu0
  %v9491 = vadd.f32 %v9178, %v9490
  %v9492 = vpop.f32.mrf.mxu0
  %v9493 = vadd.f32 %v9174, %v9492
  %v9494 = vpop.f32.mrf.mxu0
  %v9495 = vadd.f32 %v9178, %v9494
  %9496 = vmatprep.mubr.bf16.mxu0 0
  %9497 = vmatmul.mubr.bf16.gmra.mxu0 %v8629
  %v9498 = vpop.f32.mrf.mxu0
  %v9499 = vadd.f32 %v9174, %v9498
  %v9500 = vpop.f32.mrf.mxu0
  %v9501 = vadd.f32 %v9178, %v9500
  %v9502 = vpop.f32.mrf.mxu0
  %v9503 = vpop.f32.mrf.mxu0
  %9504 = vdwg.mxu0
  %v9505 = vmax.f32 %v9378, 0.0
  %v9506 = vmax.f32 %v9380, 0.0
  %v9507 = vmax.f32 %v9459, 0.0
  %v9508 = vmax.f32 %v9461, 0.0
  %v9509 = vmax.f32 %v9382, 0.0
  %v9510 = vmax.f32 %v9384, 0.0
  %v9511 = vmax.f32 %v9463, 0.0
  %v9512 = vmax.f32 %v9465, 0.0
  %v9513 = vmax.f32 %v9388, 0.0
  %v9514 = vmax.f32 %v9390, 0.0
  %v9515 = vmax.f32 %v9469, 0.0
  %v9516 = vmax.f32 %v9471, 0.0
  %v9517 = vmax.f32 %v9392, 0.0
  %v9518 = vmax.f32 %v9394, 0.0
  %v9519 = vmax.f32 %v9473, 0.0
  %v9520 = vmax.f32 %v9475, 0.0
  %v9521 = vmax.f32 %v9398, 0.0
  %v9522 = vmax.f32 %v9400, 0.0
  %v9523 = vmax.f32 %v9479, 0.0
  %v9524 = vmax.f32 %v9481, 0.0
  %v9525 = vmax.f32 %v9402, 0.0
  %v9526 = vmax.f32 %v9404, 0.0
  %v9527 = vmax.f32 %v9483, 0.0
  %v9528 = vmax.f32 %v9485, 0.0
  %v9529 = vmax.f32 %v9408, 0.0
  %v9530 = vmax.f32 %v9410, 0.0
  %v9531 = vmax.f32 %v9489, 0.0
  %v9532 = vmax.f32 %v9491, 0.0
  %v9533 = vmax.f32 %v9412, 0.0
  %v9534 = vmax.f32 %v9414, 0.0
  %v9535 = vmax.f32 %v9493, 0.0
  %v9536 = vmax.f32 %v9495, 0.0
  %v9537 = vmax.f32 %v9418, 0.0
  %v9538 = vmax.f32 %v9420, 0.0
  %v9539 = vmax.f32 %v9499, 0.0
  %v9540 = vmax.f32 %v9501, 0.0
  %v9541 = vpack.c.bf16 %v9509, %v9505
  %v9542 = vpack.c.bf16 %v9510, %v9506
  %v9543 = vpack.c.bf16 %v9511, %v9507
  %v9544 = vpack.c.bf16 %v9512, %v9508
  %v9545 = vpack.c.bf16 %v9517, %v9513
  %v9546 = vpack.c.bf16 %v9518, %v9514
  %v9547 = vpack.c.bf16 %v9519, %v9515
  %v9548 = vpack.c.bf16 %v9520, %v9516
  %v9549 = vpack.c.bf16 %v9525, %v9521
  %v9550 = vpack.c.bf16 %v9526, %v9522
  %v9551 = vpack.c.bf16 %v9527, %v9523
  %v9552 = vpack.c.bf16 %v9528, %v9524
  %v9553 = vpack.c.bf16 %v9533, %v9529
  %v9554 = vpack.c.bf16 %v9534, %v9530
  %v9555 = vpack.c.bf16 %v9535, %v9531
  %v9556 = vpack.c.bf16 %v9536, %v9532
  %v9557 = vpack.c.bf16 %v9537, %v9537
  %v9558 = vpack.c.bf16 %v9538, %v9538
  %v9559 = vpack.c.bf16 %v9539, %v9539
  %v9560 = vpack.c.bf16 %v9540, %v9540
  %v9561 = vld [vmem:[%s9064 + $0x100] sm:$0xf]
  %v9562 = vld [vmem:[%s9064 + $0x104] sm:$0xf]
  %v9563 = vld [vmem:[%s9064 + $0x108] sm:$0xf]
  %v9564 = vld [vmem:[%s9064 + $0x10c] sm:$0xf]
  %v9565 = vld [vmem:[%s9064 + $0x110] sm:$0xf]
  %v9566 = vld [vmem:[%s9064 + $0x114] sm:$0xf]
  %v9567 = vld [vmem:[%s9064 + $0x118] sm:$0xf]
  %v9568 = vld [vmem:[%s9064 + $0x11c] sm:$0xf]
  %v9569 = vld [vmem:[%s9064 + $0x120] sm:$0xf]
  %v9570 = vld [vmem:[%s9064 + $0x124] sm:$0xf]
  %v9571 = vld [vmem:[%s9064 + $0x128] sm:$0xf]
  %v9572 = vld [vmem:[%s9064 + $0x12c] sm:$0xf]
  %v9573 = vld [vmem:[%s9064 + $0x130] sm:$0xf]
  %v9574 = vld [vmem:[%s9064 + $0x134] sm:$0xf]
  %v9575 = vld [vmem:[%s9064 + $0x138] sm:$0xf]
  %v9576 = vld [vmem:[%s9064 + $0x13c] sm:$0xf]
  %v9577 = vld [vmem:[%s9064 + $0x140] sm:$0xf]
  %v9578 = vld [vmem:[%s9064 + $0x144] sm:$0xf]
  %v9579 = vld [vmem:[%s9064 + $0x148] sm:$0xf]
  %v9580 = vld [vmem:[%s9064 + $0x14c] sm:$0xf]
  %v9581 = vld [vmem:[%s9064 + $0x150] sm:$0xf]
  %v9582 = vld [vmem:[%s9064 + $0x154] sm:$0xf]
  %v9583 = vld [vmem:[%s9064 + $0x158] sm:$0xf]
  %v9584 = vld [vmem:[%s9064 + $0x15c] sm:$0xf]
  %v9585 = vld [vmem:[%s9064 + $0x160] sm:$0xf]
  %v9586 = vld [vmem:[%s9064 + $0x164] sm:$0xf]
  %v9587 = vld [vmem:[%s9064 + $0x168] sm:$0xf]
  %v9588 = vld [vmem:[%s9064 + $0x16c] sm:$0xf]
  %v9589 = vld [vmem:[%s9064 + $0x170] sm:$0xf]
  %v9590 = vld [vmem:[%s9064 + $0x174] sm:$0xf]
  %v9591 = vld [vmem:[%s9064 + $0x178] sm:$0xf]
  %v9592 = vld [vmem:[%s9064 + $0x17c] sm:$0xf]
  %v9593 = vld [vmem:[%s9064 + $0x180] sm:$0xf]
  %v9594 = vld [vmem:[%s9064 + $0x184] sm:$0xf]
  %v9595 = vld [vmem:[%s9064 + $0x188] sm:$0xf]
  %v9596 = vld [vmem:[%s9064 + $0x18c] sm:$0xf]
  %v9597 = vld [vmem:[%s9064 + $0x190] sm:$0xf]
  %v9598 = vld [vmem:[%s9064 + $0x194] sm:$0xf]
  %v9599 = vld [vmem:[%s9064 + $0x198] sm:$0xf]
  %v9600 = vld [vmem:[%s9064 + $0x19c] sm:$0xf]
  %v9601 = vld [vmem:[%s9064 + $0x1a0] sm:$0xf]
  %v9602 = vld [vmem:[%s9064 + $0x1a4] sm:$0xf]
  %v9603 = vld [vmem:[%s9064 + $0x1a8] sm:$0xf]
  %v9604 = vld [vmem:[%s9064 + $0x1ac] sm:$0xf]
  %v9605 = vld [vmem:[%s9064 + $0x1b0] sm:$0xf]
  %v9606 = vld [vmem:[%s9064 + $0x1b4] sm:$0xf]
  %v9607 = vld [vmem:[%s9064 + $0x1b8] sm:$0xf]
  %v9608 = vld [vmem:[%s9064 + $0x1bc] sm:$0xf]
  %v9609 = vld [vmem:[%s9064 + $0x1c0] sm:$0xf]
  %v9610 = vld [vmem:[%s9064 + $0x1c4] sm:$0xf]
  %v9611 = vld [vmem:[%s9064 + $0x1c8] sm:$0xf]
  %v9612 = vld [vmem:[%s9064 + $0x1cc] sm:$0xf]
  %v9613 = vld [vmem:[%s9064 + $0x1d0] sm:$0xf]
  %v9614 = vld [vmem:[%s9064 + $0x1d4] sm:$0xf]
  %v9615 = vld [vmem:[%s9064 + $0x1d8] sm:$0xf]
  %v9616 = vld [vmem:[%s9064 + $0x1dc] sm:$0xf]
  %v9617 = vld [vmem:[%s9064 + $0x1e0] sm:$0xf]
  %v9618 = vld [vmem:[%s9064 + $0x1e4] sm:$0xf]
  %v9619 = vld [vmem:[%s9064 + $0x1e8] sm:$0xf]
  %v9620 = vld [vmem:[%s9064 + $0x1ec] sm:$0xf]
  %v9621 = vld [vmem:[%s9064 + $0x1f0] sm:$0xf]
  %v9622 = vld [vmem:[%s9064 + $0x1f4] sm:$0xf]
  %v9623 = vld [vmem:[%s9064 + $0x1f8] sm:$0xf]
  %v9624 = vld [vmem:[%s9064 + $0x1fc] sm:$0xf]
  %v9689 = vunpack.c.l.b16 %v9561
  %v9690 = vunpack.c.l.b16 %v9562
  %v9691 = vunpack.c.l.b16 %v9563
  %v9692 = vunpack.c.l.b16 %v9564
  %v9693 = vunpack.c.l.b16 %v9565
  %v9694 = vunpack.c.l.b16 %v9566
  %v9695 = vunpack.c.l.b16 %v9567
  %v9696 = vunpack.c.l.b16 %v9568
  %v9697 = vunpack.c.l.b16 %v9569
  %v9698 = vunpack.c.l.b16 %v9570
  %v9699 = vunpack.c.l.b16 %v9571
  %v9700 = vunpack.c.l.b16 %v9572
  %v9701 = vunpack.c.l.b16 %v9573
  %v9702 = vunpack.c.l.b16 %v9574
  %v9703 = vunpack.c.l.b16 %v9575
  %v9704 = vunpack.c.l.b16 %v9576
  %v9705 = vunpack.c.l.b16 %v9577
  %v9706 = vunpack.c.l.b16 %v9578
  %v9707 = vunpack.c.l.b16 %v9579
  %v9708 = vunpack.c.l.b16 %v9580
  %v9709 = vunpack.c.l.b16 %v9581
  %v9710 = vunpack.c.l.b16 %v9582
  %v9711 = vunpack.c.l.b16 %v9583
  %v9712 = vunpack.c.l.b16 %v9584
  %v9713 = vunpack.c.l.b16 %v9585
  %v9714 = vunpack.c.l.b16 %v9586
  %v9715 = vunpack.c.l.b16 %v9587
  %v9716 = vunpack.c.l.b16 %v9588
  %v9717 = vunpack.c.l.b16 %v9589
  %v9718 = vunpack.c.l.b16 %v9590
  %v9719 = vunpack.c.l.b16 %v9591
  %v9720 = vunpack.c.l.b16 %v9592
  %v9721 = vunpack.c.l.b16 %v9593
  %v9722 = vunpack.c.l.b16 %v9594
  %v9723 = vunpack.c.l.b16 %v9595
  %v9724 = vunpack.c.l.b16 %v9596
  %v9725 = vunpack.c.l.b16 %v9597
  %v9726 = vunpack.c.l.b16 %v9598
  %v9727 = vunpack.c.l.b16 %v9599
  %v9728 = vunpack.c.l.b16 %v9600
  %v9729 = vunpack.c.l.b16 %v9601
  %v9730 = vunpack.c.l.b16 %v9602
  %v9731 = vunpack.c.l.b16 %v9603
  %v9732 = vunpack.c.l.b16 %v9604
  %v9733 = vunpack.c.l.b16 %v9605
  %v9734 = vunpack.c.l.b16 %v9606
  %v9735 = vunpack.c.l.b16 %v9607
  %v9736 = vunpack.c.l.b16 %v9608
  %v9737 = vunpack.c.l.b16 %v9609
  %v9738 = vunpack.c.l.b16 %v9610
  %v9739 = vunpack.c.l.b16 %v9611
  %v9740 = vunpack.c.l.b16 %v9612
  %v9741 = vunpack.c.l.b16 %v9613
  %v9742 = vunpack.c.l.b16 %v9614
  %v9743 = vunpack.c.l.b16 %v9615
  %v9744 = vunpack.c.l.b16 %v9616
  %v9745 = vunpack.c.l.b16 %v9617
  %v9746 = vunpack.c.l.b16 %v9618
  %v9747 = vunpack.c.l.b16 %v9619
  %v9748 = vunpack.c.l.b16 %v9620
  %v9749 = vunpack.c.l.b16 %v9621
  %v9750 = vunpack.c.l.b16 %v9622
  %v9751 = vunpack.c.l.b16 %v9623
  %v9752 = vunpack.c.l.b16 %v9624
  %v9753 = vpack.c.b16 %v9690, %v9689
  %v9754 = vpack.c.b16 %v9692, %v9691
  %v9755 = vpack.c.b16 %v9694, %v9693
  %v9756 = vpack.c.b16 %v9696, %v9695
  %v9757 = vpack.c.b16 %v9698, %v9697
  %v9758 = vpack.c.b16 %v9700, %v9699
  %v9759 = vpack.c.b16 %v9702, %v9701
  %v9760 = vpack.c.b16 %v9704, %v9703
  %v9761 = vpack.c.b16 %v9706, %v9705
  %v9762 = vpack.c.b16 %v9708, %v9707
  %v9763 = vpack.c.b16 %v9710, %v9709
  %v9764 = vpack.c.b16 %v9712, %v9711
  %v9765 = vpack.c.b16 %v9714, %v9713
  %v9766 = vpack.c.b16 %v9716, %v9715
  %v9767 = vpack.c.b16 %v9718, %v9717
  %v9768 = vpack.c.b16 %v9720, %v9719
  %v9769 = vpack.c.b16 %v9722, %v9721
  %v9770 = vpack.c.b16 %v9724, %v9723
  %v9771 = vpack.c.b16 %v9726, %v9725
  %v9772 = vpack.c.b16 %v9728, %v9727
  %v9773 = vpack.c.b16 %v9730, %v9729
  %v9774 = vpack.c.b16 %v9732, %v9731
  %v9775 = vpack.c.b16 %v9734, %v9733
  %v9776 = vpack.c.b16 %v9736, %v9735
  %v9777 = vpack.c.b16 %v9738, %v9737
  %v9778 = vpack.c.b16 %v9740, %v9739
  %v9779 = vpack.c.b16 %v9742, %v9741
  %v9780 = vpack.c.b16 %v9744, %v9743
  %v9781 = vpack.c.b16 %v9746, %v9745
  %v9782 = vpack.c.b16 %v9748, %v9747
  %v9783 = vpack.c.b16 %v9750, %v9749
  %v9784 = vpack.c.b16 %v9752, %v9751
  %9817 = vmatprep.subr.bf16.mxu0 0
  %9818 = vmatpush1.bf16.msra.mxu0 %v9760
  %9819 = vmatprep.subr.bf16.mxu0 0
  %9820 = vmatpush1.bf16.msra.mxu0 %v9759
  %9821 = vmatprep.subr.bf16.mxu0 0
  %9822 = vmatpush1.bf16.msra.mxu0 %v9758
  %9823 = vmatprep.subr.bf16.mxu0 0
  %9824 = vmatpush1.bf16.msra.mxu0 %v9757
  %9825 = vmatprep.subr.bf16.mxu0 0
  %9826 = vmatpush1.bf16.msra.mxu0 %v9756
  %9827 = vmatprep.subr.bf16.mxu0 0
  %9828 = vmatpush1.bf16.msra.mxu0 %v9755
  %9829 = vmatprep.subr.bf16.mxu0 0
  %9830 = vmatpush1.bf16.msra.mxu0 %v9754
  %9831 = vmatprep.subr.bf16.mxu0 0
  %9832 = vmatpush1.bf16.msra.mxu0 %v9753
  %9833 = vmatprep.subr.bf16.mxu0 0
  %9834 = vmatpush2.bf16.msra.mxu0 %v9768
  %9835 = vmatprep.subr.bf16.mxu0 0
  %9836 = vmatpush2.bf16.msra.mxu0 %v9767
  %9837 = vmatprep.subr.bf16.mxu0 0
  %9838 = vmatpush2.bf16.msra.mxu0 %v9766
  %9839 = vmatprep.subr.bf16.mxu0 0
  %9840 = vmatpush2.bf16.msra.mxu0 %v9765
  %9841 = vmatprep.subr.bf16.mxu0 0
  %9842 = vmatpush2.bf16.msra.mxu0 %v9764
  %9843 = vmatprep.subr.bf16.mxu0 0
  %9844 = vmatpush2.bf16.msra.mxu0 %v9763
  %9845 = vmatprep.subr.bf16.mxu0 0
  %9846 = vmatpush2.bf16.msra.mxu0 %v9762
  %9847 = vmatprep.subr.bf16.mxu0 0
  %9848 = vmatpush2.bf16.msra.mxu0 %v9761
  %9849 = vmatprep.mubr.bf16.mxu0 %v9542
  %9850 = vmatmul.mubr.bf16.gmra.mxu0 %v9541
  %v9851 = vpop.f32.mrf.mxu0
  %v9852 = vadd.f32 0.0, %v9851
  %v9853 = vpop.f32.mrf.mxu0
  %v9854 = vpop.f32.mrf.mxu0
  %v9855 = vadd.f32 0.0, %v9854
  %v9856 = vpop.f32.mrf.mxu0
  %9857 = vmatprep.mubr.bf16.mxu0 %v9546
  %9858 = vmatmul.mubr.bf16.gmra.mxu0 %v9545
  %v9859 = vpop.f32.mrf.mxu0
  %v9860 = vadd.f32 0.0, %v9859
  %v9861 = vpop.f32.mrf.mxu0
  %v9862 = vpop.f32.mrf.mxu0
  %v9863 = vadd.f32 0.0, %v9862
  %v9864 = vpop.f32.mrf.mxu0
  %9865 = vmatprep.mubr.bf16.mxu0 %v9550
  %9866 = vmatmul.mubr.bf16.gmra.mxu0 %v9549
  %v9867 = vpop.f32.mrf.mxu0
  %v9868 = vadd.f32 0.0, %v9867
  %v9869 = vpop.f32.mrf.mxu0
  %v9870 = vpop.f32.mrf.mxu0
  %v9871 = vadd.f32 0.0, %v9870
  %v9872 = vpop.f32.mrf.mxu0
  %9873 = vmatprep.mubr.bf16.mxu0 %v9554
  %9874 = vmatmul.mubr.bf16.gmra.mxu0 %v9553
  %v9875 = vpop.f32.mrf.mxu0
  %v9876 = vadd.f32 0.0, %v9875
  %v9877 = vpop.f32.mrf.mxu0
  %v9878 = vpop.f32.mrf.mxu0
  %v9879 = vadd.f32 0.0, %v9878
  %v9880 = vpop.f32.mrf.mxu0
  %9881 = vmatprep.mubr.bf16.mxu0 %v9558
  %9882 = vmatmul.mubr.bf16.gmra.mxu0 %v9557
  %v9883 = vpop.f32.mrf.mxu0
  %v9884 = vadd.f32 0.0, %v9883
  %v9885 = vpop.f32.mrf.mxu0
  %v9886 = vpop.f32.mrf.mxu0
  %v9887 = vpop.f32.mrf.mxu0
  %9888 = vdwg.mxu0
  %9889 = vmatprep.subr.bf16.mxu0 0
  %9890 = vmatpush1.bf16.msra.mxu0 %v9776
  %9891 = vmatprep.subr.bf16.mxu0 0
  %9892 = vmatpush1.bf16.msra.mxu0 %v9775
  %9893 = vmatprep.subr.bf16.mxu0 0
  %9894 = vmatpush1.bf16.msra.mxu0 %v9774
  %9895 = vmatprep.subr.bf16.mxu0 0
  %9896 = vmatpush1.bf16.msra.mxu0 %v9773
  %9897 = vmatprep.subr.bf16.mxu0 0
  %9898 = vmatpush1.bf16.msra.mxu0 %v9772
  %9899 = vmatprep.subr.bf16.mxu0 0
  %9900 = vmatpush1.bf16.msra.mxu0 %v9771
  %9901 = vmatprep.subr.bf16.mxu0 0
  %9902 = vmatpush1.bf16.msra.mxu0 %v9770
  %9903 = vmatprep.subr.bf16.mxu0 0
  %9904 = vmatpush1.bf16.msra.mxu0 %v9769
  %9905 = vmatprep.subr.bf16.mxu0 0
  %9906 = vmatpush2.bf16.msra.mxu0 %v9784
  %9907 = vmatprep.subr.bf16.mxu0 0
  %9908 = vmatpush2.bf16.msra.mxu0 %v9783
  %9909 = vmatprep.subr.bf16.mxu0 0
  %9910 = vmatpush2.bf16.msra.mxu0 %v9782
  %9911 = vmatprep.subr.bf16.mxu0 0
  %9912 = vmatpush2.bf16.msra.mxu0 %v9781
  %9913 = vmatprep.subr.bf16.mxu0 0
  %9914 = vmatpush2.bf16.msra.mxu0 %v9780
  %9915 = vmatprep.subr.bf16.mxu0 0
  %9916 = vmatpush2.bf16.msra.mxu0 %v9779
  %9917 = vmatprep.subr.bf16.mxu0 0
  %9918 = vmatpush2.bf16.msra.mxu0 %v9778
  %9919 = vmatprep.subr.bf16.mxu0 0
  %9920 = vmatpush2.bf16.msra.mxu0 %v9777
  %9921 = vmatprep.mubr.bf16.mxu0 %v9544
  %9922 = vmatmul.mubr.bf16.gmra.mxu0 %v9543
  %v9923 = vpop.f32.mrf.mxu0
  %v9924 = vadd.f32 %v9852, %v9923
  %v9925 = vpop.f32.mrf.mxu0
  %v9926 = vpop.f32.mrf.mxu0
  %v9927 = vadd.f32 %v9855, %v9926
  %v9928 = vpop.f32.mrf.mxu0
  %9929 = vmatprep.mubr.bf16.mxu0 %v9548
  %9930 = vmatmul.mubr.bf16.gmra.mxu0 %v9547
  %v9931 = vpop.f32.mrf.mxu0
  %v9932 = vadd.f32 %v9860, %v9931
  %v9933 = vpop.f32.mrf.mxu0
  %v9934 = vpop.f32.mrf.mxu0
  %v9935 = vadd.f32 %v9863, %v9934
  %v9936 = vpop.f32.mrf.mxu0
  %9937 = vmatprep.mubr.bf16.mxu0 %v9552
  %9938 = vmatmul.mubr.bf16.gmra.mxu0 %v9551
  %v9939 = vpop.f32.mrf.mxu0
  %v9940 = vadd.f32 %v9868, %v9939
  %v9941 = vpop.f32.mrf.mxu0
  %v9942 = vpop.f32.mrf.mxu0
  %v9943 = vadd.f32 %v9871, %v9942
  %v9944 = vpop.f32.mrf.mxu0
  %9945 = vmatprep.mubr.bf16.mxu0 %v9556
  %9946 = vmatmul.mubr.bf16.gmra.mxu0 %v9555
  %v9947 = vpop.f32.mrf.mxu0
  %v9948 = vadd.f32 %v9876, %v9947
  %v9949 = vpop.f32.mrf.mxu0
  %v9950 = vpop.f32.mrf.mxu0
  %v9951 = vadd.f32 %v9879, %v9950
  %v9952 = vpop.f32.mrf.mxu0
  %9953 = vmatprep.mubr.bf16.mxu0 %v9560
  %9954 = vmatmul.mubr.bf16.gmra.mxu0 %v9559
  %v9955 = vpop.f32.mrf.mxu0
  %v9956 = vadd.f32 %v9884, %v9955
  %v9957 = vpop.f32.mrf.mxu0
  %v9958 = vpop.f32.mrf.mxu0
  %v9959 = vpop.f32.mrf.mxu0
  %9960 = vdwg.mxu0
  %v10025 = vunpack.c.l.b16 %v9065
  %v10026 = vunpack.c.l.b16 %v9066
  %v10027 = vunpack.c.l.b16 %v9067
  %v10028 = vunpack.c.l.b16 %v9068
  %v10029 = vunpack.c.l.b16 %v9069
  %v10030 = vunpack.c.l.b16 %v9070
  %v10031 = vunpack.c.l.b16 %v9071
  %v10032 = vunpack.c.l.b16 %v9072
  %v10033 = vunpack.c.l.b16 %v9073
  %v10034 = vunpack.c.l.b16 %v9074
  %v10035 = vunpack.c.l.b16 %v9075
  %v10036 = vunpack.c.l.b16 %v9076
  %v10037 = vunpack.c.l.b16 %v9077
  %v10038 = vunpack.c.l.b16 %v9078
  %v10039 = vunpack.c.l.b16 %v9079
  %v10040 = vunpack.c.l.b16 %v9080
  %v10041 = vunpack.c.l.b16 %v9081
  %v10042 = vunpack.c.l.b16 %v9082
  %v10043 = vunpack.c.l.b16 %v9083
  %v10044 = vunpack.c.l.b16 %v9084
  %v10045 = vunpack.c.l.b16 %v9085
  %v10046 = vunpack.c.l.b16 %v9086
  %v10047 = vunpack.c.l.b16 %v9087
  %v10048 = vunpack.c.l.b16 %v9088
  %v10049 = vunpack.c.l.b16 %v9089
  %v10050 = vunpack.c.l.b16 %v9090
  %v10051 = vunpack.c.l.b16 %v9091
  %v10052 = vunpack.c.l.b16 %v9092
  %v10053 = vunpack.c.l.b16 %v9093
  %v10054 = vunpack.c.l.b16 %v9094
  %v10055 = vunpack.c.l.b16 %v9095
  %v10056 = vunpack.c.l.b16 %v9096
  %v10057 = vunpack.c.l.b16 %v9097
  %v10058 = vunpack.c.l.b16 %v9098
  %v10059 = vunpack.c.l.b16 %v9099
  %v10060 = vunpack.c.l.b16 %v9100
  %v10061 = vunpack.c.l.b16 %v9101
  %v10062 = vunpack.c.l.b16 %v9102
  %v10063 = vunpack.c.l.b16 %v9103
  %v10064 = vunpack.c.l.b16 %v9104
  %v10065 = vunpack.c.l.b16 %v9105
  %v10066 = vunpack.c.l.b16 %v9106
  %v10067 = vunpack.c.l.b16 %v9107
  %v10068 = vunpack.c.l.b16 %v9108
  %v10069 = vunpack.c.l.b16 %v9109
  %v10070 = vunpack.c.l.b16 %v9110
  %v10071 = vunpack.c.l.b16 %v9111
  %v10072 = vunpack.c.l.b16 %v9112
  %v10073 = vunpack.c.l.b16 %v9113
  %v10074 = vunpack.c.l.b16 %v9114
  %v10075 = vunpack.c.l.b16 %v9115
  %v10076 = vunpack.c.l.b16 %v9116
  %v10077 = vunpack.c.l.b16 %v9117
  %v10078 = vunpack.c.l.b16 %v9118
  %v10079 = vunpack.c.l.b16 %v9119
  %v10080 = vunpack.c.l.b16 %v9120
  %v10081 = vunpack.c.l.b16 %v9121
  %v10082 = vunpack.c.l.b16 %v9122
  %v10083 = vunpack.c.l.b16 %v9123
  %v10084 = vunpack.c.l.b16 %v9124
  %v10085 = vunpack.c.l.b16 %v9125
  %v10086 = vunpack.c.l.b16 %v9126
  %v10087 = vunpack.c.l.b16 %v9127
  %v10088 = vunpack.c.l.b16 %v9128
  %v10089 = vpack.c.b16 %v10026, %v10025
  %v10090 = vpack.c.b16 %v10028, %v10027
  %v10091 = vpack.c.b16 %v10030, %v10029
  %v10092 = vpack.c.b16 %v10032, %v10031
  %v10093 = vpack.c.b16 %v10034, %v10033
  %v10094 = vpack.c.b16 %v10036, %v10035
  %v10095 = vpack.c.b16 %v10038, %v10037
  %v10096 = vpack.c.b16 %v10040, %v10039
  %v10097 = vpack.c.b16 %v10042, %v10041
  %v10098 = vpack.c.b16 %v10044, %v10043
  %v10099 = vpack.c.b16 %v10046, %v10045
  %v10100 = vpack.c.b16 %v10048, %v10047
  %v10101 = vpack.c.b16 %v10050, %v10049
  %v10102 = vpack.c.b16 %v10052, %v10051
  %v10103 = vpack.c.b16 %v10054, %v10053
  %v10104 = vpack.c.b16 %v10056, %v10055
  %v10105 = vpack.c.b16 %v10058, %v10057
  %v10106 = vpack.c.b16 %v10060, %v10059
  %v10107 = vpack.c.b16 %v10062, %v10061
  %v10108 = vpack.c.b16 %v10064, %v10063
  %v10109 = vpack.c.b16 %v10066, %v10065
  %v10110 = vpack.c.b16 %v10068, %v10067
  %v10111 = vpack.c.b16 %v10070, %v10069
  %v10112 = vpack.c.b16 %v10072, %v10071
  %v10113 = vpack.c.b16 %v10074, %v10073
  %v10114 = vpack.c.b16 %v10076, %v10075
  %v10115 = vpack.c.b16 %v10078, %v10077
  %v10116 = vpack.c.b16 %v10080, %v10079
  %v10117 = vpack.c.b16 %v10082, %v10081
  %v10118 = vpack.c.b16 %v10084, %v10083
  %v10119 = vpack.c.b16 %v10086, %v10085
  %v10120 = vpack.c.b16 %v10088, %v10087
  %10153 = vmatprep.subr.bf16.mxu0 0
  %10154 = vmatpush1.bf16.msra.mxu0 %v10096
  %10155 = vmatprep.subr.bf16.mxu0 0
  %10156 = vmatpush1.bf16.msra.mxu0 %v10095
  %10157 = vmatprep.subr.bf16.mxu0 0
  %10158 = vmatpush1.bf16.msra.mxu0 %v10094
  %10159 = vmatprep.subr.bf16.mxu0 0
  %10160 = vmatpush1.bf16.msra.mxu0 %v10093
  %10161 = vmatprep.subr.bf16.mxu0 0
  %10162 = vmatpush1.bf16.msra.mxu0 %v10092
  %10163 = vmatprep.subr.bf16.mxu0 0
  %10164 = vmatpush1.bf16.msra.mxu0 %v10091
  %10165 = vmatprep.subr.bf16.mxu0 0
  %10166 = vmatpush1.bf16.msra.mxu0 %v10090
  %10167 = vmatprep.subr.bf16.mxu0 0
  %10168 = vmatpush1.bf16.msra.mxu0 %v10089
  %10169 = vmatprep.subr.bf16.mxu0 0
  %10170 = vmatpush2.bf16.msra.mxu0 %v10104
  %10171 = vmatprep.subr.bf16.mxu0 0
  %10172 = vmatpush2.bf16.msra.mxu0 %v10103
  %10173 = vmatprep.subr.bf16.mxu0 0
  %10174 = vmatpush2.bf16.msra.mxu0 %v10102
  %10175 = vmatprep.subr.bf16.mxu0 0
  %10176 = vmatpush2.bf16.msra.mxu0 %v10101
  %10177 = vmatprep.subr.bf16.mxu0 0
  %10178 = vmatpush2.bf16.msra.mxu0 %v10100
  %10179 = vmatprep.subr.bf16.mxu0 0
  %10180 = vmatpush2.bf16.msra.mxu0 %v10099
  %10181 = vmatprep.subr.bf16.mxu0 0
  %10182 = vmatpush2.bf16.msra.mxu0 %v10098
  %10183 = vmatprep.subr.bf16.mxu0 0
  %10184 = vmatpush2.bf16.msra.mxu0 %v10097
  %10185 = vmatprep.mubr.bf16.mxu0 %v9045
  %10186 = vmatmul.mubr.bf16.gmra.mxu0 %v9044
  %v10187 = vpop.f32.mrf.mxu0
  %v10188 = vadd.f32 %v9924, %v10187
  %v10189 = vpop.f32.mrf.mxu0
  %v10190 = vpop.f32.mrf.mxu0
  %v10191 = vadd.f32 %v9927, %v10190
  %v10192 = vpop.f32.mrf.mxu0
  %10193 = vmatprep.mubr.bf16.mxu0 %v9049
  %10194 = vmatmul.mubr.bf16.gmra.mxu0 %v9048
  %v10195 = vpop.f32.mrf.mxu0
  %v10196 = vadd.f32 %v9932, %v10195
  %v10197 = vpop.f32.mrf.mxu0
  %v10198 = vpop.f32.mrf.mxu0
  %v10199 = vadd.f32 %v9935, %v10198
  %v10200 = vpop.f32.mrf.mxu0
  %10201 = vmatprep.mubr.bf16.mxu0 %v9053
  %10202 = vmatmul.mubr.bf16.gmra.mxu0 %v9052
  %v10203 = vpop.f32.mrf.mxu0
  %v10204 = vadd.f32 %v9940, %v10203
  %v10205 = vpop.f32.mrf.mxu0
  %v10206 = vpop.f32.mrf.mxu0
  %v10207 = vadd.f32 %v9943, %v10206
  %v10208 = vpop.f32.mrf.mxu0
  %10209 = vmatprep.mubr.bf16.mxu0 %v9057
  %10210 = vmatmul.mubr.bf16.gmra.mxu0 %v9056
  %v10211 = vpop.f32.mrf.mxu0
  %v10212 = vadd.f32 %v9948, %v10211
  %v10213 = vpop.f32.mrf.mxu0
  %v10214 = vpop.f32.mrf.mxu0
  %v10215 = vadd.f32 %v9951, %v10214
  %v10216 = vpop.f32.mrf.mxu0
  %10217 = vmatprep.mubr.bf16.mxu0 %v9061
  %10218 = vmatmul.mubr.bf16.gmra.mxu0 %v9060
  %v10219 = vpop.f32.mrf.mxu0
  %v10220 = vadd.f32 %v9956, %v10219
  %v10221 = vpop.f32.mrf.mxu0
  %v10222 = vpop.f32.mrf.mxu0
  %v10223 = vpop.f32.mrf.mxu0
  %10224 = vdwg.mxu0
  %10225 = vmatprep.subr.bf16.mxu0 0
  %10226 = vmatpush1.bf16.msra.mxu0 %v10112
  %10227 = vmatprep.subr.bf16.mxu0 0
  %10228 = vmatpush1.bf16.msra.mxu0 %v10111
  %10229 = vmatprep.subr.bf16.mxu0 0
  %10230 = vmatpush1.bf16.msra.mxu0 %v10110
  %10231 = vmatprep.subr.bf16.mxu0 0
  %10232 = vmatpush1.bf16.msra.mxu0 %v10109
  %10233 = vmatprep.subr.bf16.mxu0 0
  %10234 = vmatpush1.bf16.msra.mxu0 %v10108
  %10235 = vmatprep.subr.bf16.mxu0 0
  %10236 = vmatpush1.bf16.msra.mxu0 %v10107
  %10237 = vmatprep.subr.bf16.mxu0 0
  %10238 = vmatpush1.bf16.msra.mxu0 %v10106
  %10239 = vmatprep.subr.bf16.mxu0 0
  %10240 = vmatpush1.bf16.msra.mxu0 %v10105
  %10241 = vmatprep.subr.bf16.mxu0 0
  %10242 = vmatpush2.bf16.msra.mxu0 %v10120
  %10243 = vmatprep.subr.bf16.mxu0 0
  %10244 = vmatpush2.bf16.msra.mxu0 %v10119
  %10245 = vmatprep.subr.bf16.mxu0 0
  %10246 = vmatpush2.bf16.msra.mxu0 %v10118
  %10247 = vmatprep.subr.bf16.mxu0 0
  %10248 = vmatpush2.bf16.msra.mxu0 %v10117
  %10249 = vmatprep.subr.bf16.mxu0 0
  %10250 = vmatpush2.bf16.msra.mxu0 %v10116
  %10251 = vmatprep.subr.bf16.mxu0 0
  %10252 = vmatpush2.bf16.msra.mxu0 %v10115
  %10253 = vmatprep.subr.bf16.mxu0 0
  %10254 = vmatpush2.bf16.msra.mxu0 %v10114
  %10255 = vmatprep.subr.bf16.mxu0 0
  %10256 = vmatpush2.bf16.msra.mxu0 %v10113
  %10257 = vmatprep.mubr.bf16.mxu0 %v9047
  %10258 = vmatmul.mubr.bf16.gmra.mxu0 %v9046
  %v10259 = vpop.f32.mrf.mxu0
  %v10260 = vadd.f32 %v10188, %v10259
  %v10261 = vpop.f32.mrf.mxu0
  %v10262 = vpop.f32.mrf.mxu0
  %v10263 = vadd.f32 %v10191, %v10262
  %v10264 = vpop.f32.mrf.mxu0
  %10265 = vmatprep.mubr.bf16.mxu0 %v9051
  %10266 = vmatmul.mubr.bf16.gmra.mxu0 %v9050
  %v10267 = vpop.f32.mrf.mxu0
  %v10268 = vadd.f32 %v10196, %v10267
  %v10269 = vpop.f32.mrf.mxu0
  %v10270 = vpop.f32.mrf.mxu0
  %v10271 = vadd.f32 %v10199, %v10270
  %v10272 = vpop.f32.mrf.mxu0
  %10273 = vmatprep.mubr.bf16.mxu0 %v9055
  %10274 = vmatmul.mubr.bf16.gmra.mxu0 %v9054
  %v10275 = vpop.f32.mrf.mxu0
  %v10276 = vadd.f32 %v10204, %v10275
  %v10277 = vpop.f32.mrf.mxu0
  %v10278 = vpop.f32.mrf.mxu0
  %v10279 = vadd.f32 %v10207, %v10278
  %v10280 = vpop.f32.mrf.mxu0
  %10281 = vmatprep.mubr.bf16.mxu0 %v9059
  %10282 = vmatmul.mubr.bf16.gmra.mxu0 %v9058
  %v10283 = vpop.f32.mrf.mxu0
  %v10284 = vadd.f32 %v10212, %v10283
  %v10285 = vpop.f32.mrf.mxu0
  %v10286 = vpop.f32.mrf.mxu0
  %v10287 = vadd.f32 %v10215, %v10286
  %v10288 = vpop.f32.mrf.mxu0
  %10289 = vmatprep.mubr.bf16.mxu0 %v9063
  %10290 = vmatmul.mubr.bf16.gmra.mxu0 %v9062
  %v10291 = vpop.f32.mrf.mxu0
  %v10292 = vadd.f32 %v10220, %v10291
  %v10293 = vpop.f32.mrf.mxu0
  %v10294 = vpop.f32.mrf.mxu0
  %v10295 = vpop.f32.mrf.mxu0
  %10296 = vdwg.mxu0
  %v10297 = vld [vmem:[%s8630 + $0x20] sm:$0xff]
  %v10298 = vld [vmem:[%s8630 + $0x28] sm:$0xff]
  %v10299 = vld [vmem:[%s8630 + $0x60] sm:$0xff]
  %v10300 = vld [vmem:[%s8630 + $0x68] sm:$0xff]
  %v10301 = vld [vmem:[%s8630 + $0xa0] sm:$0xff]
  %v10302 = vld [vmem:[%s8630 + $0xa8] sm:$0xff]
  %v10303 = vld [vmem:[%s8630 + $0xe0] sm:$0xff]
  %v10304 = vld [vmem:[%s8630 + $0xe8] sm:$0xff]
  %v10305 = vld [vmem:[%s8630 + $0x120] sm:$0xff]
  %v10306 = vld [vmem:[%s8630 + $0x128] sm:$0xff]
  %v10307 = vld [vmem:[%s8630 + $0x160] sm:$0xff]
  %v10308 = vld [vmem:[%s8630 + $0x168] sm:$0xff]
  %v10309 = vld [vmem:[%s8630 + $0x1a0] sm:$0xff]
  %v10310 = vld [vmem:[%s8630 + $0x1a8] sm:$0xff]
  %v10311 = vld [vmem:[%s8630 + $0x1e0] sm:$0xff]
  %v10312 = vld [vmem:[%s8630 + $0x1e8] sm:$0xff]
  %v10313 = vld [vmem:[%s8630 + $0x220] sm:$0xff]
  %v10314 = vld [vmem:[%s8630 + $0x228] sm:$0xff]
  %v10315 = vld [vmem:[%s8630 + $0x260] sm:$0xff]
  %v10316 = vld [vmem:[%s8630 + $0x268] sm:$0xff]
  %v10317 = vld [vmem:[%s8630 + $0x2a0] sm:$0xff]
  %v10318 = vld [vmem:[%s8630 + $0x2a8] sm:$0xff]
  %v10319 = vld [vmem:[%s8630 + $0x2e0] sm:$0xff]
  %v10320 = vld [vmem:[%s8630 + $0x2e8] sm:$0xff]
  %v10321 = vld [vmem:[%s8630 + $0x320] sm:$0xff]
  %v10322 = vld [vmem:[%s8630 + $0x328] sm:$0xff]
  %v10323 = vld [vmem:[%s8630 + $0x360] sm:$0xff]
  %v10324 = vld [vmem:[%s8630 + $0x368] sm:$0xff]
  %v10325 = vld [vmem:[%s8630 + $0x3a0] sm:$0xff]
  %v10326 = vld [vmem:[%s8630 + $0x3a8] sm:$0xff]
  %v10327 = vld [vmem:[%s8630 + $0x3e0] sm:$0xff]
  %v10328 = vld [vmem:[%s8630 + $0x3e8] sm:$0xff]
  %v10329 = vld [vmem:[%s8663 + $0x8] sm:$0xf]
  %v10331 = vlaneseq
  %v10332 = vshrl.u32 %v10331, 7
  %v10333 = vsub.s32 0, %v10332
  %v10334 = vrot.slane %v10329, %v10333
  %v10335 = vlaneseq
  %v10336 = vshrl.u32 %v10335, 7
  %v10337 = vsub.s32 1, %v10336
  %v10338 = vrot.slane %v10329, %v10337
  %v10339 = vlaneseq
  %v10340 = vshrl.u32 %v10339, 7
  %v10341 = vsub.s32 2, %v10340
  %v10342 = vrot.slane %v10329, %v10341
  %v10343 = vlaneseq
  %v10344 = vshrl.u32 %v10343, 7
  %v10345 = vsub.s32 3, %v10344
  %v10346 = vrot.slane %v10329, %v10345
  %v10383 = vunpack.c.l.b16 %v10297
  %v10384 = vunpack.c.h.b16 %v10297
  %v10385 = vunpack.c.l.b16 %v10298
  %v10386 = vunpack.c.h.b16 %v10298
  %v10387 = vunpack.c.l.b16 %v10299
  %v10388 = vunpack.c.h.b16 %v10299
  %v10389 = vunpack.c.l.b16 %v10300
  %v10390 = vunpack.c.h.b16 %v10300
  %v10391 = vunpack.c.l.b16 %v10301
  %v10392 = vunpack.c.h.b16 %v10301
  %v10393 = vunpack.c.l.b16 %v10302
  %v10394 = vunpack.c.h.b16 %v10302
  %v10395 = vunpack.c.l.b16 %v10303
  %v10396 = vunpack.c.h.b16 %v10303
  %v10397 = vunpack.c.l.b16 %v10304
  %v10398 = vunpack.c.h.b16 %v10304
  %v10399 = vunpack.c.l.b16 %v10305
  %v10400 = vunpack.c.h.b16 %v10305
  %v10401 = vunpack.c.l.b16 %v10306
  %v10402 = vunpack.c.h.b16 %v10306
  %v10403 = vunpack.c.l.b16 %v10307
  %v10404 = vunpack.c.h.b16 %v10307
  %v10405 = vunpack.c.l.b16 %v10308
  %v10406 = vunpack.c.h.b16 %v10308
  %v10407 = vunpack.c.l.b16 %v10309
  %v10408 = vunpack.c.h.b16 %v10309
  %v10409 = vunpack.c.l.b16 %v10310
  %v10410 = vunpack.c.h.b16 %v10310
  %v10411 = vunpack.c.l.b16 %v10311
  %v10412 = vunpack.c.h.b16 %v10311
  %v10413 = vunpack.c.l.b16 %v10312
  %v10414 = vunpack.c.h.b16 %v10312
  %v10415 = vunpack.c.l.b16 %v10313
  %v10416 = vunpack.c.h.b16 %v10313
  %v10417 = vunpack.c.l.b16 %v10314
  %v10418 = vunpack.c.h.b16 %v10314
  %v10419 = vunpack.c.l.b16 %v10315
  %v10420 = vunpack.c.h.b16 %v10315
  %v10421 = vunpack.c.l.b16 %v10316
  %v10422 = vunpack.c.h.b16 %v10316
  %v10423 = vunpack.c.l.b16 %v10317
  %v10424 = vunpack.c.h.b16 %v10317
  %v10425 = vunpack.c.l.b16 %v10318
  %v10426 = vunpack.c.h.b16 %v10318
  %v10427 = vunpack.c.l.b16 %v10319
  %v10428 = vunpack.c.h.b16 %v10319
  %v10429 = vunpack.c.l.b16 %v10320
  %v10430 = vunpack.c.h.b16 %v10320
  %v10431 = vunpack.c.l.b16 %v10321
  %v10432 = vunpack.c.h.b16 %v10321
  %v10433 = vunpack.c.l.b16 %v10322
  %v10434 = vunpack.c.h.b16 %v10322
  %v10435 = vunpack.c.l.b16 %v10323
  %v10436 = vunpack.c.h.b16 %v10323
  %v10437 = vunpack.c.l.b16 %v10324
  %v10438 = vunpack.c.h.b16 %v10324
  %v10439 = vunpack.c.l.b16 %v10325
  %v10440 = vunpack.c.h.b16 %v10325
  %v10441 = vunpack.c.l.b16 %v10326
  %v10442 = vunpack.c.h.b16 %v10326
  %v10443 = vunpack.c.l.b16 %v10327
  %v10444 = vunpack.c.h.b16 %v10327
  %v10445 = vunpack.c.l.b16 %v10328
  %v10446 = vunpack.c.h.b16 %v10328
  %v10447 = vpack.c.b16 %v10387, %v10383
  %v10448 = vpack.c.b16 %v10388, %v10384
  %v10449 = vpack.c.b16 %v10389, %v10385
  %v10450 = vpack.c.b16 %v10390, %v10386
  %v10451 = vpack.c.b16 %v10395, %v10391
  %v10452 = vpack.c.b16 %v10396, %v10392
  %v10453 = vpack.c.b16 %v10397, %v10393
  %v10454 = vpack.c.b16 %v10398, %v10394
  %v10455 = vpack.c.b16 %v10403, %v10399
  %v10456 = vpack.c.b16 %v10404, %v10400
  %v10457 = vpack.c.b16 %v10405, %v10401
  %v10458 = vpack.c.b16 %v10406, %v10402
  %v10459 = vpack.c.b16 %v10411, %v10407
  %v10460 = vpack.c.b16 %v10412, %v10408
  %v10461 = vpack.c.b16 %v10413, %v10409
  %v10462 = vpack.c.b16 %v10414, %v10410
  %v10463 = vpack.c.b16 %v10419, %v10415
  %v10464 = vpack.c.b16 %v10420, %v10416
  %v10465 = vpack.c.b16 %v10421, %v10417
  %v10466 = vpack.c.b16 %v10422, %v10418
  %v10467 = vpack.c.b16 %v10427, %v10423
  %v10468 = vpack.c.b16 %v10428, %v10424
  %v10469 = vpack.c.b16 %v10429, %v10425
  %v10470 = vpack.c.b16 %v10430, %v10426
  %v10471 = vpack.c.b16 %v10435, %v10431
  %v10472 = vpack.c.b16 %v10436, %v10432
  %v10473 = vpack.c.b16 %v10437, %v10433
  %v10474 = vpack.c.b16 %v10438, %v10434
  %v10475 = vpack.c.b16 %v10443, %v10439
  %v10476 = vpack.c.b16 %v10444, %v10440
  %v10477 = vpack.c.b16 %v10445, %v10441
  %v10478 = vpack.c.b16 %v10446, %v10442
  %10511 = vmatprep.subr.bf16.mxu0 %v10476
  %10512 = vmatpush1.bf16.msra.mxu0 %v10475
  %10513 = vmatprep.subr.bf16.mxu0 %v10472
  %10514 = vmatpush1.bf16.msra.mxu0 %v10471
  %10515 = vmatprep.subr.bf16.mxu0 %v10468
  %10516 = vmatpush1.bf16.msra.mxu0 %v10467
  %10517 = vmatprep.subr.bf16.mxu0 %v10464
  %10518 = vmatpush1.bf16.msra.mxu0 %v10463
  %10519 = vmatprep.subr.bf16.mxu0 %v10460
  %10520 = vmatpush1.bf16.msra.mxu0 %v10459
  %10521 = vmatprep.subr.bf16.mxu0 %v10456
  %10522 = vmatpush1.bf16.msra.mxu0 %v10455
  %10523 = vmatprep.subr.bf16.mxu0 %v10452
  %10524 = vmatpush1.bf16.msra.mxu0 %v10451
  %10525 = vmatprep.subr.bf16.mxu0 %v10448
  %10526 = vmatpush1.bf16.msra.mxu0 %v10447
  %10527 = vmatprep.subr.bf16.mxu0 0
  %10528 = vmatpush2.bf16.msra.mxu0 0
  %10529 = vmatprep.subr.bf16.mxu0 0
  %10530 = vmatpush2.bf16.msra.mxu0 0
  %10531 = vmatprep.subr.bf16.mxu0 0
  %10532 = vmatpush2.bf16.msra.mxu0 0
  %10533 = vmatprep.subr.bf16.mxu0 0
  %10534 = vmatpush2.bf16.msra.mxu0 0
  %10535 = vmatprep.subr.bf16.mxu0 0
  %10536 = vmatpush2.bf16.msra.mxu0 0
  %10537 = vmatprep.subr.bf16.mxu0 0
  %10538 = vmatpush2.bf16.msra.mxu0 0
  %10539 = vmatprep.subr.bf16.mxu0 0
  %10540 = vmatpush2.bf16.msra.mxu0 0
  %10541 = vmatprep.subr.bf16.mxu0 0
  %10542 = vmatpush2.bf16.msra.mxu0 0
  %10543 = vmatprep.mubr.bf16.mxu0 0
  %10544 = vmatmul.mubr.bf16.gmra.mxu0 %v8625
  %v10545 = vpop.f32.mrf.mxu0
  %v10546 = vadd.f32 %v10334, %v10545
  %v10547 = vpop.f32.mrf.mxu0
  %v10548 = vadd.f32 %v10338, %v10547
  %v10549 = vpop.f32.mrf.mxu0
  %v10550 = vadd.f32 %v10334, %v10549
  %v10551 = vpop.f32.mrf.mxu0
  %v10552 = vadd.f32 %v10338, %v10551
  %10553 = vmatprep.mubr.bf16.mxu0 0
  %10554 = vmatmul.mubr.bf16.gmra.mxu0 %v8626
  %v10555 = vpop.f32.mrf.mxu0
  %v10556 = vadd.f32 %v10334, %v10555
  %v10557 = vpop.f32.mrf.mxu0
  %v10558 = vadd.f32 %v10338, %v10557
  %v10559 = vpop.f32.mrf.mxu0
  %v10560 = vadd.f32 %v10334, %v10559
  %v10561 = vpop.f32.mrf.mxu0
  %v10562 = vadd.f32 %v10338, %v10561
  %10563 = vmatprep.mubr.bf16.mxu0 0
  %10564 = vmatmul.mubr.bf16.gmra.mxu0 %v8627
  %v10565 = vpop.f32.mrf.mxu0
  %v10566 = vadd.f32 %v10334, %v10565
  %v10567 = vpop.f32.mrf.mxu0
  %v10568 = vadd.f32 %v10338, %v10567
  %v10569 = vpop.f32.mrf.mxu0
  %v10570 = vadd.f32 %v10334, %v10569
  %v10571 = vpop.f32.mrf.mxu0
  %v10572 = vadd.f32 %v10338, %v10571
  %10573 = vmatprep.mubr.bf16.mxu0 0
  %10574 = vmatmul.mubr.bf16.gmra.mxu0 %v8628
  %v10575 = vpop.f32.mrf.mxu0
  %v10576 = vadd.f32 %v10334, %v10575
  %v10577 = vpop.f32.mrf.mxu0
  %v10578 = vadd.f32 %v10338, %v10577
  %v10579 = vpop.f32.mrf.mxu0
  %v10580 = vadd.f32 %v10334, %v10579
  %v10581 = vpop.f32.mrf.mxu0
  %v10582 = vadd.f32 %v10338, %v10581
  %10583 = vmatprep.mubr.bf16.mxu0 0
  %10584 = vmatmul.mubr.bf16.gmra.mxu0 %v8629
  %v10585 = vpop.f32.mrf.mxu0
  %v10586 = vadd.f32 %v10334, %v10585
  %v10587 = vpop.f32.mrf.mxu0
  %v10588 = vadd.f32 %v10338, %v10587
  %v10589 = vpop.f32.mrf.mxu0
  %v10590 = vpop.f32.mrf.mxu0
  %10591 = vdwg.mxu0
  %10592 = vmatprep.subr.bf16.mxu0 %v10478
  %10593 = vmatpush1.bf16.msra.mxu0 %v10477
  %10594 = vmatprep.subr.bf16.mxu0 %v10474
  %10595 = vmatpush1.bf16.msra.mxu0 %v10473
  %10596 = vmatprep.subr.bf16.mxu0 %v10470
  %10597 = vmatpush1.bf16.msra.mxu0 %v10469
  %10598 = vmatprep.subr.bf16.mxu0 %v10466
  %10599 = vmatpush1.bf16.msra.mxu0 %v10465
  %10600 = vmatprep.subr.bf16.mxu0 %v10462
  %10601 = vmatpush1.bf16.msra.mxu0 %v10461
  %10602 = vmatprep.subr.bf16.mxu0 %v10458
  %10603 = vmatpush1.bf16.msra.mxu0 %v10457
  %10604 = vmatprep.subr.bf16.mxu0 %v10454
  %10605 = vmatpush1.bf16.msra.mxu0 %v10453
  %10606 = vmatprep.subr.bf16.mxu0 %v10450
  %10607 = vmatpush1.bf16.msra.mxu0 %v10449
  %10608 = vmatprep.subr.bf16.mxu0 0
  %10609 = vmatpush2.bf16.msra.mxu0 0
  %10610 = vmatprep.subr.bf16.mxu0 0
  %10611 = vmatpush2.bf16.msra.mxu0 0
  %10612 = vmatprep.subr.bf16.mxu0 0
  %10613 = vmatpush2.bf16.msra.mxu0 0
  %10614 = vmatprep.subr.bf16.mxu0 0
  %10615 = vmatpush2.bf16.msra.mxu0 0
  %10616 = vmatprep.subr.bf16.mxu0 0
  %10617 = vmatpush2.bf16.msra.mxu0 0
  %10618 = vmatprep.subr.bf16.mxu0 0
  %10619 = vmatpush2.bf16.msra.mxu0 0
  %10620 = vmatprep.subr.bf16.mxu0 0
  %10621 = vmatpush2.bf16.msra.mxu0 0
  %10622 = vmatprep.subr.bf16.mxu0 0
  %10623 = vmatpush2.bf16.msra.mxu0 0
  %10624 = vmatprep.mubr.bf16.mxu0 0
  %10625 = vmatmul.mubr.bf16.gmra.mxu0 %v8625
  %v10626 = vpop.f32.mrf.mxu0
  %v10627 = vadd.f32 %v10342, %v10626
  %v10628 = vpop.f32.mrf.mxu0
  %v10629 = vadd.f32 %v10346, %v10628
  %v10630 = vpop.f32.mrf.mxu0
  %v10631 = vadd.f32 %v10342, %v10630
  %v10632 = vpop.f32.mrf.mxu0
  %v10633 = vadd.f32 %v10346, %v10632
  %10634 = vmatprep.mubr.bf16.mxu0 0
  %10635 = vmatmul.mubr.bf16.gmra.mxu0 %v8626
  %v10636 = vpop.f32.mrf.mxu0
  %v10637 = vadd.f32 %v10342, %v10636
  %v10638 = vpop.f32.mrf.mxu0
  %v10639 = vadd.f32 %v10346, %v10638
  %v10640 = vpop.f32.mrf.mxu0
  %v10641 = vadd.f32 %v10342, %v10640
  %v10642 = vpop.f32.mrf.mxu0
  %v10643 = vadd.f32 %v10346, %v10642
  %10644 = vmatprep.mubr.bf16.mxu0 0
  %10645 = vmatmul.mubr.bf16.gmra.mxu0 %v8627
  %v10646 = vpop.f32.mrf.mxu0
  %v10647 = vadd.f32 %v10342, %v10646
  %v10648 = vpop.f32.mrf.mxu0
  %v10649 = vadd.f32 %v10346, %v10648
  %v10650 = vpop.f32.mrf.mxu0
  %v10651 = vadd.f32 %v10342, %v10650
  %v10652 = vpop.f32.mrf.mxu0
  %v10653 = vadd.f32 %v10346, %v10652
  %10654 = vmatprep.mubr.bf16.mxu0 0
  %10655 = vmatmul.mubr.bf16.gmra.mxu0 %v8628
  %v10656 = vpop.f32.mrf.mxu0
  %v10657 = vadd.f32 %v10342, %v10656
  %v10658 = vpop.f32.mrf.mxu0
  %v10659 = vadd.f32 %v10346, %v10658
  %v10660 = vpop.f32.mrf.mxu0
  %v10661 = vadd.f32 %v10342, %v10660
  %v10662 = vpop.f32.mrf.mxu0
  %v10663 = vadd.f32 %v10346, %v10662
  %10664 = vmatprep.mubr.bf16.mxu0 0
  %10665 = vmatmul.mubr.bf16.gmra.mxu0 %v8629
  %v10666 = vpop.f32.mrf.mxu0
  %v10667 = vadd.f32 %v10342, %v10666
  %v10668 = vpop.f32.mrf.mxu0
  %v10669 = vadd.f32 %v10346, %v10668
  %v10670 = vpop.f32.mrf.mxu0
  %v10671 = vpop.f32.mrf.mxu0
  %10672 = vdwg.mxu0
  %v10673 = vmax.f32 %v10546, 0.0
  %v10674 = vmax.f32 %v10548, 0.0
  %v10675 = vmax.f32 %v10627, 0.0
  %v10676 = vmax.f32 %v10629, 0.0
  %v10677 = vmax.f32 %v10550, 0.0
  %v10678 = vmax.f32 %v10552, 0.0
  %v10679 = vmax.f32 %v10631, 0.0
  %v10680 = vmax.f32 %v10633, 0.0
  %v10681 = vmax.f32 %v10556, 0.0
  %v10682 = vmax.f32 %v10558, 0.0
  %v10683 = vmax.f32 %v10637, 0.0
  %v10684 = vmax.f32 %v10639, 0.0
  %v10685 = vmax.f32 %v10560, 0.0
  %v10686 = vmax.f32 %v10562, 0.0
  %v10687 = vmax.f32 %v10641, 0.0
  %v10688 = vmax.f32 %v10643, 0.0
  %v10689 = vmax.f32 %v10566, 0.0
  %v10690 = vmax.f32 %v10568, 0.0
  %v10691 = vmax.f32 %v10647, 0.0
  %v10692 = vmax.f32 %v10649, 0.0
  %v10693 = vmax.f32 %v10570, 0.0
  %v10694 = vmax.f32 %v10572, 0.0
  %v10695 = vmax.f32 %v10651, 0.0
  %v10696 = vmax.f32 %v10653, 0.0
  %v10697 = vmax.f32 %v10576, 0.0
  %v10698 = vmax.f32 %v10578, 0.0
  %v10699 = vmax.f32 %v10657, 0.0
  %v10700 = vmax.f32 %v10659, 0.0
  %v10701 = vmax.f32 %v10580, 0.0
  %v10702 = vmax.f32 %v10582, 0.0
  %v10703 = vmax.f32 %v10661, 0.0
  %v10704 = vmax.f32 %v10663, 0.0
  %v10705 = vmax.f32 %v10586, 0.0
  %v10706 = vmax.f32 %v10588, 0.0
  %v10707 = vmax.f32 %v10667, 0.0
  %v10708 = vmax.f32 %v10669, 0.0
  %v10709 = vpack.c.bf16 %v10677, %v10673
  %v10710 = vpack.c.bf16 %v10678, %v10674
  %v10711 = vpack.c.bf16 %v10679, %v10675
  %v10712 = vpack.c.bf16 %v10680, %v10676
  %v10713 = vpack.c.bf16 %v10685, %v10681
  %v10714 = vpack.c.bf16 %v10686, %v10682
  %v10715 = vpack.c.bf16 %v10687, %v10683
  %v10716 = vpack.c.bf16 %v10688, %v10684
  %v10717 = vpack.c.bf16 %v10693, %v10689
  %v10718 = vpack.c.bf16 %v10694, %v10690
  %v10719 = vpack.c.bf16 %v10695, %v10691
  %v10720 = vpack.c.bf16 %v10696, %v10692
  %v10721 = vpack.c.bf16 %v10701, %v10697
  %v10722 = vpack.c.bf16 %v10702, %v10698
  %v10723 = vpack.c.bf16 %v10703, %v10699
  %v10724 = vpack.c.bf16 %v10704, %v10700
  %v10725 = vpack.c.bf16 %v10705, %v10705
  %v10726 = vpack.c.bf16 %v10706, %v10706
  %v10727 = vpack.c.bf16 %v10707, %v10707
  %v10728 = vpack.c.bf16 %v10708, %v10708
  %v10729 = vld [vmem:[%s9064 + $0x200] sm:$0xf]
  %v10730 = vld [vmem:[%s9064 + $0x204] sm:$0xf]
  %v10731 = vld [vmem:[%s9064 + $0x208] sm:$0xf]
  %v10732 = vld [vmem:[%s9064 + $0x20c] sm:$0xf]
  %v10733 = vld [vmem:[%s9064 + $0x210] sm:$0xf]
  %v10734 = vld [vmem:[%s9064 + $0x214] sm:$0xf]
  %v10735 = vld [vmem:[%s9064 + $0x218] sm:$0xf]
  %v10736 = vld [vmem:[%s9064 + $0x21c] sm:$0xf]
  %v10737 = vld [vmem:[%s9064 + $0x220] sm:$0xf]
  %v10738 = vld [vmem:[%s9064 + $0x224] sm:$0xf]
  %v10739 = vld [vmem:[%s9064 + $0x228] sm:$0xf]
  %v10740 = vld [vmem:[%s9064 + $0x22c] sm:$0xf]
  %v10741 = vld [vmem:[%s9064 + $0x230] sm:$0xf]
  %v10742 = vld [vmem:[%s9064 + $0x234] sm:$0xf]
  %v10743 = vld [vmem:[%s9064 + $0x238] sm:$0xf]
  %v10744 = vld [vmem:[%s9064 + $0x23c] sm:$0xf]
  %v10745 = vld [vmem:[%s9064 + $0x240] sm:$0xf]
  %v10746 = vld [vmem:[%s9064 + $0x244] sm:$0xf]
  %v10747 = vld [vmem:[%s9064 + $0x248] sm:$0xf]
  %v10748 = vld [vmem:[%s9064 + $0x24c] sm:$0xf]
  %v10749 = vld [vmem:[%s9064 + $0x250] sm:$0xf]
  %v10750 = vld [vmem:[%s9064 + $0x254] sm:$0xf]
  %v10751 = vld [vmem:[%s9064 + $0x258] sm:$0xf]
  %v10752 = vld [vmem:[%s9064 + $0x25c] sm:$0xf]
  %v10753 = vld [vmem:[%s9064 + $0x260] sm:$0xf]
  %v10754 = vld [vmem:[%s9064 + $0x264] sm:$0xf]
  %v10755 = vld [vmem:[%s9064 + $0x268] sm:$0xf]
  %v10756 = vld [vmem:[%s9064 + $0x26c] sm:$0xf]
  %v10757 = vld [vmem:[%s9064 + $0x270] sm:$0xf]
  %v10758 = vld [vmem:[%s9064 + $0x274] sm:$0xf]
  %v10759 = vld [vmem:[%s9064 + $0x278] sm:$0xf]
  %v10760 = vld [vmem:[%s9064 + $0x27c] sm:$0xf]
  %v10761 = vld [vmem:[%s9064 + $0x280] sm:$0xf]
  %v10762 = vld [vmem:[%s9064 + $0x284] sm:$0xf]
  %v10763 = vld [vmem:[%s9064 + $0x288] sm:$0xf]
  %v10764 = vld [vmem:[%s9064 + $0x28c] sm:$0xf]
  %v10765 = vld [vmem:[%s9064 + $0x290] sm:$0xf]
  %v10766 = vld [vmem:[%s9064 + $0x294] sm:$0xf]
  %v10767 = vld [vmem:[%s9064 + $0x298] sm:$0xf]
  %v10768 = vld [vmem:[%s9064 + $0x29c] sm:$0xf]
  %v10769 = vld [vmem:[%s9064 + $0x2a0] sm:$0xf]
  %v10770 = vld [vmem:[%s9064 + $0x2a4] sm:$0xf]
  %v10771 = vld [vmem:[%s9064 + $0x2a8] sm:$0xf]
  %v10772 = vld [vmem:[%s9064 + $0x2ac] sm:$0xf]
  %v10773 = vld [vmem:[%s9064 + $0x2b0] sm:$0xf]
  %v10774 = vld [vmem:[%s9064 + $0x2b4] sm:$0xf]
  %v10775 = vld [vmem:[%s9064 + $0x2b8] sm:$0xf]
  %v10776 = vld [vmem:[%s9064 + $0x2bc] sm:$0xf]
  %v10777 = vld [vmem:[%s9064 + $0x2c0] sm:$0xf]
  %v10778 = vld [vmem:[%s9064 + $0x2c4] sm:$0xf]
  %v10779 = vld [vmem:[%s9064 + $0x2c8] sm:$0xf]
  %v10780 = vld [vmem:[%s9064 + $0x2cc] sm:$0xf]
  %v10781 = vld [vmem:[%s9064 + $0x2d0] sm:$0xf]
  %v10782 = vld [vmem:[%s9064 + $0x2d4] sm:$0xf]
  %v10783 = vld [vmem:[%s9064 + $0x2d8] sm:$0xf]
  %v10784 = vld [vmem:[%s9064 + $0x2dc] sm:$0xf]
  %v10785 = vld [vmem:[%s9064 + $0x2e0] sm:$0xf]
  %v10786 = vld [vmem:[%s9064 + $0x2e4] sm:$0xf]
  %v10787 = vld [vmem:[%s9064 + $0x2e8] sm:$0xf]
  %v10788 = vld [vmem:[%s9064 + $0x2ec] sm:$0xf]
  %v10789 = vld [vmem:[%s9064 + $0x2f0] sm:$0xf]
  %v10790 = vld [vmem:[%s9064 + $0x2f4] sm:$0xf]
  %v10791 = vld [vmem:[%s9064 + $0x2f8] sm:$0xf]
  %v10792 = vld [vmem:[%s9064 + $0x2fc] sm:$0xf]
  %v10857 = vunpack.c.l.b16 %v10729
  %v10858 = vunpack.c.l.b16 %v10730
  %v10859 = vunpack.c.l.b16 %v10731
  %v10860 = vunpack.c.l.b16 %v10732
  %v10861 = vunpack.c.l.b16 %v10733
  %v10862 = vunpack.c.l.b16 %v10734
  %v10863 = vunpack.c.l.b16 %v10735
  %v10864 = vunpack.c.l.b16 %v10736
  %v10865 = vunpack.c.l.b16 %v10737
  %v10866 = vunpack.c.l.b16 %v10738
  %v10867 = vunpack.c.l.b16 %v10739
  %v10868 = vunpack.c.l.b16 %v10740
  %v10869 = vunpack.c.l.b16 %v10741
  %v10870 = vunpack.c.l.b16 %v10742
  %v10871 = vunpack.c.l.b16 %v10743
  %v10872 = vunpack.c.l.b16 %v10744
  %v10873 = vunpack.c.l.b16 %v10745
  %v10874 = vunpack.c.l.b16 %v10746
  %v10875 = vunpack.c.l.b16 %v10747
  %v10876 = vunpack.c.l.b16 %v10748
  %v10877 = vunpack.c.l.b16 %v10749
  %v10878 = vunpack.c.l.b16 %v10750
  %v10879 = vunpack.c.l.b16 %v10751
  %v10880 = vunpack.c.l.b16 %v10752
  %v10881 = vunpack.c.l.b16 %v10753
  %v10882 = vunpack.c.l.b16 %v10754
  %v10883 = vunpack.c.l.b16 %v10755
  %v10884 = vunpack.c.l.b16 %v10756
  %v10885 = vunpack.c.l.b16 %v10757
  %v10886 = vunpack.c.l.b16 %v10758
  %v10887 = vunpack.c.l.b16 %v10759
  %v10888 = vunpack.c.l.b16 %v10760
  %v10889 = vunpack.c.l.b16 %v10761
  %v10890 = vunpack.c.l.b16 %v10762
  %v10891 = vunpack.c.l.b16 %v10763
  %v10892 = vunpack.c.l.b16 %v10764
  %v10893 = vunpack.c.l.b16 %v10765
  %v10894 = vunpack.c.l.b16 %v10766
  %v10895 = vunpack.c.l.b16 %v10767
  %v10896 = vunpack.c.l.b16 %v10768
  %v10897 = vunpack.c.l.b16 %v10769
  %v10898 = vunpack.c.l.b16 %v10770
  %v10899 = vunpack.c.l.b16 %v10771
  %v10900 = vunpack.c.l.b16 %v10772
  %v10901 = vunpack.c.l.b16 %v10773
  %v10902 = vunpack.c.l.b16 %v10774
  %v10903 = vunpack.c.l.b16 %v10775
  %v10904 = vunpack.c.l.b16 %v10776
  %v10905 = vunpack.c.l.b16 %v10777
  %v10906 = vunpack.c.l.b16 %v10778
  %v10907 = vunpack.c.l.b16 %v10779
  %v10908 = vunpack.c.l.b16 %v10780
  %v10909 = vunpack.c.l.b16 %v10781
  %v10910 = vunpack.c.l.b16 %v10782
  %v10911 = vunpack.c.l.b16 %v10783
  %v10912 = vunpack.c.l.b16 %v10784
  %v10913 = vunpack.c.l.b16 %v10785
  %v10914 = vunpack.c.l.b16 %v10786
  %v10915 = vunpack.c.l.b16 %v10787
  %v10916 = vunpack.c.l.b16 %v10788
  %v10917 = vunpack.c.l.b16 %v10789
  %v10918 = vunpack.c.l.b16 %v10790
  %v10919 = vunpack.c.l.b16 %v10791
  %v10920 = vunpack.c.l.b16 %v10792
  %v10921 = vpack.c.b16 %v10858, %v10857
  %v10922 = vpack.c.b16 %v10860, %v10859
  %v10923 = vpack.c.b16 %v10862, %v10861
  %v10924 = vpack.c.b16 %v10864, %v10863
  %v10925 = vpack.c.b16 %v10866, %v10865
  %v10926 = vpack.c.b16 %v10868, %v10867
  %v10927 = vpack.c.b16 %v10870, %v10869
  %v10928 = vpack.c.b16 %v10872, %v10871
  %v10929 = vpack.c.b16 %v10874, %v10873
  %v10930 = vpack.c.b16 %v10876, %v10875
  %v10931 = vpack.c.b16 %v10878, %v10877
  %v10932 = vpack.c.b16 %v10880, %v10879
  %v10933 = vpack.c.b16 %v10882, %v10881
  %v10934 = vpack.c.b16 %v10884, %v10883
  %v10935 = vpack.c.b16 %v10886, %v10885
  %v10936 = vpack.c.b16 %v10888, %v10887
  %v10937 = vpack.c.b16 %v10890, %v10889
  %v10938 = vpack.c.b16 %v10892, %v10891
  %v10939 = vpack.c.b16 %v10894, %v10893
  %v10940 = vpack.c.b16 %v10896, %v10895
  %v10941 = vpack.c.b16 %v10898, %v10897
  %v10942 = vpack.c.b16 %v10900, %v10899
  %v10943 = vpack.c.b16 %v10902, %v10901
  %v10944 = vpack.c.b16 %v10904, %v10903
  %v10945 = vpack.c.b16 %v10906, %v10905
  %v10946 = vpack.c.b16 %v10908, %v10907
  %v10947 = vpack.c.b16 %v10910, %v10909
  %v10948 = vpack.c.b16 %v10912, %v10911
  %v10949 = vpack.c.b16 %v10914, %v10913
  %v10950 = vpack.c.b16 %v10916, %v10915
  %v10951 = vpack.c.b16 %v10918, %v10917
  %v10952 = vpack.c.b16 %v10920, %v10919
  %10985 = vmatprep.subr.bf16.mxu0 0
  %10986 = vmatpush1.bf16.msra.mxu0 %v10928
  %10987 = vmatprep.subr.bf16.mxu0 0
  %10988 = vmatpush1.bf16.msra.mxu0 %v10927
  %10989 = vmatprep.subr.bf16.mxu0 0
  %10990 = vmatpush1.bf16.msra.mxu0 %v10926
  %10991 = vmatprep.subr.bf16.mxu0 0
  %10992 = vmatpush1.bf16.msra.mxu0 %v10925
  %10993 = vmatprep.subr.bf16.mxu0 0
  %10994 = vmatpush1.bf16.msra.mxu0 %v10924
  %10995 = vmatprep.subr.bf16.mxu0 0
  %10996 = vmatpush1.bf16.msra.mxu0 %v10923
  %10997 = vmatprep.subr.bf16.mxu0 0
  %10998 = vmatpush1.bf16.msra.mxu0 %v10922
  %10999 = vmatprep.subr.bf16.mxu0 0
  %11000 = vmatpush1.bf16.msra.mxu0 %v10921
  %11001 = vmatprep.subr.bf16.mxu0 0
  %11002 = vmatpush2.bf16.msra.mxu0 %v10936
  %11003 = vmatprep.subr.bf16.mxu0 0
  %11004 = vmatpush2.bf16.msra.mxu0 %v10935
  %11005 = vmatprep.subr.bf16.mxu0 0
  %11006 = vmatpush2.bf16.msra.mxu0 %v10934
  %11007 = vmatprep.subr.bf16.mxu0 0
  %11008 = vmatpush2.bf16.msra.mxu0 %v10933
  %11009 = vmatprep.subr.bf16.mxu0 0
  %11010 = vmatpush2.bf16.msra.mxu0 %v10932
  %11011 = vmatprep.subr.bf16.mxu0 0
  %11012 = vmatpush2.bf16.msra.mxu0 %v10931
  %11013 = vmatprep.subr.bf16.mxu0 0
  %11014 = vmatpush2.bf16.msra.mxu0 %v10930
  %11015 = vmatprep.subr.bf16.mxu0 0
  %11016 = vmatpush2.bf16.msra.mxu0 %v10929
  %11017 = vmatprep.mubr.bf16.mxu0 %v10710
  %11018 = vmatmul.mubr.bf16.gmra.mxu0 %v10709
  %v11019 = vpop.f32.mrf.mxu0
  %v11020 = vadd.f32 0.0, %v11019
  %v11021 = vpop.f32.mrf.mxu0
  %v11022 = vpop.f32.mrf.mxu0
  %v11023 = vadd.f32 0.0, %v11022
  %v11024 = vpop.f32.mrf.mxu0
  %11025 = vmatprep.mubr.bf16.mxu0 %v10714
  %11026 = vmatmul.mubr.bf16.gmra.mxu0 %v10713
  %v11027 = vpop.f32.mrf.mxu0
  %v11028 = vadd.f32 0.0, %v11027
  %v11029 = vpop.f32.mrf.mxu0
  %v11030 = vpop.f32.mrf.mxu0
  %v11031 = vadd.f32 0.0, %v11030
  %v11032 = vpop.f32.mrf.mxu0
  %11033 = vmatprep.mubr.bf16.mxu0 %v10718
  %11034 = vmatmul.mubr.bf16.gmra.mxu0 %v10717
  %v11035 = vpop.f32.mrf.mxu0
  %v11036 = vadd.f32 0.0, %v11035
  %v11037 = vpop.f32.mrf.mxu0
  %v11038 = vpop.f32.mrf.mxu0
  %v11039 = vadd.f32 0.0, %v11038
  %v11040 = vpop.f32.mrf.mxu0
  %11041 = vmatprep.mubr.bf16.mxu0 %v10722
  %11042 = vmatmul.mubr.bf16.gmra.mxu0 %v10721
  %v11043 = vpop.f32.mrf.mxu0
  %v11044 = vadd.f32 0.0, %v11043
  %v11045 = vpop.f32.mrf.mxu0
  %v11046 = vpop.f32.mrf.mxu0
  %v11047 = vadd.f32 0.0, %v11046
  %v11048 = vpop.f32.mrf.mxu0
  %11049 = vmatprep.mubr.bf16.mxu0 %v10726
  %11050 = vmatmul.mubr.bf16.gmra.mxu0 %v10725
  %v11051 = vpop.f32.mrf.mxu0
  %v11052 = vadd.f32 0.0, %v11051
  %v11053 = vpop.f32.mrf.mxu0
  %v11054 = vpop.f32.mrf.mxu0
  %v11055 = vpop.f32.mrf.mxu0
  %11056 = vdwg.mxu0
  %11057 = vmatprep.subr.bf16.mxu0 0
  %11058 = vmatpush1.bf16.msra.mxu0 %v10944
  %11059 = vmatprep.subr.bf16.mxu0 0
  %11060 = vmatpush1.bf16.msra.mxu0 %v10943
  %11061 = vmatprep.subr.bf16.mxu0 0
  %11062 = vmatpush1.bf16.msra.mxu0 %v10942
  %11063 = vmatprep.subr.bf16.mxu0 0
  %11064 = vmatpush1.bf16.msra.mxu0 %v10941
  %11065 = vmatprep.subr.bf16.mxu0 0
  %11066 = vmatpush1.bf16.msra.mxu0 %v10940
  %11067 = vmatprep.subr.bf16.mxu0 0
  %11068 = vmatpush1.bf16.msra.mxu0 %v10939
  %11069 = vmatprep.subr.bf16.mxu0 0
  %11070 = vmatpush1.bf16.msra.mxu0 %v10938
  %11071 = vmatprep.subr.bf16.mxu0 0
  %11072 = vmatpush1.bf16.msra.mxu0 %v10937
  %11073 = vmatprep.subr.bf16.mxu0 0
  %11074 = vmatpush2.bf16.msra.mxu0 %v10952
  %11075 = vmatprep.subr.bf16.mxu0 0
  %11076 = vmatpush2.bf16.msra.mxu0 %v10951
  %11077 = vmatprep.subr.bf16.mxu0 0
  %11078 = vmatpush2.bf16.msra.mxu0 %v10950
  %11079 = vmatprep.subr.bf16.mxu0 0
  %11080 = vmatpush2.bf16.msra.mxu0 %v10949
  %11081 = vmatprep.subr.bf16.mxu0 0
  %11082 = vmatpush2.bf16.msra.mxu0 %v10948
  %11083 = vmatprep.subr.bf16.mxu0 0
  %11084 = vmatpush2.bf16.msra.mxu0 %v10947
  %11085 = vmatprep.subr.bf16.mxu0 0
  %11086 = vmatpush2.bf16.msra.mxu0 %v10946
  %11087 = vmatprep.subr.bf16.mxu0 0
  %11088 = vmatpush2.bf16.msra.mxu0 %v10945
  %11089 = vmatprep.mubr.bf16.mxu0 %v10712
  %11090 = vmatmul.mubr.bf16.gmra.mxu0 %v10711
  %v11091 = vpop.f32.mrf.mxu0
  %v11092 = vadd.f32 %v11020, %v11091
  %v11093 = vpop.f32.mrf.mxu0
  %v11094 = vpop.f32.mrf.mxu0
  %v11095 = vadd.f32 %v11023, %v11094
  %v11096 = vpop.f32.mrf.mxu0
  %11097 = vmatprep.mubr.bf16.mxu0 %v10716
  %11098 = vmatmul.mubr.bf16.gmra.mxu0 %v10715
  %v11099 = vpop.f32.mrf.mxu0
  %v11100 = vadd.f32 %v11028, %v11099
  %v11101 = vpop.f32.mrf.mxu0
  %v11102 = vpop.f32.mrf.mxu0
  %v11103 = vadd.f32 %v11031, %v11102
  %v11104 = vpop.f32.mrf.mxu0
  %11105 = vmatprep.mubr.bf16.mxu0 %v10720
  %11106 = vmatmul.mubr.bf16.gmra.mxu0 %v10719
  %v11107 = vpop.f32.mrf.mxu0
  %v11108 = vadd.f32 %v11036, %v11107
  %v11109 = vpop.f32.mrf.mxu0
  %v11110 = vpop.f32.mrf.mxu0
  %v11111 = vadd.f32 %v11039, %v11110
  %v11112 = vpop.f32.mrf.mxu0
  %11113 = vmatprep.mubr.bf16.mxu0 %v10724
  %11114 = vmatmul.mubr.bf16.gmra.mxu0 %v10723
  %v11115 = vpop.f32.mrf.mxu0
  %v11116 = vadd.f32 %v11044, %v11115
  %v11117 = vpop.f32.mrf.mxu0
  %v11118 = vpop.f32.mrf.mxu0
  %v11119 = vadd.f32 %v11047, %v11118
  %v11120 = vpop.f32.mrf.mxu0
  %11121 = vmatprep.mubr.bf16.mxu0 %v10728
  %11122 = vmatmul.mubr.bf16.gmra.mxu0 %v10727
  %v11123 = vpop.f32.mrf.mxu0
  %v11124 = vadd.f32 %v11052, %v11123
  %v11125 = vpop.f32.mrf.mxu0
  %v11126 = vpop.f32.mrf.mxu0
  %v11127 = vpop.f32.mrf.mxu0
  %11128 = vdwg.mxu0
  %v11129 = vadd.f32 %v10260, %v11092
  %v11130 = vadd.f32 %v10263, %v11095
  %v11131 = vadd.f32 %v10268, %v11100
  %v11132 = vadd.f32 %v10271, %v11103
  %v11133 = vadd.f32 %v10276, %v11108
  %v11134 = vadd.f32 %v10279, %v11111
  %v11135 = vadd.f32 %v10284, %v11116
  %v11136 = vadd.f32 %v10287, %v11119
  %v11137 = vadd.f32 %v10292, %v11124
  %v11138 = vld [vmem:[%s8630 + $0x30] sm:$0xff]
  %v11139 = vld [vmem:[%s8630 + $0x38] sm:$0xff]
  %v11140 = vld [vmem:[%s8630 + $0x70] sm:$0xff]
  %v11141 = vld [vmem:[%s8630 + $0x78] sm:$0xff]
  %v11142 = vld [vmem:[%s8630 + $0xb0] sm:$0xff]
  %v11143 = vld [vmem:[%s8630 + $0xb8] sm:$0xff]
  %v11144 = vld [vmem:[%s8630 + $0xf0] sm:$0xff]
  %v11145 = vld [vmem:[%s8630 + $0xf8] sm:$0xff]
  %v11146 = vld [vmem:[%s8630 + $0x130] sm:$0xff]
  %v11147 = vld [vmem:[%s8630 + $0x138] sm:$0xff]
  %v11148 = vld [vmem:[%s8630 + $0x170] sm:$0xff]
  %v11149 = vld [vmem:[%s8630 + $0x178] sm:$0xff]
  %v11150 = vld [vmem:[%s8630 + $0x1b0] sm:$0xff]
  %v11151 = vld [vmem:[%s8630 + $0x1b8] sm:$0xff]
  %v11152 = vld [vmem:[%s8630 + $0x1f0] sm:$0xff]
  %v11153 = vld [vmem:[%s8630 + $0x1f8] sm:$0xff]
  %v11154 = vld [vmem:[%s8630 + $0x230] sm:$0xff]
  %v11155 = vld [vmem:[%s8630 + $0x238] sm:$0xff]
  %v11156 = vld [vmem:[%s8630 + $0x270] sm:$0xff]
  %v11157 = vld [vmem:[%s8630 + $0x278] sm:$0xff]
  %v11158 = vld [vmem:[%s8630 + $0x2b0] sm:$0xff]
  %v11159 = vld [vmem:[%s8630 + $0x2b8] sm:$0xff]
  %v11160 = vld [vmem:[%s8630 + $0x2f0] sm:$0xff]
  %v11161 = vld [vmem:[%s8630 + $0x2f8] sm:$0xff]
  %v11162 = vld [vmem:[%s8630 + $0x330] sm:$0xff]
  %v11163 = vld [vmem:[%s8630 + $0x338] sm:$0xff]
  %v11164 = vld [vmem:[%s8630 + $0x370] sm:$0xff]
  %v11165 = vld [vmem:[%s8630 + $0x378] sm:$0xff]
  %v11166 = vld [vmem:[%s8630 + $0x3b0] sm:$0xff]
  %v11167 = vld [vmem:[%s8630 + $0x3b8] sm:$0xff]
  %v11168 = vld [vmem:[%s8630 + $0x3f0] sm:$0xff]
  %v11169 = vld [vmem:[%s8630 + $0x3f8] sm:$0xff]
  %v11170 = vld [vmem:[%s8663 + $0xc] sm:$0xf]
  %v11172 = vlaneseq
  %v11173 = vshrl.u32 %v11172, 7
  %v11174 = vsub.s32 0, %v11173
  %v11175 = vrot.slane %v11170, %v11174
  %v11176 = vlaneseq
  %v11177 = vshrl.u32 %v11176, 7
  %v11178 = vsub.s32 1, %v11177
  %v11179 = vrot.slane %v11170, %v11178
  %v11180 = vlaneseq
  %v11181 = vshrl.u32 %v11180, 7
  %v11182 = vsub.s32 2, %v11181
  %v11183 = vrot.slane %v11170, %v11182
  %v11184 = vlaneseq
  %v11185 = vshrl.u32 %v11184, 7
  %v11186 = vsub.s32 3, %v11185
  %v11187 = vrot.slane %v11170, %v11186
  %v11224 = vunpack.c.l.b16 %v11138
  %v11225 = vunpack.c.h.b16 %v11138
  %v11226 = vunpack.c.l.b16 %v11139
  %v11227 = vunpack.c.h.b16 %v11139
  %v11228 = vunpack.c.l.b16 %v11140
  %v11229 = vunpack.c.h.b16 %v11140
  %v11230 = vunpack.c.l.b16 %v11141
  %v11231 = vunpack.c.h.b16 %v11141
  %v11232 = vunpack.c.l.b16 %v11142
  %v11233 = vunpack.c.h.b16 %v11142
  %v11234 = vunpack.c.l.b16 %v11143
  %v11235 = vunpack.c.h.b16 %v11143
  %v11236 = vunpack.c.l.b16 %v11144
  %v11237 = vunpack.c.h.b16 %v11144
  %v11238 = vunpack.c.l.b16 %v11145
  %v11239 = vunpack.c.h.b16 %v11145
  %v11240 = vunpack.c.l.b16 %v11146
  %v11241 = vunpack.c.h.b16 %v11146
  %v11242 = vunpack.c.l.b16 %v11147
  %v11243 = vunpack.c.h.b16 %v11147
  %v11244 = vunpack.c.l.b16 %v11148
  %v11245 = vunpack.c.h.b16 %v11148
  %v11246 = vunpack.c.l.b16 %v11149
  %v11247 = vunpack.c.h.b16 %v11149
  %v11248 = vunpack.c.l.b16 %v11150
  %v11249 = vunpack.c.h.b16 %v11150
  %v11250 = vunpack.c.l.b16 %v11151
  %v11251 = vunpack.c.h.b16 %v11151
  %v11252 = vunpack.c.l.b16 %v11152
  %v11253 = vunpack.c.h.b16 %v11152
  %v11254 = vunpack.c.l.b16 %v11153
  %v11255 = vunpack.c.h.b16 %v11153
  %v11256 = vunpack.c.l.b16 %v11154
  %v11257 = vunpack.c.h.b16 %v11154
  %v11258 = vunpack.c.l.b16 %v11155
  %v11259 = vunpack.c.h.b16 %v11155
  %v11260 = vunpack.c.l.b16 %v11156
  %v11261 = vunpack.c.h.b16 %v11156
  %v11262 = vunpack.c.l.b16 %v11157
  %v11263 = vunpack.c.h.b16 %v11157
  %v11264 = vunpack.c.l.b16 %v11158
  %v11265 = vunpack.c.h.b16 %v11158
  %v11266 = vunpack.c.l.b16 %v11159
  %v11267 = vunpack.c.h.b16 %v11159
  %v11268 = vunpack.c.l.b16 %v11160
  %v11269 = vunpack.c.h.b16 %v11160
  %v11270 = vunpack.c.l.b16 %v11161
  %v11271 = vunpack.c.h.b16 %v11161
  %v11272 = vunpack.c.l.b16 %v11162
  %v11273 = vunpack.c.h.b16 %v11162
  %v11274 = vunpack.c.l.b16 %v11163
  %v11275 = vunpack.c.h.b16 %v11163
  %v11276 = vunpack.c.l.b16 %v11164
  %v11277 = vunpack.c.h.b16 %v11164
  %v11278 = vunpack.c.l.b16 %v11165
  %v11279 = vunpack.c.h.b16 %v11165
  %v11280 = vunpack.c.l.b16 %v11166
  %v11281 = vunpack.c.h.b16 %v11166
  %v11282 = vunpack.c.l.b16 %v11167
  %v11283 = vunpack.c.h.b16 %v11167
  %v11284 = vunpack.c.l.b16 %v11168
  %v11285 = vunpack.c.h.b16 %v11168
  %v11286 = vunpack.c.l.b16 %v11169
  %v11287 = vunpack.c.h.b16 %v11169
  %v11288 = vpack.c.b16 %v11228, %v11224
  %v11289 = vpack.c.b16 %v11229, %v11225
  %v11290 = vpack.c.b16 %v11230, %v11226
  %v11291 = vpack.c.b16 %v11231, %v11227
  %v11292 = vpack.c.b16 %v11236, %v11232
  %v11293 = vpack.c.b16 %v11237, %v11233
  %v11294 = vpack.c.b16 %v11238, %v11234
  %v11295 = vpack.c.b16 %v11239, %v11235
  %v11296 = vpack.c.b16 %v11244, %v11240
  %v11297 = vpack.c.b16 %v11245, %v11241
  %v11298 = vpack.c.b16 %v11246, %v11242
  %v11299 = vpack.c.b16 %v11247, %v11243
  %v11300 = vpack.c.b16 %v11252, %v11248
  %v11301 = vpack.c.b16 %v11253, %v11249
  %v11302 = vpack.c.b16 %v11254, %v11250
  %v11303 = vpack.c.b16 %v11255, %v11251
  %v11304 = vpack.c.b16 %v11260, %v11256
  %v11305 = vpack.c.b16 %v11261, %v11257
  %v11306 = vpack.c.b16 %v11262, %v11258
  %v11307 = vpack.c.b16 %v11263, %v11259
  %v11308 = vpack.c.b16 %v11268, %v11264
  %v11309 = vpack.c.b16 %v11269, %v11265
  %v11310 = vpack.c.b16 %v11270, %v11266
  %v11311 = vpack.c.b16 %v11271, %v11267
  %v11312 = vpack.c.b16 %v11276, %v11272
  %v11313 = vpack.c.b16 %v11277, %v11273
  %v11314 = vpack.c.b16 %v11278, %v11274
  %v11315 = vpack.c.b16 %v11279, %v11275
  %v11316 = vpack.c.b16 %v11284, %v11280
  %v11317 = vpack.c.b16 %v11285, %v11281
  %v11318 = vpack.c.b16 %v11286, %v11282
  %v11319 = vpack.c.b16 %v11287, %v11283
  %11352 = vmatprep.subr.bf16.mxu0 %v11317
  %11353 = vmatpush1.bf16.msra.mxu0 %v11316
  %11354 = vmatprep.subr.bf16.mxu0 %v11313
  %11355 = vmatpush1.bf16.msra.mxu0 %v11312
  %11356 = vmatprep.subr.bf16.mxu0 %v11309
  %11357 = vmatpush1.bf16.msra.mxu0 %v11308
  %11358 = vmatprep.subr.bf16.mxu0 %v11305
  %11359 = vmatpush1.bf16.msra.mxu0 %v11304
  %11360 = vmatprep.subr.bf16.mxu0 %v11301
  %11361 = vmatpush1.bf16.msra.mxu0 %v11300
  %11362 = vmatprep.subr.bf16.mxu0 %v11297
  %11363 = vmatpush1.bf16.msra.mxu0 %v11296
  %11364 = vmatprep.subr.bf16.mxu0 %v11293
  %11365 = vmatpush1.bf16.msra.mxu0 %v11292
  %11366 = vmatprep.subr.bf16.mxu0 %v11289
  %11367 = vmatpush1.bf16.msra.mxu0 %v11288
  %11368 = vmatprep.subr.bf16.mxu0 0
  %11369 = vmatpush2.bf16.msra.mxu0 0
  %11370 = vmatprep.subr.bf16.mxu0 0
  %11371 = vmatpush2.bf16.msra.mxu0 0
  %11372 = vmatprep.subr.bf16.mxu0 0
  %11373 = vmatpush2.bf16.msra.mxu0 0
  %11374 = vmatprep.subr.bf16.mxu0 0
  %11375 = vmatpush2.bf16.msra.mxu0 0
  %11376 = vmatprep.subr.bf16.mxu0 0
  %11377 = vmatpush2.bf16.msra.mxu0 0
  %11378 = vmatprep.subr.bf16.mxu0 0
  %11379 = vmatpush2.bf16.msra.mxu0 0
  %11380 = vmatprep.subr.bf16.mxu0 0
  %11381 = vmatpush2.bf16.msra.mxu0 0
  %11382 = vmatprep.subr.bf16.mxu0 0
  %11383 = vmatpush2.bf16.msra.mxu0 0
  %11384 = vmatprep.mubr.bf16.mxu0 0
  %11385 = vmatmul.mubr.bf16.gmra.mxu0 %v8625
  %v11386 = vpop.f32.mrf.mxu0
  %v11387 = vadd.f32 %v11175, %v11386
  %v11388 = vpop.f32.mrf.mxu0
  %v11389 = vadd.f32 %v11179, %v11388
  %v11390 = vpop.f32.mrf.mxu0
  %v11391 = vadd.f32 %v11175, %v11390
  %v11392 = vpop.f32.mrf.mxu0
  %v11393 = vadd.f32 %v11179, %v11392
  %11394 = vmatprep.mubr.bf16.mxu0 0
  %11395 = vmatmul.mubr.bf16.gmra.mxu0 %v8626
  %v11396 = vpop.f32.mrf.mxu0
  %v11397 = vadd.f32 %v11175, %v11396
  %v11398 = vpop.f32.mrf.mxu0
  %v11399 = vadd.f32 %v11179, %v11398
  %v11400 = vpop.f32.mrf.mxu0
  %v11401 = vadd.f32 %v11175, %v11400
  %v11402 = vpop.f32.mrf.mxu0
  %v11403 = vadd.f32 %v11179, %v11402
  %11404 = vmatprep.mubr.bf16.mxu0 0
  %11405 = vmatmul.mubr.bf16.gmra.mxu0 %v8627
  %v11406 = vpop.f32.mrf.mxu0
  %v11407 = vadd.f32 %v11175, %v11406
  %v11408 = vpop.f32.mrf.mxu0
  %v11409 = vadd.f32 %v11179, %v11408
  %v11410 = vpop.f32.mrf.mxu0
  %v11411 = vadd.f32 %v11175, %v11410
  %v11412 = vpop.f32.mrf.mxu0
  %v11413 = vadd.f32 %v11179, %v11412
  %11414 = vmatprep.mubr.bf16.mxu0 0
  %11415 = vmatmul.mubr.bf16.gmra.mxu0 %v8628
  %v11416 = vpop.f32.mrf.mxu0
  %v11417 = vadd.f32 %v11175, %v11416
  %v11418 = vpop.f32.mrf.mxu0
  %v11419 = vadd.f32 %v11179, %v11418
  %v11420 = vpop.f32.mrf.mxu0
  %v11421 = vadd.f32 %v11175, %v11420
  %v11422 = vpop.f32.mrf.mxu0
  %v11423 = vadd.f32 %v11179, %v11422
  %11424 = vmatprep.mubr.bf16.mxu0 0
  %11425 = vmatmul.mubr.bf16.gmra.mxu0 %v8629
  %v11426 = vpop.f32.mrf.mxu0
  %v11427 = vadd.f32 %v11175, %v11426
  %v11428 = vpop.f32.mrf.mxu0
  %v11429 = vadd.f32 %v11179, %v11428
  %v11430 = vpop.f32.mrf.mxu0
  %v11431 = vpop.f32.mrf.mxu0
  %11432 = vdwg.mxu0
  %11433 = vmatprep.subr.bf16.mxu0 %v11319
  %11434 = vmatpush1.bf16.msra.mxu0 %v11318
  %11435 = vmatprep.subr.bf16.mxu0 %v11315
  %11436 = vmatpush1.bf16.msra.mxu0 %v11314
  %11437 = vmatprep.subr.bf16.mxu0 %v11311
  %11438 = vmatpush1.bf16.msra.mxu0 %v11310
  %11439 = vmatprep.subr.bf16.mxu0 %v11307
  %11440 = vmatpush1.bf16.msra.mxu0 %v11306
  %11441 = vmatprep.subr.bf16.mxu0 %v11303
  %11442 = vmatpush1.bf16.msra.mxu0 %v11302
  %11443 = vmatprep.subr.bf16.mxu0 %v11299
  %11444 = vmatpush1.bf16.msra.mxu0 %v11298
  %11445 = vmatprep.subr.bf16.mxu0 %v11295
  %11446 = vmatpush1.bf16.msra.mxu0 %v11294
  %11447 = vmatprep.subr.bf16.mxu0 %v11291
  %11448 = vmatpush1.bf16.msra.mxu0 %v11290
  %11449 = vmatprep.subr.bf16.mxu0 0
  %11450 = vmatpush2.bf16.msra.mxu0 0
  %11451 = vmatprep.subr.bf16.mxu0 0
  %11452 = vmatpush2.bf16.msra.mxu0 0
  %11453 = vmatprep.subr.bf16.mxu0 0
  %11454 = vmatpush2.bf16.msra.mxu0 0
  %11455 = vmatprep.subr.bf16.mxu0 0
  %11456 = vmatpush2.bf16.msra.mxu0 0
  %11457 = vmatprep.subr.bf16.mxu0 0
  %11458 = vmatpush2.bf16.msra.mxu0 0
  %11459 = vmatprep.subr.bf16.mxu0 0
  %11460 = vmatpush2.bf16.msra.mxu0 0
  %11461 = vmatprep.subr.bf16.mxu0 0
  %11462 = vmatpush2.bf16.msra.mxu0 0
  %11463 = vmatprep.subr.bf16.mxu0 0
  %11464 = vmatpush2.bf16.msra.mxu0 0
  %11465 = vmatprep.mubr.bf16.mxu0 0
  %11466 = vmatmul.mubr.bf16.gmra.mxu0 %v8625
  %v11467 = vpop.f32.mrf.mxu0
  %v11468 = vadd.f32 %v11183, %v11467
  %v11469 = vpop.f32.mrf.mxu0
  %v11470 = vadd.f32 %v11187, %v11469
  %v11471 = vpop.f32.mrf.mxu0
  %v11472 = vadd.f32 %v11183, %v11471
  %v11473 = vpop.f32.mrf.mxu0
  %v11474 = vadd.f32 %v11187, %v11473
  %11475 = vmatprep.mubr.bf16.mxu0 0
  %11476 = vmatmul.mubr.bf16.gmra.mxu0 %v8626
  %v11477 = vpop.f32.mrf.mxu0
  %v11478 = vadd.f32 %v11183, %v11477
  %v11479 = vpop.f32.mrf.mxu0
  %v11480 = vadd.f32 %v11187, %v11479
  %v11481 = vpop.f32.mrf.mxu0
  %v11482 = vadd.f32 %v11183, %v11481
  %v11483 = vpop.f32.mrf.mxu0
  %v11484 = vadd.f32 %v11187, %v11483
  %11485 = vmatprep.mubr.bf16.mxu0 0
  %11486 = vmatmul.mubr.bf16.gmra.mxu0 %v8627
  %v11487 = vpop.f32.mrf.mxu0
  %v11488 = vadd.f32 %v11183, %v11487
  %v11489 = vpop.f32.mrf.mxu0
  %v11490 = vadd.f32 %v11187, %v11489
  %v11491 = vpop.f32.mrf.mxu0
  %v11492 = vadd.f32 %v11183, %v11491
  %v11493 = vpop.f32.mrf.mxu0
  %v11494 = vadd.f32 %v11187, %v11493
  %11495 = vmatprep.mubr.bf16.mxu0 0
  %11496 = vmatmul.mubr.bf16.gmra.mxu0 %v8628
  %v11497 = vpop.f32.mrf.mxu0
  %v11498 = vadd.f32 %v11183, %v11497
  %v11499 = vpop.f32.mrf.mxu0
  %v11500 = vadd.f32 %v11187, %v11499
  %v11501 = vpop.f32.mrf.mxu0
  %v11502 = vadd.f32 %v11183, %v11501
  %v11503 = vpop.f32.mrf.mxu0
  %v11504 = vadd.f32 %v11187, %v11503
  %11505 = vmatprep.mubr.bf16.mxu0 0
  %11506 = vmatmul.mubr.bf16.gmra.mxu0 %v8629
  %v11507 = vpop.f32.mrf.mxu0
  %v11508 = vadd.f32 %v11183, %v11507
  %v11509 = vpop.f32.mrf.mxu0
  %v11510 = vadd.f32 %v11187, %v11509
  %v11511 = vpop.f32.mrf.mxu0
  %v11512 = vpop.f32.mrf.mxu0
  %11513 = vdwg.mxu0
  %v11514 = vmax.f32 %v11387, 0.0
  %v11515 = vmax.f32 %v11389, 0.0
  %v11516 = vmax.f32 %v11468, 0.0
  %v11517 = vmax.f32 %v11470, 0.0
  %v11518 = vmax.f32 %v11391, 0.0
  %v11519 = vmax.f32 %v11393, 0.0
  %v11520 = vmax.f32 %v11472, 0.0
  %v11521 = vmax.f32 %v11474, 0.0
  %v11522 = vmax.f32 %v11397, 0.0
  %v11523 = vmax.f32 %v11399, 0.0
  %v11524 = vmax.f32 %v11478, 0.0
  %v11525 = vmax.f32 %v11480, 0.0
  %v11526 = vmax.f32 %v11401, 0.0
  %v11527 = vmax.f32 %v11403, 0.0
  %v11528 = vmax.f32 %v11482, 0.0
  %v11529 = vmax.f32 %v11484, 0.0
  %v11530 = vmax.f32 %v11407, 0.0
  %v11531 = vmax.f32 %v11409, 0.0
  %v11532 = vmax.f32 %v11488, 0.0
  %v11533 = vmax.f32 %v11490, 0.0
  %v11534 = vmax.f32 %v11411, 0.0
  %v11535 = vmax.f32 %v11413, 0.0
  %v11536 = vmax.f32 %v11492, 0.0
  %v11537 = vmax.f32 %v11494, 0.0
  %v11538 = vmax.f32 %v11417, 0.0
  %v11539 = vmax.f32 %v11419, 0.0
  %v11540 = vmax.f32 %v11498, 0.0
  %v11541 = vmax.f32 %v11500, 0.0
  %v11542 = vmax.f32 %v11421, 0.0
  %v11543 = vmax.f32 %v11423, 0.0
  %v11544 = vmax.f32 %v11502, 0.0
  %v11545 = vmax.f32 %v11504, 0.0
  %v11546 = vmax.f32 %v11427, 0.0
  %v11547 = vmax.f32 %v11429, 0.0
  %v11548 = vmax.f32 %v11508, 0.0
  %v11549 = vmax.f32 %v11510, 0.0
  %v11550 = vpack.c.bf16 %v11518, %v11514
  %v11551 = vpack.c.bf16 %v11519, %v11515
  %v11552 = vpack.c.bf16 %v11520, %v11516
  %v11553 = vpack.c.bf16 %v11521, %v11517
  %v11554 = vpack.c.bf16 %v11526, %v11522
  %v11555 = vpack.c.bf16 %v11527, %v11523
  %v11556 = vpack.c.bf16 %v11528, %v11524
  %v11557 = vpack.c.bf16 %v11529, %v11525
  %v11558 = vpack.c.bf16 %v11534, %v11530
  %v11559 = vpack.c.bf16 %v11535, %v11531
  %v11560 = vpack.c.bf16 %v11536, %v11532
  %v11561 = vpack.c.bf16 %v11537, %v11533
  %v11562 = vpack.c.bf16 %v11542, %v11538
  %v11563 = vpack.c.bf16 %v11543, %v11539
  %v11564 = vpack.c.bf16 %v11544, %v11540
  %v11565 = vpack.c.bf16 %v11545, %v11541
  %v11566 = vpack.c.bf16 %v11546, %v11546
  %v11567 = vpack.c.bf16 %v11547, %v11547
  %v11568 = vpack.c.bf16 %v11548, %v11548
  %v11569 = vpack.c.bf16 %v11549, %v11549
  %v11570 = vld [vmem:[%s9064 + $0x300] sm:$0xf]
  %v11571 = vld [vmem:[%s9064 + $0x304] sm:$0xf]
  %v11572 = vld [vmem:[%s9064 + $0x308] sm:$0xf]
  %v11573 = vld [vmem:[%s9064 + $0x30c] sm:$0xf]
  %v11574 = vld [vmem:[%s9064 + $0x310] sm:$0xf]
  %v11575 = vld [vmem:[%s9064 + $0x314] sm:$0xf]
  %v11576 = vld [vmem:[%s9064 + $0x318] sm:$0xf]
  %v11577 = vld [vmem:[%s9064 + $0x31c] sm:$0xf]
  %v11578 = vld [vmem:[%s9064 + $0x320] sm:$0xf]
  %v11579 = vld [vmem:[%s9064 + $0x324] sm:$0xf]
  %v11580 = vld [vmem:[%s9064 + $0x328] sm:$0xf]
  %v11581 = vld [vmem:[%s9064 + $0x32c] sm:$0xf]
  %v11582 = vld [vmem:[%s9064 + $0x330] sm:$0xf]
  %v11583 = vld [vmem:[%s9064 + $0x334] sm:$0xf]
  %v11584 = vld [vmem:[%s9064 + $0x338] sm:$0xf]
  %v11585 = vld [vmem:[%s9064 + $0x33c] sm:$0xf]
  %v11586 = vld [vmem:[%s9064 + $0x340] sm:$0xf]
  %v11587 = vld [vmem:[%s9064 + $0x344] sm:$0xf]
  %v11588 = vld [vmem:[%s9064 + $0x348] sm:$0xf]
  %v11589 = vld [vmem:[%s9064 + $0x34c] sm:$0xf]
  %v11590 = vld [vmem:[%s9064 + $0x350] sm:$0xf]
  %v11591 = vld [vmem:[%s9064 + $0x354] sm:$0xf]
  %v11592 = vld [vmem:[%s9064 + $0x358] sm:$0xf]
  %v11593 = vld [vmem:[%s9064 + $0x35c] sm:$0xf]
  %v11594 = vld [vmem:[%s9064 + $0x360] sm:$0xf]
  %v11595 = vld [vmem:[%s9064 + $0x364] sm:$0xf]
  %v11596 = vld [vmem:[%s9064 + $0x368] sm:$0xf]
  %v11597 = vld [vmem:[%s9064 + $0x36c] sm:$0xf]
  %v11598 = vld [vmem:[%s9064 + $0x370] sm:$0xf]
  %v11599 = vld [vmem:[%s9064 + $0x374] sm:$0xf]
  %v11600 = vld [vmem:[%s9064 + $0x378] sm:$0xf]
  %v11601 = vld [vmem:[%s9064 + $0x37c] sm:$0xf]
  %v11602 = vld [vmem:[%s9064 + $0x380] sm:$0xf]
  %v11603 = vld [vmem:[%s9064 + $0x384] sm:$0xf]
  %v11604 = vld [vmem:[%s9064 + $0x388] sm:$0xf]
  %v11605 = vld [vmem:[%s9064 + $0x38c] sm:$0xf]
  %v11606 = vld [vmem:[%s9064 + $0x390] sm:$0xf]
  %v11607 = vld [vmem:[%s9064 + $0x394] sm:$0xf]
  %v11608 = vld [vmem:[%s9064 + $0x398] sm:$0xf]
  %v11609 = vld [vmem:[%s9064 + $0x39c] sm:$0xf]
  %v11610 = vld [vmem:[%s9064 + $0x3a0] sm:$0xf]
  %v11611 = vld [vmem:[%s9064 + $0x3a4] sm:$0xf]
  %v11612 = vld [vmem:[%s9064 + $0x3a8] sm:$0xf]
  %v11613 = vld [vmem:[%s9064 + $0x3ac] sm:$0xf]
  %v11614 = vld [vmem:[%s9064 + $0x3b0] sm:$0xf]
  %v11615 = vld [vmem:[%s9064 + $0x3b4] sm:$0xf]
  %v11616 = vld [vmem:[%s9064 + $0x3b8] sm:$0xf]
  %v11617 = vld [vmem:[%s9064 + $0x3bc] sm:$0xf]
  %v11618 = vld [vmem:[%s9064 + $0x3c0] sm:$0xf]
  %v11619 = vld [vmem:[%s9064 + $0x3c4] sm:$0xf]
  %v11620 = vld [vmem:[%s9064 + $0x3c8] sm:$0xf]
  %v11621 = vld [vmem:[%s9064 + $0x3cc] sm:$0xf]
  %v11622 = vld [vmem:[%s9064 + $0x3d0] sm:$0xf]
  %v11623 = vld [vmem:[%s9064 + $0x3d4] sm:$0xf]
  %v11624 = vld [vmem:[%s9064 + $0x3d8] sm:$0xf]
  %v11625 = vld [vmem:[%s9064 + $0x3dc] sm:$0xf]
  %v11626 = vld [vmem:[%s9064 + $0x3e0] sm:$0xf]
  %v11627 = vld [vmem:[%s9064 + $0x3e4] sm:$0xf]
  %v11628 = vld [vmem:[%s9064 + $0x3e8] sm:$0xf]
  %v11629 = vld [vmem:[%s9064 + $0x3ec] sm:$0xf]
  %v11630 = vld [vmem:[%s9064 + $0x3f0] sm:$0xf]
  %v11631 = vld [vmem:[%s9064 + $0x3f4] sm:$0xf]
  %v11632 = vld [vmem:[%s9064 + $0x3f8] sm:$0xf]
  %v11633 = vld [vmem:[%s9064 + $0x3fc] sm:$0xf]
  %v11698 = vunpack.c.l.b16 %v11570
  %v11699 = vunpack.c.l.b16 %v11571
  %v11700 = vunpack.c.l.b16 %v11572
  %v11701 = vunpack.c.l.b16 %v11573
  %v11702 = vunpack.c.l.b16 %v11574
  %v11703 = vunpack.c.l.b16 %v11575
  %v11704 = vunpack.c.l.b16 %v11576
  %v11705 = vunpack.c.l.b16 %v11577
  %v11706 = vunpack.c.l.b16 %v11578
  %v11707 = vunpack.c.l.b16 %v11579
  %v11708 = vunpack.c.l.b16 %v11580
  %v11709 = vunpack.c.l.b16 %v11581
  %v11710 = vunpack.c.l.b16 %v11582
  %v11711 = vunpack.c.l.b16 %v11583
  %v11712 = vunpack.c.l.b16 %v11584
  %v11713 = vunpack.c.l.b16 %v11585
  %v11714 = vunpack.c.l.b16 %v11586
  %v11715 = vunpack.c.l.b16 %v11587
  %v11716 = vunpack.c.l.b16 %v11588
  %v11717 = vunpack.c.l.b16 %v11589
  %v11718 = vunpack.c.l.b16 %v11590
  %v11719 = vunpack.c.l.b16 %v11591
  %v11720 = vunpack.c.l.b16 %v11592
  %v11721 = vunpack.c.l.b16 %v11593
  %v11722 = vunpack.c.l.b16 %v11594
  %v11723 = vunpack.c.l.b16 %v11595
  %v11724 = vunpack.c.l.b16 %v11596
  %v11725 = vunpack.c.l.b16 %v11597
  %v11726 = vunpack.c.l.b16 %v11598
  %v11727 = vunpack.c.l.b16 %v11599
  %v11728 = vunpack.c.l.b16 %v11600
  %v11729 = vunpack.c.l.b16 %v11601
  %v11730 = vunpack.c.l.b16 %v11602
  %v11731 = vunpack.c.l.b16 %v11603
  %v11732 = vunpack.c.l.b16 %v11604
  %v11733 = vunpack.c.l.b16 %v11605
  %v11734 = vunpack.c.l.b16 %v11606
  %v11735 = vunpack.c.l.b16 %v11607
  %v11736 = vunpack.c.l.b16 %v11608
  %v11737 = vunpack.c.l.b16 %v11609
  %v11738 = vunpack.c.l.b16 %v11610
  %v11739 = vunpack.c.l.b16 %v11611
  %v11740 = vunpack.c.l.b16 %v11612
  %v11741 = vunpack.c.l.b16 %v11613
  %v11742 = vunpack.c.l.b16 %v11614
  %v11743 = vunpack.c.l.b16 %v11615
  %v11744 = vunpack.c.l.b16 %v11616
  %v11745 = vunpack.c.l.b16 %v11617
  %v11746 = vunpack.c.l.b16 %v11618
  %v11747 = vunpack.c.l.b16 %v11619
  %v11748 = vunpack.c.l.b16 %v11620
  %v11749 = vunpack.c.l.b16 %v11621
  %v11750 = vunpack.c.l.b16 %v11622
  %v11751 = vunpack.c.l.b16 %v11623
  %v11752 = vunpack.c.l.b16 %v11624
  %v11753 = vunpack.c.l.b16 %v11625
  %v11754 = vunpack.c.l.b16 %v11626
  %v11755 = vunpack.c.l.b16 %v11627
  %v11756 = vunpack.c.l.b16 %v11628
  %v11757 = vunpack.c.l.b16 %v11629
  %v11758 = vunpack.c.l.b16 %v11630
  %v11759 = vunpack.c.l.b16 %v11631
  %v11760 = vunpack.c.l.b16 %v11632
  %v11761 = vunpack.c.l.b16 %v11633
  %v11762 = vpack.c.b16 %v11699, %v11698
  %v11763 = vpack.c.b16 %v11701, %v11700
  %v11764 = vpack.c.b16 %v11703, %v11702
  %v11765 = vpack.c.b16 %v11705, %v11704
  %v11766 = vpack.c.b16 %v11707, %v11706
  %v11767 = vpack.c.b16 %v11709, %v11708
  %v11768 = vpack.c.b16 %v11711, %v11710
  %v11769 = vpack.c.b16 %v11713, %v11712
  %v11770 = vpack.c.b16 %v11715, %v11714
  %v11771 = vpack.c.b16 %v11717, %v11716
  %v11772 = vpack.c.b16 %v11719, %v11718
  %v11773 = vpack.c.b16 %v11721, %v11720
  %v11774 = vpack.c.b16 %v11723, %v11722
  %v11775 = vpack.c.b16 %v11725, %v11724
  %v11776 = vpack.c.b16 %v11727, %v11726
  %v11777 = vpack.c.b16 %v11729, %v11728
  %v11778 = vpack.c.b16 %v11731, %v11730
  %v11779 = vpack.c.b16 %v11733, %v11732
  %v11780 = vpack.c.b16 %v11735, %v11734
  %v11781 = vpack.c.b16 %v11737, %v11736
  %v11782 = vpack.c.b16 %v11739, %v11738
  %v11783 = vpack.c.b16 %v11741, %v11740
  %v11784 = vpack.c.b16 %v11743, %v11742
  %v11785 = vpack.c.b16 %v11745, %v11744
  %v11786 = vpack.c.b16 %v11747, %v11746
  %v11787 = vpack.c.b16 %v11749, %v11748
  %v11788 = vpack.c.b16 %v11751, %v11750
  %v11789 = vpack.c.b16 %v11753, %v11752
  %v11790 = vpack.c.b16 %v11755, %v11754
  %v11791 = vpack.c.b16 %v11757, %v11756
  %v11792 = vpack.c.b16 %v11759, %v11758
  %v11793 = vpack.c.b16 %v11761, %v11760
  %11826 = vmatprep.subr.bf16.mxu0 0
  %11827 = vmatpush1.bf16.msra.mxu0 %v11769
  %11828 = vmatprep.subr.bf16.mxu0 0
  %11829 = vmatpush1.bf16.msra.mxu0 %v11768
  %11830 = vmatprep.subr.bf16.mxu0 0
  %11831 = vmatpush1.bf16.msra.mxu0 %v11767
  %11832 = vmatprep.subr.bf16.mxu0 0
  %11833 = vmatpush1.bf16.msra.mxu0 %v11766
  %11834 = vmatprep.subr.bf16.mxu0 0
  %11835 = vmatpush1.bf16.msra.mxu0 %v11765
  %11836 = vmatprep.subr.bf16.mxu0 0
  %11837 = vmatpush1.bf16.msra.mxu0 %v11764
  %11838 = vmatprep.subr.bf16.mxu0 0
  %11839 = vmatpush1.bf16.msra.mxu0 %v11763
  %11840 = vmatprep.subr.bf16.mxu0 0
  %11841 = vmatpush1.bf16.msra.mxu0 %v11762
  %11842 = vmatprep.subr.bf16.mxu0 0
  %11843 = vmatpush2.bf16.msra.mxu0 %v11777
  %11844 = vmatprep.subr.bf16.mxu0 0
  %11845 = vmatpush2.bf16.msra.mxu0 %v11776
  %11846 = vmatprep.subr.bf16.mxu0 0
  %11847 = vmatpush2.bf16.msra.mxu0 %v11775
  %11848 = vmatprep.subr.bf16.mxu0 0
  %11849 = vmatpush2.bf16.msra.mxu0 %v11774
  %11850 = vmatprep.subr.bf16.mxu0 0
  %11851 = vmatpush2.bf16.msra.mxu0 %v11773
  %11852 = vmatprep.subr.bf16.mxu0 0
  %11853 = vmatpush2.bf16.msra.mxu0 %v11772
  %11854 = vmatprep.subr.bf16.mxu0 0
  %11855 = vmatpush2.bf16.msra.mxu0 %v11771
  %11856 = vmatprep.subr.bf16.mxu0 0
  %11857 = vmatpush2.bf16.msra.mxu0 %v11770
  %11858 = vmatprep.mubr.bf16.mxu0 %v11551
  %11859 = vmatmul.mubr.bf16.gmra.mxu0 %v11550
  %v11860 = vpop.f32.mrf.mxu0
  %v11861 = vadd.f32 0.0, %v11860
  %v11862 = vpop.f32.mrf.mxu0
  %v11863 = vpop.f32.mrf.mxu0
  %v11864 = vadd.f32 0.0, %v11863
  %v11865 = vpop.f32.mrf.mxu0
  %11866 = vmatprep.mubr.bf16.mxu0 %v11555
  %11867 = vmatmul.mubr.bf16.gmra.mxu0 %v11554
  %v11868 = vpop.f32.mrf.mxu0
  %v11869 = vadd.f32 0.0, %v11868
  %v11870 = vpop.f32.mrf.mxu0
  %v11871 = vpop.f32.mrf.mxu0
  %v11872 = vadd.f32 0.0, %v11871
  %v11873 = vpop.f32.mrf.mxu0
  %11874 = vmatprep.mubr.bf16.mxu0 %v11559
  %11875 = vmatmul.mubr.bf16.gmra.mxu0 %v11558
  %v11876 = vpop.f32.mrf.mxu0
  %v11877 = vadd.f32 0.0, %v11876
  %v11878 = vpop.f32.mrf.mxu0
  %v11879 = vpop.f32.mrf.mxu0
  %v11880 = vadd.f32 0.0, %v11879
  %v11881 = vpop.f32.mrf.mxu0
  %11882 = vmatprep.mubr.bf16.mxu0 %v11563
  %11883 = vmatmul.mubr.bf16.gmra.mxu0 %v11562
  %v11884 = vpop.f32.mrf.mxu0
  %v11885 = vadd.f32 0.0, %v11884
  %v11886 = vpop.f32.mrf.mxu0
  %v11887 = vpop.f32.mrf.mxu0
  %v11888 = vadd.f32 0.0, %v11887
  %v11889 = vpop.f32.mrf.mxu0
  %11890 = vmatprep.mubr.bf16.mxu0 %v11567
  %11891 = vmatmul.mubr.bf16.gmra.mxu0 %v11566
  %v11892 = vpop.f32.mrf.mxu0
  %v11893 = vadd.f32 0.0, %v11892
  %v11894 = vpop.f32.mrf.mxu0
  %v11895 = vpop.f32.mrf.mxu0
  %v11896 = vpop.f32.mrf.mxu0
  %11897 = vdwg.mxu0
  %11898 = vmatprep.subr.bf16.mxu0 0
  %11899 = vmatpush1.bf16.msra.mxu0 %v11785
  %11900 = vmatprep.subr.bf16.mxu0 0
  %11901 = vmatpush1.bf16.msra.mxu0 %v11784
  %11902 = vmatprep.subr.bf16.mxu0 0
  %11903 = vmatpush1.bf16.msra.mxu0 %v11783
  %11904 = vmatprep.subr.bf16.mxu0 0
  %11905 = vmatpush1.bf16.msra.mxu0 %v11782
  %11906 = vmatprep.subr.bf16.mxu0 0
  %11907 = vmatpush1.bf16.msra.mxu0 %v11781
  %11908 = vmatprep.subr.bf16.mxu0 0
  %11909 = vmatpush1.bf16.msra.mxu0 %v11780
  %11910 = vmatprep.subr.bf16.mxu0 0
  %11911 = vmatpush1.bf16.msra.mxu0 %v11779
  %11912 = vmatprep.subr.bf16.mxu0 0
  %11913 = vmatpush1.bf16.msra.mxu0 %v11778
  %11914 = vmatprep.subr.bf16.mxu0 0
  %11915 = vmatpush2.bf16.msra.mxu0 %v11793
  %11916 = vmatprep.subr.bf16.mxu0 0
  %11917 = vmatpush2.bf16.msra.mxu0 %v11792
  %11918 = vmatprep.subr.bf16.mxu0 0
  %11919 = vmatpush2.bf16.msra.mxu0 %v11791
  %11920 = vmatprep.subr.bf16.mxu0 0
  %11921 = vmatpush2.bf16.msra.mxu0 %v11790
  %11922 = vmatprep.subr.bf16.mxu0 0
  %11923 = vmatpush2.bf16.msra.mxu0 %v11789
  %11924 = vmatprep.subr.bf16.mxu0 0
  %11925 = vmatpush2.bf16.msra.mxu0 %v11788
  %11926 = vmatprep.subr.bf16.mxu0 0
  %11927 = vmatpush2.bf16.msra.mxu0 %v11787
  %11928 = vmatprep.subr.bf16.mxu0 0
  %11929 = vmatpush2.bf16.msra.mxu0 %v11786
  %11930 = vmatprep.mubr.bf16.mxu0 %v11553
  %11931 = vmatmul.mubr.bf16.gmra.mxu0 %v11552
  %v11932 = vpop.f32.mrf.mxu0
  %v11933 = vadd.f32 %v11861, %v11932
  %v11934 = vpop.f32.mrf.mxu0
  %v11935 = vpop.f32.mrf.mxu0
  %v11936 = vadd.f32 %v11864, %v11935
  %v11937 = vpop.f32.mrf.mxu0
  %11938 = vmatprep.mubr.bf16.mxu0 %v11557
  %11939 = vmatmul.mubr.bf16.gmra.mxu0 %v11556
  %v11940 = vpop.f32.mrf.mxu0
  %v11941 = vadd.f32 %v11869, %v11940
  %v11942 = vpop.f32.mrf.mxu0
  %v11943 = vpop.f32.mrf.mxu0
  %v11944 = vadd.f32 %v11872, %v11943
  %v11945 = vpop.f32.mrf.mxu0
  %11946 = vmatprep.mubr.bf16.mxu0 %v11561
  %11947 = vmatmul.mubr.bf16.gmra.mxu0 %v11560
  %v11948 = vpop.f32.mrf.mxu0
  %v11949 = vadd.f32 %v11877, %v11948
  %v11950 = vpop.f32.mrf.mxu0
  %v11951 = vpop.f32.mrf.mxu0
  %v11952 = vadd.f32 %v11880, %v11951
  %v11953 = vpop.f32.mrf.mxu0
  %11954 = vmatprep.mubr.bf16.mxu0 %v11565
  %11955 = vmatmul.mubr.bf16.gmra.mxu0 %v11564
  %v11956 = vpop.f32.mrf.mxu0
  %v11957 = vadd.f32 %v11885, %v11956
  %v11958 = vpop.f32.mrf.mxu0
  %v11959 = vpop.f32.mrf.mxu0
  %v11960 = vadd.f32 %v11888, %v11959
  %v11961 = vpop.f32.mrf.mxu0
  %11962 = vmatprep.mubr.bf16.mxu0 %v11569
  %11963 = vmatmul.mubr.bf16.gmra.mxu0 %v11568
  %v11964 = vpop.f32.mrf.mxu0
  %v11965 = vadd.f32 %v11893, %v11964
  %v11966 = vpop.f32.mrf.mxu0
  %v11967 = vpop.f32.mrf.mxu0
  %v11968 = vpop.f32.mrf.mxu0
  %11969 = vdwg.mxu0
  %v11970 = vadd.f32 %v11129, %v11933
  %v11971 = vadd.f32 %v11130, %v11936
  %v11972 = vadd.f32 %v11131, %v11941
  %v11973 = vadd.f32 %v11132, %v11944
  %v11974 = vadd.f32 %v11133, %v11949
  %v11975 = vadd.f32 %v11134, %v11952
  %v11976 = vadd.f32 %v11135, %v11957
  %v11977 = vadd.f32 %v11136, %v11960
  %v11978 = vadd.f32 %v11137, %v11965
  %v11979 = vadd.f32 %v8616, %v11970
  %v11980 = vadd.f32 %v8617, %v11971
  %v11981 = vadd.f32 %v8618, %v11972
  %v11982 = vadd.f32 %v8619, %v11973
  %v11983 = vadd.f32 %v8620, %v11974
  %v11984 = vadd.f32 %v8621, %v11975
  %v11985 = vadd.f32 %v8622, %v11976
  %v11986 = vadd.f32 %v8623, %v11977
  %v11987 = vadd.f32 %v8624, %v11978
  %s11988 = scalar_lea.vmem %s49, 1
  %v11989 = vld [vmem:[%s11988] sm:$0x1]
  %v11991 = vlaneseq
  %v11992 = vshrl.u32 %v11991, 7
  %v11993 = vsub.s32 0, %v11992
  %v11994 = vrot.slane %v11989, %v11993
  %v11996 = vadd.f32 %v11979, %v11994
  %v11997 = vadd.f32 %v11980, %v11994
  %v11998 = vadd.f32 %v11981, %v11994
  %v11999 = vadd.f32 %v11982, %v11994
  %v12000 = vadd.f32 %v11983, %v11994
  %v12001 = vadd.f32 %v11984, %v11994
  %v12002 = vadd.f32 %v11985, %v11994
  %v12003 = vadd.f32 %v11986, %v11994
  %v12004 = vadd.f32 %v11987, %v11994
  %s12005 = scalar_lea.vmem %s51, 1
  %v12006 = vld [vmem:[%s12005] sm:$0x1]
  %s12007 = scalar_lea.vmem %s53, 1
  %v12008 = vld [vmem:[%s12007] sm:$0x1]
  %12009 = vadd.xlane.f32.xlu0 %v11996
  %v12010 = vpop.xlane.xlu0 %12009
  %12011 = vadd.xlane.f32.xlu0 %v11997
  %v12012 = vpop.xlane.xlu0 %12011
  %12013 = vadd.xlane.f32.xlu0 %v11998
  %v12014 = vpop.xlane.xlu0 %12013
  %12015 = vadd.xlane.f32.xlu0 %v11999
  %v12016 = vpop.xlane.xlu0 %12015
  %12017 = vadd.xlane.f32.xlu0 %v12000
  %v12018 = vpop.xlane.xlu0 %12017
  %12019 = vadd.xlane.f32.xlu0 %v12001
  %v12020 = vpop.xlane.xlu0 %12019
  %12021 = vadd.xlane.f32.xlu0 %v12002
  %v12022 = vpop.xlane.xlu0 %12021
  %12023 = vadd.xlane.f32.xlu0 %v12003
  %v12024 = vpop.xlane.xlu0 %12023
  %12025 = vadd.xlane.f32.xlu0 %v12004
  %v12026 = vpop.xlane.xlu0 %12025
  %v12027 = vmul.f32 %v12010, %v3538
  %v12028 = vmul.f32 %v12012, %v3538
  %v12029 = vmul.f32 %v12014, %v3538
  %v12030 = vmul.f32 %v12016, %v3538
  %v12031 = vmul.f32 %v12018, %v3538
  %v12032 = vmul.f32 %v12020, %v3538
  %v12033 = vmul.f32 %v12022, %v3538
  %v12034 = vmul.f32 %v12024, %v3538
  %v12035 = vmul.f32 %v12026, %v3538
  %v12036 = vsub.f32 %v11996, %v12027
  %v12037 = vsub.f32 %v11997, %v12028
  %v12038 = vsub.f32 %v11998, %v12029
  %v12039 = vsub.f32 %v11999, %v12030
  %v12040 = vsub.f32 %v12000, %v12031
  %v12041 = vsub.f32 %v12001, %v12032
  %v12042 = vsub.f32 %v12002, %v12033
  %v12043 = vsub.f32 %v12003, %v12034
  %v12044 = vsub.f32 %v12004, %v12035
  %v12045 = vmul.f32 %v12036, %v12036
  %v12046 = vmul.f32 %v12037, %v12037
  %v12047 = vmul.f32 %v12038, %v12038
  %v12048 = vmul.f32 %v12039, %v12039
  %v12049 = vmul.f32 %v12040, %v12040
  %v12050 = vmul.f32 %v12041, %v12041
  %v12051 = vmul.f32 %v12042, %v12042
  %v12052 = vmul.f32 %v12043, %v12043
  %v12053 = vmul.f32 %v12044, %v12044
  %12054 = vadd.xlane.f32.xlu0 %v12045
  %v12055 = vpop.xlane.xlu0 %12054
  %12056 = vadd.xlane.f32.xlu0 %v12046
  %v12057 = vpop.xlane.xlu0 %12056
  %12058 = vadd.xlane.f32.xlu0 %v12047
  %v12059 = vpop.xlane.xlu0 %12058
  %12060 = vadd.xlane.f32.xlu0 %v12048
  %v12061 = vpop.xlane.xlu0 %12060
  %12062 = vadd.xlane.f32.xlu0 %v12049
  %v12063 = vpop.xlane.xlu0 %12062
  %12064 = vadd.xlane.f32.xlu0 %v12050
  %v12065 = vpop.xlane.xlu0 %12064
  %12066 = vadd.xlane.f32.xlu0 %v12051
  %v12067 = vpop.xlane.xlu0 %12066
  %12068 = vadd.xlane.f32.xlu0 %v12052
  %v12069 = vpop.xlane.xlu0 %12068
  %12070 = vadd.xlane.f32.xlu0 %v12053
  %v12071 = vpop.xlane.xlu0 %12070
  %v12072 = vmul.f32 %v12055, %v3538
  %v12073 = vmul.f32 %v12057, %v3538
  %v12074 = vmul.f32 %v12059, %v3538
  %v12075 = vmul.f32 %v12061, %v3538
  %v12076 = vmul.f32 %v12063, %v3538
  %v12077 = vmul.f32 %v12065, %v3538
  %v12078 = vmul.f32 %v12067, %v3538
  %v12079 = vmul.f32 %v12069, %v3538
  %v12080 = vmul.f32 %v12071, %v3538
  %v12081 = vadd.f32 %v12072, 1e-05
  %v12082 = vadd.f32 %v12073, 1e-05
  %v12083 = vadd.f32 %v12074, 1e-05
  %v12084 = vadd.f32 %v12075, 1e-05
  %v12085 = vadd.f32 %v12076, 1e-05
  %v12086 = vadd.f32 %v12077, 1e-05
  %v12087 = vadd.f32 %v12078, 1e-05
  %v12088 = vadd.f32 %v12079, 1e-05
  %v12089 = vadd.f32 %v12080, 1e-05
  %v12090 = vrsqrt.pop %v12081
  %v12091 = vrsqrt.pop %v12082
  %v12092 = vrsqrt.pop %v12083
  %v12093 = vrsqrt.pop %v12084
  %v12094 = vrsqrt.pop %v12085
  %v12095 = vrsqrt.pop %v12086
  %v12096 = vrsqrt.pop %v12087
  %v12097 = vrsqrt.pop %v12088
  %v12098 = vrsqrt.pop %v12089
  %v12099 = vmul.f32 %v12036, %v12090
  %v12100 = vmul.f32 %v12037, %v12091
  %v12101 = vmul.f32 %v12038, %v12092
  %v12102 = vmul.f32 %v12039, %v12093
  %v12103 = vmul.f32 %v12040, %v12094
  %v12104 = vmul.f32 %v12041, %v12095
  %v12105 = vmul.f32 %v12042, %v12096
  %v12106 = vmul.f32 %v12043, %v12097
  %v12107 = vmul.f32 %v12044, %v12098
  %v12109 = vlaneseq
  %v12110 = vshrl.u32 %v12109, 7
  %v12111 = vsub.s32 0, %v12110
  %v12112 = vrot.slane %v12006, %v12111
  %v12114 = vmul.f32 %v12099, %v12112
  %v12115 = vmul.f32 %v12100, %v12112
  %v12116 = vmul.f32 %v12101, %v12112
  %v12117 = vmul.f32 %v12102, %v12112
  %v12118 = vmul.f32 %v12103, %v12112
  %v12119 = vmul.f32 %v12104, %v12112
  %v12120 = vmul.f32 %v12105, %v12112
  %v12121 = vmul.f32 %v12106, %v12112
  %v12122 = vmul.f32 %v12107, %v12112
  %v12124 = vlaneseq
  %v12125 = vshrl.u32 %v12124, 7
  %v12126 = vsub.s32 0, %v12125
  %v12127 = vrot.slane %v12008, %v12126
  %v12129 = vadd.f32 %v12114, %v12127
  %v12130 = vadd.f32 %v12115, %v12127
  %v12131 = vadd.f32 %v12116, %v12127
  %v12132 = vadd.f32 %v12117, %v12127
  %v12133 = vadd.f32 %v12118, %v12127
  %v12134 = vadd.f32 %v12119, %v12127
  %v12135 = vadd.f32 %v12120, %v12127
  %v12136 = vadd.f32 %v12121, %v12127
  %v12137 = vadd.f32 %v12122, %v12127
  %v12138 = vadd.f32 %v12129, %v636
  %v12139 = vadd.f32 %v12130, %v637
  %v12140 = vadd.f32 %v12131, %v638
  %v12141 = vadd.f32 %v12132, %v639
  %v12142 = vadd.f32 %v12133, %v640
  %v12143 = vadd.f32 %v12134, %v641
  %v12144 = vadd.f32 %v12135, %v642
  %v12145 = vadd.f32 %v12136, %v643
  %v12146 = vadd.f32 %v12137, %v644
  %v12147 = vld [vmem:[%s55] sm:$0x1]
  %v12149 = vlaneseq
  %v12150 = vshrl.u32 %v12149, 7
  %v12151 = vsub.s32 0, %v12150
  %v12152 = vrot.slane %v12147, %v12151
  %v12154 = vmul.f32 %v12138, %v12152
  %v12155 = vmul.f32 %v12139, %v12152
  %v12156 = vmul.f32 %v12140, %v12152
  %v12157 = vmul.f32 %v12141, %v12152
  %v12158 = vmul.f32 %v12142, %v12152
  %v12159 = vmul.f32 %v12143, %v12152
  %v12160 = vmul.f32 %v12144, %v12152
  %v12161 = vmul.f32 %v12145, %v12152
  %v12162 = vmul.f32 %v12146, %v12152
  %12163 = vadd.xlane.f32.xlu0 %v12154
  %v12164 = vpop.xlane.xlu0 %12163
  %12165 = vadd.xlane.f32.xlu0 %v12155
  %v12166 = vpop.xlane.xlu0 %12165
  %12167 = vadd.xlane.f32.xlu0 %v12156
  %v12168 = vpop.xlane.xlu0 %12167
  %12169 = vadd.xlane.f32.xlu0 %v12157
  %v12170 = vpop.xlane.xlu0 %12169
  %12171 = vadd.xlane.f32.xlu0 %v12158
  %v12172 = vpop.xlane.xlu0 %12171
  %12173 = vadd.xlane.f32.xlu0 %v12159
  %v12174 = vpop.xlane.xlu0 %12173
  %12175 = vadd.xlane.f32.xlu0 %v12160
  %v12176 = vpop.xlane.xlu0 %12175
  %12177 = vadd.xlane.f32.xlu0 %v12161
  %v12178 = vpop.xlane.xlu0 %12177
  %12179 = vadd.xlane.f32.xlu0 %v12162
  %v12180 = vpop.xlane.xlu0 %12179
  %v12181 = vld [vmem:[#allocation3] sm:$0x1]
  %v12183 = vlaneseq
  %v12184 = vshrl.u32 %v12183, 7
  %v12185 = vsub.s32 0, %v12184
  %v12186 = vrot.slane %v12181, %v12185
  %v12188 = vadd.f32 %v12164, %v12186
  %v12189 = vadd.f32 %v12166, %v12186
  %v12190 = vadd.f32 %v12168, %v12186
  %v12191 = vadd.f32 %v12170, %v12186
  %v12192 = vadd.f32 %v12172, %v12186
  %v12193 = vadd.f32 %v12174, %v12186
  %v12194 = vadd.f32 %v12176, %v12186
  %v12195 = vadd.f32 %v12178, %v12186
  %v12196 = vadd.f32 %v12180, %v12186
  %vm12197 = vcmask 7168
  %v12198 = vsel %vm12197, %v12188, -inf
  %v12199 = vsel %vm12197, %v12189, -inf
  %v12200 = vsel %vm12197, %v12190, -inf
  %v12201 = vsel %vm12197, %v12191, -inf
  %v12202 = vsel %vm12197, %v12192, -inf
  %v12203 = vmax.f32 %v12198, %v12202
  %v12204 = vsel %vm12197, %v12193, -inf
  %v12205 = vmax.f32 %v12199, %v12204
  %v12206 = vsel %vm12197, %v12194, -inf
  %v12207 = vmax.f32 %v12200, %v12206
  %v12208 = vsel %vm12197, %v12195, -inf
  %v12209 = vmax.f32 %v12201, %v12208
  %v12210 = vsel %vm12197, %v12196, -inf
  %v12211 = vmax.f32 %v12203, %v12210
  %v12212 = vmax.f32 %v12211, %v12205
  %v12213 = vmax.f32 %v12207, %v12209
  %v12214 = vmax.f32 %v12212, %v12213
  %v12215 = vrot.slane %v12214, 4
  %v12216 = vmax.f32 %v12214, %v12215
  %v12217 = vrot.slane %v12216, 2
  %v12218 = vmax.f32 %v12216, %v12217
  %v12219 = vrot.slane %v12218, 1
  %v12220 = vmax.f32 %v12218, %v12219
  %v12221 = vsub.f32 %v12188, %v12220
  %v12222 = vsub.f32 %v12189, %v12220
  %v12223 = vsub.f32 %v12190, %v12220
  %v12224 = vsub.f32 %v12191, %v12220
  %v12225 = vsub.f32 %v12192, %v12220
  %v12226 = vsub.f32 %v12193, %v12220
  %v12227 = vsub.f32 %v12194, %v12220
  %v12228 = vsub.f32 %v12195, %v12220
  %v12229 = vsub.f32 %v12196, %v12220
  %v12230 = vmul.f32 %v12221, 1.442695
  %v12231 = vpow.pop %v12230
  %v12232 = vmul.f32 %v12222, 1.442695
  %v12233 = vpow.pop %v12232
  %v12234 = vmul.f32 %v12223, 1.442695
  %v12235 = vpow.pop %v12234
  %v12236 = vmul.f32 %v12224, 1.442695
  %v12237 = vpow.pop %v12236
  %v12238 = vmul.f32 %v12225, 1.442695
  %v12239 = vpow.pop %v12238
  %v12240 = vmul.f32 %v12226, 1.442695
  %v12241 = vpow.pop %v12240
  %v12242 = vmul.f32 %v12227, 1.442695
  %v12243 = vpow.pop %v12242
  %v12244 = vmul.f32 %v12228, 1.442695
  %v12245 = vpow.pop %v12244
  %v12246 = vmul.f32 %v12229, 1.442695
  %v12247 = vpow.pop %v12246
  %v12248 = vld [vmem:[%s13] sm:$0x3]
  %12250 = vset.pattern.permute.xlu0 0
  %12251 = vperm.xlu0 %12250, %v12231
  %v12252 = vpop.permute.xlu0 %12251
  %12255 = vset.pattern.permute.xlu0 0
  %12256 = vperm.xlu0 %12255, %v12233
  %v12257 = vpop.permute.xlu0 %12256
  %12260 = vset.pattern.permute.xlu0 0
  %12261 = vperm.xlu0 %12260, %v12235
  %v12262 = vpop.permute.xlu0 %12261
  %12265 = vset.pattern.permute.xlu0 0
  %12266 = vperm.xlu0 %12265, %v12237
  %v12267 = vpop.permute.xlu0 %12266
  %12270 = vset.pattern.permute.xlu0 0
  %12271 = vperm.xlu0 %12270, %v12239
  %v12272 = vpop.permute.xlu0 %12271
  %12275 = vset.pattern.permute.xlu0 0
  %12276 = vperm.xlu0 %12275, %v12241
  %v12277 = vpop.permute.xlu0 %12276
  %12280 = vset.pattern.permute.xlu0 0
  %12281 = vperm.xlu0 %12280, %v12243
  %v12282 = vpop.permute.xlu0 %12281
  %12285 = vset.pattern.permute.xlu0 0
  %12286 = vperm.xlu0 %12285, %v12245
  %v12287 = vpop.permute.xlu0 %12286
  %12290 = vset.pattern.permute.xlu0 0
  %12291 = vperm.xlu0 %12290, %v12247
  %v12292 = vpop.permute.xlu0 %12291
  %v12294 = vmul.f32 %v12138, %v12252
  %v12295 = vmul.f32 %v12139, %v12257
  %v12296 = vmul.f32 %v12140, %v12262
  %v12297 = vmul.f32 %v12141, %v12267
  %v12298 = vmul.f32 %v12142, %v12272
  %v12299 = vmul.f32 %v12143, %v12277
  %v12300 = vmul.f32 %v12144, %v12282
  %v12301 = vmul.f32 %v12145, %v12287
  %v12302 = vmul.f32 %v12146, %v12292
  %v12304 = vsel %vm2663, %v12248, 0
  %12306 = vmatprep.subr.mxu0 0.0
  %12307 = vmatpush1.msra.mxu0 0.0
  %12308 = vmatprep.subr.mxu0 0.0
  %12309 = vmatpush1.msra.mxu0 0.0
  %12310 = vmatprep.subr.mxu0 0.0
  %12311 = vmatpush1.msra.mxu0 0.0
  %12312 = vmatprep.subr.mxu0 0.0
  %12313 = vmatpush1.msra.mxu0 0.0
  %12314 = vmatprep.subr.mxu0 0.0
  %12315 = vmatpush1.msra.mxu0 0.0
  %12316 = vmatprep.subr.mxu0 0.0
  %12317 = vmatpush1.msra.mxu0 0.0
  %12318 = vmatprep.subr.mxu0 0.0
  %12319 = vmatpush1.msra.mxu0 0.0
  %12320 = vmatprep.subr.mxu0 0.0
  %12321 = vmatpush1.msra.mxu0 %v12302
  %12322 = vmatprep.subr.mxu0 0.0
  %12323 = vmatpush1.msra.mxu0 %v12301
  %12324 = vmatprep.subr.mxu0 0.0
  %12325 = vmatpush1.msra.mxu0 %v12300
  %12326 = vmatprep.subr.mxu0 0.0
  %12327 = vmatpush1.msra.mxu0 %v12299
  %12328 = vmatprep.subr.mxu0 0.0
  %12329 = vmatpush1.msra.mxu0 %v12298
  %12330 = vmatprep.subr.mxu0 0.0
  %12331 = vmatpush1.msra.mxu0 %v12297
  %12332 = vmatprep.subr.mxu0 0.0
  %12333 = vmatpush1.msra.mxu0 %v12296
  %12334 = vmatprep.subr.mxu0 0.0
  %12335 = vmatpush1.msra.mxu0 %v12295
  %12336 = vmatprep.subr.mxu0 0.0
  %12337 = vmatpush1.msra.mxu0 %v12294
  %12338 = vmatprep.subr.mxu0 0.0
  %12339 = vmatpush2.msra.mxu0 0.0
  %12340 = vmatprep.subr.mxu0 0.0
  %12341 = vmatpush2.msra.mxu0 0.0
  %12342 = vmatprep.subr.mxu0 0.0
  %12343 = vmatpush2.msra.mxu0 0.0
  %12344 = vmatprep.subr.mxu0 0.0
  %12345 = vmatpush2.msra.mxu0 0.0
  %12346 = vmatprep.subr.mxu0 0.0
  %12347 = vmatpush2.msra.mxu0 0.0
  %12348 = vmatprep.subr.mxu0 0.0
  %12349 = vmatpush2.msra.mxu0 0.0
  %12350 = vmatprep.subr.mxu0 0.0
  %12351 = vmatpush2.msra.mxu0 0.0
  %12352 = vmatprep.subr.mxu0 0.0
  %12353 = vmatpush2.msra.mxu0 0.0
  %12354 = vmatprep.subr.mxu0 0.0
  %12355 = vmatpush2.msra.mxu0 0.0
  %12356 = vmatprep.subr.mxu0 0.0
  %12357 = vmatpush2.msra.mxu0 0.0
  %12358 = vmatprep.subr.mxu0 0.0
  %12359 = vmatpush2.msra.mxu0 0.0
  %12360 = vmatprep.subr.mxu0 0.0
  %12361 = vmatpush2.msra.mxu0 0.0
  %12362 = vmatprep.subr.mxu0 0.0
  %12363 = vmatpush2.msra.mxu0 0.0
  %12364 = vmatprep.subr.mxu0 0.0
  %12365 = vmatpush2.msra.mxu0 0.0
  %12366 = vmatprep.subr.mxu0 0.0
  %12367 = vmatpush2.msra.mxu0 0.0
  %12368 = vmatprep.subr.mxu0 0.0
  %12369 = vmatpush2.msra.mxu0 0.0
  %12370 = vmatprep.mubr.f32.mxu0 0.0
  %12371 = vmatmul.mubr.f32.gmra.mxu0 %v12304
  %v12372 = vpop.f32.mrf.mxu0
  %v12373 = vadd.f32 0.0, %v12372
  %v12374 = vpop.f32.mrf.mxu0
  %12375 = vdwg.mxu0
  %12376 = vmatprep.subr.mxu0 0.0
  %12377 = vmatpush1.msra.mxu0 0.0
  %12378 = vmatprep.subr.mxu0 0.0
  %12379 = vmatpush1.msra.mxu0 0.0
  %12380 = vmatprep.subr.mxu0 0.0
  %12381 = vmatpush1.msra.mxu0 0.0
  %12382 = vmatprep.subr.mxu0 0.0
  %12383 = vmatpush1.msra.mxu0 0.0
  %12384 = vmatprep.subr.mxu0 0.0
  %12385 = vmatpush1.msra.mxu0 0.0
  %12386 = vmatprep.subr.mxu0 0.0
  %12387 = vmatpush1.msra.mxu0 0.0
  %12388 = vmatprep.subr.mxu0 0.0
  %12389 = vmatpush1.msra.mxu0 0.0
  %12390 = vmatprep.subr.mxu0 0.0
  %12391 = vmatpush1.msra.mxu0 %v12247
  %12392 = vmatprep.subr.mxu0 0.0
  %12393 = vmatpush1.msra.mxu0 %v12245
  %12394 = vmatprep.subr.mxu0 0.0
  %12395 = vmatpush1.msra.mxu0 %v12243
  %12396 = vmatprep.subr.mxu0 0.0
  %12397 = vmatpush1.msra.mxu0 %v12241
  %12398 = vmatprep.subr.mxu0 0.0
  %12399 = vmatpush1.msra.mxu0 %v12239
  %12400 = vmatprep.subr.mxu0 0.0
  %12401 = vmatpush1.msra.mxu0 %v12237
  %12402 = vmatprep.subr.mxu0 0.0
  %12403 = vmatpush1.msra.mxu0 %v12235
  %12404 = vmatprep.subr.mxu0 0.0
  %12405 = vmatpush1.msra.mxu0 %v12233
  %12406 = vmatprep.subr.mxu0 0.0
  %12407 = vmatpush1.msra.mxu0 %v12231
  %12408 = vmatprep.subr.mxu0 0.0
  %12409 = vmatpush2.msra.mxu0 0.0
  %12410 = vmatprep.subr.mxu0 0.0
  %12411 = vmatpush2.msra.mxu0 0.0
  %12412 = vmatprep.subr.mxu0 0.0
  %12413 = vmatpush2.msra.mxu0 0.0
  %12414 = vmatprep.subr.mxu0 0.0
  %12415 = vmatpush2.msra.mxu0 0.0
  %12416 = vmatprep.subr.mxu0 0.0
  %12417 = vmatpush2.msra.mxu0 0.0
  %12418 = vmatprep.subr.mxu0 0.0
  %12419 = vmatpush2.msra.mxu0 0.0
  %12420 = vmatprep.subr.mxu0 0.0
  %12421 = vmatpush2.msra.mxu0 0.0
  %12422 = vmatprep.subr.mxu0 0.0
  %12423 = vmatpush2.msra.mxu0 0.0
  %12424 = vmatprep.subr.mxu0 0.0
  %12425 = vmatpush2.msra.mxu0 0.0
  %12426 = vmatprep.subr.mxu0 0.0
  %12427 = vmatpush2.msra.mxu0 0.0
  %12428 = vmatprep.subr.mxu0 0.0
  %12429 = vmatpush2.msra.mxu0 0.0
  %12430 = vmatprep.subr.mxu0 0.0
  %12431 = vmatpush2.msra.mxu0 0.0
  %12432 = vmatprep.subr.mxu0 0.0
  %12433 = vmatpush2.msra.mxu0 0.0
  %12434 = vmatprep.subr.mxu0 0.0
  %12435 = vmatpush2.msra.mxu0 0.0
  %12436 = vmatprep.subr.mxu0 0.0
  %12437 = vmatpush2.msra.mxu0 0.0
  %12438 = vmatprep.subr.mxu0 0.0
  %12439 = vmatpush2.msra.mxu0 0.0
  %12440 = vmatprep.mubr.f32.mxu0 0.0
  %12441 = vmatmul.mubr.f32.gmra.mxu0 %v12304
  %v12442 = vpop.f32.mrf.mxu0
  %v12443 = vadd.f32 0.0, %v12442
  %v12444 = vpop.f32.mrf.mxu0
  %12445 = vdwg.mxu0
  %12447 = vset.pattern.permute.xlu0 0
  %12448 = vperm.xlu0 %12447, %v12443
  %v12449 = vpop.permute.xlu0 %12448
  %v12451 = vrcp.pop %v12449
  %v12452 = vmul.f32 %v12373, %v12451
  %v12453 = vld [vmem:[%s59] sm:$0x1]
  %v12455 = vlaneseq
  %v12456 = vshrl.u32 %v12455, 7
  %v12457 = vsub.s32 0, %v12456
  %v12458 = vrot.slane %v12453, %v12457
  %v12460 = vmul.f32 %v12452, %v12458
  %vm12461 = vcmask 1041408
  %v12462 = vsel %vm12461, %v12460, 0.0
  %12463 = vadd.xlane.f32.xlu0 %v12462
  %v12464 = vpop.xlane.xlu0 %12463
  %v12465 = vld [vmem:[#allocation4] sm:$0x1]
  %v12467 = vlaneseq
  %v12468 = vshrl.u32 %v12467, 7
  %v12469 = vsub.s32 0, %v12468
  %v12470 = vrot.slane %v12465, %v12469
  %v12472 = vadd.f32 %v12464, %v12470
  %vm12473 = vcmp.gt.f32.partialorder %v12472, 0.0
  %v12474 = vmul.f32 %v12472, 0.1
  %v12475 = vsel %vm12473, %v12472, %v12474
  %vm12476 = vcmask 1024
  %12477 = vst.msk [vmem:[%s63] sm:$0x3] %vm12476, %v12475
  // Predicated region
  $region126: #{graphforecast_pred.1} parent=0 // pred_check
    _
  $region127: #{graphforecast_pred.1} parent=0 // pred_check_branch
    %12479 = sbr.rel (0) target = $region129
  $region128: #{graphforecast_pred.1} parent=0 // pred_region
    _
  $region129: #{graphforecast_pred.1} parent=0 // pred_fallthru
    _
  // Predicated region
  $region130: #{graphforecast_pred.1} parent=0 // pred_check
    _
  $region131: #{graphforecast_pred.1} parent=0 // pred_check_branch
    %12481 = sbr.rel (0) target = $region133
  $region132: #{graphforecast_pred.1} parent=0 // pred_region
    _
  $region133: #{graphforecast_pred.1} parent=0 // pred_fallthru
    _

</llo_original>
